<compile_context>
chip_gen: v7x
topology: tpu7x:2x2x1
jax: 0.10.0
libtpu: 0.0.40
codegen_flags: <defaults>
</compile_context>

<pallas_src>
import functools

import jax
import jax.numpy as jnp
from jax.experimental import pallas as pl
from jax.experimental.pallas import tpu as pltpu


def perceiver_attention_kernel(
    x_ref,        # (bt, Nx, D)   media
    lat_ref,      # (bt, Nl, D)   latents
    ln_ref,       # (4, D)        [lnm_w, lnm_b, lnl_w, lnl_b]
    wqkv_ref,     # (D, 3*inner)  [Wq*scale | Wk | Wv]  bf16
    wo_ref,       # (inner, D)                          bf16
    o_ref,        # (bt, Nl, D)
    head_out_ref,  # scratch (bt*Nl, inner) bf16
    *,
    heads: int,
    dim_head: int,
    eps: float,
):
  bt, n_media, dim = x_ref.shape
  n_lat = lat_ref.shape[1]
  inner = heads * dim_head

  x = x_ref[...].astype(jnp.float32)      # (bt, Nx, D)
  lat = lat_ref[...].astype(jnp.float32)  # (bt, Nl, D)
  ln = ln_ref[...].astype(jnp.float32)    # (4, D)

  def layernorm(z, w, b):
    # Single-pass statistics: var = E[z^2] - mu^2 (one sweep over z instead of
    # mean followed by mean((z - mu)^2)).
    mu = jnp.mean(z, axis=-1, keepdims=True)
    ms = jnp.mean(z * z, axis=-1, keepdims=True)
    var = ms - mu * mu
    return (z - mu) * jax.lax.rsqrt(var + eps) * w + b

  xn = layernorm(x, ln[0:1, :], ln[1:2, :])
  latn = layernorm(lat, ln[2:3, :], ln[3:4, :])

  # bf16 operands into the MXU, f32 accumulation.
  xn_flat = xn.astype(jnp.bfloat16).reshape(bt * n_media, dim)
  latn_flat = latn.astype(jnp.bfloat16).reshape(bt * n_lat, dim)

  w_all = wqkv_ref[...]  # (D, 3*inner) bf16
  # latents -> [q*scale | k_lat | v_lat]; media -> [k_med | v_med].
  # Wk|Wv are stored once: the media projection reuses a static lane slice.
  # Cast to bf16 right after the dot so the big temporaries are half-size.
  lat_proj = jnp.dot(latn_flat, w_all,
                     preferred_element_type=jnp.float32).astype(jnp.bfloat16)
  x_proj = jnp.dot(xn_flat, w_all[:, inner:],
                   preferred_element_type=jnp.float32).astype(jnp.bfloat16)

  # NOTE: these reshapes are free relayouts when Nl / Nx are multiples of 8.
  q_all = lat_proj[:, :inner].reshape(bt, n_lat, inner)
  k_lat = lat_proj[:, inner:2 * inner].reshape(bt, n_lat, inner)
  v_lat = lat_proj[:, 2 * inner:].reshape(bt, n_lat, inner)
  k_med = x_proj[:, :inner].reshape(bt, n_media, inner)
  v_med = x_proj[:, inner:].reshape(bt, n_media, inner)

  # Per-head attention; `heads` is a small static constant -> unrolled.
  # Online softmax over the two key groups, so logits are never concatenated
  # / re-split on the lane axis.
  for h in range(heads):
    sl = slice(h * dim_head, (h + 1) * dim_head)
    qh = q_all[:, :, sl]                                        # (bt, Nl, DH)
    sim_med = jnp.einsum('bqd,bkd->bqk', qh, k_med[:, :, sl],
                         preferred_element_type=jnp.float32)    # (bt, Nl, Nx)
    sim_lat = jnp.einsum('bqd,bkd->bqk', qh, k_lat[:, :, sl],
                         preferred_element_type=jnp.float32)    # (bt, Nl, Nl)
    m = jnp.maximum(jnp.max(sim_med, axis=-1, keepdims=True),
                    jnp.max(sim_lat, axis=-1, keepdims=True))
    p_med = jnp.exp(sim_med - m)
    p_lat = jnp.exp(sim_lat - m)
    denom = (jnp.sum(p_med, axis=-1, keepdims=True) +
             jnp.sum(p_lat, axis=-1, keepdims=True))
    inv = pl.reciprocal(denom, approx=True)                     # EUP slot
    oh = jnp.einsum('bqk,bkd->bqd', (p_med * inv).astype(jnp.bfloat16),
                    v_med[:, :, sl], preferred_element_type=jnp.float32)
    oh = oh + jnp.einsum('bqk,bkd->bqd', (p_lat * inv).astype(jnp.bfloat16),
                         v_lat[:, :, sl], preferred_element_type=jnp.float32)
    # Assemble head outputs in a VMEM scratch slab at a static lane slice
    # (no H-way lane concat, bounded vreg live ranges).
    head_out_ref[:, sl] = oh.reshape(bt * n_lat, dim_head).astype(jnp.bfloat16)

  # Single dense output projection over all heads.
  o = jnp.dot(head_out_ref[...], wo_ref[...],
              preferred_element_type=jnp.float32)               # (bt*Nl, D)
  o_ref[...] = o.reshape(bt, n_lat, dim).astype(o_ref.dtype)


def _device_hints():
  """(has_two_tensorcores, vmem_capacity_bytes) with safe fallbacks."""
  kind = ''
  try:
    kind = (jax.devices()[0].device_kind or '').lower()
  except Exception:
    pass
  two_tc = ('v7' in kind) or ('7x' in kind)
  try:
    vmem_cap = int(pltpu.get_tpu_info().vmem_capacity_bytes)
  except Exception:
    vmem_cap = (64 if two_tc else 128) * 1024 * 1024
  return two_tc, vmem_cap


def _pick_bt_tile(bt_total, n_media, n_lat, dim, inner, vmem_budget,
                  prefer_even_grid):
  """Largest divisor of bt_total whose rough VMEM footprint fits the budget.

  On two-TensorCore parts (v7x) prefer an even grid length so the 'parallel'
  axis shards evenly; on single-TC parts the grid is a serial loop, so take
  the biggest tile even if that means grid == 1.
  """
  def tile_bytes(t):
    act = 2 * t * (n_media + 2 * n_lat) * dim * 4          # x/lat/out, 2 bufs
    tmp = t * (3 * n_lat + 2 * n_media) * inner * 4        # projection temps
    tmp += 2 * t * n_lat * (n_media + n_lat) * 4           # live attn probs
    tmp += t * n_lat * inner * 2                           # head-out scratch
    return act + tmp

  weight_bytes = (3 * inner * dim + inner * dim) * 2 + 4 * dim * 4
  divisors = [t for t in range(1, bt_total + 1) if bt_total % t == 0]
  fits = [t for t in divisors if weight_bytes + tile_bytes(t) <= vmem_budget]
  tile = max(fits) if fits else 1
  if prefer_even_grid and bt_total > 1:
    even = [t for t in divisors if t <= tile and (bt_total // t) % 2 == 0]
    if even:
      tile = max(even)
    else:
      smaller = [t for t in divisors if t < tile]
      if smaller:
        tile = max(smaller)
  return tile


def perceiver_attention(x, latents, params, *, heads, dim_head, eps=1e-5,
                        bt_tile=None):
  """x: (B, T, Nx, D), latents: (B, T, Nl, D) -> (B, T, Nl, D)."""
  B, T, Nx, D = x.shape
  Nl = latents.shape[2]
  BT = B * T
  inner = heads * dim_head

  ln_packed, wqkv, wo = params

  xf = x.reshape(BT, Nx, D)
  lf = latents.reshape(BT, Nl, D)

  two_tc, vmem_cap = _device_hints()
  vmem_limit = max(32 * 1024 * 1024,
                   min(int(0.75 * vmem_cap), 100 * 1024 * 1024))
  if bt_tile is None:
    bt_tile = _pick_bt_tile(BT, Nx, Nl, D, inner,
                            vmem_budget=int(0.7 * vmem_limit),
                            prefer_even_grid=two_tc)
  assert BT % bt_tile == 0, (BT, bt_tile)

  kernel = functools.partial(
      perceiver_attention_kernel, heads=heads, dim_head=dim_head, eps=eps)

  def _build(single_buffer_consts):
    def const_spec(shape):
      zeros = (0,) * len(shape)
      if single_buffer_consts:
        # Constant block index -> the second pipeline buffer is pure waste.
        return pl.BlockSpec(shape, lambda i, z=zeros: z,
                            pipeline_mode=pl.Buffered(1))
      return pl.BlockSpec(shape, lambda i, z=zeros: z)

    in_specs = [
        pl.BlockSpec((bt_tile, Nx, D), lambda i: (i, 0, 0)),
        pl.BlockSpec((bt_tile, Nl, D), lambda i: (i, 0, 0)),
        const_spec((4, D)),
        const_spec((D, 3 * inner)),
        const_spec((inner, D)),
    ]
    return pl.pallas_call(
        kernel,
        out_shape=jax.ShapeDtypeStruct((BT, Nl, D), x.dtype),
        grid=(BT // bt_tile,),
        in_specs=in_specs,
        out_specs=pl.BlockSpec((bt_tile, Nl, D), lambda i: (i, 0, 0)),
        scratch_shapes=[pltpu.VMEM((bt_tile * Nl, inner), jnp.bfloat16)],
        compiler_params=pltpu.CompilerParams(
            dimension_semantics=("parallel",),
            vmem_limit_bytes=vmem_limit),
    )

  out = None
  last_err = None
  # Try single-buffered constant weights first; fall back to default
  # double-buffering if this JAX/Mosaic build rejects pipeline_mode.
  for single in (True, False):
    try:
      out = jax.block_until_ready(_build(single)(xf, lf, ln_packed, wqkv, wo))
      break
    except Exception as e:  # noqa: BLE001 - fallback path must stay runnable
      last_err = e
      out = None
  if out is None:
    raise last_err
  return out.reshape(B, T, Nl, D)


def make_params(key, dim, heads, dim_head):
  """Deterministic synthetic params matching PerceiverAttention.__init__."""
  inner = heads * dim_head
  k1, k2, k3 = jax.random.split(key, 3)
  # LayerNorm defaults: weight = 1, bias = 0.
  lnm_w = jnp.ones((1, dim), jnp.float32)
  lnm_b = jnp.zeros((1, dim), jnp.float32)
  lnl_w = jnp.ones((1, dim), jnp.float32)
  lnl_b = jnp.zeros((1, dim), jnp.float32)
  # Linear weights stored as (in, out); bias-free, as in the module.
  wq = jax.random.normal(k1, (dim, inner), jnp.float32) * (dim ** -0.5)
  wkv = jax.random.normal(k2, (dim, 2 * inner), jnp.float32) * (dim ** -0.5)
  wo = jax.random.normal(k3, (inner, dim), jnp.float32) * (inner ** -0.5)
  wk = wkv[:, :inner]
  wv = wkv[:, inner:]
  scale = dim_head ** (-0.5)
  # Packed kernel params: LN params in one (4, D) slab; fused, pre-scaled,
  # bf16 [Wq*scale | Wk | Wv] (Wk/Wv stored once); bf16 Wout. Columns stay
  # head-major (index = h*dim_head + d), matching 'b t n (h d) -> b h t n d'.
  ln_packed = jnp.concatenate([lnm_w, lnm_b, lnl_w, lnl_b], axis=0)
  wqkv_f = jnp.concatenate([wq * scale, wk, wv], axis=1).astype(jnp.bfloat16)
  wo_b = wo.astype(jnp.bfloat16)
  kernel_params = (ln_packed, wqkv_f, wo_b)
  raw = (lnm_w, lnm_b, lnl_w, lnl_b, wq, wk, wv, wo)
  return kernel_params, raw


def reference(x, latents, raw, heads, dim_head, eps=1e-5):
  """Pure-JAX f32 reference reproducing the PyTorch forward."""
  lnm_w, lnm_b, lnl_w, lnl_b, wq, wk, wv, wo = raw

  def ln(z, w, b):
    mu = jnp.mean(z, -1, keepdims=True)
    var = jnp.mean(jnp.square(z - mu), -1, keepdims=True)
    return (z - mu) / jnp.sqrt(var + eps) * w[0] + b[0]

  xn = ln(x, lnm_w, lnm_b)
  latn = ln(latents, lnl_w, lnl_b)
  q = latn @ wq
  kv_in = jnp.concatenate([xn, latn], axis=-2)
  k = kv_in @ wk
  v = kv_in @ wv

  def split_heads(t):
    b, tt, n, _ = t.shape
    return t.reshape(b, tt, n, heads, dim_head).transpose(0, 3, 1, 2, 4)

  qh = split_heads(q) * (dim_head ** -0.5)
  kh = split_heads(k)
  vh = split_heads(v)
  sim = jnp.einsum('bhtid,bhtjd->bhtij', qh, kh)
  sim = sim - jnp.max(sim, axis=-1, keepdims=True)
  attn = jax.nn.softmax(sim, axis=-1)
  out = jnp.einsum('bhtij,bhtjd->bhtid', attn, vh)       # (b, h, t, n, d)
  out = out.transpose(0, 2, 3, 1, 4)                     # (b, t, n, h, d)
  out = out.reshape(out.shape[0], out.shape[1], out.shape[2], heads * dim_head)
  return out @ wo


if __name__ == "__main__":
  DIM, DIM_HEAD, HEADS = 32, 8, 4
  B, T, N_MEDIA, N_LAT = 2, 2, 16, 8

  key = jax.random.PRNGKey(0)
  kx, kl, kp = jax.random.split(key, 3)
  x = jax.random.normal(kx, (B, T, N_MEDIA, DIM), jnp.float32)
  latents = jax.random.normal(kl, (B, T, N_LAT, DIM), jnp.float32)

  params, raw = make_params(kp, DIM, HEADS, DIM_HEAD)

  out = perceiver_attention(x, latents, params, heads=HEADS, dim_head=DIM_HEAD)
  out = jax.block_until_ready(out)

  ref = reference(x, latents, raw, HEADS, DIM_HEAD)
  assert out.shape == (B, T, N_LAT, DIM)
  max_err = float(jnp.max(jnp.abs(out - ref)))
  # bf16 MXU operands (f32 accumulation) -> slightly looser tolerance.
  assert jnp.allclose(out, ref, atol=3e-2, rtol=3e-2), max_err

  print("KERNEL_OK")
</pallas_src>

<mosaic_0001>
module attributes {stable_mosaic.version = 11 : i64} {
  func.func @perceiver_attention_kernel(%arg0: i32, %arg1: memref<4x16x32xf32, #tpu.memory_space<vmem>>, %arg2: memref<4x8x32xf32, #tpu.memory_space<vmem>>, %arg3: memref<4x32xf32, #tpu.memory_space<vmem>>, %arg4: memref<32x96xbf16, #tpu.memory_space<vmem>>, %arg5: memref<32x32xbf16, #tpu.memory_space<vmem>>, %arg6: memref<4x8x32xf32, #tpu.memory_space<vmem>>, %arg7: memref<32x32xbf16, #tpu.memory_space<vmem>>) attributes {dimension_semantics = [#tpu.dimension_semantics<parallel>], iteration_bounds = array<i64: 1>, scalar_prefetch = 0 : i64, scratch_operands = 1 : i64, tpu.core_type = #tpu.core_type<tc>, window_params = [{transform_indices = @transform_0, window_bounds = array<i64: 4, 16, 32>}, {transform_indices = @transform_1, window_bounds = array<i64: 4, 8, 32>}, {pipeline_mode = #tpu.pipeline_mode<synchronous>, transform_indices = @transform_2, window_bounds = array<i64: 4, 32>}, {pipeline_mode = #tpu.pipeline_mode<synchronous>, transform_indices = @transform_3, window_bounds = array<i64: 32, 96>}, {pipeline_mode = #tpu.pipeline_mode<synchronous>, transform_indices = @transform_4, window_bounds = array<i64: 32, 32>}, {transform_indices = @transform_5, window_bounds = array<i64: 4, 8, 32>}]} {
    %c0 = arith.constant 0 : index
    %c0_0 = arith.constant 0 : index
    %c0_1 = arith.constant 0 : index
    %0 = vector.load %arg1[%c0, %c0_0, %c0_1] : memref<4x16x32xf32, #tpu.memory_space<vmem>>, vector<4x16x32xf32>
    %c0_2 = arith.constant 0 : index
    %c0_3 = arith.constant 0 : index
    %c0_4 = arith.constant 0 : index
    %1 = vector.load %arg2[%c0_2, %c0_3, %c0_4] : memref<4x8x32xf32, #tpu.memory_space<vmem>>, vector<4x8x32xf32>
    %c0_5 = arith.constant 0 : index
    %c0_6 = arith.constant 0 : index
    %2 = vector.load %arg3[%c0_5, %c0_6] : memref<4x32xf32, #tpu.memory_space<vmem>>, vector<4x32xf32>
    %3 = vector.extract_strided_slice %2 {offsets = [0, 0], sizes = [1, 32], strides = [1, 1]} : vector<4x32xf32> to vector<1x32xf32>
    %4 = vector.extract_strided_slice %2 {offsets = [1, 0], sizes = [1, 32], strides = [1, 1]} : vector<4x32xf32> to vector<1x32xf32>
    %cst = arith.constant dense<0.000000e+00> : vector<4x16xf32>
    %5 = vector.multi_reduction <add>, %0, %cst [2] : vector<4x16x32xf32> to vector<4x16xf32>
    %6 = vector.shape_cast %5 : vector<4x16xf32> to vector<4x16x1xf32>
    %cst_7 = arith.constant 3.200000e+01 : f32
    %7 = vector.broadcast %cst_7 : f32 to vector<4x16x1xf32>
    %8 = arith.divf %6, %7 : vector<4x16x1xf32>
    %9 = arith.mulf %0, %0 : vector<4x16x32xf32>
    %cst_8 = arith.constant dense<0.000000e+00> : vector<4x16xf32>
    %10 = vector.multi_reduction <add>, %9, %cst_8 [2] : vector<4x16x32xf32> to vector<4x16xf32>
    %11 = vector.shape_cast %10 : vector<4x16xf32> to vector<4x16x1xf32>
    %cst_9 = arith.constant 3.200000e+01 : f32
    %12 = vector.broadcast %cst_9 : f32 to vector<4x16x1xf32>
    %13 = arith.divf %11, %12 : vector<4x16x1xf32>
    %14 = arith.mulf %8, %8 : vector<4x16x1xf32>
    %15 = arith.subf %13, %14 : vector<4x16x1xf32>
    %16 = vector.broadcast %8 : vector<4x16x1xf32> to vector<4x16x32xf32>
    %17 = arith.subf %0, %16 : vector<4x16x32xf32>
    %cst_10 = arith.constant 9.99999974E-6 : f32
    %18 = vector.broadcast %cst_10 : f32 to vector<4x16x1xf32>
    %19 = arith.addf %15, %18 : vector<4x16x1xf32>
    %20 = math.rsqrt %19 : vector<4x16x1xf32>
    %21 = vector.broadcast %20 : vector<4x16x1xf32> to vector<4x16x32xf32>
    %22 = arith.mulf %17, %21 : vector<4x16x32xf32>
    %23 = vector.shape_cast %3 : vector<1x32xf32> to vector<1x1x32xf32>
    %24 = vector.broadcast %23 : vector<1x1x32xf32> to vector<4x16x32xf32>
    %25 = arith.mulf %22, %24 : vector<4x16x32xf32>
    %26 = vector.shape_cast %4 : vector<1x32xf32> to vector<1x1x32xf32>
    %27 = vector.broadcast %26 : vector<1x1x32xf32> to vector<4x16x32xf32>
    %28 = arith.addf %25, %27 : vector<4x16x32xf32>
    %29 = vector.extract_strided_slice %2 {offsets = [2, 0], sizes = [1, 32], strides = [1, 1]} : vector<4x32xf32> to vector<1x32xf32>
    %30 = vector.extract_strided_slice %2 {offsets = [3, 0], sizes = [1, 32], strides = [1, 1]} : vector<4x32xf32> to vector<1x32xf32>
    %cst_11 = arith.constant dense<0.000000e+00> : vector<4x8xf32>
    %31 = vector.multi_reduction <add>, %1, %cst_11 [2] : vector<4x8x32xf32> to vector<4x8xf32>
    %32 = vector.shape_cast %31 : vector<4x8xf32> to vector<4x8x1xf32>
    %cst_12 = arith.constant 3.200000e+01 : f32
    %33 = vector.broadcast %cst_12 : f32 to vector<4x8x1xf32>
    %34 = arith.divf %32, %33 : vector<4x8x1xf32>
    %35 = arith.mulf %1, %1 : vector<4x8x32xf32>
    %cst_13 = arith.constant dense<0.000000e+00> : vector<4x8xf32>
    %36 = vector.multi_reduction <add>, %35, %cst_13 [2] : vector<4x8x32xf32> to vector<4x8xf32>
    %37 = vector.shape_cast %36 : vector<4x8xf32> to vector<4x8x1xf32>
    %cst_14 = arith.constant 3.200000e+01 : f32
    %38 = vector.broadcast %cst_14 : f32 to vector<4x8x1xf32>
    %39 = arith.divf %37, %38 : vector<4x8x1xf32>
    %40 = arith.mulf %34, %34 : vector<4x8x1xf32>
    %41 = arith.subf %39, %40 : vector<4x8x1xf32>
    %42 = vector.broadcast %34 : vector<4x8x1xf32> to vector<4x8x32xf32>
    %43 = arith.subf %1, %42 : vector<4x8x32xf32>
    %cst_15 = arith.constant 9.99999974E-6 : f32
    %44 = vector.broadcast %cst_15 : f32 to vector<4x8x1xf32>
    %45 = arith.addf %41, %44 : vector<4x8x1xf32>
    %46 = math.rsqrt %45 : vector<4x8x1xf32>
    %47 = vector.broadcast %46 : vector<4x8x1xf32> to vector<4x8x32xf32>
    %48 = arith.mulf %43, %47 : vector<4x8x32xf32>
    %49 = vector.shape_cast %29 : vector<1x32xf32> to vector<1x1x32xf32>
    %50 = vector.broadcast %49 : vector<1x1x32xf32> to vector<4x8x32xf32>
    %51 = arith.mulf %48, %50 : vector<4x8x32xf32>
    %52 = vector.shape_cast %30 : vector<1x32xf32> to vector<1x1x32xf32>
    %53 = vector.broadcast %52 : vector<1x1x32xf32> to vector<4x8x32xf32>
    %54 = arith.addf %51, %53 : vector<4x8x32xf32>
    %55 = arith.truncf %28 : vector<4x16x32xf32> to vector<4x16x32xbf16>
    %56 = vector.shape_cast %55 : vector<4x16x32xbf16> to vector<64x32xbf16>
    %57 = arith.truncf %54 : vector<4x8x32xf32> to vector<4x8x32xbf16>
    %58 = vector.shape_cast %57 : vector<4x8x32xbf16> to vector<32x32xbf16>
    %c0_16 = arith.constant 0 : index
    %c0_17 = arith.constant 0 : index
    %59 = vector.load %arg4[%c0_16, %c0_17] : memref<32x96xbf16, #tpu.memory_space<vmem>>, vector<32x96xbf16>
    %cst_18 = arith.constant dense<0.000000e+00> : vector<32x96xf32>
    %60 = tpu.matmul %58, %59, %cst_18 {dimension_numbers = #tpu.dot_dimension_numbers<[1], [0], [0], [1], [0, 0, 1, 1], [], []>} : vector<32x32xbf16>, vector<32x96xbf16>, vector<32x96xf32> -> vector<32x96xf32>
    %61 = arith.truncf %60 : vector<32x96xf32> to vector<32x96xbf16>
    %62 = vector.extract_strided_slice %59 {offsets = [0, 32], sizes = [32, 64], strides = [1, 1]} : vector<32x96xbf16> to vector<32x64xbf16>
    %cst_19 = arith.constant dense<0.000000e+00> : vector<64x64xf32>
    %63 = tpu.matmul %56, %62, %cst_19 {dimension_numbers = #tpu.dot_dimension_numbers<[1], [0], [0], [1], [0, 0, 1, 1], [], []>} : vector<64x32xbf16>, vector<32x64xbf16>, vector<64x64xf32> -> vector<64x64xf32>
    %64 = arith.truncf %63 : vector<64x64xf32> to vector<64x64xbf16>
    %65 = vector.extract_strided_slice %61 {offsets = [0, 0], sizes = [32, 32], strides = [1, 1]} : vector<32x96xbf16> to vector<32x32xbf16>
    %66 = vector.shape_cast %65 : vector<32x32xbf16> to vector<4x8x32xbf16>
    %67 = vector.extract_strided_slice %61 {offsets = [0, 32], sizes = [32, 32], strides = [1, 1]} : vector<32x96xbf16> to vector<32x32xbf16>
    %68 = vector.shape_cast %67 : vector<32x32xbf16> to vector<4x8x32xbf16>
    %69 = vector.extract_strided_slice %61 {offsets = [0, 64], sizes = [32, 32], strides = [1, 1]} : vector<32x96xbf16> to vector<32x32xbf16>
    %70 = vector.shape_cast %69 : vector<32x32xbf16> to vector<4x8x32xbf16>
    %71 = vector.extract_strided_slice %64 {offsets = [0, 0], sizes = [64, 32], strides = [1, 1]} : vector<64x64xbf16> to vector<64x32xbf16>
    %72 = vector.shape_cast %71 : vector<64x32xbf16> to vector<4x16x32xbf16>
    %73 = vector.extract_strided_slice %64 {offsets = [0, 32], sizes = [64, 32], strides = [1, 1]} : vector<64x64xbf16> to vector<64x32xbf16>
    %74 = vector.shape_cast %73 : vector<64x32xbf16> to vector<4x16x32xbf16>
    %75 = vector.extract_strided_slice %66 {offsets = [0, 0, 0], sizes = [4, 8, 8], strides = [1, 1, 1]} : vector<4x8x32xbf16> to vector<4x8x8xbf16>
    %76 = vector.extract_strided_slice %72 {offsets = [0, 0, 0], sizes = [4, 16, 8], strides = [1, 1, 1]} : vector<4x16x32xbf16> to vector<4x16x8xbf16>
    "tpu.trace_start"() <{level = 10 : i32, message = "bqd,bkd->bqk"}> : () -> ()
    %cst_20 = arith.constant dense<0.000000e+00> : vector<4x8x16xf32>
    %77 = tpu.matmul %75, %76, %cst_20 {dimension_numbers = #tpu.dot_dimension_numbers<[2], [2], [1], [1], [0, 0, 0, 1, 1, 1], [0], [0]>} : vector<4x8x8xbf16>, vector<4x16x8xbf16>, vector<4x8x16xf32> -> vector<4x8x16xf32>
    "tpu.trace_stop"() : () -> ()
    %78 = vector.extract_strided_slice %68 {offsets = [0, 0, 0], sizes = [4, 8, 8], strides = [1, 1, 1]} : vector<4x8x32xbf16> to vector<4x8x8xbf16>
    "tpu.trace_start"() <{level = 10 : i32, message = "bqd,bkd->bqk"}> : () -> ()
    %cst_21 = arith.constant dense<0.000000e+00> : vector<4x8x8xf32>
    %79 = tpu.matmul %75, %78, %cst_21 {dimension_numbers = #tpu.dot_dimension_numbers<[2], [2], [1], [1], [0, 0, 0, 1, 1, 1], [0], [0]>} : vector<4x8x8xbf16>, vector<4x8x8xbf16>, vector<4x8x8xf32> -> vector<4x8x8xf32>
    "tpu.trace_stop"() : () -> ()
    %cst_22 = arith.constant dense<0xFF800000> : vector<4x8xf32>
    %80 = vector.multi_reduction <maximumf>, %77, %cst_22 [2] : vector<4x8x16xf32> to vector<4x8xf32>
    %81 = vector.shape_cast %80 : vector<4x8xf32> to vector<4x8x1xf32>
    %cst_23 = arith.constant dense<0xFF800000> : vector<4x8xf32>
    %82 = vector.multi_reduction <maximumf>, %79, %cst_23 [2] : vector<4x8x8xf32> to vector<4x8xf32>
    %83 = vector.shape_cast %82 : vector<4x8xf32> to vector<4x8x1xf32>
    %84 = arith.maximumf %81, %83 : vector<4x8x1xf32>
    %85 = vector.broadcast %84 : vector<4x8x1xf32> to vector<4x8x16xf32>
    %86 = arith.subf %77, %85 : vector<4x8x16xf32>
    %87 = math.exp %86 : vector<4x8x16xf32>
    %88 = vector.broadcast %84 : vector<4x8x1xf32> to vector<4x8x8xf32>
    %89 = arith.subf %79, %88 : vector<4x8x8xf32>
    %90 = math.exp %89 : vector<4x8x8xf32>
    %cst_24 = arith.constant dense<0.000000e+00> : vector<4x8xf32>
    %91 = vector.multi_reduction <add>, %87, %cst_24 [2] : vector<4x8x16xf32> to vector<4x8xf32>
    %92 = vector.shape_cast %91 : vector<4x8xf32> to vector<4x8x1xf32>
    %cst_25 = arith.constant dense<0.000000e+00> : vector<4x8xf32>
    %93 = vector.multi_reduction <add>, %90, %cst_25 [2] : vector<4x8x8xf32> to vector<4x8xf32>
    %94 = vector.shape_cast %93 : vector<4x8xf32> to vector<4x8x1xf32>
    %95 = arith.addf %92, %94 : vector<4x8x1xf32>
    %96 = tpu.reciprocal %95 {approx = true} : vector<4x8x1xf32> -> vector<4x8x1xf32>
    %97 = vector.broadcast %96 : vector<4x8x1xf32> to vector<4x8x16xf32>
    %98 = arith.mulf %87, %97 : vector<4x8x16xf32>
    %99 = arith.truncf %98 : vector<4x8x16xf32> to vector<4x8x16xbf16>
    %100 = vector.extract_strided_slice %74 {offsets = [0, 0, 0], sizes = [4, 16, 8], strides = [1, 1, 1]} : vector<4x16x32xbf16> to vector<4x16x8xbf16>
    "tpu.trace_start"() <{level = 10 : i32, message = "bqk,bkd->bqd"}> : () -> ()
    %cst_26 = arith.constant dense<0.000000e+00> : vector<4x8x8xf32>
    %101 = tpu.matmul %99, %100, %cst_26 {dimension_numbers = #tpu.dot_dimension_numbers<[2], [1], [1], [2], [0, 0, 0, 1, 1, 2], [0], [0]>} : vector<4x8x16xbf16>, vector<4x16x8xbf16>, vector<4x8x8xf32> -> vector<4x8x8xf32>
    "tpu.trace_stop"() : () -> ()
    %102 = vector.broadcast %96 : vector<4x8x1xf32> to vector<4x8x8xf32>
    %103 = arith.mulf %90, %102 : vector<4x8x8xf32>
    %104 = arith.truncf %103 : vector<4x8x8xf32> to vector<4x8x8xbf16>
    %105 = vector.extract_strided_slice %70 {offsets = [0, 0, 0], sizes = [4, 8, 8], strides = [1, 1, 1]} : vector<4x8x32xbf16> to vector<4x8x8xbf16>
    "tpu.trace_start"() <{level = 10 : i32, message = "bqk,bkd->bqd"}> : () -> ()
    %cst_27 = arith.constant dense<0.000000e+00> : vector<4x8x8xf32>
    %106 = tpu.matmul %104, %105, %cst_27 {dimension_numbers = #tpu.dot_dimension_numbers<[2], [1], [1], [2], [0, 0, 0, 1, 1, 2], [0], [0]>} : vector<4x8x8xbf16>, vector<4x8x8xbf16>, vector<4x8x8xf32> -> vector<4x8x8xf32>
    "tpu.trace_stop"() : () -> ()
    %107 = arith.addf %101, %106 : vector<4x8x8xf32>
    %108 = vector.shape_cast %107 : vector<4x8x8xf32> to vector<32x8xf32>
    %109 = arith.truncf %108 : vector<32x8xf32> to vector<32x8xbf16>
    %c0_28 = arith.constant 0 : index
    %c0_29 = arith.constant 0 : index
    %110 = vector.load %arg7[%c0_28, %c0_29] : memref<32x32xbf16, #tpu.memory_space<vmem>>, vector<32x8xbf16>
    tpu.vector_store %arg7[%c0_28, %c0_29], %109 {strides = array<i32>} : memref<32x32xbf16, #tpu.memory_space<vmem>>, vector<32x8xbf16>,
    %111 = vector.extract_strided_slice %66 {offsets = [0, 0, 8], sizes = [4, 8, 8], strides = [1, 1, 1]} : vector<4x8x32xbf16> to vector<4x8x8xbf16>
    %112 = vector.extract_strided_slice %72 {offsets = [0, 0, 8], sizes = [4, 16, 8], strides = [1, 1, 1]} : vector<4x16x32xbf16> to vector<4x16x8xbf16>
    "tpu.trace_start"() <{level = 10 : i32, message = "bqd,bkd->bqk"}> : () -> ()
    %cst_30 = arith.constant dense<0.000000e+00> : vector<4x8x16xf32>
    %113 = tpu.matmul %111, %112, %cst_30 {dimension_numbers = #tpu.dot_dimension_numbers<[2], [2], [1], [1], [0, 0, 0, 1, 1, 1], [0], [0]>} : vector<4x8x8xbf16>, vector<4x16x8xbf16>, vector<4x8x16xf32> -> vector<4x8x16xf32>
    "tpu.trace_stop"() : () -> ()
    %114 = vector.extract_strided_slice %68 {offsets = [0, 0, 8], sizes = [4, 8, 8], strides = [1, 1, 1]} : vector<4x8x32xbf16> to vector<4x8x8xbf16>
    "tpu.trace_start"() <{level = 10 : i32, message = "bqd,bkd->bqk"}> : () -> ()
    %cst_31 = arith.constant dense<0.000000e+00> : vector<4x8x8xf32>
    %115 = tpu.matmul %111, %114, %cst_31 {dimension_numbers = #tpu.dot_dimension_numbers<[2], [2], [1], [1], [0, 0, 0, 1, 1, 1], [0], [0]>} : vector<4x8x8xbf16>, vector<4x8x8xbf16>, vector<4x8x8xf32> -> vector<4x8x8xf32>
    "tpu.trace_stop"() : () -> ()
    %cst_32 = arith.constant dense<0xFF800000> : vector<4x8xf32>
    %116 = vector.multi_reduction <maximumf>, %113, %cst_32 [2] : vector<4x8x16xf32> to vector<4x8xf32>
    %117 = vector.shape_cast %116 : vector<4x8xf32> to vector<4x8x1xf32>
    %cst_33 = arith.constant dense<0xFF800000> : vector<4x8xf32>
    %118 = vector.multi_reduction <maximumf>, %115, %cst_33 [2] : vector<4x8x8xf32> to vector<4x8xf32>
    %119 = vector.shape_cast %118 : vector<4x8xf32> to vector<4x8x1xf32>
    %120 = arith.maximumf %117, %119 : vector<4x8x1xf32>
    %121 = vector.broadcast %120 : vector<4x8x1xf32> to vector<4x8x16xf32>
    %122 = arith.subf %113, %121 : vector<4x8x16xf32>
    %123 = math.exp %122 : vector<4x8x16xf32>
    %124 = vector.broadcast %120 : vector<4x8x1xf32> to vector<4x8x8xf32>
    %125 = arith.subf %115, %124 : vector<4x8x8xf32>
    %126 = math.exp %125 : vector<4x8x8xf32>
    %cst_34 = arith.constant dense<0.000000e+00> : vector<4x8xf32>
    %127 = vector.multi_reduction <add>, %123, %cst_34 [2] : vector<4x8x16xf32> to vector<4x8xf32>
    %128 = vector.shape_cast %127 : vector<4x8xf32> to vector<4x8x1xf32>
    %cst_35 = arith.constant dense<0.000000e+00> : vector<4x8xf32>
    %129 = vector.multi_reduction <add>, %126, %cst_35 [2] : vector<4x8x8xf32> to vector<4x8xf32>
    %130 = vector.shape_cast %129 : vector<4x8xf32> to vector<4x8x1xf32>
    %131 = arith.addf %128, %130 : vector<4x8x1xf32>
    %132 = tpu.reciprocal %131 {approx = true} : vector<4x8x1xf32> -> vector<4x8x1xf32>
    %133 = vector.broadcast %132 : vector<4x8x1xf32> to vector<4x8x16xf32>
    %134 = arith.mulf %123, %133 : vector<4x8x16xf32>
    %135 = arith.truncf %134 : vector<4x8x16xf32> to vector<4x8x16xbf16>
    %136 = vector.extract_strided_slice %74 {offsets = [0, 0, 8], sizes = [4, 16, 8], strides = [1, 1, 1]} : vector<4x16x32xbf16> to vector<4x16x8xbf16>
    "tpu.trace_start"() <{level = 10 : i32, message = "bqk,bkd->bqd"}> : () -> ()
    %cst_36 = arith.constant dense<0.000000e+00> : vector<4x8x8xf32>
    %137 = tpu.matmul %135, %136, %cst_36 {dimension_numbers = #tpu.dot_dimension_numbers<[2], [1], [1], [2], [0, 0, 0, 1, 1, 2], [0], [0]>} : vector<4x8x16xbf16>, vector<4x16x8xbf16>, vector<4x8x8xf32> -> vector<4x8x8xf32>
    "tpu.trace_stop"() : () -> ()
    %138 = vector.broadcast %132 : vector<4x8x1xf32> to vector<4x8x8xf32>
    %139 = arith.mulf %126, %138 : vector<4x8x8xf32>
    %140 = arith.truncf %139 : vector<4x8x8xf32> to vector<4x8x8xbf16>
    %141 = vector.extract_strided_slice %70 {offsets = [0, 0, 8], sizes = [4, 8, 8], strides = [1, 1, 1]} : vector<4x8x32xbf16> to vector<4x8x8xbf16>
    "tpu.trace_start"() <{level = 10 : i32, message = "bqk,bkd->bqd"}> : () -> ()
    %cst_37 = arith.constant dense<0.000000e+00> : vector<4x8x8xf32>
    %142 = tpu.matmul %140, %141, %cst_37 {dimension_numbers = #tpu.dot_dimension_numbers<[2], [1], [1], [2], [0, 0, 0, 1, 1, 2], [0], [0]>} : vector<4x8x8xbf16>, vector<4x8x8xbf16>, vector<4x8x8xf32> -> vector<4x8x8xf32>
    "tpu.trace_stop"() : () -> ()
    %143 = arith.addf %137, %142 : vector<4x8x8xf32>
    %144 = vector.shape_cast %143 : vector<4x8x8xf32> to vector<32x8xf32>
    %145 = arith.truncf %144 : vector<32x8xf32> to vector<32x8xbf16>
    %c0_38 = arith.constant 0 : index
    %c8 = arith.constant 8 : index
    %146 = vector.load %arg7[%c0_38, %c8] : memref<32x32xbf16, #tpu.memory_space<vmem>>, vector<32x8xbf16>
    tpu.vector_store %arg7[%c0_38, %c8], %145 {strides = array<i32>} : memref<32x32xbf16, #tpu.memory_space<vmem>>, vector<32x8xbf16>,
    %147 = vector.extract_strided_slice %66 {offsets = [0, 0, 16], sizes = [4, 8, 8], strides = [1, 1, 1]} : vector<4x8x32xbf16> to vector<4x8x8xbf16>
    %148 = vector.extract_strided_slice %72 {offsets = [0, 0, 16], sizes = [4, 16, 8], strides = [1, 1, 1]} : vector<4x16x32xbf16> to vector<4x16x8xbf16>
    "tpu.trace_start"() <{level = 10 : i32, message = "bqd,bkd->bqk"}> : () -> ()
    %cst_39 = arith.constant dense<0.000000e+00> : vector<4x8x16xf32>
    %149 = tpu.matmul %147, %148, %cst_39 {dimension_numbers = #tpu.dot_dimension_numbers<[2], [2], [1], [1], [0, 0, 0, 1, 1, 1], [0], [0]>} : vector<4x8x8xbf16>, vector<4x16x8xbf16>, vector<4x8x16xf32> -> vector<4x8x16xf32>
    "tpu.trace_stop"() : () -> ()
    %150 = vector.extract_strided_slice %68 {offsets = [0, 0, 16], sizes = [4, 8, 8], strides = [1, 1, 1]} : vector<4x8x32xbf16> to vector<4x8x8xbf16>
    "tpu.trace_start"() <{level = 10 : i32, message = "bqd,bkd->bqk"}> : () -> ()
    %cst_40 = arith.constant dense<0.000000e+00> : vector<4x8x8xf32>
    %151 = tpu.matmul %147, %150, %cst_40 {dimension_numbers = #tpu.dot_dimension_numbers<[2], [2], [1], [1], [0, 0, 0, 1, 1, 1], [0], [0]>} : vector<4x8x8xbf16>, vector<4x8x8xbf16>, vector<4x8x8xf32> -> vector<4x8x8xf32>
    "tpu.trace_stop"() : () -> ()
    %cst_41 = arith.constant dense<0xFF800000> : vector<4x8xf32>
    %152 = vector.multi_reduction <maximumf>, %149, %cst_41 [2] : vector<4x8x16xf32> to vector<4x8xf32>
    %153 = vector.shape_cast %152 : vector<4x8xf32> to vector<4x8x1xf32>
    %cst_42 = arith.constant dense<0xFF800000> : vector<4x8xf32>
    %154 = vector.multi_reduction <maximumf>, %151, %cst_42 [2] : vector<4x8x8xf32> to vector<4x8xf32>
    %155 = vector.shape_cast %154 : vector<4x8xf32> to vector<4x8x1xf32>
    %156 = arith.maximumf %153, %155 : vector<4x8x1xf32>
    %157 = vector.broadcast %156 : vector<4x8x1xf32> to vector<4x8x16xf32>
    %158 = arith.subf %149, %157 : vector<4x8x16xf32>
    %159 = math.exp %158 : vector<4x8x16xf32>
    %160 = vector.broadcast %156 : vector<4x8x1xf32> to vector<4x8x8xf32>
    %161 = arith.subf %151, %160 : vector<4x8x8xf32>
    %162 = math.exp %161 : vector<4x8x8xf32>
    %cst_43 = arith.constant dense<0.000000e+00> : vector<4x8xf32>
    %163 = vector.multi_reduction <add>, %159, %cst_43 [2] : vector<4x8x16xf32> to vector<4x8xf32>
    %164 = vector.shape_cast %163 : vector<4x8xf32> to vector<4x8x1xf32>
    %cst_44 = arith.constant dense<0.000000e+00> : vector<4x8xf32>
    %165 = vector.multi_reduction <add>, %162, %cst_44 [2] : vector<4x8x8xf32> to vector<4x8xf32>
    %166 = vector.shape_cast %165 : vector<4x8xf32> to vector<4x8x1xf32>
    %167 = arith.addf %164, %166 : vector<4x8x1xf32>
    %168 = tpu.reciprocal %167 {approx = true} : vector<4x8x1xf32> -> vector<4x8x1xf32>
    %169 = vector.broadcast %168 : vector<4x8x1xf32> to vector<4x8x16xf32>
    %170 = arith.mulf %159, %169 : vector<4x8x16xf32>
    %171 = arith.truncf %170 : vector<4x8x16xf32> to vector<4x8x16xbf16>
    %172 = vector.extract_strided_slice %74 {offsets = [0, 0, 16], sizes = [4, 16, 8], strides = [1, 1, 1]} : vector<4x16x32xbf16> to vector<4x16x8xbf16>
    "tpu.trace_start"() <{level = 10 : i32, message = "bqk,bkd->bqd"}> : () -> ()
    %cst_45 = arith.constant dense<0.000000e+00> : vector<4x8x8xf32>
    %173 = tpu.matmul %171, %172, %cst_45 {dimension_numbers = #tpu.dot_dimension_numbers<[2], [1], [1], [2], [0, 0, 0, 1, 1, 2], [0], [0]>} : vector<4x8x16xbf16>, vector<4x16x8xbf16>, vector<4x8x8xf32> -> vector<4x8x8xf32>
    "tpu.trace_stop"() : () -> ()
    %174 = vector.broadcast %168 : vector<4x8x1xf32> to vector<4x8x8xf32>
    %175 = arith.mulf %162, %174 : vector<4x8x8xf32>
    %176 = arith.truncf %175 : vector<4x8x8xf32> to vector<4x8x8xbf16>
    %177 = vector.extract_strided_slice %70 {offsets = [0, 0, 16], sizes = [4, 8, 8], strides = [1, 1, 1]} : vector<4x8x32xbf16> to vector<4x8x8xbf16>
    "tpu.trace_start"() <{level = 10 : i32, message = "bqk,bkd->bqd"}> : () -> ()
    %cst_46 = arith.constant dense<0.000000e+00> : vector<4x8x8xf32>
    %178 = tpu.matmul %176, %177, %cst_46 {dimension_numbers = #tpu.dot_dimension_numbers<[2], [1], [1], [2], [0, 0, 0, 1, 1, 2], [0], [0]>} : vector<4x8x8xbf16>, vector<4x8x8xbf16>, vector<4x8x8xf32> -> vector<4x8x8xf32>
    "tpu.trace_stop"() : () -> ()
    %179 = arith.addf %173, %178 : vector<4x8x8xf32>
    %180 = vector.shape_cast %179 : vector<4x8x8xf32> to vector<32x8xf32>
    %181 = arith.truncf %180 : vector<32x8xf32> to vector<32x8xbf16>
    %c0_47 = arith.constant 0 : index
    %c16 = arith.constant 16 : index
    %182 = vector.load %arg7[%c0_47, %c16] : memref<32x32xbf16, #tpu.memory_space<vmem>>, vector<32x8xbf16>
    tpu.vector_store %arg7[%c0_47, %c16], %181 {strides = array<i32>} : memref<32x32xbf16, #tpu.memory_space<vmem>>, vector<32x8xbf16>,
    %183 = vector.extract_strided_slice %66 {offsets = [0, 0, 24], sizes = [4, 8, 8], strides = [1, 1, 1]} : vector<4x8x32xbf16> to vector<4x8x8xbf16>
    %184 = vector.extract_strided_slice %72 {offsets = [0, 0, 24], sizes = [4, 16, 8], strides = [1, 1, 1]} : vector<4x16x32xbf16> to vector<4x16x8xbf16>
    "tpu.trace_start"() <{level = 10 : i32, message = "bqd,bkd->bqk"}> : () -> ()
    %cst_48 = arith.constant dense<0.000000e+00> : vector<4x8x16xf32>
    %185 = tpu.matmul %183, %184, %cst_48 {dimension_numbers = #tpu.dot_dimension_numbers<[2], [2], [1], [1], [0, 0, 0, 1, 1, 1], [0], [0]>} : vector<4x8x8xbf16>, vector<4x16x8xbf16>, vector<4x8x16xf32> -> vector<4x8x16xf32>
    "tpu.trace_stop"() : () -> ()
    %186 = vector.extract_strided_slice %68 {offsets = [0, 0, 24], sizes = [4, 8, 8], strides = [1, 1, 1]} : vector<4x8x32xbf16> to vector<4x8x8xbf16>
    "tpu.trace_start"() <{level = 10 : i32, message = "bqd,bkd->bqk"}> : () -> ()
    %cst_49 = arith.constant dense<0.000000e+00> : vector<4x8x8xf32>
    %187 = tpu.matmul %183, %186, %cst_49 {dimension_numbers = #tpu.dot_dimension_numbers<[2], [2], [1], [1], [0, 0, 0, 1, 1, 1], [0], [0]>} : vector<4x8x8xbf16>, vector<4x8x8xbf16>, vector<4x8x8xf32> -> vector<4x8x8xf32>
    "tpu.trace_stop"() : () -> ()
    %cst_50 = arith.constant dense<0xFF800000> : vector<4x8xf32>
    %188 = vector.multi_reduction <maximumf>, %185, %cst_50 [2] : vector<4x8x16xf32> to vector<4x8xf32>
    %189 = vector.shape_cast %188 : vector<4x8xf32> to vector<4x8x1xf32>
    %cst_51 = arith.constant dense<0xFF800000> : vector<4x8xf32>
    %190 = vector.multi_reduction <maximumf>, %187, %cst_51 [2] : vector<4x8x8xf32> to vector<4x8xf32>
    %191 = vector.shape_cast %190 : vector<4x8xf32> to vector<4x8x1xf32>
    %192 = arith.maximumf %189, %191 : vector<4x8x1xf32>
    %193 = vector.broadcast %192 : vector<4x8x1xf32> to vector<4x8x16xf32>
    %194 = arith.subf %185, %193 : vector<4x8x16xf32>
    %195 = math.exp %194 : vector<4x8x16xf32>
    %196 = vector.broadcast %192 : vector<4x8x1xf32> to vector<4x8x8xf32>
    %197 = arith.subf %187, %196 : vector<4x8x8xf32>
    %198 = math.exp %197 : vector<4x8x8xf32>
    %cst_52 = arith.constant dense<0.000000e+00> : vector<4x8xf32>
    %199 = vector.multi_reduction <add>, %195, %cst_52 [2] : vector<4x8x16xf32> to vector<4x8xf32>
    %200 = vector.shape_cast %199 : vector<4x8xf32> to vector<4x8x1xf32>
    %cst_53 = arith.constant dense<0.000000e+00> : vector<4x8xf32>
    %201 = vector.multi_reduction <add>, %198, %cst_53 [2] : vector<4x8x8xf32> to vector<4x8xf32>
    %202 = vector.shape_cast %201 : vector<4x8xf32> to vector<4x8x1xf32>
    %203 = arith.addf %200, %202 : vector<4x8x1xf32>
    %204 = tpu.reciprocal %203 {approx = true} : vector<4x8x1xf32> -> vector<4x8x1xf32>
    %205 = vector.broadcast %204 : vector<4x8x1xf32> to vector<4x8x16xf32>
    %206 = arith.mulf %195, %205 : vector<4x8x16xf32>
    %207 = arith.truncf %206 : vector<4x8x16xf32> to vector<4x8x16xbf16>
    %208 = vector.extract_strided_slice %74 {offsets = [0, 0, 24], sizes = [4, 16, 8], strides = [1, 1, 1]} : vector<4x16x32xbf16> to vector<4x16x8xbf16>
    "tpu.trace_start"() <{level = 10 : i32, message = "bqk,bkd->bqd"}> : () -> ()
    %cst_54 = arith.constant dense<0.000000e+00> : vector<4x8x8xf32>
    %209 = tpu.matmul %207, %208, %cst_54 {dimension_numbers = #tpu.dot_dimension_numbers<[2], [1], [1], [2], [0, 0, 0, 1, 1, 2], [0], [0]>} : vector<4x8x16xbf16>, vector<4x16x8xbf16>, vector<4x8x8xf32> -> vector<4x8x8xf32>
    "tpu.trace_stop"() : () -> ()
    %210 = vector.broadcast %204 : vector<4x8x1xf32> to vector<4x8x8xf32>
    %211 = arith.mulf %198, %210 : vector<4x8x8xf32>
    %212 = arith.truncf %211 : vector<4x8x8xf32> to vector<4x8x8xbf16>
    %213 = vector.extract_strided_slice %70 {offsets = [0, 0, 24], sizes = [4, 8, 8], strides = [1, 1, 1]} : vector<4x8x32xbf16> to vector<4x8x8xbf16>
    "tpu.trace_start"() <{level = 10 : i32, message = "bqk,bkd->bqd"}> : () -> ()
    %cst_55 = arith.constant dense<0.000000e+00> : vector<4x8x8xf32>
    %214 = tpu.matmul %212, %213, %cst_55 {dimension_numbers = #tpu.dot_dimension_numbers<[2], [1], [1], [2], [0, 0, 0, 1, 1, 2], [0], [0]>} : vector<4x8x8xbf16>, vector<4x8x8xbf16>, vector<4x8x8xf32> -> vector<4x8x8xf32>
    "tpu.trace_stop"() : () -> ()
    %215 = arith.addf %209, %214 : vector<4x8x8xf32>
    %216 = vector.shape_cast %215 : vector<4x8x8xf32> to vector<32x8xf32>
    %217 = arith.truncf %216 : vector<32x8xf32> to vector<32x8xbf16>
    %c0_56 = arith.constant 0 : index
    %c24 = arith.constant 24 : index
    %218 = vector.load %arg7[%c0_56, %c24] : memref<32x32xbf16, #tpu.memory_space<vmem>>, vector<32x8xbf16>
    tpu.vector_store %arg7[%c0_56, %c24], %217 {strides = array<i32>} : memref<32x32xbf16, #tpu.memory_space<vmem>>, vector<32x8xbf16>,
    %c0_57 = arith.constant 0 : index
    %c0_58 = arith.constant 0 : index
    %219 = vector.load %arg7[%c0_57, %c0_58] : memref<32x32xbf16, #tpu.memory_space<vmem>>, vector<32x32xbf16>
    %c0_59 = arith.constant 0 : index
    %c0_60 = arith.constant 0 : index
    %220 = vector.load %arg5[%c0_59, %c0_60] : memref<32x32xbf16, #tpu.memory_space<vmem>>, vector<32x32xbf16>
    %cst_61 = arith.constant dense<0.000000e+00> : vector<32x32xf32>
    %221 = tpu.matmul %219, %220, %cst_61 {dimension_numbers = #tpu.dot_dimension_numbers<[1], [0], [0], [1], [0, 0, 1, 1], [], []>} : vector<32x32xbf16>, vector<32x32xbf16>, vector<32x32xf32> -> vector<32x32xf32>
    %222 = vector.shape_cast %221 : vector<32x32xf32> to vector<4x8x32xf32>
    %c0_62 = arith.constant 0 : index
    %c0_63 = arith.constant 0 : index
    %c0_64 = arith.constant 0 : index
    %223 = vector.load %arg6[%c0_62, %c0_63, %c0_64] : memref<4x8x32xf32, #tpu.memory_space<vmem>>, vector<4x8x32xf32>
    tpu.vector_store %arg6[%c0_62, %c0_63, %c0_64], %222 {strides = array<i32>} : memref<4x8x32xf32, #tpu.memory_space<vmem>>, vector<4x8x32xf32>,
    return
  }
  func.func @transform_0(%arg0: i32) -> (i32, i32, i32) {
    %c0_i32 = arith.constant 0 : i32
    %c0_i32_0 = arith.constant 0 : i32
    %c0_i32_1 = arith.constant 0 : i32
    return %arg0, %c0_i32, %c0_i32_0 : i32, i32, i32
  }
  func.func @transform_1(%arg0: i32) -> (i32, i32, i32) {
    %c0_i32 = arith.constant 0 : i32
    %c0_i32_0 = arith.constant 0 : i32
    %c0_i32_1 = arith.constant 0 : i32
    return %arg0, %c0_i32, %c0_i32_0 : i32, i32, i32
  }
  func.func @transform_2(%arg0: i32) -> (i32, i32) {
    %c0_i32 = arith.constant 0 : i32
    %c0_i32_0 = arith.constant 0 : i32
    %c0_i32_1 = arith.constant 0 : i32
    return %c0_i32, %c0_i32_0 : i32, i32
  }
  func.func @transform_3(%arg0: i32) -> (i32, i32) {
    %c0_i32 = arith.constant 0 : i32
    %c0_i32_0 = arith.constant 0 : i32
    %c0_i32_1 = arith.constant 0 : i32
    return %c0_i32, %c0_i32_0 : i32, i32
  }
  func.func @transform_4(%arg0: i32) -> (i32, i32) {
    %c0_i32 = arith.constant 0 : i32
    %c0_i32_0 = arith.constant 0 : i32
    %c0_i32_1 = arith.constant 0 : i32
    return %c0_i32, %c0_i32_0 : i32, i32
  }
  func.func @transform_5(%arg0: i32) -> (i32, i32, i32) {
    %c0_i32 = arith.constant 0 : i32
    %c0_i32_0 = arith.constant 0 : i32
    %c0_i32_1 = arith.constant 0 : i32
    return %arg0, %c0_i32, %c0_i32_0 : i32, i32, i32
  }
}

module attributes {stable_mosaic.version = 11 : i64} {
  func.func @perceiver_attention_kernel(%arg0: i32, %arg1: memref<4x16x32xf32, #tpu.memory_space<vmem>>, %arg2: memref<4x8x32xf32, #tpu.memory_space<vmem>>, %arg3: memref<4x32xf32, #tpu.memory_space<vmem>>, %arg4: memref<32x96xbf16, #tpu.memory_space<vmem>>, %arg5: memref<32x32xbf16, #tpu.memory_space<vmem>>, %arg6: memref<4x8x32xf32, #tpu.memory_space<vmem>>, %arg7: memref<32x32xbf16, #tpu.memory_space<vmem>>) attributes {dimension_semantics = [#tpu.dimension_semantics<parallel>], iteration_bounds = array<i64: 1>, scalar_prefetch = 0 : i64, scratch_operands = 1 : i64, tpu.core_type = #tpu.core_type<tc>, window_params = [{transform_indices = @transform_0, window_bounds = array<i64: 4, 16, 32>}, {transform_indices = @transform_1, window_bounds = array<i64: 4, 8, 32>}, {pipeline_mode = #tpu.pipeline_mode<synchronous>, transform_indices = @transform_2, window_bounds = array<i64: 4, 32>}, {pipeline_mode = #tpu.pipeline_mode<synchronous>, transform_indices = @transform_3, window_bounds = array<i64: 32, 96>}, {pipeline_mode = #tpu.pipeline_mode<synchronous>, transform_indices = @transform_4, window_bounds = array<i64: 32, 32>}, {transform_indices = @transform_5, window_bounds = array<i64: 4, 8, 32>}]} {
    %c0 = arith.constant 0 : index
    %c0_0 = arith.constant 0 : index
    %c0_1 = arith.constant 0 : index
    %0 = vector.load %arg1[%c0, %c0_0, %c0_1] : memref<4x16x32xf32, #tpu.memory_space<vmem>>, vector<4x16x32xf32>
    %c0_2 = arith.constant 0 : index
    %c0_3 = arith.constant 0 : index
    %c0_4 = arith.constant 0 : index
    %1 = vector.load %arg2[%c0_2, %c0_3, %c0_4] : memref<4x8x32xf32, #tpu.memory_space<vmem>>, vector<4x8x32xf32>
    %c0_5 = arith.constant 0 : index
    %c0_6 = arith.constant 0 : index
    %2 = vector.load %arg3[%c0_5, %c0_6] : memref<4x32xf32, #tpu.memory_space<vmem>>, vector<4x32xf32>
    %3 = vector.extract_strided_slice %2 {offsets = [0, 0], sizes = [1, 32], strides = [1, 1]} : vector<4x32xf32> to vector<1x32xf32>
    %4 = vector.extract_strided_slice %2 {offsets = [1, 0], sizes = [1, 32], strides = [1, 1]} : vector<4x32xf32> to vector<1x32xf32>
    %cst = arith.constant dense<0.000000e+00> : vector<4x16xf32>
    %5 = vector.multi_reduction <add>, %0, %cst [2] : vector<4x16x32xf32> to vector<4x16xf32>
    %6 = vector.shape_cast %5 : vector<4x16xf32> to vector<4x16x1xf32>
    %cst_7 = arith.constant 3.200000e+01 : f32
    %7 = vector.broadcast %cst_7 : f32 to vector<4x16x1xf32>
    %8 = arith.divf %6, %7 : vector<4x16x1xf32>
    %9 = arith.mulf %0, %0 : vector<4x16x32xf32>
    %cst_8 = arith.constant dense<0.000000e+00> : vector<4x16xf32>
    %10 = vector.multi_reduction <add>, %9, %cst_8 [2] : vector<4x16x32xf32> to vector<4x16xf32>
    %11 = vector.shape_cast %10 : vector<4x16xf32> to vector<4x16x1xf32>
    %cst_9 = arith.constant 3.200000e+01 : f32
    %12 = vector.broadcast %cst_9 : f32 to vector<4x16x1xf32>
    %13 = arith.divf %11, %12 : vector<4x16x1xf32>
    %14 = arith.mulf %8, %8 : vector<4x16x1xf32>
    %15 = arith.subf %13, %14 : vector<4x16x1xf32>
    %16 = vector.broadcast %8 : vector<4x16x1xf32> to vector<4x16x32xf32>
    %17 = arith.subf %0, %16 : vector<4x16x32xf32>
    %cst_10 = arith.constant 9.99999974E-6 : f32
    %18 = vector.broadcast %cst_10 : f32 to vector<4x16x1xf32>
    %19 = arith.addf %15, %18 : vector<4x16x1xf32>
    %20 = math.rsqrt %19 : vector<4x16x1xf32>
    %21 = vector.broadcast %20 : vector<4x16x1xf32> to vector<4x16x32xf32>
    %22 = arith.mulf %17, %21 : vector<4x16x32xf32>
    %23 = vector.shape_cast %3 : vector<1x32xf32> to vector<1x1x32xf32>
    %24 = vector.broadcast %23 : vector<1x1x32xf32> to vector<4x16x32xf32>
    %25 = arith.mulf %22, %24 : vector<4x16x32xf32>
    %26 = vector.shape_cast %4 : vector<1x32xf32> to vector<1x1x32xf32>
    %27 = vector.broadcast %26 : vector<1x1x32xf32> to vector<4x16x32xf32>
    %28 = arith.addf %25, %27 : vector<4x16x32xf32>
    %29 = vector.extract_strided_slice %2 {offsets = [2, 0], sizes = [1, 32], strides = [1, 1]} : vector<4x32xf32> to vector<1x32xf32>
    %30 = vector.extract_strided_slice %2 {offsets = [3, 0], sizes = [1, 32], strides = [1, 1]} : vector<4x32xf32> to vector<1x32xf32>
    %cst_11 = arith.constant dense<0.000000e+00> : vector<4x8xf32>
    %31 = vector.multi_reduction <add>, %1, %cst_11 [2] : vector<4x8x32xf32> to vector<4x8xf32>
    %32 = vector.shape_cast %31 : vector<4x8xf32> to vector<4x8x1xf32>
    %cst_12 = arith.constant 3.200000e+01 : f32
    %33 = vector.broadcast %cst_12 : f32 to vector<4x8x1xf32>
    %34 = arith.divf %32, %33 : vector<4x8x1xf32>
    %35 = arith.mulf %1, %1 : vector<4x8x32xf32>
    %cst_13 = arith.constant dense<0.000000e+00> : vector<4x8xf32>
    %36 = vector.multi_reduction <add>, %35, %cst_13 [2] : vector<4x8x32xf32> to vector<4x8xf32>
    %37 = vector.shape_cast %36 : vector<4x8xf32> to vector<4x8x1xf32>
    %cst_14 = arith.constant 3.200000e+01 : f32
    %38 = vector.broadcast %cst_14 : f32 to vector<4x8x1xf32>
    %39 = arith.divf %37, %38 : vector<4x8x1xf32>
    %40 = arith.mulf %34, %34 : vector<4x8x1xf32>
    %41 = arith.subf %39, %40 : vector<4x8x1xf32>
    %42 = vector.broadcast %34 : vector<4x8x1xf32> to vector<4x8x32xf32>
    %43 = arith.subf %1, %42 : vector<4x8x32xf32>
    %cst_15 = arith.constant 9.99999974E-6 : f32
    %44 = vector.broadcast %cst_15 : f32 to vector<4x8x1xf32>
    %45 = arith.addf %41, %44 : vector<4x8x1xf32>
    %46 = math.rsqrt %45 : vector<4x8x1xf32>
    %47 = vector.broadcast %46 : vector<4x8x1xf32> to vector<4x8x32xf32>
    %48 = arith.mulf %43, %47 : vector<4x8x32xf32>
    %49 = vector.shape_cast %29 : vector<1x32xf32> to vector<1x1x32xf32>
    %50 = vector.broadcast %49 : vector<1x1x32xf32> to vector<4x8x32xf32>
    %51 = arith.mulf %48, %50 : vector<4x8x32xf32>
    %52 = vector.shape_cast %30 : vector<1x32xf32> to vector<1x1x32xf32>
    %53 = vector.broadcast %52 : vector<1x1x32xf32> to vector<4x8x32xf32>
    %54 = arith.addf %51, %53 : vector<4x8x32xf32>
    %55 = arith.truncf %28 : vector<4x16x32xf32> to vector<4x16x32xbf16>
    %56 = vector.shape_cast %55 : vector<4x16x32xbf16> to vector<64x32xbf16>
    %57 = arith.truncf %54 : vector<4x8x32xf32> to vector<4x8x32xbf16>
    %58 = vector.shape_cast %57 : vector<4x8x32xbf16> to vector<32x32xbf16>
    %c0_16 = arith.constant 0 : index
    %c0_17 = arith.constant 0 : index
    %59 = vector.load %arg4[%c0_16, %c0_17] : memref<32x96xbf16, #tpu.memory_space<vmem>>, vector<32x96xbf16>
    %cst_18 = arith.constant dense<0.000000e+00> : vector<32x96xf32>
    %60 = tpu.matmul %58, %59, %cst_18 {dimension_numbers = #tpu.dot_dimension_numbers<[1], [0], [0], [1], [0, 0, 1, 1], [], []>} : vector<32x32xbf16>, vector<32x96xbf16>, vector<32x96xf32> -> vector<32x96xf32>
    %61 = arith.truncf %60 : vector<32x96xf32> to vector<32x96xbf16>
    %62 = vector.extract_strided_slice %59 {offsets = [0, 32], sizes = [32, 64], strides = [1, 1]} : vector<32x96xbf16> to vector<32x64xbf16>
    %cst_19 = arith.constant dense<0.000000e+00> : vector<64x64xf32>
    %63 = tpu.matmul %56, %62, %cst_19 {dimension_numbers = #tpu.dot_dimension_numbers<[1], [0], [0], [1], [0, 0, 1, 1], [], []>} : vector<64x32xbf16>, vector<32x64xbf16>, vector<64x64xf32> -> vector<64x64xf32>
    %64 = arith.truncf %63 : vector<64x64xf32> to vector<64x64xbf16>
    %65 = vector.extract_strided_slice %61 {offsets = [0, 0], sizes = [32, 32], strides = [1, 1]} : vector<32x96xbf16> to vector<32x32xbf16>
    %66 = vector.shape_cast %65 : vector<32x32xbf16> to vector<4x8x32xbf16>
    %67 = vector.extract_strided_slice %61 {offsets = [0, 32], sizes = [32, 32], strides = [1, 1]} : vector<32x96xbf16> to vector<32x32xbf16>
    %68 = vector.shape_cast %67 : vector<32x32xbf16> to vector<4x8x32xbf16>
    %69 = vector.extract_strided_slice %61 {offsets = [0, 64], sizes = [32, 32], strides = [1, 1]} : vector<32x96xbf16> to vector<32x32xbf16>
    %70 = vector.shape_cast %69 : vector<32x32xbf16> to vector<4x8x32xbf16>
    %71 = vector.extract_strided_slice %64 {offsets = [0, 0], sizes = [64, 32], strides = [1, 1]} : vector<64x64xbf16> to vector<64x32xbf16>
    %72 = vector.shape_cast %71 : vector<64x32xbf16> to vector<4x16x32xbf16>
    %73 = vector.extract_strided_slice %64 {offsets = [0, 32], sizes = [64, 32], strides = [1, 1]} : vector<64x64xbf16> to vector<64x32xbf16>
    %74 = vector.shape_cast %73 : vector<64x32xbf16> to vector<4x16x32xbf16>
    %75 = vector.extract_strided_slice %66 {offsets = [0, 0, 0], sizes = [4, 8, 8], strides = [1, 1, 1]} : vector<4x8x32xbf16> to vector<4x8x8xbf16>
    %76 = vector.extract_strided_slice %72 {offsets = [0, 0, 0], sizes = [4, 16, 8], strides = [1, 1, 1]} : vector<4x16x32xbf16> to vector<4x16x8xbf16>
    "tpu.trace_start"() <{level = 10 : i32, message = "bqd,bkd->bqk"}> : () -> ()
    %cst_20 = arith.constant dense<0.000000e+00> : vector<4x8x16xf32>
    %77 = tpu.matmul %75, %76, %cst_20 {dimension_numbers = #tpu.dot_dimension_numbers<[2], [2], [1], [1], [0, 0, 0, 1, 1, 1], [0], [0]>} : vector<4x8x8xbf16>, vector<4x16x8xbf16>, vector<4x8x16xf32> -> vector<4x8x16xf32>
    "tpu.trace_stop"() : () -> ()
    %78 = vector.extract_strided_slice %68 {offsets = [0, 0, 0], sizes = [4, 8, 8], strides = [1, 1, 1]} : vector<4x8x32xbf16> to vector<4x8x8xbf16>
    "tpu.trace_start"() <{level = 10 : i32, message = "bqd,bkd->bqk"}> : () -> ()
    %cst_21 = arith.constant dense<0.000000e+00> : vector<4x8x8xf32>
    %79 = tpu.matmul %75, %78, %cst_21 {dimension_numbers = #tpu.dot_dimension_numbers<[2], [2], [1], [1], [0, 0, 0, 1, 1, 1], [0], [0]>} : vector<4x8x8xbf16>, vector<4x8x8xbf16>, vector<4x8x8xf32> -> vector<4x8x8xf32>
    "tpu.trace_stop"() : () -> ()
    %cst_22 = arith.constant dense<0xFF800000> : vector<4x8xf32>
    %80 = vector.multi_reduction <maximumf>, %77, %cst_22 [2] : vector<4x8x16xf32> to vector<4x8xf32>
    %81 = vector.shape_cast %80 : vector<4x8xf32> to vector<4x8x1xf32>
    %cst_23 = arith.constant dense<0xFF800000> : vector<4x8xf32>
    %82 = vector.multi_reduction <maximumf>, %79, %cst_23 [2] : vector<4x8x8xf32> to vector<4x8xf32>
    %83 = vector.shape_cast %82 : vector<4x8xf32> to vector<4x8x1xf32>
    %84 = arith.maximumf %81, %83 : vector<4x8x1xf32>
    %85 = vector.broadcast %84 : vector<4x8x1xf32> to vector<4x8x16xf32>
    %86 = arith.subf %77, %85 : vector<4x8x16xf32>
    %87 = math.exp %86 : vector<4x8x16xf32>
    %88 = vector.broadcast %84 : vector<4x8x1xf32> to vector<4x8x8xf32>
    %89 = arith.subf %79, %88 : vector<4x8x8xf32>
    %90 = math.exp %89 : vector<4x8x8xf32>
    %cst_24 = arith.constant dense<0.000000e+00> : vector<4x8xf32>
    %91 = vector.multi_reduction <add>, %87, %cst_24 [2] : vector<4x8x16xf32> to vector<4x8xf32>
    %92 = vector.shape_cast %91 : vector<4x8xf32> to vector<4x8x1xf32>
    %cst_25 = arith.constant dense<0.000000e+00> : vector<4x8xf32>
    %93 = vector.multi_reduction <add>, %90, %cst_25 [2] : vector<4x8x8xf32> to vector<4x8xf32>
    %94 = vector.shape_cast %93 : vector<4x8xf32> to vector<4x8x1xf32>
    %95 = arith.addf %92, %94 : vector<4x8x1xf32>
    %96 = tpu.reciprocal %95 {approx = true} : vector<4x8x1xf32> -> vector<4x8x1xf32>
    %97 = vector.broadcast %96 : vector<4x8x1xf32> to vector<4x8x16xf32>
    %98 = arith.mulf %87, %97 : vector<4x8x16xf32>
    %99 = arith.truncf %98 : vector<4x8x16xf32> to vector<4x8x16xbf16>
    %100 = vector.extract_strided_slice %74 {offsets = [0, 0, 0], sizes = [4, 16, 8], strides = [1, 1, 1]} : vector<4x16x32xbf16> to vector<4x16x8xbf16>
    "tpu.trace_start"() <{level = 10 : i32, message = "bqk,bkd->bqd"}> : () -> ()
    %cst_26 = arith.constant dense<0.000000e+00> : vector<4x8x8xf32>
    %101 = tpu.matmul %99, %100, %cst_26 {dimension_numbers = #tpu.dot_dimension_numbers<[2], [1], [1], [2], [0, 0, 0, 1, 1, 2], [0], [0]>} : vector<4x8x16xbf16>, vector<4x16x8xbf16>, vector<4x8x8xf32> -> vector<4x8x8xf32>
    "tpu.trace_stop"() : () -> ()
    %102 = vector.broadcast %96 : vector<4x8x1xf32> to vector<4x8x8xf32>
    %103 = arith.mulf %90, %102 : vector<4x8x8xf32>
    %104 = arith.truncf %103 : vector<4x8x8xf32> to vector<4x8x8xbf16>
    %105 = vector.extract_strided_slice %70 {offsets = [0, 0, 0], sizes = [4, 8, 8], strides = [1, 1, 1]} : vector<4x8x32xbf16> to vector<4x8x8xbf16>
    "tpu.trace_start"() <{level = 10 : i32, message = "bqk,bkd->bqd"}> : () -> ()
    %cst_27 = arith.constant dense<0.000000e+00> : vector<4x8x8xf32>
    %106 = tpu.matmul %104, %105, %cst_27 {dimension_numbers = #tpu.dot_dimension_numbers<[2], [1], [1], [2], [0, 0, 0, 1, 1, 2], [0], [0]>} : vector<4x8x8xbf16>, vector<4x8x8xbf16>, vector<4x8x8xf32> -> vector<4x8x8xf32>
    "tpu.trace_stop"() : () -> ()
    %107 = arith.addf %101, %106 : vector<4x8x8xf32>
    %108 = vector.shape_cast %107 : vector<4x8x8xf32> to vector<32x8xf32>
    %109 = arith.truncf %108 : vector<32x8xf32> to vector<32x8xbf16>
    %c0_28 = arith.constant 0 : index
    %c0_29 = arith.constant 0 : index
    %110 = vector.load %arg7[%c0_28, %c0_29] : memref<32x32xbf16, #tpu.memory_space<vmem>>, vector<32x8xbf16>
    tpu.vector_store %arg7[%c0_28, %c0_29], %109 {strides = array<i32>} : memref<32x32xbf16, #tpu.memory_space<vmem>>, vector<32x8xbf16>,
    %111 = vector.extract_strided_slice %66 {offsets = [0, 0, 8], sizes = [4, 8, 8], strides = [1, 1, 1]} : vector<4x8x32xbf16> to vector<4x8x8xbf16>
    %112 = vector.extract_strided_slice %72 {offsets = [0, 0, 8], sizes = [4, 16, 8], strides = [1, 1, 1]} : vector<4x16x32xbf16> to vector<4x16x8xbf16>
    "tpu.trace_start"() <{level = 10 : i32, message = "bqd,bkd->bqk"}> : () -> ()
    %cst_30 = arith.constant dense<0.000000e+00> : vector<4x8x16xf32>
    %113 = tpu.matmul %111, %112, %cst_30 {dimension_numbers = #tpu.dot_dimension_numbers<[2], [2], [1], [1], [0, 0, 0, 1, 1, 1], [0], [0]>} : vector<4x8x8xbf16>, vector<4x16x8xbf16>, vector<4x8x16xf32> -> vector<4x8x16xf32>
    "tpu.trace_stop"() : () -> ()
    %114 = vector.extract_strided_slice %68 {offsets = [0, 0, 8], sizes = [4, 8, 8], strides = [1, 1, 1]} : vector<4x8x32xbf16> to vector<4x8x8xbf16>
    "tpu.trace_start"() <{level = 10 : i32, message = "bqd,bkd->bqk"}> : () -> ()
    %cst_31 = arith.constant dense<0.000000e+00> : vector<4x8x8xf32>
    %115 = tpu.matmul %111, %114, %cst_31 {dimension_numbers = #tpu.dot_dimension_numbers<[2], [2], [1], [1], [0, 0, 0, 1, 1, 1], [0], [0]>} : vector<4x8x8xbf16>, vector<4x8x8xbf16>, vector<4x8x8xf32> -> vector<4x8x8xf32>
    "tpu.trace_stop"() : () -> ()
    %cst_32 = arith.constant dense<0xFF800000> : vector<4x8xf32>
    %116 = vector.multi_reduction <maximumf>, %113, %cst_32 [2] : vector<4x8x16xf32> to vector<4x8xf32>
    %117 = vector.shape_cast %116 : vector<4x8xf32> to vector<4x8x1xf32>
    %cst_33 = arith.constant dense<0xFF800000> : vector<4x8xf32>
    %118 = vector.multi_reduction <maximumf>, %115, %cst_33 [2] : vector<4x8x8xf32> to vector<4x8xf32>
    %119 = vector.shape_cast %118 : vector<4x8xf32> to vector<4x8x1xf32>
    %120 = arith.maximumf %117, %119 : vector<4x8x1xf32>
    %121 = vector.broadcast %120 : vector<4x8x1xf32> to vector<4x8x16xf32>
    %122 = arith.subf %113, %121 : vector<4x8x16xf32>
    %123 = math.exp %122 : vector<4x8x16xf32>
    %124 = vector.broadcast %120 : vector<4x8x1xf32> to vector<4x8x8xf32>
    %125 = arith.subf %115, %124 : vector<4x8x8xf32>
    %126 = math.exp %125 : vector<4x8x8xf32>
    %cst_34 = arith.constant dense<0.000000e+00> : vector<4x8xf32>
    %127 = vector.multi_reduction <add>, %123, %cst_34 [2] : vector<4x8x16xf32> to vector<4x8xf32>
    %128 = vector.shape_cast %127 : vector<4x8xf32> to vector<4x8x1xf32>
    %cst_35 = arith.constant dense<0.000000e+00> : vector<4x8xf32>
    %129 = vector.multi_reduction <add>, %126, %cst_35 [2] : vector<4x8x8xf32> to vector<4x8xf32>
    %130 = vector.shape_cast %129 : vector<4x8xf32> to vector<4x8x1xf32>
    %131 = arith.addf %128, %130 : vector<4x8x1xf32>
    %132 = tpu.reciprocal %131 {approx = true} : vector<4x8x1xf32> -> vector<4x8x1xf32>
    %133 = vector.broadcast %132 : vector<4x8x1xf32> to vector<4x8x16xf32>
    %134 = arith.mulf %123, %133 : vector<4x8x16xf32>
    %135 = arith.truncf %134 : vector<4x8x16xf32> to vector<4x8x16xbf16>
    %136 = vector.extract_strided_slice %74 {offsets = [0, 0, 8], sizes = [4, 16, 8], strides = [1, 1, 1]} : vector<4x16x32xbf16> to vector<4x16x8xbf16>
    "tpu.trace_start"() <{level = 10 : i32, message = "bqk,bkd->bqd"}> : () -> ()
    %cst_36 = arith.constant dense<0.000000e+00> : vector<4x8x8xf32>
    %137 = tpu.matmul %135, %136, %cst_36 {dimension_numbers = #tpu.dot_dimension_numbers<[2], [1], [1], [2], [0, 0, 0, 1, 1, 2], [0], [0]>} : vector<4x8x16xbf16>, vector<4x16x8xbf16>, vector<4x8x8xf32> -> vector<4x8x8xf32>
    "tpu.trace_stop"() : () -> ()
    %138 = vector.broadcast %132 : vector<4x8x1xf32> to vector<4x8x8xf32>
    %139 = arith.mulf %126, %138 : vector<4x8x8xf32>
    %140 = arith.truncf %139 : vector<4x8x8xf32> to vector<4x8x8xbf16>
    %141 = vector.extract_strided_slice %70 {offsets = [0, 0, 8], sizes = [4, 8, 8], strides = [1, 1, 1]} : vector<4x8x32xbf16> to vector<4x8x8xbf16>
    "tpu.trace_start"() <{level = 10 : i32, message = "bqk,bkd->bqd"}> : () -> ()
    %cst_37 = arith.constant dense<0.000000e+00> : vector<4x8x8xf32>
    %142 = tpu.matmul %140, %141, %cst_37 {dimension_numbers = #tpu.dot_dimension_numbers<[2], [1], [1], [2], [0, 0, 0, 1, 1, 2], [0], [0]>} : vector<4x8x8xbf16>, vector<4x8x8xbf16>, vector<4x8x8xf32> -> vector<4x8x8xf32>
    "tpu.trace_stop"() : () -> ()
    %143 = arith.addf %137, %142 : vector<4x8x8xf32>
    %144 = vector.shape_cast %143 : vector<4x8x8xf32> to vector<32x8xf32>
    %145 = arith.truncf %144 : vector<32x8xf32> to vector<32x8xbf16>
    %c0_38 = arith.constant 0 : index
    %c8 = arith.constant 8 : index
    %146 = vector.load %arg7[%c0_38, %c8] : memref<32x32xbf16, #tpu.memory_space<vmem>>, vector<32x8xbf16>
    tpu.vector_store %arg7[%c0_38, %c8], %145 {strides = array<i32>} : memref<32x32xbf16, #tpu.memory_space<vmem>>, vector<32x8xbf16>,
    %147 = vector.extract_strided_slice %66 {offsets = [0, 0, 16], sizes = [4, 8, 8], strides = [1, 1, 1]} : vector<4x8x32xbf16> to vector<4x8x8xbf16>
    %148 = vector.extract_strided_slice %72 {offsets = [0, 0, 16], sizes = [4, 16, 8], strides = [1, 1, 1]} : vector<4x16x32xbf16> to vector<4x16x8xbf16>
    "tpu.trace_start"() <{level = 10 : i32, message = "bqd,bkd->bqk"}> : () -> ()
    %cst_39 = arith.constant dense<0.000000e+00> : vector<4x8x16xf32>
    %149 = tpu.matmul %147, %148, %cst_39 {dimension_numbers = #tpu.dot_dimension_numbers<[2], [2], [1], [1], [0, 0, 0, 1, 1, 1], [0], [0]>} : vector<4x8x8xbf16>, vector<4x16x8xbf16>, vector<4x8x16xf32> -> vector<4x8x16xf32>
    "tpu.trace_stop"() : () -> ()
    %150 = vector.extract_strided_slice %68 {offsets = [0, 0, 16], sizes = [4, 8, 8], strides = [1, 1, 1]} : vector<4x8x32xbf16> to vector<4x8x8xbf16>
    "tpu.trace_start"() <{level = 10 : i32, message = "bqd,bkd->bqk"}> : () -> ()
    %cst_40 = arith.constant dense<0.000000e+00> : vector<4x8x8xf32>
    %151 = tpu.matmul %147, %150, %cst_40 {dimension_numbers = #tpu.dot_dimension_numbers<[2], [2], [1], [1], [0, 0, 0, 1, 1, 1], [0], [0]>} : vector<4x8x8xbf16>, vector<4x8x8xbf16>, vector<4x8x8xf32> -> vector<4x8x8xf32>
    "tpu.trace_stop"() : () -> ()
    %cst_41 = arith.constant dense<0xFF800000> : vector<4x8xf32>
    %152 = vector.multi_reduction <maximumf>, %149, %cst_41 [2] : vector<4x8x16xf32> to vector<4x8xf32>
    %153 = vector.shape_cast %152 : vector<4x8xf32> to vector<4x8x1xf32>
    %cst_42 = arith.constant dense<0xFF800000> : vector<4x8xf32>
    %154 = vector.multi_reduction <maximumf>, %151, %cst_42 [2] : vector<4x8x8xf32> to vector<4x8xf32>
    %155 = vector.shape_cast %154 : vector<4x8xf32> to vector<4x8x1xf32>
    %156 = arith.maximumf %153, %155 : vector<4x8x1xf32>
    %157 = vector.broadcast %156 : vector<4x8x1xf32> to vector<4x8x16xf32>
    %158 = arith.subf %149, %157 : vector<4x8x16xf32>
    %159 = math.exp %158 : vector<4x8x16xf32>
    %160 = vector.broadcast %156 : vector<4x8x1xf32> to vector<4x8x8xf32>
    %161 = arith.subf %151, %160 : vector<4x8x8xf32>
    %162 = math.exp %161 : vector<4x8x8xf32>
    %cst_43 = arith.constant dense<0.000000e+00> : vector<4x8xf32>
    %163 = vector.multi_reduction <add>, %159, %cst_43 [2] : vector<4x8x16xf32> to vector<4x8xf32>
    %164 = vector.shape_cast %163 : vector<4x8xf32> to vector<4x8x1xf32>
    %cst_44 = arith.constant dense<0.000000e+00> : vector<4x8xf32>
    %165 = vector.multi_reduction <add>, %162, %cst_44 [2] : vector<4x8x8xf32> to vector<4x8xf32>
    %166 = vector.shape_cast %165 : vector<4x8xf32> to vector<4x8x1xf32>
    %167 = arith.addf %164, %166 : vector<4x8x1xf32>
    %168 = tpu.reciprocal %167 {approx = true} : vector<4x8x1xf32> -> vector<4x8x1xf32>
    %169 = vector.broadcast %168 : vector<4x8x1xf32> to vector<4x8x16xf32>
    %170 = arith.mulf %159, %169 : vector<4x8x16xf32>
    %171 = arith.truncf %170 : vector<4x8x16xf32> to vector<4x8x16xbf16>
    %172 = vector.extract_strided_slice %74 {offsets = [0, 0, 16], sizes = [4, 16, 8], strides = [1, 1, 1]} : vector<4x16x32xbf16> to vector<4x16x8xbf16>
    "tpu.trace_start"() <{level = 10 : i32, message = "bqk,bkd->bqd"}> : () -> ()
    %cst_45 = arith.constant dense<0.000000e+00> : vector<4x8x8xf32>
    %173 = tpu.matmul %171, %172, %cst_45 {dimension_numbers = #tpu.dot_dimension_numbers<[2], [1], [1], [2], [0, 0, 0, 1, 1, 2], [0], [0]>} : vector<4x8x16xbf16>, vector<4x16x8xbf16>, vector<4x8x8xf32> -> vector<4x8x8xf32>
    "tpu.trace_stop"() : () -> ()
    %174 = vector.broadcast %168 : vector<4x8x1xf32> to vector<4x8x8xf32>
    %175 = arith.mulf %162, %174 : vector<4x8x8xf32>
    %176 = arith.truncf %175 : vector<4x8x8xf32> to vector<4x8x8xbf16>
    %177 = vector.extract_strided_slice %70 {offsets = [0, 0, 16], sizes = [4, 8, 8], strides = [1, 1, 1]} : vector<4x8x32xbf16> to vector<4x8x8xbf16>
    "tpu.trace_start"() <{level = 10 : i32, message = "bqk,bkd->bqd"}> : () -> ()
    %cst_46 = arith.constant dense<0.000000e+00> : vector<4x8x8xf32>
    %178 = tpu.matmul %176, %177, %cst_46 {dimension_numbers = #tpu.dot_dimension_numbers<[2], [1], [1], [2], [0, 0, 0, 1, 1, 2], [0], [0]>} : vector<4x8x8xbf16>, vector<4x8x8xbf16>, vector<4x8x8xf32> -> vector<4x8x8xf32>
    "tpu.trace_stop"() : () -> ()
    %179 = arith.addf %173, %178 : vector<4x8x8xf32>
    %180 = vector.shape_cast %179 : vector<4x8x8xf32> to vector<32x8xf32>
    %181 = arith.truncf %180 : vector<32x8xf32> to vector<32x8xbf16>
    %c0_47 = arith.constant 0 : index
    %c16 = arith.constant 16 : index
    %182 = vector.load %arg7[%c0_47, %c16] : memref<32x32xbf16, #tpu.memory_space<vmem>>, vector<32x8xbf16>
    tpu.vector_store %arg7[%c0_47, %c16], %181 {strides = array<i32>} : memref<32x32xbf16, #tpu.memory_space<vmem>>, vector<32x8xbf16>,
    %183 = vector.extract_strided_slice %66 {offsets = [0, 0, 24], sizes = [4, 8, 8], strides = [1, 1, 1]} : vector<4x8x32xbf16> to vector<4x8x8xbf16>
    %184 = vector.extract_strided_slice %72 {offsets = [0, 0, 24], sizes = [4, 16, 8], strides = [1, 1, 1]} : vector<4x16x32xbf16> to vector<4x16x8xbf16>
    "tpu.trace_start"() <{level = 10 : i32, message = "bqd,bkd->bqk"}> : () -> ()
    %cst_48 = arith.constant dense<0.000000e+00> : vector<4x8x16xf32>
    %185 = tpu.matmul %183, %184, %cst_48 {dimension_numbers = #tpu.dot_dimension_numbers<[2], [2], [1], [1], [0, 0, 0, 1, 1, 1], [0], [0]>} : vector<4x8x8xbf16>, vector<4x16x8xbf16>, vector<4x8x16xf32> -> vector<4x8x16xf32>
    "tpu.trace_stop"() : () -> ()
    %186 = vector.extract_strided_slice %68 {offsets = [0, 0, 24], sizes = [4, 8, 8], strides = [1, 1, 1]} : vector<4x8x32xbf16> to vector<4x8x8xbf16>
    "tpu.trace_start"() <{level = 10 : i32, message = "bqd,bkd->bqk"}> : () -> ()
    %cst_49 = arith.constant dense<0.000000e+00> : vector<4x8x8xf32>
    %187 = tpu.matmul %183, %186, %cst_49 {dimension_numbers = #tpu.dot_dimension_numbers<[2], [2], [1], [1], [0, 0, 0, 1, 1, 1], [0], [0]>} : vector<4x8x8xbf16>, vector<4x8x8xbf16>, vector<4x8x8xf32> -> vector<4x8x8xf32>
    "tpu.trace_stop"() : () -> ()
    %cst_50 = arith.constant dense<0xFF800000> : vector<4x8xf32>
    %188 = vector.multi_reduction <maximumf>, %185, %cst_50 [2] : vector<4x8x16xf32> to vector<4x8xf32>
    %189 = vector.shape_cast %188 : vector<4x8xf32> to vector<4x8x1xf32>
    %cst_51 = arith.constant dense<0xFF800000> : vector<4x8xf32>
    %190 = vector.multi_reduction <maximumf>, %187, %cst_51 [2] : vector<4x8x8xf32> to vector<4x8xf32>
    %191 = vector.shape_cast %190 : vector<4x8xf32> to vector<4x8x1xf32>
    %192 = arith.maximumf %189, %191 : vector<4x8x1xf32>
    %193 = vector.broadcast %192 : vector<4x8x1xf32> to vector<4x8x16xf32>
    %194 = arith.subf %185, %193 : vector<4x8x16xf32>
    %195 = math.exp %194 : vector<4x8x16xf32>
    %196 = vector.broadcast %192 : vector<4x8x1xf32> to vector<4x8x8xf32>
    %197 = arith.subf %187, %196 : vector<4x8x8xf32>
    %198 = math.exp %197 : vector<4x8x8xf32>
    %cst_52 = arith.constant dense<0.000000e+00> : vector<4x8xf32>
    %199 = vector.multi_reduction <add>, %195, %cst_52 [2] : vector<4x8x16xf32> to vector<4x8xf32>
    %200 = vector.shape_cast %199 : vector<4x8xf32> to vector<4x8x1xf32>
    %cst_53 = arith.constant dense<0.000000e+00> : vector<4x8xf32>
    %201 = vector.multi_reduction <add>, %198, %cst_53 [2] : vector<4x8x8xf32> to vector<4x8xf32>
    %202 = vector.shape_cast %201 : vector<4x8xf32> to vector<4x8x1xf32>
    %203 = arith.addf %200, %202 : vector<4x8x1xf32>
    %204 = tpu.reciprocal %203 {approx = true} : vector<4x8x1xf32> -> vector<4x8x1xf32>
    %205 = vector.broadcast %204 : vector<4x8x1xf32> to vector<4x8x16xf32>
    %206 = arith.mulf %195, %205 : vector<4x8x16xf32>
    %207 = arith.truncf %206 : vector<4x8x16xf32> to vector<4x8x16xbf16>
    %208 = vector.extract_strided_slice %74 {offsets = [0, 0, 24], sizes = [4, 16, 8], strides = [1, 1, 1]} : vector<4x16x32xbf16> to vector<4x16x8xbf16>
    "tpu.trace_start"() <{level = 10 : i32, message = "bqk,bkd->bqd"}> : () -> ()
    %cst_54 = arith.constant dense<0.000000e+00> : vector<4x8x8xf32>
    %209 = tpu.matmul %207, %208, %cst_54 {dimension_numbers = #tpu.dot_dimension_numbers<[2], [1], [1], [2], [0, 0, 0, 1, 1, 2], [0], [0]>} : vector<4x8x16xbf16>, vector<4x16x8xbf16>, vector<4x8x8xf32> -> vector<4x8x8xf32>
    "tpu.trace_stop"() : () -> ()
    %210 = vector.broadcast %204 : vector<4x8x1xf32> to vector<4x8x8xf32>
    %211 = arith.mulf %198, %210 : vector<4x8x8xf32>
    %212 = arith.truncf %211 : vector<4x8x8xf32> to vector<4x8x8xbf16>
    %213 = vector.extract_strided_slice %70 {offsets = [0, 0, 24], sizes = [4, 8, 8], strides = [1, 1, 1]} : vector<4x8x32xbf16> to vector<4x8x8xbf16>
    "tpu.trace_start"() <{level = 10 : i32, message = "bqk,bkd->bqd"}> : () -> ()
    %cst_55 = arith.constant dense<0.000000e+00> : vector<4x8x8xf32>
    %214 = tpu.matmul %212, %213, %cst_55 {dimension_numbers = #tpu.dot_dimension_numbers<[2], [1], [1], [2], [0, 0, 0, 1, 1, 2], [0], [0]>} : vector<4x8x8xbf16>, vector<4x8x8xbf16>, vector<4x8x8xf32> -> vector<4x8x8xf32>
    "tpu.trace_stop"() : () -> ()
    %215 = arith.addf %209, %214 : vector<4x8x8xf32>
    %216 = vector.shape_cast %215 : vector<4x8x8xf32> to vector<32x8xf32>
    %217 = arith.truncf %216 : vector<32x8xf32> to vector<32x8xbf16>
    %c0_56 = arith.constant 0 : index
    %c24 = arith.constant 24 : index
    %218 = vector.load %arg7[%c0_56, %c24] : memref<32x32xbf16, #tpu.memory_space<vmem>>, vector<32x8xbf16>
    tpu.vector_store %arg7[%c0_56, %c24], %217 {strides = array<i32>} : memref<32x32xbf16, #tpu.memory_space<vmem>>, vector<32x8xbf16>,
    %c0_57 = arith.constant 0 : index
    %c0_58 = arith.constant 0 : index
    %219 = vector.load %arg7[%c0_57, %c0_58] : memref<32x32xbf16, #tpu.memory_space<vmem>>, vector<32x32xbf16>
    %c0_59 = arith.constant 0 : index
    %c0_60 = arith.constant 0 : index
    %220 = vector.load %arg5[%c0_59, %c0_60] : memref<32x32xbf16, #tpu.memory_space<vmem>>, vector<32x32xbf16>
    %cst_61 = arith.constant dense<0.000000e+00> : vector<32x32xf32>
    %221 = tpu.matmul %219, %220, %cst_61 {dimension_numbers = #tpu.dot_dimension_numbers<[1], [0], [0], [1], [0, 0, 1, 1], [], []>} : vector<32x32xbf16>, vector<32x32xbf16>, vector<32x32xf32> -> vector<32x32xf32>
    %222 = vector.shape_cast %221 : vector<32x32xf32> to vector<4x8x32xf32>
    %c0_62 = arith.constant 0 : index
    %c0_63 = arith.constant 0 : index
    %c0_64 = arith.constant 0 : index
    %223 = vector.load %arg6[%c0_62, %c0_63, %c0_64] : memref<4x8x32xf32, #tpu.memory_space<vmem>>, vector<4x8x32xf32>
    tpu.vector_store %arg6[%c0_62, %c0_63, %c0_64], %222 {strides = array<i32>} : memref<4x8x32xf32, #tpu.memory_space<vmem>>, vector<4x8x32xf32>,
    return
  }
  func.func @transform_0(%arg0: i32) -> (i32, i32, i32) {
    %c0_i32 = arith.constant 0 : i32
    %c0_i32_0 = arith.constant 0 : i32
    %c0_i32_1 = arith.constant 0 : i32
    return %arg0, %c0_i32, %c0_i32_0 : i32, i32, i32
  }
  func.func @transform_1(%arg0: i32) -> (i32, i32, i32) {
    %c0_i32 = arith.constant 0 : i32
    %c0_i32_0 = arith.constant 0 : i32
    %c0_i32_1 = arith.constant 0 : i32
    return %arg0, %c0_i32, %c0_i32_0 : i32, i32, i32
  }
  func.func @transform_2(%arg0: i32) -> (i32, i32) {
    %c0_i32 = arith.constant 0 : i32
    %c0_i32_0 = arith.constant 0 : i32
    %c0_i32_1 = arith.constant 0 : i32
    return %c0_i32, %c0_i32_0 : i32, i32
  }
  func.func @transform_3(%arg0: i32) -> (i32, i32) {
    %c0_i32 = arith.constant 0 : i32
    %c0_i32_0 = arith.constant 0 : i32
    %c0_i32_1 = arith.constant 0 : i32
    return %c0_i32, %c0_i32_0 : i32, i32
  }
  func.func @transform_4(%arg0: i32) -> (i32, i32) {
    %c0_i32 = arith.constant 0 : i32
    %c0_i32_0 = arith.constant 0 : i32
    %c0_i32_1 = arith.constant 0 : i32
    return %c0_i32, %c0_i32_0 : i32, i32
  }
  func.func @transform_5(%arg0: i32) -> (i32, i32, i32) {
    %c0_i32 = arith.constant 0 : i32
    %c0_i32_0 = arith.constant 0 : i32
    %c0_i32_1 = arith.constant 0 : i32
    return %arg0, %c0_i32, %c0_i32_0 : i32, i32, i32
  }
}

</mosaic_0001>

<llo_original>
// kernel: tpu_custom_call.1
$region0: #{tpu_custom_call.1}
  #allocation0 [shape = 'u32[]', space=smem, size = 0x4, offset = 0x4, fixed_abs, tag = 'smem constant byte address 0x4 - core index']
  #allocation1 [shape = 'u32[144,128]{1,0:T(1,128)}', space=vmem, size = 0x12000, scoped, tag = 'internal scratch']
  #allocation2 [shape = 'bf16[32,32]{1,0:T(16,128)(2,1)}', space=vmem, size = 0x2000, scoped, tag = 'scratch operand']
  %s0 = inlined_call_operand.hbm [shape: f32[4,16,32], index: 0, kind: input, shape index: {}]
  %s1 = inlined_call_operand.hbm [shape: f32[4,8,32], index: 1, kind: input, shape index: {}]
  %s2 = inlined_call_operand.hbm [shape: f32[4,32], index: 2, kind: input, shape index: {}]
  %s3 = inlined_call_operand.hbm [shape: bf16[32,96], index: 3, kind: input, shape index: {}]
  %s4 = inlined_call_operand.hbm [shape: bf16[32,32], index: 4, kind: input, shape index: {}]
  %s5 = inlined_call_operand.hbm [shape: f32[4,8,32], index: 5, kind: output, shape index: {}]
  %s6 = sld [smem:[#allocation0]]
  $region50: #{tpu_custom_call.1} parent=0
    _
  %s8 = ssub.s32 1, %s6
  %s9 = scalar_select 0, %s8, %s6
  $region1: #{tpu_custom_call.1} parent=0
    #allocation3 [shape = 'u8[32768]{0}', space=vmem, size = 0x8000, scoped, tag = 'input window, operand 0, single buffered']
    #allocation4 [shape = 's32[1]{0}', space=sflag, size = 0x4, scoped, tag = 'scoped memory for tpu_custom_call.1']
    #allocation5 [shape = 's32[1]{0}', space=sflag, size = 0x4, scoped, tag = 'scoped memory for tpu_custom_call.1']
    #allocation6 [shape = 'u8[16384]{0}', space=vmem, size = 0x4000, scoped, tag = 'input window, operand 1, single buffered']
    #allocation7 [shape = 's32[1]{0}', space=sflag, size = 0x4, scoped, tag = 'scoped memory for tpu_custom_call.1']
    #allocation8 [shape = 'u8[2048]{0}', space=vmem, size = 0x800, scoped, tag = 'input window, operand 2, single buffered']
    #allocation9 [shape = 'u8[8192]{0}', space=vmem, size = 0x2000, scoped, tag = 'input window, operand 3, single buffered']
    #allocation10 [shape = 's32[1]{0}', space=sflag, size = 0x4, scoped, tag = 'scoped memory for tpu_custom_call.1']
    #allocation11 [shape = 'u8[8192]{0}', space=vmem, size = 0x2000, scoped, tag = 'input window, operand 4, single buffered']
    #allocation12 [shape = 'u8[16384]{0}', space=vmem, size = 0x4000, scoped, tag = 'output window, operand 0, single buffered']
    %10 = vsyncpa [#allocation4], 0
    %11 = vsyncpa [#allocation7], 0
    %12 = vsyncpa [#allocation10], 0
    %13 = vsyncpa [#allocation5], 0
    // Predicated region
    $region2: #{tpu_custom_call.1} parent=1 // pred_check
      _
    $region3: #{tpu_custom_call.1} parent=1 // pred_check_branch
      %15 = sbr.rel (0) target = $region5
    $region4: #{tpu_custom_call.1} parent=1 // pred_region
      %s17 = ssub.s32 1024, 1024
      %18 = vsyncadd [#allocation4], %s17
      %s19 = sshll.u32 [#allocation3], 4
      %s20 = int_to_ptr.vmem [resolvable:$true] %s19
      %25 = dma.hbm_to_vmem [thread:$0]  %s0, 1024, %s20, [#allocation4], 128, 128, 8
    $region5: #{tpu_custom_call.1} parent=1 // pred_fallthru
      _
    // Predicated region
    $region6: #{tpu_custom_call.1} parent=1 // pred_check
      _
    $region7: #{tpu_custom_call.1} parent=1 // pred_check_branch
      %27 = sbr.rel (0) target = $region9
    $region8: #{tpu_custom_call.1} parent=1 // pred_region
      %s29 = ssub.s32 512, 512
      %30 = vsyncadd [#allocation7], %s29
      %s31 = sshll.u32 [#allocation6], 4
      %s32 = int_to_ptr.vmem [resolvable:$true] %s31
      %37 = dma.hbm_to_vmem [thread:$0]  %s1, 512, %s32, [#allocation7], 128, 128, 8
    $region9: #{tpu_custom_call.1} parent=1 // pred_fallthru
      _
    // Predicated region
    $region10: #{tpu_custom_call.1} parent=1 // pred_check
      _
    $region11: #{tpu_custom_call.1} parent=1 // pred_check_branch
      %39 = sbr.rel (0) target = $region13
    $region12: #{tpu_custom_call.1} parent=1 // pred_region
      %s41 = ssub.s32 64, 64
      %42 = vsyncadd [#allocation7], %s41
      %s44 = sshll.u32 [#allocation8], 4
      %s45 = int_to_ptr.vmem [resolvable:$true] %s44
      %47 = dma.hbm_to_vmem [thread:$0]  %s2, 64, %s45, [#allocation7]
    $region13: #{tpu_custom_call.1} parent=1 // pred_fallthru
      _
    // Predicated region
    $region14: #{tpu_custom_call.1} parent=1 // pred_check
      _
    $region15: #{tpu_custom_call.1} parent=1 // pred_check_branch
      %49 = sbr.rel (0) target = $region17
    $region16: #{tpu_custom_call.1} parent=1 // pred_region
      %s51 = ssub.s32 256, 256
      %52 = vsyncadd [#allocation10], %s51
      %s53 = sshll.u32 [#allocation9], 4
      %s54 = int_to_ptr.vmem [resolvable:$true] %s53
      %59 = dma.hbm_to_vmem [thread:$0]  %s3, 256, %s54, [#allocation10], 64, 64, 4
    $region17: #{tpu_custom_call.1} parent=1 // pred_fallthru
      _
    // Predicated region
    $region18: #{tpu_custom_call.1} parent=1 // pred_check
      _
    $region19: #{tpu_custom_call.1} parent=1 // pred_check_branch
      %61 = sbr.rel (0) target = $region21
    $region20: #{tpu_custom_call.1} parent=1 // pred_region
      %s63 = ssub.s32 256, 256
      %64 = vsyncadd [#allocation10], %s63
      %s65 = sshll.u32 [#allocation11], 4
      %s66 = int_to_ptr.vmem [resolvable:$true] %s65
      %71 = dma.hbm_to_vmem [thread:$0]  %s4, 256, %s66, [#allocation10], 64, 64, 4
    $region21: #{tpu_custom_call.1} parent=1 // pred_fallthru
      _
    // Predicated region
    $region22: #{tpu_custom_call.1} parent=1 // pred_check
      _
    $region23: #{tpu_custom_call.1} parent=1 // pred_check_branch
      %73 = sbr.rel (0) target = $region25
    $region24: #{tpu_custom_call.1} parent=1 // pred_region
      %74 = dma.done [#allocation4], 1024
    $region25: #{tpu_custom_call.1} parent=1 // pred_fallthru
      _
    // Predicated region
    $region26: #{tpu_custom_call.1} parent=1 // pred_check
      _
    $region27: #{tpu_custom_call.1} parent=1 // pred_check_branch
      %76 = sbr.rel (0) target = $region29
    $region28: #{tpu_custom_call.1} parent=1 // pred_region
      %77 = dma.done [#allocation7], 512
    $region29: #{tpu_custom_call.1} parent=1 // pred_fallthru
      _
    // Predicated region
    $region30: #{tpu_custom_call.1} parent=1 // pred_check
      _
    $region31: #{tpu_custom_call.1} parent=1 // pred_check_branch
      %79 = sbr.rel (0) target = $region33
    $region32: #{tpu_custom_call.1} parent=1 // pred_region
      %80 = dma.done [#allocation7], 64
    $region33: #{tpu_custom_call.1} parent=1 // pred_fallthru
      _
    // Predicated region
    $region34: #{tpu_custom_call.1} parent=1 // pred_check
      _
    $region35: #{tpu_custom_call.1} parent=1 // pred_check_branch
      %82 = sbr.rel (0) target = $region37
    $region36: #{tpu_custom_call.1} parent=1 // pred_region
      %83 = dma.done [#allocation10], 256
    $region37: #{tpu_custom_call.1} parent=1 // pred_fallthru
      _
    // Predicated region
    $region38: #{tpu_custom_call.1} parent=1 // pred_check
      _
    $region39: #{tpu_custom_call.1} parent=1 // pred_check_branch
      %85 = sbr.rel (0) target = $region41
    $region40: #{tpu_custom_call.1} parent=1 // pred_region
      %86 = dma.done [#allocation10], 256
    $region41: #{tpu_custom_call.1} parent=1 // pred_fallthru
      _
    %v88 = vld [vmem:[#allocation3] sm:$0xff]
    %v89 = vld [vmem:[#allocation3 + $0x8] sm:$0xff]
    %v90 = vld [vmem:[#allocation3 + $0x10] sm:$0xff]
    %v91 = vld [vmem:[#allocation3 + $0x18] sm:$0xff]
    %v92 = vld [vmem:[#allocation3 + $0x20] sm:$0xff]
    %v93 = vld [vmem:[#allocation3 + $0x28] sm:$0xff]
    %v94 = vld [vmem:[#allocation3 + $0x30] sm:$0xff]
    %v95 = vld [vmem:[#allocation3 + $0x38] sm:$0xff]
    %v96 = vld [vmem:[#allocation6] sm:$0xff]
    %v97 = vld [vmem:[#allocation6 + $0x8] sm:$0xff]
    %v98 = vld [vmem:[#allocation6 + $0x10] sm:$0xff]
    %v99 = vld [vmem:[#allocation6 + $0x18] sm:$0xff]
    %v100 = vld [vmem:[#allocation8] sm:$0xf]
    %vm101 = vcmask 261120
    %v102 = vsel %vm101, %v88, 0.0
    %103 = vadd.xlane.f32.xlu0 %v102
    %v104 = vpop.xlane.xlu0 %103
    %v105 = vsel %vm101, %v89, 0.0
    %106 = vadd.xlane.f32.xlu0 %v105
    %v107 = vpop.xlane.xlu0 %106
    %v108 = vsel %vm101, %v90, 0.0
    %109 = vadd.xlane.f32.xlu0 %v108
    %v110 = vpop.xlane.xlu0 %109
    %v111 = vsel %vm101, %v91, 0.0
    %112 = vadd.xlane.f32.xlu0 %v111
    %v113 = vpop.xlane.xlu0 %112
    %v114 = vsel %vm101, %v92, 0.0
    %115 = vadd.xlane.f32.xlu0 %v114
    %v116 = vpop.xlane.xlu0 %115
    %v117 = vsel %vm101, %v93, 0.0
    %118 = vadd.xlane.f32.xlu0 %v117
    %v119 = vpop.xlane.xlu0 %118
    %v120 = vsel %vm101, %v94, 0.0
    %121 = vadd.xlane.f32.xlu0 %v120
    %v122 = vpop.xlane.xlu0 %121
    %v123 = vsel %vm101, %v95, 0.0
    %124 = vadd.xlane.f32.xlu0 %v123
    %v125 = vpop.xlane.xlu0 %124
    %v126 = vrcp.pop 32.0
    %v127 = vmul.f32 %v104, %v126
    %v128 = vmul.f32 %v107, %v126
    %v129 = vmul.f32 %v110, %v126
    %v130 = vmul.f32 %v113, %v126
    %v131 = vmul.f32 %v116, %v126
    %v132 = vmul.f32 %v119, %v126
    %v133 = vmul.f32 %v122, %v126
    %v134 = vmul.f32 %v125, %v126
    %v135 = vmul.f32 %v88, %v88
    %v136 = vmul.f32 %v89, %v89
    %v137 = vmul.f32 %v90, %v90
    %v138 = vmul.f32 %v91, %v91
    %v139 = vmul.f32 %v92, %v92
    %v140 = vmul.f32 %v93, %v93
    %v141 = vmul.f32 %v94, %v94
    %v142 = vmul.f32 %v95, %v95
    %v143 = vsel %vm101, %v135, 0.0
    %144 = vadd.xlane.f32.xlu0 %v143
    %v145 = vpop.xlane.xlu0 %144
    %v146 = vsel %vm101, %v136, 0.0
    %147 = vadd.xlane.f32.xlu0 %v146
    %v148 = vpop.xlane.xlu0 %147
    %v149 = vsel %vm101, %v137, 0.0
    %150 = vadd.xlane.f32.xlu0 %v149
    %v151 = vpop.xlane.xlu0 %150
    %v152 = vsel %vm101, %v138, 0.0
    %153 = vadd.xlane.f32.xlu0 %v152
    %v154 = vpop.xlane.xlu0 %153
    %v155 = vsel %vm101, %v139, 0.0
    %156 = vadd.xlane.f32.xlu0 %v155
    %v157 = vpop.xlane.xlu0 %156
    %v158 = vsel %vm101, %v140, 0.0
    %159 = vadd.xlane.f32.xlu0 %v158
    %v160 = vpop.xlane.xlu0 %159
    %v161 = vsel %vm101, %v141, 0.0
    %162 = vadd.xlane.f32.xlu0 %v161
    %v163 = vpop.xlane.xlu0 %162
    %v164 = vsel %vm101, %v142, 0.0
    %165 = vadd.xlane.f32.xlu0 %v164
    %v166 = vpop.xlane.xlu0 %165
    %v167 = vmul.f32 %v145, %v126
    %v168 = vmul.f32 %v148, %v126
    %v169 = vmul.f32 %v151, %v126
    %v170 = vmul.f32 %v154, %v126
    %v171 = vmul.f32 %v157, %v126
    %v172 = vmul.f32 %v160, %v126
    %v173 = vmul.f32 %v163, %v126
    %v174 = vmul.f32 %v166, %v126
    %v175 = vmul.f32 %v127, %v127
    %v176 = vmul.f32 %v128, %v128
    %v177 = vmul.f32 %v129, %v129
    %v178 = vmul.f32 %v130, %v130
    %v179 = vmul.f32 %v131, %v131
    %v180 = vmul.f32 %v132, %v132
    %v181 = vmul.f32 %v133, %v133
    %v182 = vmul.f32 %v134, %v134
    %v183 = vsub.f32 %v167, %v175
    %v184 = vsub.f32 %v168, %v176
    %v185 = vsub.f32 %v169, %v177
    %v186 = vsub.f32 %v170, %v178
    %v187 = vsub.f32 %v171, %v179
    %v188 = vsub.f32 %v172, %v180
    %v189 = vsub.f32 %v173, %v181
    %v190 = vsub.f32 %v174, %v182
    %v191 = vsub.f32 %v88, %v127
    %v192 = vsub.f32 %v89, %v128
    %v193 = vsub.f32 %v90, %v129
    %v194 = vsub.f32 %v91, %v130
    %v195 = vsub.f32 %v92, %v131
    %v196 = vsub.f32 %v93, %v132
    %v197 = vsub.f32 %v94, %v133
    %v198 = vsub.f32 %v95, %v134
    %v199 = vadd.f32 %v183, 1e-05
    %v200 = vadd.f32 %v184, 1e-05
    %v201 = vadd.f32 %v185, 1e-05
    %v202 = vadd.f32 %v186, 1e-05
    %v203 = vadd.f32 %v187, 1e-05
    %v204 = vadd.f32 %v188, 1e-05
    %v205 = vadd.f32 %v189, 1e-05
    %v206 = vadd.f32 %v190, 1e-05
    %v207 = vrsqrt.pop %v199
    %v208 = vrsqrt.pop %v200
    %v209 = vrsqrt.pop %v201
    %v210 = vrsqrt.pop %v202
    %v211 = vrsqrt.pop %v203
    %v212 = vrsqrt.pop %v204
    %v213 = vrsqrt.pop %v205
    %v214 = vrsqrt.pop %v206
    %v215 = vmul.f32 %v191, %v207
    %v216 = vmul.f32 %v192, %v208
    %v217 = vmul.f32 %v193, %v209
    %v218 = vmul.f32 %v194, %v210
    %v219 = vmul.f32 %v195, %v211
    %v220 = vmul.f32 %v196, %v212
    %v221 = vmul.f32 %v197, %v213
    %v222 = vmul.f32 %v198, %v214
    %v223 = vlaneseq
    %v224 = vshrl.u32 %v223, 7
    %v225 = vsub.s32 0, %v224
    %v226 = vrot.slane %v100, %v225
    %v227 = vmul.f32 %v215, %v226
    %v228 = vmul.f32 %v216, %v226
    %v229 = vmul.f32 %v217, %v226
    %v230 = vmul.f32 %v218, %v226
    %v231 = vmul.f32 %v219, %v226
    %v232 = vmul.f32 %v220, %v226
    %v233 = vmul.f32 %v221, %v226
    %v234 = vmul.f32 %v222, %v226
    %v235 = vlaneseq
    %v236 = vshrl.u32 %v235, 7
    %v237 = vsub.s32 1, %v236
    %v238 = vrot.slane %v100, %v237
    %v239 = vadd.f32 %v227, %v238
    %v240 = vadd.f32 %v228, %v238
    %v241 = vadd.f32 %v229, %v238
    %v242 = vadd.f32 %v230, %v238
    %v243 = vadd.f32 %v231, %v238
    %v244 = vadd.f32 %v232, %v238
    %v245 = vadd.f32 %v233, %v238
    %v246 = vadd.f32 %v234, %v238
    %v247 = vsel %vm101, %v96, 0.0
    %248 = vadd.xlane.f32.xlu0 %v247
    %v249 = vpop.xlane.xlu0 %248
    %v250 = vsel %vm101, %v97, 0.0
    %251 = vadd.xlane.f32.xlu0 %v250
    %v252 = vpop.xlane.xlu0 %251
    %v253 = vsel %vm101, %v98, 0.0
    %254 = vadd.xlane.f32.xlu0 %v253
    %v255 = vpop.xlane.xlu0 %254
    %v256 = vsel %vm101, %v99, 0.0
    %257 = vadd.xlane.f32.xlu0 %v256
    %v258 = vpop.xlane.xlu0 %257
    %v259 = vmul.f32 %v249, %v126
    %v260 = vmul.f32 %v252, %v126
    %v261 = vmul.f32 %v255, %v126
    %v262 = vmul.f32 %v258, %v126
    %v263 = vmul.f32 %v96, %v96
    %v264 = vmul.f32 %v97, %v97
    %v265 = vmul.f32 %v98, %v98
    %v266 = vmul.f32 %v99, %v99
    %v267 = vsel %vm101, %v263, 0.0
    %268 = vadd.xlane.f32.xlu0 %v267
    %v269 = vpop.xlane.xlu0 %268
    %v270 = vsel %vm101, %v264, 0.0
    %271 = vadd.xlane.f32.xlu0 %v270
    %v272 = vpop.xlane.xlu0 %271
    %v273 = vsel %vm101, %v265, 0.0
    %274 = vadd.xlane.f32.xlu0 %v273
    %v275 = vpop.xlane.xlu0 %274
    %v276 = vsel %vm101, %v266, 0.0
    %277 = vadd.xlane.f32.xlu0 %v276
    %v278 = vpop.xlane.xlu0 %277
    %v279 = vmul.f32 %v269, %v126
    %v280 = vmul.f32 %v272, %v126
    %v281 = vmul.f32 %v275, %v126
    %v282 = vmul.f32 %v278, %v126
    %v283 = vmul.f32 %v259, %v259
    %v284 = vmul.f32 %v260, %v260
    %v285 = vmul.f32 %v261, %v261
    %v286 = vmul.f32 %v262, %v262
    %v287 = vsub.f32 %v279, %v283
    %v288 = vsub.f32 %v280, %v284
    %v289 = vsub.f32 %v281, %v285
    %v290 = vsub.f32 %v282, %v286
    %v291 = vsub.f32 %v96, %v259
    %v292 = vsub.f32 %v97, %v260
    %v293 = vsub.f32 %v98, %v261
    %v294 = vsub.f32 %v99, %v262
    %v295 = vadd.f32 %v287, 1e-05
    %v296 = vadd.f32 %v288, 1e-05
    %v297 = vadd.f32 %v289, 1e-05
    %v298 = vadd.f32 %v290, 1e-05
    %v299 = vrsqrt.pop %v295
    %v300 = vrsqrt.pop %v296
    %v301 = vrsqrt.pop %v297
    %v302 = vrsqrt.pop %v298
    %v303 = vmul.f32 %v291, %v299
    %v304 = vmul.f32 %v292, %v300
    %v305 = vmul.f32 %v293, %v301
    %v306 = vmul.f32 %v294, %v302
    %v307 = vlaneseq
    %v308 = vshrl.u32 %v307, 7
    %v309 = vsub.s32 2, %v308
    %v310 = vrot.slane %v100, %v309
    %v311 = vmul.f32 %v303, %v310
    %v312 = vmul.f32 %v304, %v310
    %v313 = vmul.f32 %v305, %v310
    %v314 = vmul.f32 %v306, %v310
    %v315 = vlaneseq
    %v316 = vshrl.u32 %v315, 7
    %v317 = vsub.s32 3, %v316
    %v318 = vrot.slane %v100, %v317
    %v319 = vadd.f32 %v311, %v318
    %v320 = vadd.f32 %v312, %v318
    %v321 = vadd.f32 %v313, %v318
    %v322 = vadd.f32 %v314, %v318
    %v323 = vpack.c.bf16 %v240, %v239
    %v324 = vpack.c.bf16 %v242, %v241
    %v325 = vpack.c.bf16 %v244, %v243
    %v326 = vpack.c.bf16 %v246, %v245
    %v327 = vpack.c.bf16 %v319, %v319
    %v328 = vpack.c.bf16 %v320, %v320
    %v329 = vpack.c.bf16 %v321, %v321
    %v330 = vpack.c.bf16 %v322, %v322
    %v331 = vld [vmem:[#allocation9] sm:$0xf]
    %v332 = vld [vmem:[#allocation9 + $0x4] sm:$0xf]
    %v333 = vld [vmem:[#allocation9 + $0x8] sm:$0xf]
    %v334 = vld [vmem:[#allocation9 + $0xc] sm:$0xf]
    %v339 = vunpack.c.l.b16 %v327
    %v340 = vunpack.c.l.b16 %v328
    %v341 = vunpack.c.l.b16 %v329
    %v342 = vunpack.c.l.b16 %v330
    %v343 = vpack.c.b16 %v340, %v339
    %v344 = vpack.c.b16 %v342, %v341
    %v349 = vunpack.c.l.b16 %v331
    %v350 = vunpack.c.l.b16 %v332
    %v351 = vunpack.c.l.b16 %v333
    %v352 = vunpack.c.l.b16 %v334
    %v353 = vpack.c.b16 %v350, %v349
    %v354 = vpack.c.b16 %v352, %v351
    %v358 = vsel %vm101, %v343, 0
    %v361 = vsel %vm101, %v344, 0
    %363 = vmatprep.subr.bf16.mxu0 0
    %364 = vmatpush1.bf16.msra.mxu0 %v353
    %365 = vmatprep.subr.bf16.mxu0 0
    %366 = vmatpush1.bf16.msra.mxu0 %v354
    %367 = vmatprep.subr.bf16.mxu0 0
    %368 = vmatpush1.bf16.msra.mxu0 0
    %369 = vmatprep.subr.bf16.mxu0 0
    %370 = vmatpush1.bf16.msra.mxu0 0
    %371 = vmatprep.subr.bf16.mxu0 0
    %372 = vmatpush1.bf16.msra.mxu0 0
    %373 = vmatprep.subr.bf16.mxu0 0
    %374 = vmatpush1.bf16.msra.mxu0 0
    %375 = vmatprep.subr.bf16.mxu0 0
    %376 = vmatpush1.bf16.msra.mxu0 0
    %377 = vmatprep.subr.bf16.mxu0 0
    %378 = vmatpush1.bf16.msra.mxu0 0
    %379 = vmatprep.subr.bf16.mxu0 0
    %380 = vmatpush1.bf16.msra.mxu0 0
    %381 = vmatprep.subr.bf16.mxu0 0
    %382 = vmatpush1.bf16.msra.mxu0 0
    %383 = vmatprep.subr.bf16.mxu0 0
    %384 = vmatpush1.bf16.msra.mxu0 0
    %385 = vmatprep.subr.bf16.mxu0 0
    %386 = vmatpush1.bf16.msra.mxu0 0
    %387 = vmatprep.subr.bf16.mxu0 0
    %388 = vmatpush1.bf16.msra.mxu0 0
    %389 = vmatprep.subr.bf16.mxu0 0
    %390 = vmatpush1.bf16.msra.mxu0 0
    %391 = vmatprep.subr.bf16.mxu0 0
    %392 = vmatpush1.bf16.msra.mxu0 0
    %393 = vmatprep.subr.bf16.mxu0 0
    %394 = vmatpush1.bf16.msra.mxu0 0
    %395 = vmatprep.mubr.bf16.mxu0 0
    %396 = vmatmul.mubr.bf16.gmra.mrb[0].mxu0 %v358
    %v397 = vpop.f32.mrb[0].mxu0
    %v398 = vadd.f32 0.0, %v397
    %v399 = vpop.f32.mrb[0].mxu0
    %v400 = vpop.f32.mrb[0].mxu0
    %v401 = vadd.f32 0.0, %v400
    %v402 = vpop.f32.mrb[0].mxu0
    %403 = vmatprep.mubr.bf16.mxu0 0
    %404 = vmatmul.mubr.bf16.gmra.mrb[0].mxu0 %v361
    %v405 = vpop.f32.mrb[0].mxu0
    %v406 = vadd.f32 0.0, %v405
    %v407 = vpop.f32.mrb[0].mxu0
    %v408 = vpop.f32.mrb[0].mxu0
    %v409 = vadd.f32 0.0, %v408
    %v410 = vpop.f32.mrb[0].mxu0
    %411 = vdwg.mxu0
    %v412 = vpack.c.bf16 %v401, %v398
    %v413 = vpack.c.bf16 %v409, %v406
    %414 = vrot.lane.b32.xlu0 %v353, 96
    %v415 = vpop.permute.xlu0 %414
    %416 = vrot.lane.b32.xlu0 %v354, 96
    %v417 = vpop.permute.xlu0 %416
    %v421 = vsel %vm101, %v323, 0
    %v424 = vsel %vm101, %v324, 0
    %v427 = vsel %vm101, %v325, 0
    %v430 = vsel %vm101, %v326, 0
    %432 = vmatprep.subr.bf16.mxu0 0
    %433 = vmatpush1.bf16.msra.mxu0 %v415
    %434 = vmatprep.subr.bf16.mxu0 0
    %435 = vmatpush1.bf16.msra.mxu0 %v417
    %436 = vmatprep.subr.bf16.mxu0 0
    %437 = vmatpush1.bf16.msra.mxu0 0
    %438 = vmatprep.subr.bf16.mxu0 0
    %439 = vmatpush1.bf16.msra.mxu0 0
    %440 = vmatprep.subr.bf16.mxu0 0
    %441 = vmatpush1.bf16.msra.mxu0 0
    %442 = vmatprep.subr.bf16.mxu0 0
    %443 = vmatpush1.bf16.msra.mxu0 0
    %444 = vmatprep.subr.bf16.mxu0 0
    %445 = vmatpush1.bf16.msra.mxu0 0
    %446 = vmatprep.subr.bf16.mxu0 0
    %447 = vmatpush1.bf16.msra.mxu0 0
    %448 = vmatprep.subr.bf16.mxu0 0
    %449 = vmatpush1.bf16.msra.mxu0 0
    %450 = vmatprep.subr.bf16.mxu0 0
    %451 = vmatpush1.bf16.msra.mxu0 0
    %452 = vmatprep.subr.bf16.mxu0 0
    %453 = vmatpush1.bf16.msra.mxu0 0
    %454 = vmatprep.subr.bf16.mxu0 0
    %455 = vmatpush1.bf16.msra.mxu0 0
    %456 = vmatprep.subr.bf16.mxu0 0
    %457 = vmatpush1.bf16.msra.mxu0 0
    %458 = vmatprep.subr.bf16.mxu0 0
    %459 = vmatpush1.bf16.msra.mxu0 0
    %460 = vmatprep.subr.bf16.mxu0 0
    %461 = vmatpush1.bf16.msra.mxu0 0
    %462 = vmatprep.subr.bf16.mxu0 0
    %463 = vmatpush1.bf16.msra.mxu0 0
    %464 = vmatprep.mubr.bf16.mxu0 0
    %465 = vmatmul.mubr.bf16.gmra.mrb[0].mxu0 %v421
    %v466 = vpop.f32.mrb[0].mxu0
    %v467 = vadd.f32 0.0, %v466
    %v468 = vpop.f32.mrb[0].mxu0
    %v469 = vpop.f32.mrb[0].mxu0
    %v470 = vadd.f32 0.0, %v469
    %v471 = vpop.f32.mrb[0].mxu0
    %472 = vmatprep.mubr.bf16.mxu0 0
    %473 = vmatmul.mubr.bf16.gmra.mrb[0].mxu0 %v424
    %v474 = vpop.f32.mrb[0].mxu0
    %v475 = vadd.f32 0.0, %v474
    %v476 = vpop.f32.mrb[0].mxu0
    %v477 = vpop.f32.mrb[0].mxu0
    %v478 = vadd.f32 0.0, %v477
    %v479 = vpop.f32.mrb[0].mxu0
    %480 = vmatprep.mubr.bf16.mxu0 0
    %481 = vmatmul.mubr.bf16.gmra.mrb[0].mxu0 %v427
    %v482 = vpop.f32.mrb[0].mxu0
    %v483 = vadd.f32 0.0, %v482
    %v484 = vpop.f32.mrb[0].mxu0
    %v485 = vpop.f32.mrb[0].mxu0
    %v486 = vadd.f32 0.0, %v485
    %v487 = vpop.f32.mrb[0].mxu0
    %488 = vmatprep.mubr.bf16.mxu0 0
    %489 = vmatmul.mubr.bf16.gmra.mrb[0].mxu0 %v430
    %v490 = vpop.f32.mrb[0].mxu0
    %v491 = vadd.f32 0.0, %v490
    %v492 = vpop.f32.mrb[0].mxu0
    %v493 = vpop.f32.mrb[0].mxu0
    %v494 = vadd.f32 0.0, %v493
    %v495 = vpop.f32.mrb[0].mxu0
    %496 = vdwg.mxu0
    %v497 = vpack.c.bf16 %v470, %v467
    %v498 = vpack.c.bf16 %v478, %v475
    %v499 = vpack.c.bf16 %v486, %v483
    %v500 = vpack.c.bf16 %v494, %v491
    %v503 = vunpack.c.l.b16 %v412
    %v504 = vunpack.c.h.b16 %v412
    %v505 = vunpack.c.l.b16 %v413
    %v506 = vunpack.c.h.b16 %v413
    %v507 = vpack.c.b16 %v503, %v503
    %v508 = vpack.c.b16 %v504, %v504
    %v509 = vpack.c.b16 %v505, %v505
    %v510 = vpack.c.b16 %v506, %v506
    %vm511 = vcmask 64512
    %v513 = vsel %vm511, %v507, 0
    %v516 = vsel %vm511, %v497, 0
    %518 = vmatprep.subr.bf16.mxu0 0
    %519 = vmatpush1.bf16.xpose.msra.mxu0 %v516
    %520 = vmatprep.subr.bf16.mxu0 0
    %521 = vmatpush1.bf16.xpose.msra.mxu0 0
    %522 = vmatprep.subr.bf16.mxu0 0
    %523 = vmatpush1.bf16.xpose.msra.mxu0 0
    %524 = vmatprep.subr.bf16.mxu0 0
    %525 = vmatpush1.bf16.xpose.msra.mxu0 0
    %526 = vmatprep.subr.bf16.mxu0 0
    %527 = vmatpush1.bf16.xpose.msra.mxu0 0
    %528 = vmatprep.subr.bf16.mxu0 0
    %529 = vmatpush1.bf16.xpose.msra.mxu0 0
    %530 = vmatprep.subr.bf16.mxu0 0
    %531 = vmatpush1.bf16.xpose.msra.mxu0 0
    %532 = vmatprep.subr.bf16.mxu0 0
    %533 = vmatpush1.bf16.xpose.msra.mxu0 0
    %534 = vmatprep.subr.bf16.mxu0 0
    %535 = vmatpush1.bf16.xpose.msra.mxu0 0
    %536 = vmatprep.subr.bf16.mxu0 0
    %537 = vmatpush1.bf16.xpose.msra.mxu0 0
    %538 = vmatprep.subr.bf16.mxu0 0
    %539 = vmatpush1.bf16.xpose.msra.mxu0 0
    %540 = vmatprep.subr.bf16.mxu0 0
    %541 = vmatpush1.bf16.xpose.msra.mxu0 0
    %542 = vmatprep.subr.bf16.mxu0 0
    %543 = vmatpush1.bf16.xpose.msra.mxu0 0
    %544 = vmatprep.subr.bf16.mxu0 0
    %545 = vmatpush1.bf16.xpose.msra.mxu0 0
    %546 = vmatprep.subr.bf16.mxu0 0
    %547 = vmatpush1.bf16.xpose.msra.mxu0 0
    %548 = vmatprep.subr.bf16.mxu0 0
    %549 = vmatpush1.bf16.xpose.msra.mxu0 0
    %550 = vmatprep.mubr.bf16.mxu0 0
    %551 = vmatmul.mubr.bf16.gmra.mrb[0].mxu0 %v513
    %v552 = vpop.f32.mrb[0].mxu0
    %v553 = vadd.f32 0.0, %v552
    %v554 = vpop.f32.mrb[0].mxu0
    %v555 = vpop.f32.mrb[0].mxu0
    %v556 = vpop.f32.mrb[0].mxu0
    %557 = vdwg.mxu0
    %v559 = vsel %vm511, %v508, 0
    %v562 = vsel %vm511, %v498, 0
    %564 = vmatprep.subr.bf16.mxu0 0
    %565 = vmatpush1.bf16.xpose.msra.mxu0 %v562
    %566 = vmatprep.subr.bf16.mxu0 0
    %567 = vmatpush1.bf16.xpose.msra.mxu0 0
    %568 = vmatprep.subr.bf16.mxu0 0
    %569 = vmatpush1.bf16.xpose.msra.mxu0 0
    %570 = vmatprep.subr.bf16.mxu0 0
    %571 = vmatpush1.bf16.xpose.msra.mxu0 0
    %572 = vmatprep.subr.bf16.mxu0 0
    %573 = vmatpush1.bf16.xpose.msra.mxu0 0
    %574 = vmatprep.subr.bf16.mxu0 0
    %575 = vmatpush1.bf16.xpose.msra.mxu0 0
    %576 = vmatprep.subr.bf16.mxu0 0
    %577 = vmatpush1.bf16.xpose.msra.mxu0 0
    %578 = vmatprep.subr.bf16.mxu0 0
    %579 = vmatpush1.bf16.xpose.msra.mxu0 0
    %580 = vmatprep.subr.bf16.mxu0 0
    %581 = vmatpush1.bf16.xpose.msra.mxu0 0
    %582 = vmatprep.subr.bf16.mxu0 0
    %583 = vmatpush1.bf16.xpose.msra.mxu0 0
    %584 = vmatprep.subr.bf16.mxu0 0
    %585 = vmatpush1.bf16.xpose.msra.mxu0 0
    %586 = vmatprep.subr.bf16.mxu0 0
    %587 = vmatpush1.bf16.xpose.msra.mxu0 0
    %588 = vmatprep.subr.bf16.mxu0 0
    %589 = vmatpush1.bf16.xpose.msra.mxu0 0
    %590 = vmatprep.subr.bf16.mxu0 0
    %591 = vmatpush1.bf16.xpose.msra.mxu0 0
    %592 = vmatprep.subr.bf16.mxu0 0
    %593 = vmatpush1.bf16.xpose.msra.mxu0 0
    %594 = vmatprep.subr.bf16.mxu0 0
    %595 = vmatpush1.bf16.xpose.msra.mxu0 0
    %596 = vmatprep.mubr.bf16.mxu0 0
    %597 = vmatmul.mubr.bf16.gmra.mrb[0].mxu0 %v559
    %v598 = vpop.f32.mrb[0].mxu0
    %v599 = vadd.f32 0.0, %v598
    %v600 = vpop.f32.mrb[0].mxu0
    %v601 = vpop.f32.mrb[0].mxu0
    %v602 = vpop.f32.mrb[0].mxu0
    %603 = vdwg.mxu0
    %v605 = vsel %vm511, %v509, 0
    %v608 = vsel %vm511, %v499, 0
    %610 = vmatprep.subr.bf16.mxu0 0
    %611 = vmatpush1.bf16.xpose.msra.mxu0 %v608
    %612 = vmatprep.subr.bf16.mxu0 0
    %613 = vmatpush1.bf16.xpose.msra.mxu0 0
    %614 = vmatprep.subr.bf16.mxu0 0
    %615 = vmatpush1.bf16.xpose.msra.mxu0 0
    %616 = vmatprep.subr.bf16.mxu0 0
    %617 = vmatpush1.bf16.xpose.msra.mxu0 0
    %618 = vmatprep.subr.bf16.mxu0 0
    %619 = vmatpush1.bf16.xpose.msra.mxu0 0
    %620 = vmatprep.subr.bf16.mxu0 0
    %621 = vmatpush1.bf16.xpose.msra.mxu0 0
    %622 = vmatprep.subr.bf16.mxu0 0
    %623 = vmatpush1.bf16.xpose.msra.mxu0 0
    %624 = vmatprep.subr.bf16.mxu0 0
    %625 = vmatpush1.bf16.xpose.msra.mxu0 0
    %626 = vmatprep.subr.bf16.mxu0 0
    %627 = vmatpush1.bf16.xpose.msra.mxu0 0
    %628 = vmatprep.subr.bf16.mxu0 0
    %629 = vmatpush1.bf16.xpose.msra.mxu0 0
    %630 = vmatprep.subr.bf16.mxu0 0
    %631 = vmatpush1.bf16.xpose.msra.mxu0 0
    %632 = vmatprep.subr.bf16.mxu0 0
    %633 = vmatpush1.bf16.xpose.msra.mxu0 0
    %634 = vmatprep.subr.bf16.mxu0 0
    %635 = vmatpush1.bf16.xpose.msra.mxu0 0
    %636 = vmatprep.subr.bf16.mxu0 0
    %637 = vmatpush1.bf16.xpose.msra.mxu0 0
    %638 = vmatprep.subr.bf16.mxu0 0
    %639 = vmatpush1.bf16.xpose.msra.mxu0 0
    %640 = vmatprep.subr.bf16.mxu0 0
    %641 = vmatpush1.bf16.xpose.msra.mxu0 0
    %642 = vmatprep.mubr.bf16.mxu0 0
    %643 = vmatmul.mubr.bf16.gmra.mrb[0].mxu0 %v605
    %v644 = vpop.f32.mrb[0].mxu0
    %v645 = vadd.f32 0.0, %v644
    %v646 = vpop.f32.mrb[0].mxu0
    %v647 = vpop.f32.mrb[0].mxu0
    %v648 = vpop.f32.mrb[0].mxu0
    %649 = vdwg.mxu0
    %v651 = vsel %vm511, %v510, 0
    %v654 = vsel %vm511, %v500, 0
    %656 = vmatprep.subr.bf16.mxu0 0
    %657 = vmatpush1.bf16.xpose.msra.mxu0 %v654
    %658 = vmatprep.subr.bf16.mxu0 0
    %659 = vmatpush1.bf16.xpose.msra.mxu0 0
    %660 = vmatprep.subr.bf16.mxu0 0
    %661 = vmatpush1.bf16.xpose.msra.mxu0 0
    %662 = vmatprep.subr.bf16.mxu0 0
    %663 = vmatpush1.bf16.xpose.msra.mxu0 0
    %664 = vmatprep.subr.bf16.mxu0 0
    %665 = vmatpush1.bf16.xpose.msra.mxu0 0
    %666 = vmatprep.subr.bf16.mxu0 0
    %667 = vmatpush1.bf16.xpose.msra.mxu0 0
    %668 = vmatprep.subr.bf16.mxu0 0
    %669 = vmatpush1.bf16.xpose.msra.mxu0 0
    %670 = vmatprep.subr.bf16.mxu0 0
    %671 = vmatpush1.bf16.xpose.msra.mxu0 0
    %672 = vmatprep.subr.bf16.mxu0 0
    %673 = vmatpush1.bf16.xpose.msra.mxu0 0
    %674 = vmatprep.subr.bf16.mxu0 0
    %675 = vmatpush1.bf16.xpose.msra.mxu0 0
    %676 = vmatprep.subr.bf16.mxu0 0
    %677 = vmatpush1.bf16.xpose.msra.mxu0 0
    %678 = vmatprep.subr.bf16.mxu0 0
    %679 = vmatpush1.bf16.xpose.msra.mxu0 0
    %680 = vmatprep.subr.bf16.mxu0 0
    %681 = vmatpush1.bf16.xpose.msra.mxu0 0
    %682 = vmatprep.subr.bf16.mxu0 0
    %683 = vmatpush1.bf16.xpose.msra.mxu0 0
    %684 = vmatprep.subr.bf16.mxu0 0
    %685 = vmatpush1.bf16.xpose.msra.mxu0 0
    %686 = vmatprep.subr.bf16.mxu0 0
    %687 = vmatpush1.bf16.xpose.msra.mxu0 0
    %688 = vmatprep.mubr.bf16.mxu0 0
    %689 = vmatmul.mubr.bf16.gmra.mrb[0].mxu0 %v651
    %v690 = vpop.f32.mrb[0].mxu0
    %v691 = vadd.f32 0.0, %v690
    %v692 = vpop.f32.mrb[0].mxu0
    %v693 = vpop.f32.mrb[0].mxu0
    %v694 = vpop.f32.mrb[0].mxu0
    %695 = vdwg.mxu0
    %696 = vrot.lane.b32.xlu0 %v507, 96
    %v697 = vpop.permute.xlu0 %696
    %v699 = vsel %vm511, %v697, 0
    %701 = vmatprep.subr.bf16.mxu0 0
    %702 = vmatpush1.bf16.xpose.msra.mxu0 %v699
    %703 = vmatprep.subr.bf16.mxu0 0
    %704 = vmatpush1.bf16.xpose.msra.mxu0 0
    %705 = vmatprep.subr.bf16.mxu0 0
    %706 = vmatpush1.bf16.xpose.msra.mxu0 0
    %707 = vmatprep.subr.bf16.mxu0 0
    %708 = vmatpush1.bf16.xpose.msra.mxu0 0
    %709 = vmatprep.subr.bf16.mxu0 0
    %710 = vmatpush1.bf16.xpose.msra.mxu0 0
    %711 = vmatprep.subr.bf16.mxu0 0
    %712 = vmatpush1.bf16.xpose.msra.mxu0 0
    %713 = vmatprep.subr.bf16.mxu0 0
    %714 = vmatpush1.bf16.xpose.msra.mxu0 0
    %715 = vmatprep.subr.bf16.mxu0 0
    %716 = vmatpush1.bf16.xpose.msra.mxu0 0
    %717 = vmatprep.subr.bf16.mxu0 0
    %718 = vmatpush1.bf16.xpose.msra.mxu0 0
    %719 = vmatprep.subr.bf16.mxu0 0
    %720 = vmatpush1.bf16.xpose.msra.mxu0 0
    %721 = vmatprep.subr.bf16.mxu0 0
    %722 = vmatpush1.bf16.xpose.msra.mxu0 0
    %723 = vmatprep.subr.bf16.mxu0 0
    %724 = vmatpush1.bf16.xpose.msra.mxu0 0
    %725 = vmatprep.subr.bf16.mxu0 0
    %726 = vmatpush1.bf16.xpose.msra.mxu0 0
    %727 = vmatprep.subr.bf16.mxu0 0
    %728 = vmatpush1.bf16.xpose.msra.mxu0 0
    %729 = vmatprep.subr.bf16.mxu0 0
    %730 = vmatpush1.bf16.xpose.msra.mxu0 0
    %731 = vmatprep.subr.bf16.mxu0 0
    %732 = vmatpush1.bf16.xpose.msra.mxu0 0
    %733 = vmatprep.mubr.bf16.mxu0 0
    %734 = vmatmul.mubr.bf16.gmra.mrb[0].mxu0 %v513
    %v735 = vpop.f32.mrb[0].mxu0
    %v736 = vadd.f32 0.0, %v735
    %v737 = vpop.f32.mrb[0].mxu0
    %v738 = vpop.f32.mrb[0].mxu0
    %v739 = vpop.f32.mrb[0].mxu0
    %740 = vdwg.mxu0
    %741 = vrot.lane.b32.xlu0 %v508, 96
    %v742 = vpop.permute.xlu0 %741
    %v744 = vsel %vm511, %v742, 0
    %746 = vmatprep.subr.bf16.mxu0 0
    %747 = vmatpush1.bf16.xpose.msra.mxu0 %v744
    %748 = vmatprep.subr.bf16.mxu0 0
    %749 = vmatpush1.bf16.xpose.msra.mxu0 0
    %750 = vmatprep.subr.bf16.mxu0 0
    %751 = vmatpush1.bf16.xpose.msra.mxu0 0
    %752 = vmatprep.subr.bf16.mxu0 0
    %753 = vmatpush1.bf16.xpose.msra.mxu0 0
    %754 = vmatprep.subr.bf16.mxu0 0
    %755 = vmatpush1.bf16.xpose.msra.mxu0 0
    %756 = vmatprep.subr.bf16.mxu0 0
    %757 = vmatpush1.bf16.xpose.msra.mxu0 0
    %758 = vmatprep.subr.bf16.mxu0 0
    %759 = vmatpush1.bf16.xpose.msra.mxu0 0
    %760 = vmatprep.subr.bf16.mxu0 0
    %761 = vmatpush1.bf16.xpose.msra.mxu0 0
    %762 = vmatprep.subr.bf16.mxu0 0
    %763 = vmatpush1.bf16.xpose.msra.mxu0 0
    %764 = vmatprep.subr.bf16.mxu0 0
    %765 = vmatpush1.bf16.xpose.msra.mxu0 0
    %766 = vmatprep.subr.bf16.mxu0 0
    %767 = vmatpush1.bf16.xpose.msra.mxu0 0
    %768 = vmatprep.subr.bf16.mxu0 0
    %769 = vmatpush1.bf16.xpose.msra.mxu0 0
    %770 = vmatprep.subr.bf16.mxu0 0
    %771 = vmatpush1.bf16.xpose.msra.mxu0 0
    %772 = vmatprep.subr.bf16.mxu0 0
    %773 = vmatpush1.bf16.xpose.msra.mxu0 0
    %774 = vmatprep.subr.bf16.mxu0 0
    %775 = vmatpush1.bf16.xpose.msra.mxu0 0
    %776 = vmatprep.subr.bf16.mxu0 0
    %777 = vmatpush1.bf16.xpose.msra.mxu0 0
    %778 = vmatprep.mubr.bf16.mxu0 0
    %779 = vmatmul.mubr.bf16.gmra.mrb[0].mxu0 %v559
    %v780 = vpop.f32.mrb[0].mxu0
    %v781 = vadd.f32 0.0, %v780
    %v782 = vpop.f32.mrb[0].mxu0
    %v783 = vpop.f32.mrb[0].mxu0
    %v784 = vpop.f32.mrb[0].mxu0
    %785 = vdwg.mxu0
    %786 = vrot.lane.b32.xlu0 %v509, 96
    %v787 = vpop.permute.xlu0 %786
    %v789 = vsel %vm511, %v787, 0
    %791 = vmatprep.subr.bf16.mxu0 0
    %792 = vmatpush1.bf16.xpose.msra.mxu0 %v789
    %793 = vmatprep.subr.bf16.mxu0 0
    %794 = vmatpush1.bf16.xpose.msra.mxu0 0
    %795 = vmatprep.subr.bf16.mxu0 0
    %796 = vmatpush1.bf16.xpose.msra.mxu0 0
    %797 = vmatprep.subr.bf16.mxu0 0
    %798 = vmatpush1.bf16.xpose.msra.mxu0 0
    %799 = vmatprep.subr.bf16.mxu0 0
    %800 = vmatpush1.bf16.xpose.msra.mxu0 0
    %801 = vmatprep.subr.bf16.mxu0 0
    %802 = vmatpush1.bf16.xpose.msra.mxu0 0
    %803 = vmatprep.subr.bf16.mxu0 0
    %804 = vmatpush1.bf16.xpose.msra.mxu0 0
    %805 = vmatprep.subr.bf16.mxu0 0
    %806 = vmatpush1.bf16.xpose.msra.mxu0 0
    %807 = vmatprep.subr.bf16.mxu0 0
    %808 = vmatpush1.bf16.xpose.msra.mxu0 0
    %809 = vmatprep.subr.bf16.mxu0 0
    %810 = vmatpush1.bf16.xpose.msra.mxu0 0
    %811 = vmatprep.subr.bf16.mxu0 0
    %812 = vmatpush1.bf16.xpose.msra.mxu0 0
    %813 = vmatprep.subr.bf16.mxu0 0
    %814 = vmatpush1.bf16.xpose.msra.mxu0 0
    %815 = vmatprep.subr.bf16.mxu0 0
    %816 = vmatpush1.bf16.xpose.msra.mxu0 0
    %817 = vmatprep.subr.bf16.mxu0 0
    %818 = vmatpush1.bf16.xpose.msra.mxu0 0
    %819 = vmatprep.subr.bf16.mxu0 0
    %820 = vmatpush1.bf16.xpose.msra.mxu0 0
    %821 = vmatprep.subr.bf16.mxu0 0
    %822 = vmatpush1.bf16.xpose.msra.mxu0 0
    %823 = vmatprep.mubr.bf16.mxu0 0
    %824 = vmatmul.mubr.bf16.gmra.mrb[0].mxu0 %v605
    %v825 = vpop.f32.mrb[0].mxu0
    %v826 = vadd.f32 0.0, %v825
    %v827 = vpop.f32.mrb[0].mxu0
    %v828 = vpop.f32.mrb[0].mxu0
    %v829 = vpop.f32.mrb[0].mxu0
    %830 = vdwg.mxu0
    %831 = vrot.lane.b32.xlu0 %v510, 96
    %v832 = vpop.permute.xlu0 %831
    %v834 = vsel %vm511, %v832, 0
    %836 = vmatprep.subr.bf16.mxu0 0
    %837 = vmatpush1.bf16.xpose.msra.mxu0 %v834
    %838 = vmatprep.subr.bf16.mxu0 0
    %839 = vmatpush1.bf16.xpose.msra.mxu0 0
    %840 = vmatprep.subr.bf16.mxu0 0
    %841 = vmatpush1.bf16.xpose.msra.mxu0 0
    %842 = vmatprep.subr.bf16.mxu0 0
    %843 = vmatpush1.bf16.xpose.msra.mxu0 0
    %844 = vmatprep.subr.bf16.mxu0 0
    %845 = vmatpush1.bf16.xpose.msra.mxu0 0
    %846 = vmatprep.subr.bf16.mxu0 0
    %847 = vmatpush1.bf16.xpose.msra.mxu0 0
    %848 = vmatprep.subr.bf16.mxu0 0
    %849 = vmatpush1.bf16.xpose.msra.mxu0 0
    %850 = vmatprep.subr.bf16.mxu0 0
    %851 = vmatpush1.bf16.xpose.msra.mxu0 0
    %852 = vmatprep.subr.bf16.mxu0 0
    %853 = vmatpush1.bf16.xpose.msra.mxu0 0
    %854 = vmatprep.subr.bf16.mxu0 0
    %855 = vmatpush1.bf16.xpose.msra.mxu0 0
    %856 = vmatprep.subr.bf16.mxu0 0
    %857 = vmatpush1.bf16.xpose.msra.mxu0 0
    %858 = vmatprep.subr.bf16.mxu0 0
    %859 = vmatpush1.bf16.xpose.msra.mxu0 0
    %860 = vmatprep.subr.bf16.mxu0 0
    %861 = vmatpush1.bf16.xpose.msra.mxu0 0
    %862 = vmatprep.subr.bf16.mxu0 0
    %863 = vmatpush1.bf16.xpose.msra.mxu0 0
    %864 = vmatprep.subr.bf16.mxu0 0
    %865 = vmatpush1.bf16.xpose.msra.mxu0 0
    %866 = vmatprep.subr.bf16.mxu0 0
    %867 = vmatpush1.bf16.xpose.msra.mxu0 0
    %868 = vmatprep.mubr.bf16.mxu0 0
    %869 = vmatmul.mubr.bf16.gmra.mrb[0].mxu0 %v651
    %v870 = vpop.f32.mrb[0].mxu0
    %v871 = vadd.f32 0.0, %v870
    %v872 = vpop.f32.mrb[0].mxu0
    %v873 = vpop.f32.mrb[0].mxu0
    %v874 = vpop.f32.mrb[0].mxu0
    %875 = vdwg.mxu0
    %vm876 = vcmask 130048
    %v877 = vsel %vm876, %v553, -inf
    %878 = vmax.xlane.f32.xlu0 %v877
    %v879 = vpop.xlane.xlu0 %878
    %v880 = vsel %vm876, %v599, -inf
    %881 = vmax.xlane.f32.xlu0 %v880
    %v882 = vpop.xlane.xlu0 %881
    %v883 = vsel %vm876, %v645, -inf
    %884 = vmax.xlane.f32.xlu0 %v883
    %v885 = vpop.xlane.xlu0 %884
    %v886 = vsel %vm876, %v691, -inf
    %887 = vmax.xlane.f32.xlu0 %v886
    %v888 = vpop.xlane.xlu0 %887
    %v889 = vsel %vm511, %v736, -inf
    %890 = vmax.xlane.f32.xlu0 %v889
    %v891 = vpop.xlane.xlu0 %890
    %v892 = vsel %vm511, %v781, -inf
    %893 = vmax.xlane.f32.xlu0 %v892
    %v894 = vpop.xlane.xlu0 %893
    %v895 = vsel %vm511, %v826, -inf
    %896 = vmax.xlane.f32.xlu0 %v895
    %v897 = vpop.xlane.xlu0 %896
    %v898 = vsel %vm511, %v871, -inf
    %899 = vmax.xlane.f32.xlu0 %v898
    %v900 = vpop.xlane.xlu0 %899
    %v901 = vmax.f32 %v879, %v891
    %v902 = vmax.f32 %v882, %v894
    %v903 = vmax.f32 %v885, %v897
    %v904 = vmax.f32 %v888, %v900
    %v905 = vsub.f32 %v553, %v901
    %v906 = vsub.f32 %v599, %v902
    %v907 = vsub.f32 %v645, %v903
    %v908 = vsub.f32 %v691, %v904
    %v909 = vmul.f32 %v905, 1.442695
    %v910 = vpow.pop %v909
    %v911 = vmul.f32 %v906, 1.442695
    %v912 = vpow.pop %v911
    %v913 = vmul.f32 %v907, 1.442695
    %v914 = vpow.pop %v913
    %v915 = vmul.f32 %v908, 1.442695
    %v916 = vpow.pop %v915
    %v917 = vsub.f32 %v736, %v901
    %v918 = vsub.f32 %v781, %v902
    %v919 = vsub.f32 %v826, %v903
    %v920 = vsub.f32 %v871, %v904
    %v921 = vmul.f32 %v917, 1.442695
    %v922 = vpow.pop %v921
    %v923 = vmul.f32 %v918, 1.442695
    %v924 = vpow.pop %v923
    %v925 = vmul.f32 %v919, 1.442695
    %v926 = vpow.pop %v925
    %v927 = vmul.f32 %v920, 1.442695
    %v928 = vpow.pop %v927
    %v929 = vsel %vm876, %v910, 0.0
    %930 = vadd.xlane.f32.xlu0 %v929
    %v931 = vpop.xlane.xlu0 %930
    %v932 = vsel %vm876, %v912, 0.0
    %933 = vadd.xlane.f32.xlu0 %v932
    %v934 = vpop.xlane.xlu0 %933
    %v935 = vsel %vm876, %v914, 0.0
    %936 = vadd.xlane.f32.xlu0 %v935
    %v937 = vpop.xlane.xlu0 %936
    %v938 = vsel %vm876, %v916, 0.0
    %939 = vadd.xlane.f32.xlu0 %v938
    %v940 = vpop.xlane.xlu0 %939
    %v941 = vsel %vm511, %v922, 0.0
    %942 = vadd.xlane.f32.xlu0 %v941
    %v943 = vpop.xlane.xlu0 %942
    %v944 = vsel %vm511, %v924, 0.0
    %945 = vadd.xlane.f32.xlu0 %v944
    %v946 = vpop.xlane.xlu0 %945
    %v947 = vsel %vm511, %v926, 0.0
    %948 = vadd.xlane.f32.xlu0 %v947
    %v949 = vpop.xlane.xlu0 %948
    %v950 = vsel %vm511, %v928, 0.0
    %951 = vadd.xlane.f32.xlu0 %v950
    %v952 = vpop.xlane.xlu0 %951
    %v953 = vadd.f32 %v931, %v943
    %v954 = vadd.f32 %v934, %v946
    %v955 = vadd.f32 %v937, %v949
    %v956 = vadd.f32 %v940, %v952
    %v957 = vrcp.pop %v953
    %v958 = vrcp.pop %v954
    %v959 = vrcp.pop %v955
    %v960 = vrcp.pop %v956
    %v961 = vmul.f32 %v910, %v957
    %v962 = vmul.f32 %v912, %v958
    %v963 = vmul.f32 %v914, %v959
    %v964 = vmul.f32 %v916, %v960
    %v965 = vpack.c.bf16 %v961, %v961
    %v966 = vpack.c.bf16 %v962, %v962
    %v967 = vpack.c.bf16 %v963, %v963
    %v968 = vpack.c.bf16 %v964, %v964
    %v969 = vmul.f32 %v922, %v957
    %v970 = vmul.f32 %v924, %v958
    %v971 = vmul.f32 %v926, %v959
    %v972 = vmul.f32 %v928, %v960
    %v973 = vpack.c.bf16 %v969, %v969
    %v974 = vpack.c.bf16 %v970, %v970
    %v975 = vpack.c.bf16 %v971, %v971
    %v976 = vpack.c.bf16 %v972, %v972
    %977 = vrot.lane.b32.xlu0 %v507, 64
    %v978 = vpop.permute.xlu0 %977
    %v980 = vsel %vm511, %v973, 0
    %vm982 = vcmask 1043456
    %v984 = vsel %vm982, %v978, 0
    %986 = vmatprep.subr.bf16.mxu0 0
    %987 = vmatpush1.bf16.msra.mxu0 %v984
    %988 = vmatprep.subr.bf16.mxu0 0
    %989 = vmatpush1.bf16.msra.mxu0 0
    %990 = vmatprep.subr.bf16.mxu0 0
    %991 = vmatpush1.bf16.msra.mxu0 0
    %992 = vmatprep.subr.bf16.mxu0 0
    %993 = vmatpush1.bf16.msra.mxu0 0
    %994 = vmatprep.subr.bf16.mxu0 0
    %995 = vmatpush1.bf16.msra.mxu0 0
    %996 = vmatprep.subr.bf16.mxu0 0
    %997 = vmatpush1.bf16.msra.mxu0 0
    %998 = vmatprep.subr.bf16.mxu0 0
    %999 = vmatpush1.bf16.msra.mxu0 0
    %1000 = vmatprep.subr.bf16.mxu0 0
    %1001 = vmatpush1.bf16.msra.mxu0 0
    %1002 = vmatprep.subr.bf16.mxu0 0
    %1003 = vmatpush1.bf16.msra.mxu0 0
    %1004 = vmatprep.subr.bf16.mxu0 0
    %1005 = vmatpush1.bf16.msra.mxu0 0
    %1006 = vmatprep.subr.bf16.mxu0 0
    %1007 = vmatpush1.bf16.msra.mxu0 0
    %1008 = vmatprep.subr.bf16.mxu0 0
    %1009 = vmatpush1.bf16.msra.mxu0 0
    %1010 = vmatprep.subr.bf16.mxu0 0
    %1011 = vmatpush1.bf16.msra.mxu0 0
    %1012 = vmatprep.subr.bf16.mxu0 0
    %1013 = vmatpush1.bf16.msra.mxu0 0
    %1014 = vmatprep.subr.bf16.mxu0 0
    %1015 = vmatpush1.bf16.msra.mxu0 0
    %1016 = vmatprep.subr.bf16.mxu0 0
    %1017 = vmatpush1.bf16.msra.mxu0 0
    %1018 = vmatprep.mubr.bf16.mxu0 0
    %1019 = vmatmul.mubr.bf16.gmra.mrb[0].mxu0 %v980
    %v1020 = vpop.f32.mrb[0].mxu0
    %v1021 = vadd.f32 0.0, %v1020
    %v1022 = vpop.f32.mrb[0].mxu0
    %v1023 = vpop.f32.mrb[0].mxu0
    %v1024 = vpop.f32.mrb[0].mxu0
    %1025 = vdwg.mxu0
    %1026 = vrot.lane.b32.xlu0 %v508, 64
    %v1027 = vpop.permute.xlu0 %1026
    %v1029 = vsel %vm511, %v974, 0
    %v1032 = vsel %vm982, %v1027, 0
    %1034 = vmatprep.subr.bf16.mxu0 0
    %1035 = vmatpush1.bf16.msra.mxu0 %v1032
    %1036 = vmatprep.subr.bf16.mxu0 0
    %1037 = vmatpush1.bf16.msra.mxu0 0
    %1038 = vmatprep.subr.bf16.mxu0 0
    %1039 = vmatpush1.bf16.msra.mxu0 0
    %1040 = vmatprep.subr.bf16.mxu0 0
    %1041 = vmatpush1.bf16.msra.mxu0 0
    %1042 = vmatprep.subr.bf16.mxu0 0
    %1043 = vmatpush1.bf16.msra.mxu0 0
    %1044 = vmatprep.subr.bf16.mxu0 0
    %1045 = vmatpush1.bf16.msra.mxu0 0
    %1046 = vmatprep.subr.bf16.mxu0 0
    %1047 = vmatpush1.bf16.msra.mxu0 0
    %1048 = vmatprep.subr.bf16.mxu0 0
    %1049 = vmatpush1.bf16.msra.mxu0 0
    %1050 = vmatprep.subr.bf16.mxu0 0
    %1051 = vmatpush1.bf16.msra.mxu0 0
    %1052 = vmatprep.subr.bf16.mxu0 0
    %1053 = vmatpush1.bf16.msra.mxu0 0
    %1054 = vmatprep.subr.bf16.mxu0 0
    %1055 = vmatpush1.bf16.msra.mxu0 0
    %1056 = vmatprep.subr.bf16.mxu0 0
    %1057 = vmatpush1.bf16.msra.mxu0 0
    %1058 = vmatprep.subr.bf16.mxu0 0
    %1059 = vmatpush1.bf16.msra.mxu0 0
    %1060 = vmatprep.subr.bf16.mxu0 0
    %1061 = vmatpush1.bf16.msra.mxu0 0
    %1062 = vmatprep.subr.bf16.mxu0 0
    %1063 = vmatpush1.bf16.msra.mxu0 0
    %1064 = vmatprep.subr.bf16.mxu0 0
    %1065 = vmatpush1.bf16.msra.mxu0 0
    %1066 = vmatprep.mubr.bf16.mxu0 0
    %1067 = vmatmul.mubr.bf16.gmra.mrb[0].mxu0 %v1029
    %v1068 = vpop.f32.mrb[0].mxu0
    %v1069 = vadd.f32 0.0, %v1068
    %v1070 = vpop.f32.mrb[0].mxu0
    %v1071 = vpop.f32.mrb[0].mxu0
    %v1072 = vpop.f32.mrb[0].mxu0
    %1073 = vdwg.mxu0
    %1074 = vrot.lane.b32.xlu0 %v509, 64
    %v1075 = vpop.permute.xlu0 %1074
    %v1077 = vsel %vm511, %v975, 0
    %v1080 = vsel %vm982, %v1075, 0
    %1082 = vmatprep.subr.bf16.mxu0 0
    %1083 = vmatpush1.bf16.msra.mxu0 %v1080
    %1084 = vmatprep.subr.bf16.mxu0 0
    %1085 = vmatpush1.bf16.msra.mxu0 0
    %1086 = vmatprep.subr.bf16.mxu0 0
    %1087 = vmatpush1.bf16.msra.mxu0 0
    %1088 = vmatprep.subr.bf16.mxu0 0
    %1089 = vmatpush1.bf16.msra.mxu0 0
    %1090 = vmatprep.subr.bf16.mxu0 0
    %1091 = vmatpush1.bf16.msra.mxu0 0
    %1092 = vmatprep.subr.bf16.mxu0 0
    %1093 = vmatpush1.bf16.msra.mxu0 0
    %1094 = vmatprep.subr.bf16.mxu0 0
    %1095 = vmatpush1.bf16.msra.mxu0 0
    %1096 = vmatprep.subr.bf16.mxu0 0
    %1097 = vmatpush1.bf16.msra.mxu0 0
    %1098 = vmatprep.subr.bf16.mxu0 0
    %1099 = vmatpush1.bf16.msra.mxu0 0
    %1100 = vmatprep.subr.bf16.mxu0 0
    %1101 = vmatpush1.bf16.msra.mxu0 0
    %1102 = vmatprep.subr.bf16.mxu0 0
    %1103 = vmatpush1.bf16.msra.mxu0 0
    %1104 = vmatprep.subr.bf16.mxu0 0
    %1105 = vmatpush1.bf16.msra.mxu0 0
    %1106 = vmatprep.subr.bf16.mxu0 0
    %1107 = vmatpush1.bf16.msra.mxu0 0
    %1108 = vmatprep.subr.bf16.mxu0 0
    %1109 = vmatpush1.bf16.msra.mxu0 0
    %1110 = vmatprep.subr.bf16.mxu0 0
    %1111 = vmatpush1.bf16.msra.mxu0 0
    %1112 = vmatprep.subr.bf16.mxu0 0
    %1113 = vmatpush1.bf16.msra.mxu0 0
    %1114 = vmatprep.mubr.bf16.mxu0 0
    %1115 = vmatmul.mubr.bf16.gmra.mrb[0].mxu0 %v1077
    %v1116 = vpop.f32.mrb[0].mxu0
    %v1117 = vadd.f32 0.0, %v1116
    %v1118 = vpop.f32.mrb[0].mxu0
    %v1119 = vpop.f32.mrb[0].mxu0
    %v1120 = vpop.f32.mrb[0].mxu0
    %1121 = vdwg.mxu0
    %1122 = vrot.lane.b32.xlu0 %v510, 64
    %v1123 = vpop.permute.xlu0 %1122
    %v1125 = vsel %vm511, %v976, 0
    %v1128 = vsel %vm982, %v1123, 0
    %1130 = vmatprep.subr.bf16.mxu0 0
    %1131 = vmatpush1.bf16.msra.mxu0 %v1128
    %1132 = vmatprep.subr.bf16.mxu0 0
    %1133 = vmatpush1.bf16.msra.mxu0 0
    %1134 = vmatprep.subr.bf16.mxu0 0
    %1135 = vmatpush1.bf16.msra.mxu0 0
    %1136 = vmatprep.subr.bf16.mxu0 0
    %1137 = vmatpush1.bf16.msra.mxu0 0
    %1138 = vmatprep.subr.bf16.mxu0 0
    %1139 = vmatpush1.bf16.msra.mxu0 0
    %1140 = vmatprep.subr.bf16.mxu0 0
    %1141 = vmatpush1.bf16.msra.mxu0 0
    %1142 = vmatprep.subr.bf16.mxu0 0
    %1143 = vmatpush1.bf16.msra.mxu0 0
    %1144 = vmatprep.subr.bf16.mxu0 0
    %1145 = vmatpush1.bf16.msra.mxu0 0
    %1146 = vmatprep.subr.bf16.mxu0 0
    %1147 = vmatpush1.bf16.msra.mxu0 0
    %1148 = vmatprep.subr.bf16.mxu0 0
    %1149 = vmatpush1.bf16.msra.mxu0 0
    %1150 = vmatprep.subr.bf16.mxu0 0
    %1151 = vmatpush1.bf16.msra.mxu0 0
    %1152 = vmatprep.subr.bf16.mxu0 0
    %1153 = vmatpush1.bf16.msra.mxu0 0
    %1154 = vmatprep.subr.bf16.mxu0 0
    %1155 = vmatpush1.bf16.msra.mxu0 0
    %1156 = vmatprep.subr.bf16.mxu0 0
    %1157 = vmatpush1.bf16.msra.mxu0 0
    %1158 = vmatprep.subr.bf16.mxu0 0
    %1159 = vmatpush1.bf16.msra.mxu0 0
    %1160 = vmatprep.subr.bf16.mxu0 0
    %1161 = vmatpush1.bf16.msra.mxu0 0
    %1162 = vmatprep.mubr.bf16.mxu0 0
    %1163 = vmatmul.mubr.bf16.gmra.mrb[0].mxu0 %v1125
    %v1164 = vpop.f32.mrb[0].mxu0
    %v1165 = vadd.f32 0.0, %v1164
    %v1166 = vpop.f32.mrb[0].mxu0
    %v1167 = vpop.f32.mrb[0].mxu0
    %v1168 = vpop.f32.mrb[0].mxu0
    %1169 = vdwg.mxu0
    %1171 = vrot.lane.b32.xlu0 %v497, 96
    %v1172 = vpop.permute.xlu0 %1171
    %v1175 = vsel %vm876, %v965, 0
    %1177 = vmatprep.subr.bf16.mxu0 0
    %1178 = vmatpush1.bf16.msra.mxu0 %v1172
    %1179 = vmatprep.subr.bf16.mxu0 0
    %1180 = vmatpush1.bf16.msra.mxu0 0
    %1181 = vmatprep.subr.bf16.mxu0 0
    %1182 = vmatpush1.bf16.msra.mxu0 0
    %1183 = vmatprep.subr.bf16.mxu0 0
    %1184 = vmatpush1.bf16.msra.mxu0 0
    %1185 = vmatprep.subr.bf16.mxu0 0
    %1186 = vmatpush1.bf16.msra.mxu0 0
    %1187 = vmatprep.subr.bf16.mxu0 0
    %1188 = vmatpush1.bf16.msra.mxu0 0
    %1189 = vmatprep.subr.bf16.mxu0 0
    %1190 = vmatpush1.bf16.msra.mxu0 0
    %1191 = vmatprep.subr.bf16.mxu0 0
    %1192 = vmatpush1.bf16.msra.mxu0 0
    %1193 = vmatprep.subr.bf16.mxu0 0
    %1194 = vmatpush1.bf16.msra.mxu0 0
    %1195 = vmatprep.subr.bf16.mxu0 0
    %1196 = vmatpush1.bf16.msra.mxu0 0
    %1197 = vmatprep.subr.bf16.mxu0 0
    %1198 = vmatpush1.bf16.msra.mxu0 0
    %1199 = vmatprep.subr.bf16.mxu0 0
    %1200 = vmatpush1.bf16.msra.mxu0 0
    %1201 = vmatprep.subr.bf16.mxu0 0
    %1202 = vmatpush1.bf16.msra.mxu0 0
    %1203 = vmatprep.subr.bf16.mxu0 0
    %1204 = vmatpush1.bf16.msra.mxu0 0
    %1205 = vmatprep.subr.bf16.mxu0 0
    %1206 = vmatpush1.bf16.msra.mxu0 0
    %1207 = vmatprep.subr.bf16.mxu0 0
    %1208 = vmatpush1.bf16.msra.mxu0 0
    %1209 = vmatprep.mubr.bf16.mxu0 0
    %1210 = vmatmul.mubr.bf16.gmra.mrb[0].mxu0 %v1175
    %v1211 = vpop.f32.mrb[0].mxu0
    %v1212 = vadd.f32 %v1021, %v1211
    %v1213 = vpop.f32.mrb[0].mxu0
    %v1214 = vpop.f32.mrb[0].mxu0
    %v1215 = vpop.f32.mrb[0].mxu0
    %1216 = vdwg.mxu0
    %1218 = vrot.lane.b32.xlu0 %v498, 96
    %v1219 = vpop.permute.xlu0 %1218
    %v1222 = vsel %vm876, %v966, 0
    %1224 = vmatprep.subr.bf16.mxu0 0
    %1225 = vmatpush1.bf16.msra.mxu0 %v1219
    %1226 = vmatprep.subr.bf16.mxu0 0
    %1227 = vmatpush1.bf16.msra.mxu0 0
    %1228 = vmatprep.subr.bf16.mxu0 0
    %1229 = vmatpush1.bf16.msra.mxu0 0
    %1230 = vmatprep.subr.bf16.mxu0 0
    %1231 = vmatpush1.bf16.msra.mxu0 0
    %1232 = vmatprep.subr.bf16.mxu0 0
    %1233 = vmatpush1.bf16.msra.mxu0 0
    %1234 = vmatprep.subr.bf16.mxu0 0
    %1235 = vmatpush1.bf16.msra.mxu0 0
    %1236 = vmatprep.subr.bf16.mxu0 0
    %1237 = vmatpush1.bf16.msra.mxu0 0
    %1238 = vmatprep.subr.bf16.mxu0 0
    %1239 = vmatpush1.bf16.msra.mxu0 0
    %1240 = vmatprep.subr.bf16.mxu0 0
    %1241 = vmatpush1.bf16.msra.mxu0 0
    %1242 = vmatprep.subr.bf16.mxu0 0
    %1243 = vmatpush1.bf16.msra.mxu0 0
    %1244 = vmatprep.subr.bf16.mxu0 0
    %1245 = vmatpush1.bf16.msra.mxu0 0
    %1246 = vmatprep.subr.bf16.mxu0 0
    %1247 = vmatpush1.bf16.msra.mxu0 0
    %1248 = vmatprep.subr.bf16.mxu0 0
    %1249 = vmatpush1.bf16.msra.mxu0 0
    %1250 = vmatprep.subr.bf16.mxu0 0
    %1251 = vmatpush1.bf16.msra.mxu0 0
    %1252 = vmatprep.subr.bf16.mxu0 0
    %1253 = vmatpush1.bf16.msra.mxu0 0
    %1254 = vmatprep.subr.bf16.mxu0 0
    %1255 = vmatpush1.bf16.msra.mxu0 0
    %1256 = vmatprep.mubr.bf16.mxu0 0
    %1257 = vmatmul.mubr.bf16.gmra.mrb[0].mxu0 %v1222
    %v1258 = vpop.f32.mrb[0].mxu0
    %v1259 = vadd.f32 %v1069, %v1258
    %v1260 = vpop.f32.mrb[0].mxu0
    %v1261 = vpop.f32.mrb[0].mxu0
    %v1262 = vpop.f32.mrb[0].mxu0
    %1263 = vdwg.mxu0
    %1265 = vrot.lane.b32.xlu0 %v499, 96
    %v1266 = vpop.permute.xlu0 %1265
    %v1269 = vsel %vm876, %v967, 0
    %1271 = vmatprep.subr.bf16.mxu0 0
    %1272 = vmatpush1.bf16.msra.mxu0 %v1266
    %1273 = vmatprep.subr.bf16.mxu0 0
    %1274 = vmatpush1.bf16.msra.mxu0 0
    %1275 = vmatprep.subr.bf16.mxu0 0
    %1276 = vmatpush1.bf16.msra.mxu0 0
    %1277 = vmatprep.subr.bf16.mxu0 0
    %1278 = vmatpush1.bf16.msra.mxu0 0
    %1279 = vmatprep.subr.bf16.mxu0 0
    %1280 = vmatpush1.bf16.msra.mxu0 0
    %1281 = vmatprep.subr.bf16.mxu0 0
    %1282 = vmatpush1.bf16.msra.mxu0 0
    %1283 = vmatprep.subr.bf16.mxu0 0
    %1284 = vmatpush1.bf16.msra.mxu0 0
    %1285 = vmatprep.subr.bf16.mxu0 0
    %1286 = vmatpush1.bf16.msra.mxu0 0
    %1287 = vmatprep.subr.bf16.mxu0 0
    %1288 = vmatpush1.bf16.msra.mxu0 0
    %1289 = vmatprep.subr.bf16.mxu0 0
    %1290 = vmatpush1.bf16.msra.mxu0 0
    %1291 = vmatprep.subr.bf16.mxu0 0
    %1292 = vmatpush1.bf16.msra.mxu0 0
    %1293 = vmatprep.subr.bf16.mxu0 0
    %1294 = vmatpush1.bf16.msra.mxu0 0
    %1295 = vmatprep.subr.bf16.mxu0 0
    %1296 = vmatpush1.bf16.msra.mxu0 0
    %1297 = vmatprep.subr.bf16.mxu0 0
    %1298 = vmatpush1.bf16.msra.mxu0 0
    %1299 = vmatprep.subr.bf16.mxu0 0
    %1300 = vmatpush1.bf16.msra.mxu0 0
    %1301 = vmatprep.subr.bf16.mxu0 0
    %1302 = vmatpush1.bf16.msra.mxu0 0
    %1303 = vmatprep.mubr.bf16.mxu0 0
    %1304 = vmatmul.mubr.bf16.gmra.mrb[0].mxu0 %v1269
    %v1305 = vpop.f32.mrb[0].mxu0
    %v1306 = vadd.f32 %v1117, %v1305
    %v1307 = vpop.f32.mrb[0].mxu0
    %v1308 = vpop.f32.mrb[0].mxu0
    %v1309 = vpop.f32.mrb[0].mxu0
    %1310 = vdwg.mxu0
    %1312 = vrot.lane.b32.xlu0 %v500, 96
    %v1313 = vpop.permute.xlu0 %1312
    %v1316 = vsel %vm876, %v968, 0
    %1318 = vmatprep.subr.bf16.mxu0 0
    %1319 = vmatpush1.bf16.msra.mxu0 %v1313
    %1320 = vmatprep.subr.bf16.mxu0 0
    %1321 = vmatpush1.bf16.msra.mxu0 0
    %1322 = vmatprep.subr.bf16.mxu0 0
    %1323 = vmatpush1.bf16.msra.mxu0 0
    %1324 = vmatprep.subr.bf16.mxu0 0
    %1325 = vmatpush1.bf16.msra.mxu0 0
    %1326 = vmatprep.subr.bf16.mxu0 0
    %1327 = vmatpush1.bf16.msra.mxu0 0
    %1328 = vmatprep.subr.bf16.mxu0 0
    %1329 = vmatpush1.bf16.msra.mxu0 0
    %1330 = vmatprep.subr.bf16.mxu0 0
    %1331 = vmatpush1.bf16.msra.mxu0 0
    %1332 = vmatprep.subr.bf16.mxu0 0
    %1333 = vmatpush1.bf16.msra.mxu0 0
    %1334 = vmatprep.subr.bf16.mxu0 0
    %1335 = vmatpush1.bf16.msra.mxu0 0
    %1336 = vmatprep.subr.bf16.mxu0 0
    %1337 = vmatpush1.bf16.msra.mxu0 0
    %1338 = vmatprep.subr.bf16.mxu0 0
    %1339 = vmatpush1.bf16.msra.mxu0 0
    %1340 = vmatprep.subr.bf16.mxu0 0
    %1341 = vmatpush1.bf16.msra.mxu0 0
    %1342 = vmatprep.subr.bf16.mxu0 0
    %1343 = vmatpush1.bf16.msra.mxu0 0
    %1344 = vmatprep.subr.bf16.mxu0 0
    %1345 = vmatpush1.bf16.msra.mxu0 0
    %1346 = vmatprep.subr.bf16.mxu0 0
    %1347 = vmatpush1.bf16.msra.mxu0 0
    %1348 = vmatprep.subr.bf16.mxu0 0
    %1349 = vmatpush1.bf16.msra.mxu0 0
    %1350 = vmatprep.mubr.bf16.mxu0 0
    %1351 = vmatmul.mubr.bf16.gmra.mrb[0].mxu0 %v1316
    %v1352 = vpop.f32.mrb[0].mxu0
    %v1353 = vadd.f32 %v1165, %v1352
    %v1354 = vpop.f32.mrb[0].mxu0
    %v1355 = vpop.f32.mrb[0].mxu0
    %v1356 = vpop.f32.mrb[0].mxu0
    %1357 = vdwg.mxu0
    %v1358 = vpack.c.bf16 %v1259, %v1212
    %v1359 = vpack.c.bf16 %v1353, %v1306
    %1360 = vst.msk [vmem:[#allocation2] sm:$0xff] %vm511, %v1358
    %1361 = vst.msk [vmem:[#allocation2 + $0x8] sm:$0xff] %vm511, %v1359
    %1362 = vrot.lane.b32.xlu0 %v507, 120
    %v1363 = vpop.permute.xlu0 %1362
    %1364 = vrot.lane.b32.xlu0 %v497, 120
    %v1365 = vpop.permute.xlu0 %1364
    %v1367 = vsel %vm511, %v1363, 0
    %v1370 = vsel %vm511, %v1365, 0
    %1372 = vmatprep.subr.bf16.mxu0 0
    %1373 = vmatpush1.bf16.xpose.msra.mxu0 %v1370
    %1374 = vmatprep.subr.bf16.mxu0 0
    %1375 = vmatpush1.bf16.xpose.msra.mxu0 0
    %1376 = vmatprep.subr.bf16.mxu0 0
    %1377 = vmatpush1.bf16.xpose.msra.mxu0 0
    %1378 = vmatprep.subr.bf16.mxu0 0
    %1379 = vmatpush1.bf16.xpose.msra.mxu0 0
    %1380 = vmatprep.subr.bf16.mxu0 0
    %1381 = vmatpush1.bf16.xpose.msra.mxu0 0
    %1382 = vmatprep.subr.bf16.mxu0 0
    %1383 = vmatpush1.bf16.xpose.msra.mxu0 0
    %1384 = vmatprep.subr.bf16.mxu0 0
    %1385 = vmatpush1.bf16.xpose.msra.mxu0 0
    %1386 = vmatprep.subr.bf16.mxu0 0
    %1387 = vmatpush1.bf16.xpose.msra.mxu0 0
    %1388 = vmatprep.subr.bf16.mxu0 0
    %1389 = vmatpush1.bf16.xpose.msra.mxu0 0
    %1390 = vmatprep.subr.bf16.mxu0 0
    %1391 = vmatpush1.bf16.xpose.msra.mxu0 0
    %1392 = vmatprep.subr.bf16.mxu0 0
    %1393 = vmatpush1.bf16.xpose.msra.mxu0 0
    %1394 = vmatprep.subr.bf16.mxu0 0
    %1395 = vmatpush1.bf16.xpose.msra.mxu0 0
    %1396 = vmatprep.subr.bf16.mxu0 0
    %1397 = vmatpush1.bf16.xpose.msra.mxu0 0
    %1398 = vmatprep.subr.bf16.mxu0 0
    %1399 = vmatpush1.bf16.xpose.msra.mxu0 0
    %1400 = vmatprep.subr.bf16.mxu0 0
    %1401 = vmatpush1.bf16.xpose.msra.mxu0 0
    %1402 = vmatprep.subr.bf16.mxu0 0
    %1403 = vmatpush1.bf16.xpose.msra.mxu0 0
    %1404 = vmatprep.mubr.bf16.mxu0 0
    %1405 = vmatmul.mubr.bf16.gmra.mrb[0].mxu0 %v1367
    %v1406 = vpop.f32.mrb[0].mxu0
    %v1407 = vadd.f32 0.0, %v1406
    %v1408 = vpop.f32.mrb[0].mxu0
    %v1409 = vpop.f32.mrb[0].mxu0
    %v1410 = vpop.f32.mrb[0].mxu0
    %1411 = vdwg.mxu0
    %1412 = vrot.lane.b32.xlu0 %v508, 120
    %v1413 = vpop.permute.xlu0 %1412
    %1414 = vrot.lane.b32.xlu0 %v498, 120
    %v1415 = vpop.permute.xlu0 %1414
    %v1417 = vsel %vm511, %v1413, 0
    %v1420 = vsel %vm511, %v1415, 0
    %1422 = vmatprep.subr.bf16.mxu0 0
    %1423 = vmatpush1.bf16.xpose.msra.mxu0 %v1420
    %1424 = vmatprep.subr.bf16.mxu0 0
    %1425 = vmatpush1.bf16.xpose.msra.mxu0 0
    %1426 = vmatprep.subr.bf16.mxu0 0
    %1427 = vmatpush1.bf16.xpose.msra.mxu0 0
    %1428 = vmatprep.subr.bf16.mxu0 0
    %1429 = vmatpush1.bf16.xpose.msra.mxu0 0
    %1430 = vmatprep.subr.bf16.mxu0 0
    %1431 = vmatpush1.bf16.xpose.msra.mxu0 0
    %1432 = vmatprep.subr.bf16.mxu0 0
    %1433 = vmatpush1.bf16.xpose.msra.mxu0 0
    %1434 = vmatprep.subr.bf16.mxu0 0
    %1435 = vmatpush1.bf16.xpose.msra.mxu0 0
    %1436 = vmatprep.subr.bf16.mxu0 0
    %1437 = vmatpush1.bf16.xpose.msra.mxu0 0
    %1438 = vmatprep.subr.bf16.mxu0 0
    %1439 = vmatpush1.bf16.xpose.msra.mxu0 0
    %1440 = vmatprep.subr.bf16.mxu0 0
    %1441 = vmatpush1.bf16.xpose.msra.mxu0 0
    %1442 = vmatprep.subr.bf16.mxu0 0
    %1443 = vmatpush1.bf16.xpose.msra.mxu0 0
    %1444 = vmatprep.subr.bf16.mxu0 0
    %1445 = vmatpush1.bf16.xpose.msra.mxu0 0
    %1446 = vmatprep.subr.bf16.mxu0 0
    %1447 = vmatpush1.bf16.xpose.msra.mxu0 0
    %1448 = vmatprep.subr.bf16.mxu0 0
    %1449 = vmatpush1.bf16.xpose.msra.mxu0 0
    %1450 = vmatprep.subr.bf16.mxu0 0
    %1451 = vmatpush1.bf16.xpose.msra.mxu0 0
    %1452 = vmatprep.subr.bf16.mxu0 0
    %1453 = vmatpush1.bf16.xpose.msra.mxu0 0
    %1454 = vmatprep.mubr.bf16.mxu0 0
    %1455 = vmatmul.mubr.bf16.gmra.mrb[0].mxu0 %v1417
    %v1456 = vpop.f32.mrb[0].mxu0
    %v1457 = vadd.f32 0.0, %v1456
    %v1458 = vpop.f32.mrb[0].mxu0
    %v1459 = vpop.f32.mrb[0].mxu0
    %v1460 = vpop.f32.mrb[0].mxu0
    %1461 = vdwg.mxu0
    %1462 = vrot.lane.b32.xlu0 %v509, 120
    %v1463 = vpop.permute.xlu0 %1462
    %1464 = vrot.lane.b32.xlu0 %v499, 120
    %v1465 = vpop.permute.xlu0 %1464
    %v1467 = vsel %vm511, %v1463, 0
    %v1470 = vsel %vm511, %v1465, 0
    %1472 = vmatprep.subr.bf16.mxu0 0
    %1473 = vmatpush1.bf16.xpose.msra.mxu0 %v1470
    %1474 = vmatprep.subr.bf16.mxu0 0
    %1475 = vmatpush1.bf16.xpose.msra.mxu0 0
    %1476 = vmatprep.subr.bf16.mxu0 0
    %1477 = vmatpush1.bf16.xpose.msra.mxu0 0
    %1478 = vmatprep.subr.bf16.mxu0 0
    %1479 = vmatpush1.bf16.xpose.msra.mxu0 0
    %1480 = vmatprep.subr.bf16.mxu0 0
    %1481 = vmatpush1.bf16.xpose.msra.mxu0 0
    %1482 = vmatprep.subr.bf16.mxu0 0
    %1483 = vmatpush1.bf16.xpose.msra.mxu0 0
    %1484 = vmatprep.subr.bf16.mxu0 0
    %1485 = vmatpush1.bf16.xpose.msra.mxu0 0
    %1486 = vmatprep.subr.bf16.mxu0 0
    %1487 = vmatpush1.bf16.xpose.msra.mxu0 0
    %1488 = vmatprep.subr.bf16.mxu0 0
    %1489 = vmatpush1.bf16.xpose.msra.mxu0 0
    %1490 = vmatprep.subr.bf16.mxu0 0
    %1491 = vmatpush1.bf16.xpose.msra.mxu0 0
    %1492 = vmatprep.subr.bf16.mxu0 0
    %1493 = vmatpush1.bf16.xpose.msra.mxu0 0
    %1494 = vmatprep.subr.bf16.mxu0 0
    %1495 = vmatpush1.bf16.xpose.msra.mxu0 0
    %1496 = vmatprep.subr.bf16.mxu0 0
    %1497 = vmatpush1.bf16.xpose.msra.mxu0 0
    %1498 = vmatprep.subr.bf16.mxu0 0
    %1499 = vmatpush1.bf16.xpose.msra.mxu0 0
    %1500 = vmatprep.subr.bf16.mxu0 0
    %1501 = vmatpush1.bf16.xpose.msra.mxu0 0
    %1502 = vmatprep.subr.bf16.mxu0 0
    %1503 = vmatpush1.bf16.xpose.msra.mxu0 0
    %1504 = vmatprep.mubr.bf16.mxu0 0
    %1505 = vmatmul.mubr.bf16.gmra.mrb[0].mxu0 %v1467
    %v1506 = vpop.f32.mrb[0].mxu0
    %v1507 = vadd.f32 0.0, %v1506
    %v1508 = vpop.f32.mrb[0].mxu0
    %v1509 = vpop.f32.mrb[0].mxu0
    %v1510 = vpop.f32.mrb[0].mxu0
    %1511 = vdwg.mxu0
    %1512 = vrot.lane.b32.xlu0 %v510, 120
    %v1513 = vpop.permute.xlu0 %1512
    %1514 = vrot.lane.b32.xlu0 %v500, 120
    %v1515 = vpop.permute.xlu0 %1514
    %v1517 = vsel %vm511, %v1513, 0
    %v1520 = vsel %vm511, %v1515, 0
    %1522 = vmatprep.subr.bf16.mxu0 0
    %1523 = vmatpush1.bf16.xpose.msra.mxu0 %v1520
    %1524 = vmatprep.subr.bf16.mxu0 0
    %1525 = vmatpush1.bf16.xpose.msra.mxu0 0
    %1526 = vmatprep.subr.bf16.mxu0 0
    %1527 = vmatpush1.bf16.xpose.msra.mxu0 0
    %1528 = vmatprep.subr.bf16.mxu0 0
    %1529 = vmatpush1.bf16.xpose.msra.mxu0 0
    %1530 = vmatprep.subr.bf16.mxu0 0
    %1531 = vmatpush1.bf16.xpose.msra.mxu0 0
    %1532 = vmatprep.subr.bf16.mxu0 0
    %1533 = vmatpush1.bf16.xpose.msra.mxu0 0
    %1534 = vmatprep.subr.bf16.mxu0 0
    %1535 = vmatpush1.bf16.xpose.msra.mxu0 0
    %1536 = vmatprep.subr.bf16.mxu0 0
    %1537 = vmatpush1.bf16.xpose.msra.mxu0 0
    %1538 = vmatprep.subr.bf16.mxu0 0
    %1539 = vmatpush1.bf16.xpose.msra.mxu0 0
    %1540 = vmatprep.subr.bf16.mxu0 0
    %1541 = vmatpush1.bf16.xpose.msra.mxu0 0
    %1542 = vmatprep.subr.bf16.mxu0 0
    %1543 = vmatpush1.bf16.xpose.msra.mxu0 0
    %1544 = vmatprep.subr.bf16.mxu0 0
    %1545 = vmatpush1.bf16.xpose.msra.mxu0 0
    %1546 = vmatprep.subr.bf16.mxu0 0
    %1547 = vmatpush1.bf16.xpose.msra.mxu0 0
    %1548 = vmatprep.subr.bf16.mxu0 0
    %1549 = vmatpush1.bf16.xpose.msra.mxu0 0
    %1550 = vmatprep.subr.bf16.mxu0 0
    %1551 = vmatpush1.bf16.xpose.msra.mxu0 0
    %1552 = vmatprep.subr.bf16.mxu0 0
    %1553 = vmatpush1.bf16.xpose.msra.mxu0 0
    %1554 = vmatprep.mubr.bf16.mxu0 0
    %1555 = vmatmul.mubr.bf16.gmra.mrb[0].mxu0 %v1517
    %v1556 = vpop.f32.mrb[0].mxu0
    %v1557 = vadd.f32 0.0, %v1556
    %v1558 = vpop.f32.mrb[0].mxu0
    %v1559 = vpop.f32.mrb[0].mxu0
    %v1560 = vpop.f32.mrb[0].mxu0
    %1561 = vdwg.mxu0
    %1562 = vrot.lane.b32.xlu0 %v507, 88
    %v1563 = vpop.permute.xlu0 %1562
    %v1565 = vsel %vm511, %v1563, 0
    %1567 = vmatprep.subr.bf16.mxu0 0
    %1568 = vmatpush1.bf16.xpose.msra.mxu0 %v1565
    %1569 = vmatprep.subr.bf16.mxu0 0
    %1570 = vmatpush1.bf16.xpose.msra.mxu0 0
    %1571 = vmatprep.subr.bf16.mxu0 0
    %1572 = vmatpush1.bf16.xpose.msra.mxu0 0
    %1573 = vmatprep.subr.bf16.mxu0 0
    %1574 = vmatpush1.bf16.xpose.msra.mxu0 0
    %1575 = vmatprep.subr.bf16.mxu0 0
    %1576 = vmatpush1.bf16.xpose.msra.mxu0 0
    %1577 = vmatprep.subr.bf16.mxu0 0
    %1578 = vmatpush1.bf16.xpose.msra.mxu0 0
    %1579 = vmatprep.subr.bf16.mxu0 0
    %1580 = vmatpush1.bf16.xpose.msra.mxu0 0
    %1581 = vmatprep.subr.bf16.mxu0 0
    %1582 = vmatpush1.bf16.xpose.msra.mxu0 0
    %1583 = vmatprep.subr.bf16.mxu0 0
    %1584 = vmatpush1.bf16.xpose.msra.mxu0 0
    %1585 = vmatprep.subr.bf16.mxu0 0
    %1586 = vmatpush1.bf16.xpose.msra.mxu0 0
    %1587 = vmatprep.subr.bf16.mxu0 0
    %1588 = vmatpush1.bf16.xpose.msra.mxu0 0
    %1589 = vmatprep.subr.bf16.mxu0 0
    %1590 = vmatpush1.bf16.xpose.msra.mxu0 0
    %1591 = vmatprep.subr.bf16.mxu0 0
    %1592 = vmatpush1.bf16.xpose.msra.mxu0 0
    %1593 = vmatprep.subr.bf16.mxu0 0
    %1594 = vmatpush1.bf16.xpose.msra.mxu0 0
    %1595 = vmatprep.subr.bf16.mxu0 0
    %1596 = vmatpush1.bf16.xpose.msra.mxu0 0
    %1597 = vmatprep.subr.bf16.mxu0 0
    %1598 = vmatpush1.bf16.xpose.msra.mxu0 0
    %1599 = vmatprep.mubr.bf16.mxu0 0
    %1600 = vmatmul.mubr.bf16.gmra.mrb[0].mxu0 %v1367
    %v1601 = vpop.f32.mrb[0].mxu0
    %v1602 = vadd.f32 0.0, %v1601
    %v1603 = vpop.f32.mrb[0].mxu0
    %v1604 = vpop.f32.mrb[0].mxu0
    %v1605 = vpop.f32.mrb[0].mxu0
    %1606 = vdwg.mxu0
    %1607 = vrot.lane.b32.xlu0 %v508, 88
    %v1608 = vpop.permute.xlu0 %1607
    %v1610 = vsel %vm511, %v1608, 0
    %1612 = vmatprep.subr.bf16.mxu0 0
    %1613 = vmatpush1.bf16.xpose.msra.mxu0 %v1610
    %1614 = vmatprep.subr.bf16.mxu0 0
    %1615 = vmatpush1.bf16.xpose.msra.mxu0 0
    %1616 = vmatprep.subr.bf16.mxu0 0
    %1617 = vmatpush1.bf16.xpose.msra.mxu0 0
    %1618 = vmatprep.subr.bf16.mxu0 0
    %1619 = vmatpush1.bf16.xpose.msra.mxu0 0
    %1620 = vmatprep.subr.bf16.mxu0 0
    %1621 = vmatpush1.bf16.xpose.msra.mxu0 0
    %1622 = vmatprep.subr.bf16.mxu0 0
    %1623 = vmatpush1.bf16.xpose.msra.mxu0 0
    %1624 = vmatprep.subr.bf16.mxu0 0
    %1625 = vmatpush1.bf16.xpose.msra.mxu0 0
    %1626 = vmatprep.subr.bf16.mxu0 0
    %1627 = vmatpush1.bf16.xpose.msra.mxu0 0
    %1628 = vmatprep.subr.bf16.mxu0 0
    %1629 = vmatpush1.bf16.xpose.msra.mxu0 0
    %1630 = vmatprep.subr.bf16.mxu0 0
    %1631 = vmatpush1.bf16.xpose.msra.mxu0 0
    %1632 = vmatprep.subr.bf16.mxu0 0
    %1633 = vmatpush1.bf16.xpose.msra.mxu0 0
    %1634 = vmatprep.subr.bf16.mxu0 0
    %1635 = vmatpush1.bf16.xpose.msra.mxu0 0
    %1636 = vmatprep.subr.bf16.mxu0 0
    %1637 = vmatpush1.bf16.xpose.msra.mxu0 0
    %1638 = vmatprep.subr.bf16.mxu0 0
    %1639 = vmatpush1.bf16.xpose.msra.mxu0 0
    %1640 = vmatprep.subr.bf16.mxu0 0
    %1641 = vmatpush1.bf16.xpose.msra.mxu0 0
    %1642 = vmatprep.subr.bf16.mxu0 0
    %1643 = vmatpush1.bf16.xpose.msra.mxu0 0
    %1644 = vmatprep.mubr.bf16.mxu0 0
    %1645 = vmatmul.mubr.bf16.gmra.mrb[0].mxu0 %v1417
    %v1646 = vpop.f32.mrb[0].mxu0
    %v1647 = vadd.f32 0.0, %v1646
    %v1648 = vpop.f32.mrb[0].mxu0
    %v1649 = vpop.f32.mrb[0].mxu0
    %v1650 = vpop.f32.mrb[0].mxu0
    %1651 = vdwg.mxu0
    %1652 = vrot.lane.b32.xlu0 %v509, 88
    %v1653 = vpop.permute.xlu0 %1652
    %v1655 = vsel %vm511, %v1653, 0
    %1657 = vmatprep.subr.bf16.mxu0 0
    %1658 = vmatpush1.bf16.xpose.msra.mxu0 %v1655
    %1659 = vmatprep.subr.bf16.mxu0 0
    %1660 = vmatpush1.bf16.xpose.msra.mxu0 0
    %1661 = vmatprep.subr.bf16.mxu0 0
    %1662 = vmatpush1.bf16.xpose.msra.mxu0 0
    %1663 = vmatprep.subr.bf16.mxu0 0
    %1664 = vmatpush1.bf16.xpose.msra.mxu0 0
    %1665 = vmatprep.subr.bf16.mxu0 0
    %1666 = vmatpush1.bf16.xpose.msra.mxu0 0
    %1667 = vmatprep.subr.bf16.mxu0 0
    %1668 = vmatpush1.bf16.xpose.msra.mxu0 0
    %1669 = vmatprep.subr.bf16.mxu0 0
    %1670 = vmatpush1.bf16.xpose.msra.mxu0 0
    %1671 = vmatprep.subr.bf16.mxu0 0
    %1672 = vmatpush1.bf16.xpose.msra.mxu0 0
    %1673 = vmatprep.subr.bf16.mxu0 0
    %1674 = vmatpush1.bf16.xpose.msra.mxu0 0
    %1675 = vmatprep.subr.bf16.mxu0 0
    %1676 = vmatpush1.bf16.xpose.msra.mxu0 0
    %1677 = vmatprep.subr.bf16.mxu0 0
    %1678 = vmatpush1.bf16.xpose.msra.mxu0 0
    %1679 = vmatprep.subr.bf16.mxu0 0
    %1680 = vmatpush1.bf16.xpose.msra.mxu0 0
    %1681 = vmatprep.subr.bf16.mxu0 0
    %1682 = vmatpush1.bf16.xpose.msra.mxu0 0
    %1683 = vmatprep.subr.bf16.mxu0 0
    %1684 = vmatpush1.bf16.xpose.msra.mxu0 0
    %1685 = vmatprep.subr.bf16.mxu0 0
    %1686 = vmatpush1.bf16.xpose.msra.mxu0 0
    %1687 = vmatprep.subr.bf16.mxu0 0
    %1688 = vmatpush1.bf16.xpose.msra.mxu0 0
    %1689 = vmatprep.mubr.bf16.mxu0 0
    %1690 = vmatmul.mubr.bf16.gmra.mrb[0].mxu0 %v1467
    %v1691 = vpop.f32.mrb[0].mxu0
    %v1692 = vadd.f32 0.0, %v1691
    %v1693 = vpop.f32.mrb[0].mxu0
    %v1694 = vpop.f32.mrb[0].mxu0
    %v1695 = vpop.f32.mrb[0].mxu0
    %1696 = vdwg.mxu0
    %1697 = vrot.lane.b32.xlu0 %v510, 88
    %v1698 = vpop.permute.xlu0 %1697
    %v1700 = vsel %vm511, %v1698, 0
    %1702 = vmatprep.subr.bf16.mxu0 0
    %1703 = vmatpush1.bf16.xpose.msra.mxu0 %v1700
    %1704 = vmatprep.subr.bf16.mxu0 0
    %1705 = vmatpush1.bf16.xpose.msra.mxu0 0
    %1706 = vmatprep.subr.bf16.mxu0 0
    %1707 = vmatpush1.bf16.xpose.msra.mxu0 0
    %1708 = vmatprep.subr.bf16.mxu0 0
    %1709 = vmatpush1.bf16.xpose.msra.mxu0 0
    %1710 = vmatprep.subr.bf16.mxu0 0
    %1711 = vmatpush1.bf16.xpose.msra.mxu0 0
    %1712 = vmatprep.subr.bf16.mxu0 0
    %1713 = vmatpush1.bf16.xpose.msra.mxu0 0
    %1714 = vmatprep.subr.bf16.mxu0 0
    %1715 = vmatpush1.bf16.xpose.msra.mxu0 0
    %1716 = vmatprep.subr.bf16.mxu0 0
    %1717 = vmatpush1.bf16.xpose.msra.mxu0 0
    %1718 = vmatprep.subr.bf16.mxu0 0
    %1719 = vmatpush1.bf16.xpose.msra.mxu0 0
    %1720 = vmatprep.subr.bf16.mxu0 0
    %1721 = vmatpush1.bf16.xpose.msra.mxu0 0
    %1722 = vmatprep.subr.bf16.mxu0 0
    %1723 = vmatpush1.bf16.xpose.msra.mxu0 0
    %1724 = vmatprep.subr.bf16.mxu0 0
    %1725 = vmatpush1.bf16.xpose.msra.mxu0 0
    %1726 = vmatprep.subr.bf16.mxu0 0
    %1727 = vmatpush1.bf16.xpose.msra.mxu0 0
    %1728 = vmatprep.subr.bf16.mxu0 0
    %1729 = vmatpush1.bf16.xpose.msra.mxu0 0
    %1730 = vmatprep.subr.bf16.mxu0 0
    %1731 = vmatpush1.bf16.xpose.msra.mxu0 0
    %1732 = vmatprep.subr.bf16.mxu0 0
    %1733 = vmatpush1.bf16.xpose.msra.mxu0 0
    %1734 = vmatprep.mubr.bf16.mxu0 0
    %1735 = vmatmul.mubr.bf16.gmra.mrb[0].mxu0 %v1517
    %v1736 = vpop.f32.mrb[0].mxu0
    %v1737 = vadd.f32 0.0, %v1736
    %v1738 = vpop.f32.mrb[0].mxu0
    %v1739 = vpop.f32.mrb[0].mxu0
    %v1740 = vpop.f32.mrb[0].mxu0
    %1741 = vdwg.mxu0
    %v1742 = vsel %vm876, %v1407, -inf
    %1743 = vmax.xlane.f32.xlu0 %v1742
    %v1744 = vpop.xlane.xlu0 %1743
    %v1745 = vsel %vm876, %v1457, -inf
    %1746 = vmax.xlane.f32.xlu0 %v1745
    %v1747 = vpop.xlane.xlu0 %1746
    %v1748 = vsel %vm876, %v1507, -inf
    %1749 = vmax.xlane.f32.xlu0 %v1748
    %v1750 = vpop.xlane.xlu0 %1749
    %v1751 = vsel %vm876, %v1557, -inf
    %1752 = vmax.xlane.f32.xlu0 %v1751
    %v1753 = vpop.xlane.xlu0 %1752
    %v1754 = vsel %vm511, %v1602, -inf
    %1755 = vmax.xlane.f32.xlu0 %v1754
    %v1756 = vpop.xlane.xlu0 %1755
    %v1757 = vsel %vm511, %v1647, -inf
    %1758 = vmax.xlane.f32.xlu0 %v1757
    %v1759 = vpop.xlane.xlu0 %1758
    %v1760 = vsel %vm511, %v1692, -inf
    %1761 = vmax.xlane.f32.xlu0 %v1760
    %v1762 = vpop.xlane.xlu0 %1761
    %v1763 = vsel %vm511, %v1737, -inf
    %1764 = vmax.xlane.f32.xlu0 %v1763
    %v1765 = vpop.xlane.xlu0 %1764
    %v1766 = vmax.f32 %v1744, %v1756
    %v1767 = vmax.f32 %v1747, %v1759
    %v1768 = vmax.f32 %v1750, %v1762
    %v1769 = vmax.f32 %v1753, %v1765
    %v1770 = vsub.f32 %v1407, %v1766
    %v1771 = vsub.f32 %v1457, %v1767
    %v1772 = vsub.f32 %v1507, %v1768
    %v1773 = vsub.f32 %v1557, %v1769
    %v1774 = vmul.f32 %v1770, 1.442695
    %v1775 = vpow.pop %v1774
    %v1776 = vmul.f32 %v1771, 1.442695
    %v1777 = vpow.pop %v1776
    %v1778 = vmul.f32 %v1772, 1.442695
    %v1779 = vpow.pop %v1778
    %v1780 = vmul.f32 %v1773, 1.442695
    %v1781 = vpow.pop %v1780
    %v1782 = vsub.f32 %v1602, %v1766
    %v1783 = vsub.f32 %v1647, %v1767
    %v1784 = vsub.f32 %v1692, %v1768
    %v1785 = vsub.f32 %v1737, %v1769
    %v1786 = vmul.f32 %v1782, 1.442695
    %v1787 = vpow.pop %v1786
    %v1788 = vmul.f32 %v1783, 1.442695
    %v1789 = vpow.pop %v1788
    %v1790 = vmul.f32 %v1784, 1.442695
    %v1791 = vpow.pop %v1790
    %v1792 = vmul.f32 %v1785, 1.442695
    %v1793 = vpow.pop %v1792
    %v1794 = vsel %vm876, %v1775, 0.0
    %1795 = vadd.xlane.f32.xlu0 %v1794
    %v1796 = vpop.xlane.xlu0 %1795
    %v1797 = vsel %vm876, %v1777, 0.0
    %1798 = vadd.xlane.f32.xlu0 %v1797
    %v1799 = vpop.xlane.xlu0 %1798
    %v1800 = vsel %vm876, %v1779, 0.0
    %1801 = vadd.xlane.f32.xlu0 %v1800
    %v1802 = vpop.xlane.xlu0 %1801
    %v1803 = vsel %vm876, %v1781, 0.0
    %1804 = vadd.xlane.f32.xlu0 %v1803
    %v1805 = vpop.xlane.xlu0 %1804
    %v1806 = vsel %vm511, %v1787, 0.0
    %1807 = vadd.xlane.f32.xlu0 %v1806
    %v1808 = vpop.xlane.xlu0 %1807
    %v1809 = vsel %vm511, %v1789, 0.0
    %1810 = vadd.xlane.f32.xlu0 %v1809
    %v1811 = vpop.xlane.xlu0 %1810
    %v1812 = vsel %vm511, %v1791, 0.0
    %1813 = vadd.xlane.f32.xlu0 %v1812
    %v1814 = vpop.xlane.xlu0 %1813
    %v1815 = vsel %vm511, %v1793, 0.0
    %1816 = vadd.xlane.f32.xlu0 %v1815
    %v1817 = vpop.xlane.xlu0 %1816
    %v1818 = vadd.f32 %v1796, %v1808
    %v1819 = vadd.f32 %v1799, %v1811
    %v1820 = vadd.f32 %v1802, %v1814
    %v1821 = vadd.f32 %v1805, %v1817
    %v1822 = vrcp.pop %v1818
    %v1823 = vrcp.pop %v1819
    %v1824 = vrcp.pop %v1820
    %v1825 = vrcp.pop %v1821
    %v1826 = vmul.f32 %v1775, %v1822
    %v1827 = vmul.f32 %v1777, %v1823
    %v1828 = vmul.f32 %v1779, %v1824
    %v1829 = vmul.f32 %v1781, %v1825
    %v1830 = vpack.c.bf16 %v1826, %v1826
    %v1831 = vpack.c.bf16 %v1827, %v1827
    %v1832 = vpack.c.bf16 %v1828, %v1828
    %v1833 = vpack.c.bf16 %v1829, %v1829
    %v1834 = vmul.f32 %v1787, %v1822
    %v1835 = vmul.f32 %v1789, %v1823
    %v1836 = vmul.f32 %v1791, %v1824
    %v1837 = vmul.f32 %v1793, %v1825
    %v1838 = vpack.c.bf16 %v1834, %v1834
    %v1839 = vpack.c.bf16 %v1835, %v1835
    %v1840 = vpack.c.bf16 %v1836, %v1836
    %v1841 = vpack.c.bf16 %v1837, %v1837
    %1842 = vrot.lane.b32.xlu0 %v507, 56
    %v1843 = vpop.permute.xlu0 %1842
    %v1845 = vsel %vm511, %v1838, 0
    %v1848 = vsel %vm982, %v1843, 0
    %1850 = vmatprep.subr.bf16.mxu0 0
    %1851 = vmatpush1.bf16.msra.mxu0 %v1848
    %1852 = vmatprep.subr.bf16.mxu0 0
    %1853 = vmatpush1.bf16.msra.mxu0 0
    %1854 = vmatprep.subr.bf16.mxu0 0
    %1855 = vmatpush1.bf16.msra.mxu0 0
    %1856 = vmatprep.subr.bf16.mxu0 0
    %1857 = vmatpush1.bf16.msra.mxu0 0
    %1858 = vmatprep.subr.bf16.mxu0 0
    %1859 = vmatpush1.bf16.msra.mxu0 0
    %1860 = vmatprep.subr.bf16.mxu0 0
    %1861 = vmatpush1.bf16.msra.mxu0 0
    %1862 = vmatprep.subr.bf16.mxu0 0
    %1863 = vmatpush1.bf16.msra.mxu0 0
    %1864 = vmatprep.subr.bf16.mxu0 0
    %1865 = vmatpush1.bf16.msra.mxu0 0
    %1866 = vmatprep.subr.bf16.mxu0 0
    %1867 = vmatpush1.bf16.msra.mxu0 0
    %1868 = vmatprep.subr.bf16.mxu0 0
    %1869 = vmatpush1.bf16.msra.mxu0 0
    %1870 = vmatprep.subr.bf16.mxu0 0
    %1871 = vmatpush1.bf16.msra.mxu0 0
    %1872 = vmatprep.subr.bf16.mxu0 0
    %1873 = vmatpush1.bf16.msra.mxu0 0
    %1874 = vmatprep.subr.bf16.mxu0 0
    %1875 = vmatpush1.bf16.msra.mxu0 0
    %1876 = vmatprep.subr.bf16.mxu0 0
    %1877 = vmatpush1.bf16.msra.mxu0 0
    %1878 = vmatprep.subr.bf16.mxu0 0
    %1879 = vmatpush1.bf16.msra.mxu0 0
    %1880 = vmatprep.subr.bf16.mxu0 0
    %1881 = vmatpush1.bf16.msra.mxu0 0
    %1882 = vmatprep.mubr.bf16.mxu0 0
    %1883 = vmatmul.mubr.bf16.gmra.mrb[0].mxu0 %v1845
    %v1884 = vpop.f32.mrb[0].mxu0
    %v1885 = vadd.f32 0.0, %v1884
    %v1886 = vpop.f32.mrb[0].mxu0
    %v1887 = vpop.f32.mrb[0].mxu0
    %v1888 = vpop.f32.mrb[0].mxu0
    %1889 = vdwg.mxu0
    %1890 = vrot.lane.b32.xlu0 %v508, 56
    %v1891 = vpop.permute.xlu0 %1890
    %v1893 = vsel %vm511, %v1839, 0
    %v1896 = vsel %vm982, %v1891, 0
    %1898 = vmatprep.subr.bf16.mxu0 0
    %1899 = vmatpush1.bf16.msra.mxu0 %v1896
    %1900 = vmatprep.subr.bf16.mxu0 0
    %1901 = vmatpush1.bf16.msra.mxu0 0
    %1902 = vmatprep.subr.bf16.mxu0 0
    %1903 = vmatpush1.bf16.msra.mxu0 0
    %1904 = vmatprep.subr.bf16.mxu0 0
    %1905 = vmatpush1.bf16.msra.mxu0 0
    %1906 = vmatprep.subr.bf16.mxu0 0
    %1907 = vmatpush1.bf16.msra.mxu0 0
    %1908 = vmatprep.subr.bf16.mxu0 0
    %1909 = vmatpush1.bf16.msra.mxu0 0
    %1910 = vmatprep.subr.bf16.mxu0 0
    %1911 = vmatpush1.bf16.msra.mxu0 0
    %1912 = vmatprep.subr.bf16.mxu0 0
    %1913 = vmatpush1.bf16.msra.mxu0 0
    %1914 = vmatprep.subr.bf16.mxu0 0
    %1915 = vmatpush1.bf16.msra.mxu0 0
    %1916 = vmatprep.subr.bf16.mxu0 0
    %1917 = vmatpush1.bf16.msra.mxu0 0
    %1918 = vmatprep.subr.bf16.mxu0 0
    %1919 = vmatpush1.bf16.msra.mxu0 0
    %1920 = vmatprep.subr.bf16.mxu0 0
    %1921 = vmatpush1.bf16.msra.mxu0 0
    %1922 = vmatprep.subr.bf16.mxu0 0
    %1923 = vmatpush1.bf16.msra.mxu0 0
    %1924 = vmatprep.subr.bf16.mxu0 0
    %1925 = vmatpush1.bf16.msra.mxu0 0
    %1926 = vmatprep.subr.bf16.mxu0 0
    %1927 = vmatpush1.bf16.msra.mxu0 0
    %1928 = vmatprep.subr.bf16.mxu0 0
    %1929 = vmatpush1.bf16.msra.mxu0 0
    %1930 = vmatprep.mubr.bf16.mxu0 0
    %1931 = vmatmul.mubr.bf16.gmra.mrb[0].mxu0 %v1893
    %v1932 = vpop.f32.mrb[0].mxu0
    %v1933 = vadd.f32 0.0, %v1932
    %v1934 = vpop.f32.mrb[0].mxu0
    %v1935 = vpop.f32.mrb[0].mxu0
    %v1936 = vpop.f32.mrb[0].mxu0
    %1937 = vdwg.mxu0
    %1938 = vrot.lane.b32.xlu0 %v509, 56
    %v1939 = vpop.permute.xlu0 %1938
    %v1941 = vsel %vm511, %v1840, 0
    %v1944 = vsel %vm982, %v1939, 0
    %1946 = vmatprep.subr.bf16.mxu0 0
    %1947 = vmatpush1.bf16.msra.mxu0 %v1944
    %1948 = vmatprep.subr.bf16.mxu0 0
    %1949 = vmatpush1.bf16.msra.mxu0 0
    %1950 = vmatprep.subr.bf16.mxu0 0
    %1951 = vmatpush1.bf16.msra.mxu0 0
    %1952 = vmatprep.subr.bf16.mxu0 0
    %1953 = vmatpush1.bf16.msra.mxu0 0
    %1954 = vmatprep.subr.bf16.mxu0 0
    %1955 = vmatpush1.bf16.msra.mxu0 0
    %1956 = vmatprep.subr.bf16.mxu0 0
    %1957 = vmatpush1.bf16.msra.mxu0 0
    %1958 = vmatprep.subr.bf16.mxu0 0
    %1959 = vmatpush1.bf16.msra.mxu0 0
    %1960 = vmatprep.subr.bf16.mxu0 0
    %1961 = vmatpush1.bf16.msra.mxu0 0
    %1962 = vmatprep.subr.bf16.mxu0 0
    %1963 = vmatpush1.bf16.msra.mxu0 0
    %1964 = vmatprep.subr.bf16.mxu0 0
    %1965 = vmatpush1.bf16.msra.mxu0 0
    %1966 = vmatprep.subr.bf16.mxu0 0
    %1967 = vmatpush1.bf16.msra.mxu0 0
    %1968 = vmatprep.subr.bf16.mxu0 0
    %1969 = vmatpush1.bf16.msra.mxu0 0
    %1970 = vmatprep.subr.bf16.mxu0 0
    %1971 = vmatpush1.bf16.msra.mxu0 0
    %1972 = vmatprep.subr.bf16.mxu0 0
    %1973 = vmatpush1.bf16.msra.mxu0 0
    %1974 = vmatprep.subr.bf16.mxu0 0
    %1975 = vmatpush1.bf16.msra.mxu0 0
    %1976 = vmatprep.subr.bf16.mxu0 0
    %1977 = vmatpush1.bf16.msra.mxu0 0
    %1978 = vmatprep.mubr.bf16.mxu0 0
    %1979 = vmatmul.mubr.bf16.gmra.mrb[0].mxu0 %v1941
    %v1980 = vpop.f32.mrb[0].mxu0
    %v1981 = vadd.f32 0.0, %v1980
    %v1982 = vpop.f32.mrb[0].mxu0
    %v1983 = vpop.f32.mrb[0].mxu0
    %v1984 = vpop.f32.mrb[0].mxu0
    %1985 = vdwg.mxu0
    %1986 = vrot.lane.b32.xlu0 %v510, 56
    %v1987 = vpop.permute.xlu0 %1986
    %v1989 = vsel %vm511, %v1841, 0
    %v1992 = vsel %vm982, %v1987, 0
    %1994 = vmatprep.subr.bf16.mxu0 0
    %1995 = vmatpush1.bf16.msra.mxu0 %v1992
    %1996 = vmatprep.subr.bf16.mxu0 0
    %1997 = vmatpush1.bf16.msra.mxu0 0
    %1998 = vmatprep.subr.bf16.mxu0 0
    %1999 = vmatpush1.bf16.msra.mxu0 0
    %2000 = vmatprep.subr.bf16.mxu0 0
    %2001 = vmatpush1.bf16.msra.mxu0 0
    %2002 = vmatprep.subr.bf16.mxu0 0
    %2003 = vmatpush1.bf16.msra.mxu0 0
    %2004 = vmatprep.subr.bf16.mxu0 0
    %2005 = vmatpush1.bf16.msra.mxu0 0
    %2006 = vmatprep.subr.bf16.mxu0 0
    %2007 = vmatpush1.bf16.msra.mxu0 0
    %2008 = vmatprep.subr.bf16.mxu0 0
    %2009 = vmatpush1.bf16.msra.mxu0 0
    %2010 = vmatprep.subr.bf16.mxu0 0
    %2011 = vmatpush1.bf16.msra.mxu0 0
    %2012 = vmatprep.subr.bf16.mxu0 0
    %2013 = vmatpush1.bf16.msra.mxu0 0
    %2014 = vmatprep.subr.bf16.mxu0 0
    %2015 = vmatpush1.bf16.msra.mxu0 0
    %2016 = vmatprep.subr.bf16.mxu0 0
    %2017 = vmatpush1.bf16.msra.mxu0 0
    %2018 = vmatprep.subr.bf16.mxu0 0
    %2019 = vmatpush1.bf16.msra.mxu0 0
    %2020 = vmatprep.subr.bf16.mxu0 0
    %2021 = vmatpush1.bf16.msra.mxu0 0
    %2022 = vmatprep.subr.bf16.mxu0 0
    %2023 = vmatpush1.bf16.msra.mxu0 0
    %2024 = vmatprep.subr.bf16.mxu0 0
    %2025 = vmatpush1.bf16.msra.mxu0 0
    %2026 = vmatprep.mubr.bf16.mxu0 0
    %2027 = vmatmul.mubr.bf16.gmra.mrb[0].mxu0 %v1989
    %v2028 = vpop.f32.mrb[0].mxu0
    %v2029 = vadd.f32 0.0, %v2028
    %v2030 = vpop.f32.mrb[0].mxu0
    %v2031 = vpop.f32.mrb[0].mxu0
    %v2032 = vpop.f32.mrb[0].mxu0
    %2033 = vdwg.mxu0
    %2034 = vrot.lane.b32.xlu0 %v497, 88
    %v2035 = vpop.permute.xlu0 %2034
    %v2038 = vsel %vm876, %v1830, 0
    %2040 = vmatprep.subr.bf16.mxu0 0
    %2041 = vmatpush1.bf16.msra.mxu0 %v2035
    %2042 = vmatprep.subr.bf16.mxu0 0
    %2043 = vmatpush1.bf16.msra.mxu0 0
    %2044 = vmatprep.subr.bf16.mxu0 0
    %2045 = vmatpush1.bf16.msra.mxu0 0
    %2046 = vmatprep.subr.bf16.mxu0 0
    %2047 = vmatpush1.bf16.msra.mxu0 0
    %2048 = vmatprep.subr.bf16.mxu0 0
    %2049 = vmatpush1.bf16.msra.mxu0 0
    %2050 = vmatprep.subr.bf16.mxu0 0
    %2051 = vmatpush1.bf16.msra.mxu0 0
    %2052 = vmatprep.subr.bf16.mxu0 0
    %2053 = vmatpush1.bf16.msra.mxu0 0
    %2054 = vmatprep.subr.bf16.mxu0 0
    %2055 = vmatpush1.bf16.msra.mxu0 0
    %2056 = vmatprep.subr.bf16.mxu0 0
    %2057 = vmatpush1.bf16.msra.mxu0 0
    %2058 = vmatprep.subr.bf16.mxu0 0
    %2059 = vmatpush1.bf16.msra.mxu0 0
    %2060 = vmatprep.subr.bf16.mxu0 0
    %2061 = vmatpush1.bf16.msra.mxu0 0
    %2062 = vmatprep.subr.bf16.mxu0 0
    %2063 = vmatpush1.bf16.msra.mxu0 0
    %2064 = vmatprep.subr.bf16.mxu0 0
    %2065 = vmatpush1.bf16.msra.mxu0 0
    %2066 = vmatprep.subr.bf16.mxu0 0
    %2067 = vmatpush1.bf16.msra.mxu0 0
    %2068 = vmatprep.subr.bf16.mxu0 0
    %2069 = vmatpush1.bf16.msra.mxu0 0
    %2070 = vmatprep.subr.bf16.mxu0 0
    %2071 = vmatpush1.bf16.msra.mxu0 0
    %2072 = vmatprep.mubr.bf16.mxu0 0
    %2073 = vmatmul.mubr.bf16.gmra.mrb[0].mxu0 %v2038
    %v2074 = vpop.f32.mrb[0].mxu0
    %v2075 = vadd.f32 %v1885, %v2074
    %v2076 = vpop.f32.mrb[0].mxu0
    %v2077 = vpop.f32.mrb[0].mxu0
    %v2078 = vpop.f32.mrb[0].mxu0
    %2079 = vdwg.mxu0
    %2080 = vrot.lane.b32.xlu0 %v498, 88
    %v2081 = vpop.permute.xlu0 %2080
    %v2084 = vsel %vm876, %v1831, 0
    %2086 = vmatprep.subr.bf16.mxu0 0
    %2087 = vmatpush1.bf16.msra.mxu0 %v2081
    %2088 = vmatprep.subr.bf16.mxu0 0
    %2089 = vmatpush1.bf16.msra.mxu0 0
    %2090 = vmatprep.subr.bf16.mxu0 0
    %2091 = vmatpush1.bf16.msra.mxu0 0
    %2092 = vmatprep.subr.bf16.mxu0 0
    %2093 = vmatpush1.bf16.msra.mxu0 0
    %2094 = vmatprep.subr.bf16.mxu0 0
    %2095 = vmatpush1.bf16.msra.mxu0 0
    %2096 = vmatprep.subr.bf16.mxu0 0
    %2097 = vmatpush1.bf16.msra.mxu0 0
    %2098 = vmatprep.subr.bf16.mxu0 0
    %2099 = vmatpush1.bf16.msra.mxu0 0
    %2100 = vmatprep.subr.bf16.mxu0 0
    %2101 = vmatpush1.bf16.msra.mxu0 0
    %2102 = vmatprep.subr.bf16.mxu0 0
    %2103 = vmatpush1.bf16.msra.mxu0 0
    %2104 = vmatprep.subr.bf16.mxu0 0
    %2105 = vmatpush1.bf16.msra.mxu0 0
    %2106 = vmatprep.subr.bf16.mxu0 0
    %2107 = vmatpush1.bf16.msra.mxu0 0
    %2108 = vmatprep.subr.bf16.mxu0 0
    %2109 = vmatpush1.bf16.msra.mxu0 0
    %2110 = vmatprep.subr.bf16.mxu0 0
    %2111 = vmatpush1.bf16.msra.mxu0 0
    %2112 = vmatprep.subr.bf16.mxu0 0
    %2113 = vmatpush1.bf16.msra.mxu0 0
    %2114 = vmatprep.subr.bf16.mxu0 0
    %2115 = vmatpush1.bf16.msra.mxu0 0
    %2116 = vmatprep.subr.bf16.mxu0 0
    %2117 = vmatpush1.bf16.msra.mxu0 0
    %2118 = vmatprep.mubr.bf16.mxu0 0
    %2119 = vmatmul.mubr.bf16.gmra.mrb[0].mxu0 %v2084
    %v2120 = vpop.f32.mrb[0].mxu0
    %v2121 = vadd.f32 %v1933, %v2120
    %v2122 = vpop.f32.mrb[0].mxu0
    %v2123 = vpop.f32.mrb[0].mxu0
    %v2124 = vpop.f32.mrb[0].mxu0
    %2125 = vdwg.mxu0
    %2126 = vrot.lane.b32.xlu0 %v499, 88
    %v2127 = vpop.permute.xlu0 %2126
    %v2130 = vsel %vm876, %v1832, 0
    %2132 = vmatprep.subr.bf16.mxu0 0
    %2133 = vmatpush1.bf16.msra.mxu0 %v2127
    %2134 = vmatprep.subr.bf16.mxu0 0
    %2135 = vmatpush1.bf16.msra.mxu0 0
    %2136 = vmatprep.subr.bf16.mxu0 0
    %2137 = vmatpush1.bf16.msra.mxu0 0
    %2138 = vmatprep.subr.bf16.mxu0 0
    %2139 = vmatpush1.bf16.msra.mxu0 0
    %2140 = vmatprep.subr.bf16.mxu0 0
    %2141 = vmatpush1.bf16.msra.mxu0 0
    %2142 = vmatprep.subr.bf16.mxu0 0
    %2143 = vmatpush1.bf16.msra.mxu0 0
    %2144 = vmatprep.subr.bf16.mxu0 0
    %2145 = vmatpush1.bf16.msra.mxu0 0
    %2146 = vmatprep.subr.bf16.mxu0 0
    %2147 = vmatpush1.bf16.msra.mxu0 0
    %2148 = vmatprep.subr.bf16.mxu0 0
    %2149 = vmatpush1.bf16.msra.mxu0 0
    %2150 = vmatprep.subr.bf16.mxu0 0
    %2151 = vmatpush1.bf16.msra.mxu0 0
    %2152 = vmatprep.subr.bf16.mxu0 0
    %2153 = vmatpush1.bf16.msra.mxu0 0
    %2154 = vmatprep.subr.bf16.mxu0 0
    %2155 = vmatpush1.bf16.msra.mxu0 0
    %2156 = vmatprep.subr.bf16.mxu0 0
    %2157 = vmatpush1.bf16.msra.mxu0 0
    %2158 = vmatprep.subr.bf16.mxu0 0
    %2159 = vmatpush1.bf16.msra.mxu0 0
    %2160 = vmatprep.subr.bf16.mxu0 0
    %2161 = vmatpush1.bf16.msra.mxu0 0
    %2162 = vmatprep.subr.bf16.mxu0 0
    %2163 = vmatpush1.bf16.msra.mxu0 0
    %2164 = vmatprep.mubr.bf16.mxu0 0
    %2165 = vmatmul.mubr.bf16.gmra.mrb[0].mxu0 %v2130
    %v2166 = vpop.f32.mrb[0].mxu0
    %v2167 = vadd.f32 %v1981, %v2166
    %v2168 = vpop.f32.mrb[0].mxu0
    %v2169 = vpop.f32.mrb[0].mxu0
    %v2170 = vpop.f32.mrb[0].mxu0
    %2171 = vdwg.mxu0
    %2172 = vrot.lane.b32.xlu0 %v500, 88
    %v2173 = vpop.permute.xlu0 %2172
    %v2176 = vsel %vm876, %v1833, 0
    %2178 = vmatprep.subr.bf16.mxu0 0
    %2179 = vmatpush1.bf16.msra.mxu0 %v2173
    %2180 = vmatprep.subr.bf16.mxu0 0
    %2181 = vmatpush1.bf16.msra.mxu0 0
    %2182 = vmatprep.subr.bf16.mxu0 0
    %2183 = vmatpush1.bf16.msra.mxu0 0
    %2184 = vmatprep.subr.bf16.mxu0 0
    %2185 = vmatpush1.bf16.msra.mxu0 0
    %2186 = vmatprep.subr.bf16.mxu0 0
    %2187 = vmatpush1.bf16.msra.mxu0 0
    %2188 = vmatprep.subr.bf16.mxu0 0
    %2189 = vmatpush1.bf16.msra.mxu0 0
    %2190 = vmatprep.subr.bf16.mxu0 0
    %2191 = vmatpush1.bf16.msra.mxu0 0
    %2192 = vmatprep.subr.bf16.mxu0 0
    %2193 = vmatpush1.bf16.msra.mxu0 0
    %2194 = vmatprep.subr.bf16.mxu0 0
    %2195 = vmatpush1.bf16.msra.mxu0 0
    %2196 = vmatprep.subr.bf16.mxu0 0
    %2197 = vmatpush1.bf16.msra.mxu0 0
    %2198 = vmatprep.subr.bf16.mxu0 0
    %2199 = vmatpush1.bf16.msra.mxu0 0
    %2200 = vmatprep.subr.bf16.mxu0 0
    %2201 = vmatpush1.bf16.msra.mxu0 0
    %2202 = vmatprep.subr.bf16.mxu0 0
    %2203 = vmatpush1.bf16.msra.mxu0 0
    %2204 = vmatprep.subr.bf16.mxu0 0
    %2205 = vmatpush1.bf16.msra.mxu0 0
    %2206 = vmatprep.subr.bf16.mxu0 0
    %2207 = vmatpush1.bf16.msra.mxu0 0
    %2208 = vmatprep.subr.bf16.mxu0 0
    %2209 = vmatpush1.bf16.msra.mxu0 0
    %2210 = vmatprep.mubr.bf16.mxu0 0
    %2211 = vmatmul.mubr.bf16.gmra.mrb[0].mxu0 %v2176
    %v2212 = vpop.f32.mrb[0].mxu0
    %v2213 = vadd.f32 %v2029, %v2212
    %v2214 = vpop.f32.mrb[0].mxu0
    %v2215 = vpop.f32.mrb[0].mxu0
    %v2216 = vpop.f32.mrb[0].mxu0
    %2217 = vdwg.mxu0
    %v2218 = vpack.c.bf16 %v2121, %v2075
    %v2219 = vpack.c.bf16 %v2213, %v2167
    %2222 = vrot.lane.b32.xlu0 %v2218, 8
    %v2223 = vpop.permute.xlu0 %2222
    %2224 = vrot.lane.b32.xlu0 %v2219, 8
    %v2225 = vpop.permute.xlu0 %2224
    %vm2228 = vcmask 130112
    %2229 = vst.msk [vmem:[#allocation2] sm:$0xff] %vm2228, %v2223
    %2230 = vst.msk [vmem:[#allocation2 + $0x8] sm:$0xff] %vm2228, %v2225
    %2231 = vrot.lane.b32.xlu0 %v507, 112
    %v2232 = vpop.permute.xlu0 %2231
    %2233 = vrot.lane.b32.xlu0 %v497, 112
    %v2234 = vpop.permute.xlu0 %2233
    %v2236 = vsel %vm511, %v2232, 0
    %v2239 = vsel %vm511, %v2234, 0
    %2241 = vmatprep.subr.bf16.mxu0 0
    %2242 = vmatpush1.bf16.xpose.msra.mxu0 %v2239
    %2243 = vmatprep.subr.bf16.mxu0 0
    %2244 = vmatpush1.bf16.xpose.msra.mxu0 0
    %2245 = vmatprep.subr.bf16.mxu0 0
    %2246 = vmatpush1.bf16.xpose.msra.mxu0 0
    %2247 = vmatprep.subr.bf16.mxu0 0
    %2248 = vmatpush1.bf16.xpose.msra.mxu0 0
    %2249 = vmatprep.subr.bf16.mxu0 0
    %2250 = vmatpush1.bf16.xpose.msra.mxu0 0
    %2251 = vmatprep.subr.bf16.mxu0 0
    %2252 = vmatpush1.bf16.xpose.msra.mxu0 0
    %2253 = vmatprep.subr.bf16.mxu0 0
    %2254 = vmatpush1.bf16.xpose.msra.mxu0 0
    %2255 = vmatprep.subr.bf16.mxu0 0
    %2256 = vmatpush1.bf16.xpose.msra.mxu0 0
    %2257 = vmatprep.subr.bf16.mxu0 0
    %2258 = vmatpush1.bf16.xpose.msra.mxu0 0
    %2259 = vmatprep.subr.bf16.mxu0 0
    %2260 = vmatpush1.bf16.xpose.msra.mxu0 0
    %2261 = vmatprep.subr.bf16.mxu0 0
    %2262 = vmatpush1.bf16.xpose.msra.mxu0 0
    %2263 = vmatprep.subr.bf16.mxu0 0
    %2264 = vmatpush1.bf16.xpose.msra.mxu0 0
    %2265 = vmatprep.subr.bf16.mxu0 0
    %2266 = vmatpush1.bf16.xpose.msra.mxu0 0
    %2267 = vmatprep.subr.bf16.mxu0 0
    %2268 = vmatpush1.bf16.xpose.msra.mxu0 0
    %2269 = vmatprep.subr.bf16.mxu0 0
    %2270 = vmatpush1.bf16.xpose.msra.mxu0 0
    %2271 = vmatprep.subr.bf16.mxu0 0
    %2272 = vmatpush1.bf16.xpose.msra.mxu0 0
    %2273 = vmatprep.mubr.bf16.mxu0 0
    %2274 = vmatmul.mubr.bf16.gmra.mrb[0].mxu0 %v2236
    %v2275 = vpop.f32.mrb[0].mxu0
    %v2276 = vadd.f32 0.0, %v2275
    %v2277 = vpop.f32.mrb[0].mxu0
    %v2278 = vpop.f32.mrb[0].mxu0
    %v2279 = vpop.f32.mrb[0].mxu0
    %2280 = vdwg.mxu0
    %2281 = vrot.lane.b32.xlu0 %v508, 112
    %v2282 = vpop.permute.xlu0 %2281
    %2283 = vrot.lane.b32.xlu0 %v498, 112
    %v2284 = vpop.permute.xlu0 %2283
    %v2286 = vsel %vm511, %v2282, 0
    %v2289 = vsel %vm511, %v2284, 0
    %2291 = vmatprep.subr.bf16.mxu0 0
    %2292 = vmatpush1.bf16.xpose.msra.mxu0 %v2289
    %2293 = vmatprep.subr.bf16.mxu0 0
    %2294 = vmatpush1.bf16.xpose.msra.mxu0 0
    %2295 = vmatprep.subr.bf16.mxu0 0
    %2296 = vmatpush1.bf16.xpose.msra.mxu0 0
    %2297 = vmatprep.subr.bf16.mxu0 0
    %2298 = vmatpush1.bf16.xpose.msra.mxu0 0
    %2299 = vmatprep.subr.bf16.mxu0 0
    %2300 = vmatpush1.bf16.xpose.msra.mxu0 0
    %2301 = vmatprep.subr.bf16.mxu0 0
    %2302 = vmatpush1.bf16.xpose.msra.mxu0 0
    %2303 = vmatprep.subr.bf16.mxu0 0
    %2304 = vmatpush1.bf16.xpose.msra.mxu0 0
    %2305 = vmatprep.subr.bf16.mxu0 0
    %2306 = vmatpush1.bf16.xpose.msra.mxu0 0
    %2307 = vmatprep.subr.bf16.mxu0 0
    %2308 = vmatpush1.bf16.xpose.msra.mxu0 0
    %2309 = vmatprep.subr.bf16.mxu0 0
    %2310 = vmatpush1.bf16.xpose.msra.mxu0 0
    %2311 = vmatprep.subr.bf16.mxu0 0
    %2312 = vmatpush1.bf16.xpose.msra.mxu0 0
    %2313 = vmatprep.subr.bf16.mxu0 0
    %2314 = vmatpush1.bf16.xpose.msra.mxu0 0
    %2315 = vmatprep.subr.bf16.mxu0 0
    %2316 = vmatpush1.bf16.xpose.msra.mxu0 0
    %2317 = vmatprep.subr.bf16.mxu0 0
    %2318 = vmatpush1.bf16.xpose.msra.mxu0 0
    %2319 = vmatprep.subr.bf16.mxu0 0
    %2320 = vmatpush1.bf16.xpose.msra.mxu0 0
    %2321 = vmatprep.subr.bf16.mxu0 0
    %2322 = vmatpush1.bf16.xpose.msra.mxu0 0
    %2323 = vmatprep.mubr.bf16.mxu0 0
    %2324 = vmatmul.mubr.bf16.gmra.mrb[0].mxu0 %v2286
    %v2325 = vpop.f32.mrb[0].mxu0
    %v2326 = vadd.f32 0.0, %v2325
    %v2327 = vpop.f32.mrb[0].mxu0
    %v2328 = vpop.f32.mrb[0].mxu0
    %v2329 = vpop.f32.mrb[0].mxu0
    %2330 = vdwg.mxu0
    %2331 = vrot.lane.b32.xlu0 %v509, 112
    %v2332 = vpop.permute.xlu0 %2331
    %2333 = vrot.lane.b32.xlu0 %v499, 112
    %v2334 = vpop.permute.xlu0 %2333
    %v2336 = vsel %vm511, %v2332, 0
    %v2339 = vsel %vm511, %v2334, 0
    %2341 = vmatprep.subr.bf16.mxu0 0
    %2342 = vmatpush1.bf16.xpose.msra.mxu0 %v2339
    %2343 = vmatprep.subr.bf16.mxu0 0
    %2344 = vmatpush1.bf16.xpose.msra.mxu0 0
    %2345 = vmatprep.subr.bf16.mxu0 0
    %2346 = vmatpush1.bf16.xpose.msra.mxu0 0
    %2347 = vmatprep.subr.bf16.mxu0 0
    %2348 = vmatpush1.bf16.xpose.msra.mxu0 0
    %2349 = vmatprep.subr.bf16.mxu0 0
    %2350 = vmatpush1.bf16.xpose.msra.mxu0 0
    %2351 = vmatprep.subr.bf16.mxu0 0
    %2352 = vmatpush1.bf16.xpose.msra.mxu0 0
    %2353 = vmatprep.subr.bf16.mxu0 0
    %2354 = vmatpush1.bf16.xpose.msra.mxu0 0
    %2355 = vmatprep.subr.bf16.mxu0 0
    %2356 = vmatpush1.bf16.xpose.msra.mxu0 0
    %2357 = vmatprep.subr.bf16.mxu0 0
    %2358 = vmatpush1.bf16.xpose.msra.mxu0 0
    %2359 = vmatprep.subr.bf16.mxu0 0
    %2360 = vmatpush1.bf16.xpose.msra.mxu0 0
    %2361 = vmatprep.subr.bf16.mxu0 0
    %2362 = vmatpush1.bf16.xpose.msra.mxu0 0
    %2363 = vmatprep.subr.bf16.mxu0 0
    %2364 = vmatpush1.bf16.xpose.msra.mxu0 0
    %2365 = vmatprep.subr.bf16.mxu0 0
    %2366 = vmatpush1.bf16.xpose.msra.mxu0 0
    %2367 = vmatprep.subr.bf16.mxu0 0
    %2368 = vmatpush1.bf16.xpose.msra.mxu0 0
    %2369 = vmatprep.subr.bf16.mxu0 0
    %2370 = vmatpush1.bf16.xpose.msra.mxu0 0
    %2371 = vmatprep.subr.bf16.mxu0 0
    %2372 = vmatpush1.bf16.xpose.msra.mxu0 0
    %2373 = vmatprep.mubr.bf16.mxu0 0
    %2374 = vmatmul.mubr.bf16.gmra.mrb[0].mxu0 %v2336
    %v2375 = vpop.f32.mrb[0].mxu0
    %v2376 = vadd.f32 0.0, %v2375
    %v2377 = vpop.f32.mrb[0].mxu0
    %v2378 = vpop.f32.mrb[0].mxu0
    %v2379 = vpop.f32.mrb[0].mxu0
    %2380 = vdwg.mxu0
    %2381 = vrot.lane.b32.xlu0 %v510, 112
    %v2382 = vpop.permute.xlu0 %2381
    %2383 = vrot.lane.b32.xlu0 %v500, 112
    %v2384 = vpop.permute.xlu0 %2383
    %v2386 = vsel %vm511, %v2382, 0
    %v2389 = vsel %vm511, %v2384, 0
    %2391 = vmatprep.subr.bf16.mxu0 0
    %2392 = vmatpush1.bf16.xpose.msra.mxu0 %v2389
    %2393 = vmatprep.subr.bf16.mxu0 0
    %2394 = vmatpush1.bf16.xpose.msra.mxu0 0
    %2395 = vmatprep.subr.bf16.mxu0 0
    %2396 = vmatpush1.bf16.xpose.msra.mxu0 0
    %2397 = vmatprep.subr.bf16.mxu0 0
    %2398 = vmatpush1.bf16.xpose.msra.mxu0 0
    %2399 = vmatprep.subr.bf16.mxu0 0
    %2400 = vmatpush1.bf16.xpose.msra.mxu0 0
    %2401 = vmatprep.subr.bf16.mxu0 0
    %2402 = vmatpush1.bf16.xpose.msra.mxu0 0
    %2403 = vmatprep.subr.bf16.mxu0 0
    %2404 = vmatpush1.bf16.xpose.msra.mxu0 0
    %2405 = vmatprep.subr.bf16.mxu0 0
    %2406 = vmatpush1.bf16.xpose.msra.mxu0 0
    %2407 = vmatprep.subr.bf16.mxu0 0
    %2408 = vmatpush1.bf16.xpose.msra.mxu0 0
    %2409 = vmatprep.subr.bf16.mxu0 0
    %2410 = vmatpush1.bf16.xpose.msra.mxu0 0
    %2411 = vmatprep.subr.bf16.mxu0 0
    %2412 = vmatpush1.bf16.xpose.msra.mxu0 0
    %2413 = vmatprep.subr.bf16.mxu0 0
    %2414 = vmatpush1.bf16.xpose.msra.mxu0 0
    %2415 = vmatprep.subr.bf16.mxu0 0
    %2416 = vmatpush1.bf16.xpose.msra.mxu0 0
    %2417 = vmatprep.subr.bf16.mxu0 0
    %2418 = vmatpush1.bf16.xpose.msra.mxu0 0
    %2419 = vmatprep.subr.bf16.mxu0 0
    %2420 = vmatpush1.bf16.xpose.msra.mxu0 0
    %2421 = vmatprep.subr.bf16.mxu0 0
    %2422 = vmatpush1.bf16.xpose.msra.mxu0 0
    %2423 = vmatprep.mubr.bf16.mxu0 0
    %2424 = vmatmul.mubr.bf16.gmra.mrb[0].mxu0 %v2386
    %v2425 = vpop.f32.mrb[0].mxu0
    %v2426 = vadd.f32 0.0, %v2425
    %v2427 = vpop.f32.mrb[0].mxu0
    %v2428 = vpop.f32.mrb[0].mxu0
    %v2429 = vpop.f32.mrb[0].mxu0
    %2430 = vdwg.mxu0
    %2431 = vrot.lane.b32.xlu0 %v507, 80
    %v2432 = vpop.permute.xlu0 %2431
    %v2434 = vsel %vm511, %v2432, 0
    %2436 = vmatprep.subr.bf16.mxu0 0
    %2437 = vmatpush1.bf16.xpose.msra.mxu0 %v2434
    %2438 = vmatprep.subr.bf16.mxu0 0
    %2439 = vmatpush1.bf16.xpose.msra.mxu0 0
    %2440 = vmatprep.subr.bf16.mxu0 0
    %2441 = vmatpush1.bf16.xpose.msra.mxu0 0
    %2442 = vmatprep.subr.bf16.mxu0 0
    %2443 = vmatpush1.bf16.xpose.msra.mxu0 0
    %2444 = vmatprep.subr.bf16.mxu0 0
    %2445 = vmatpush1.bf16.xpose.msra.mxu0 0
    %2446 = vmatprep.subr.bf16.mxu0 0
    %2447 = vmatpush1.bf16.xpose.msra.mxu0 0
    %2448 = vmatprep.subr.bf16.mxu0 0
    %2449 = vmatpush1.bf16.xpose.msra.mxu0 0
    %2450 = vmatprep.subr.bf16.mxu0 0
    %2451 = vmatpush1.bf16.xpose.msra.mxu0 0
    %2452 = vmatprep.subr.bf16.mxu0 0
    %2453 = vmatpush1.bf16.xpose.msra.mxu0 0
    %2454 = vmatprep.subr.bf16.mxu0 0
    %2455 = vmatpush1.bf16.xpose.msra.mxu0 0
    %2456 = vmatprep.subr.bf16.mxu0 0
    %2457 = vmatpush1.bf16.xpose.msra.mxu0 0
    %2458 = vmatprep.subr.bf16.mxu0 0
    %2459 = vmatpush1.bf16.xpose.msra.mxu0 0
    %2460 = vmatprep.subr.bf16.mxu0 0
    %2461 = vmatpush1.bf16.xpose.msra.mxu0 0
    %2462 = vmatprep.subr.bf16.mxu0 0
    %2463 = vmatpush1.bf16.xpose.msra.mxu0 0
    %2464 = vmatprep.subr.bf16.mxu0 0
    %2465 = vmatpush1.bf16.xpose.msra.mxu0 0
    %2466 = vmatprep.subr.bf16.mxu0 0
    %2467 = vmatpush1.bf16.xpose.msra.mxu0 0
    %2468 = vmatprep.mubr.bf16.mxu0 0
    %2469 = vmatmul.mubr.bf16.gmra.mrb[0].mxu0 %v2236
    %v2470 = vpop.f32.mrb[0].mxu0
    %v2471 = vadd.f32 0.0, %v2470
    %v2472 = vpop.f32.mrb[0].mxu0
    %v2473 = vpop.f32.mrb[0].mxu0
    %v2474 = vpop.f32.mrb[0].mxu0
    %2475 = vdwg.mxu0
    %2476 = vrot.lane.b32.xlu0 %v508, 80
    %v2477 = vpop.permute.xlu0 %2476
    %v2479 = vsel %vm511, %v2477, 0
    %2481 = vmatprep.subr.bf16.mxu0 0
    %2482 = vmatpush1.bf16.xpose.msra.mxu0 %v2479
    %2483 = vmatprep.subr.bf16.mxu0 0
    %2484 = vmatpush1.bf16.xpose.msra.mxu0 0
    %2485 = vmatprep.subr.bf16.mxu0 0
    %2486 = vmatpush1.bf16.xpose.msra.mxu0 0
    %2487 = vmatprep.subr.bf16.mxu0 0
    %2488 = vmatpush1.bf16.xpose.msra.mxu0 0
    %2489 = vmatprep.subr.bf16.mxu0 0
    %2490 = vmatpush1.bf16.xpose.msra.mxu0 0
    %2491 = vmatprep.subr.bf16.mxu0 0
    %2492 = vmatpush1.bf16.xpose.msra.mxu0 0
    %2493 = vmatprep.subr.bf16.mxu0 0
    %2494 = vmatpush1.bf16.xpose.msra.mxu0 0
    %2495 = vmatprep.subr.bf16.mxu0 0
    %2496 = vmatpush1.bf16.xpose.msra.mxu0 0
    %2497 = vmatprep.subr.bf16.mxu0 0
    %2498 = vmatpush1.bf16.xpose.msra.mxu0 0
    %2499 = vmatprep.subr.bf16.mxu0 0
    %2500 = vmatpush1.bf16.xpose.msra.mxu0 0
    %2501 = vmatprep.subr.bf16.mxu0 0
    %2502 = vmatpush1.bf16.xpose.msra.mxu0 0
    %2503 = vmatprep.subr.bf16.mxu0 0
    %2504 = vmatpush1.bf16.xpose.msra.mxu0 0
    %2505 = vmatprep.subr.bf16.mxu0 0
    %2506 = vmatpush1.bf16.xpose.msra.mxu0 0
    %2507 = vmatprep.subr.bf16.mxu0 0
    %2508 = vmatpush1.bf16.xpose.msra.mxu0 0
    %2509 = vmatprep.subr.bf16.mxu0 0
    %2510 = vmatpush1.bf16.xpose.msra.mxu0 0
    %2511 = vmatprep.subr.bf16.mxu0 0
    %2512 = vmatpush1.bf16.xpose.msra.mxu0 0
    %2513 = vmatprep.mubr.bf16.mxu0 0
    %2514 = vmatmul.mubr.bf16.gmra.mrb[0].mxu0 %v2286
    %v2515 = vpop.f32.mrb[0].mxu0
    %v2516 = vadd.f32 0.0, %v2515
    %v2517 = vpop.f32.mrb[0].mxu0
    %v2518 = vpop.f32.mrb[0].mxu0
    %v2519 = vpop.f32.mrb[0].mxu0
    %2520 = vdwg.mxu0
    %2521 = vrot.lane.b32.xlu0 %v509, 80
    %v2522 = vpop.permute.xlu0 %2521
    %v2524 = vsel %vm511, %v2522, 0
    %2526 = vmatprep.subr.bf16.mxu0 0
    %2527 = vmatpush1.bf16.xpose.msra.mxu0 %v2524
    %2528 = vmatprep.subr.bf16.mxu0 0
    %2529 = vmatpush1.bf16.xpose.msra.mxu0 0
    %2530 = vmatprep.subr.bf16.mxu0 0
    %2531 = vmatpush1.bf16.xpose.msra.mxu0 0
    %2532 = vmatprep.subr.bf16.mxu0 0
    %2533 = vmatpush1.bf16.xpose.msra.mxu0 0
    %2534 = vmatprep.subr.bf16.mxu0 0
    %2535 = vmatpush1.bf16.xpose.msra.mxu0 0
    %2536 = vmatprep.subr.bf16.mxu0 0
    %2537 = vmatpush1.bf16.xpose.msra.mxu0 0
    %2538 = vmatprep.subr.bf16.mxu0 0
    %2539 = vmatpush1.bf16.xpose.msra.mxu0 0
    %2540 = vmatprep.subr.bf16.mxu0 0
    %2541 = vmatpush1.bf16.xpose.msra.mxu0 0
    %2542 = vmatprep.subr.bf16.mxu0 0
    %2543 = vmatpush1.bf16.xpose.msra.mxu0 0
    %2544 = vmatprep.subr.bf16.mxu0 0
    %2545 = vmatpush1.bf16.xpose.msra.mxu0 0
    %2546 = vmatprep.subr.bf16.mxu0 0
    %2547 = vmatpush1.bf16.xpose.msra.mxu0 0
    %2548 = vmatprep.subr.bf16.mxu0 0
    %2549 = vmatpush1.bf16.xpose.msra.mxu0 0
    %2550 = vmatprep.subr.bf16.mxu0 0
    %2551 = vmatpush1.bf16.xpose.msra.mxu0 0
    %2552 = vmatprep.subr.bf16.mxu0 0
    %2553 = vmatpush1.bf16.xpose.msra.mxu0 0
    %2554 = vmatprep.subr.bf16.mxu0 0
    %2555 = vmatpush1.bf16.xpose.msra.mxu0 0
    %2556 = vmatprep.subr.bf16.mxu0 0
    %2557 = vmatpush1.bf16.xpose.msra.mxu0 0
    %2558 = vmatprep.mubr.bf16.mxu0 0
    %2559 = vmatmul.mubr.bf16.gmra.mrb[0].mxu0 %v2336
    %v2560 = vpop.f32.mrb[0].mxu0
    %v2561 = vadd.f32 0.0, %v2560
    %v2562 = vpop.f32.mrb[0].mxu0
    %v2563 = vpop.f32.mrb[0].mxu0
    %v2564 = vpop.f32.mrb[0].mxu0
    %2565 = vdwg.mxu0
    %2566 = vrot.lane.b32.xlu0 %v510, 80
    %v2567 = vpop.permute.xlu0 %2566
    %v2569 = vsel %vm511, %v2567, 0
    %2571 = vmatprep.subr.bf16.mxu0 0
    %2572 = vmatpush1.bf16.xpose.msra.mxu0 %v2569
    %2573 = vmatprep.subr.bf16.mxu0 0
    %2574 = vmatpush1.bf16.xpose.msra.mxu0 0
    %2575 = vmatprep.subr.bf16.mxu0 0
    %2576 = vmatpush1.bf16.xpose.msra.mxu0 0
    %2577 = vmatprep.subr.bf16.mxu0 0
    %2578 = vmatpush1.bf16.xpose.msra.mxu0 0
    %2579 = vmatprep.subr.bf16.mxu0 0
    %2580 = vmatpush1.bf16.xpose.msra.mxu0 0
    %2581 = vmatprep.subr.bf16.mxu0 0
    %2582 = vmatpush1.bf16.xpose.msra.mxu0 0
    %2583 = vmatprep.subr.bf16.mxu0 0
    %2584 = vmatpush1.bf16.xpose.msra.mxu0 0
    %2585 = vmatprep.subr.bf16.mxu0 0
    %2586 = vmatpush1.bf16.xpose.msra.mxu0 0
    %2587 = vmatprep.subr.bf16.mxu0 0
    %2588 = vmatpush1.bf16.xpose.msra.mxu0 0
    %2589 = vmatprep.subr.bf16.mxu0 0
    %2590 = vmatpush1.bf16.xpose.msra.mxu0 0
    %2591 = vmatprep.subr.bf16.mxu0 0
    %2592 = vmatpush1.bf16.xpose.msra.mxu0 0
    %2593 = vmatprep.subr.bf16.mxu0 0
    %2594 = vmatpush1.bf16.xpose.msra.mxu0 0
    %2595 = vmatprep.subr.bf16.mxu0 0
    %2596 = vmatpush1.bf16.xpose.msra.mxu0 0
    %2597 = vmatprep.subr.bf16.mxu0 0
    %2598 = vmatpush1.bf16.xpose.msra.mxu0 0
    %2599 = vmatprep.subr.bf16.mxu0 0
    %2600 = vmatpush1.bf16.xpose.msra.mxu0 0
    %2601 = vmatprep.subr.bf16.mxu0 0
    %2602 = vmatpush1.bf16.xpose.msra.mxu0 0
    %2603 = vmatprep.mubr.bf16.mxu0 0
    %2604 = vmatmul.mubr.bf16.gmra.mrb[0].mxu0 %v2386
    %v2605 = vpop.f32.mrb[0].mxu0
    %v2606 = vadd.f32 0.0, %v2605
    %v2607 = vpop.f32.mrb[0].mxu0
    %v2608 = vpop.f32.mrb[0].mxu0
    %v2609 = vpop.f32.mrb[0].mxu0
    %2610 = vdwg.mxu0
    %v2611 = vsel %vm876, %v2276, -inf
    %2612 = vmax.xlane.f32.xlu0 %v2611
    %v2613 = vpop.xlane.xlu0 %2612
    %v2614 = vsel %vm876, %v2326, -inf
    %2615 = vmax.xlane.f32.xlu0 %v2614
    %v2616 = vpop.xlane.xlu0 %2615
    %v2617 = vsel %vm876, %v2376, -inf
    %2618 = vmax.xlane.f32.xlu0 %v2617
    %v2619 = vpop.xlane.xlu0 %2618
    %v2620 = vsel %vm876, %v2426, -inf
    %2621 = vmax.xlane.f32.xlu0 %v2620
    %v2622 = vpop.xlane.xlu0 %2621
    %v2623 = vsel %vm511, %v2471, -inf
    %2624 = vmax.xlane.f32.xlu0 %v2623
    %v2625 = vpop.xlane.xlu0 %2624
    %v2626 = vsel %vm511, %v2516, -inf
    %2627 = vmax.xlane.f32.xlu0 %v2626
    %v2628 = vpop.xlane.xlu0 %2627
    %v2629 = vsel %vm511, %v2561, -inf
    %2630 = vmax.xlane.f32.xlu0 %v2629
    %v2631 = vpop.xlane.xlu0 %2630
    %v2632 = vsel %vm511, %v2606, -inf
    %2633 = vmax.xlane.f32.xlu0 %v2632
    %v2634 = vpop.xlane.xlu0 %2633
    %v2635 = vmax.f32 %v2613, %v2625
    %v2636 = vmax.f32 %v2616, %v2628
    %v2637 = vmax.f32 %v2619, %v2631
    %v2638 = vmax.f32 %v2622, %v2634
    %v2639 = vsub.f32 %v2276, %v2635
    %v2640 = vsub.f32 %v2326, %v2636
    %v2641 = vsub.f32 %v2376, %v2637
    %v2642 = vsub.f32 %v2426, %v2638
    %v2643 = vmul.f32 %v2639, 1.442695
    %v2644 = vpow.pop %v2643
    %v2645 = vmul.f32 %v2640, 1.442695
    %v2646 = vpow.pop %v2645
    %v2647 = vmul.f32 %v2641, 1.442695
    %v2648 = vpow.pop %v2647
    %v2649 = vmul.f32 %v2642, 1.442695
    %v2650 = vpow.pop %v2649
    %v2651 = vsub.f32 %v2471, %v2635
    %v2652 = vsub.f32 %v2516, %v2636
    %v2653 = vsub.f32 %v2561, %v2637
    %v2654 = vsub.f32 %v2606, %v2638
    %v2655 = vmul.f32 %v2651, 1.442695
    %v2656 = vpow.pop %v2655
    %v2657 = vmul.f32 %v2652, 1.442695
    %v2658 = vpow.pop %v2657
    %v2659 = vmul.f32 %v2653, 1.442695
    %v2660 = vpow.pop %v2659
    %v2661 = vmul.f32 %v2654, 1.442695
    %v2662 = vpow.pop %v2661
    %v2663 = vsel %vm876, %v2644, 0.0
    %2664 = vadd.xlane.f32.xlu0 %v2663
    %v2665 = vpop.xlane.xlu0 %2664
    %v2666 = vsel %vm876, %v2646, 0.0
    %2667 = vadd.xlane.f32.xlu0 %v2666
    %v2668 = vpop.xlane.xlu0 %2667
    %v2669 = vsel %vm876, %v2648, 0.0
    %2670 = vadd.xlane.f32.xlu0 %v2669
    %v2671 = vpop.xlane.xlu0 %2670
    %v2672 = vsel %vm876, %v2650, 0.0
    %2673 = vadd.xlane.f32.xlu0 %v2672
    %v2674 = vpop.xlane.xlu0 %2673
    %v2675 = vsel %vm511, %v2656, 0.0
    %2676 = vadd.xlane.f32.xlu0 %v2675
    %v2677 = vpop.xlane.xlu0 %2676
    %v2678 = vsel %vm511, %v2658, 0.0
    %2679 = vadd.xlane.f32.xlu0 %v2678
    %v2680 = vpop.xlane.xlu0 %2679
    %v2681 = vsel %vm511, %v2660, 0.0
    %2682 = vadd.xlane.f32.xlu0 %v2681
    %v2683 = vpop.xlane.xlu0 %2682
    %v2684 = vsel %vm511, %v2662, 0.0
    %2685 = vadd.xlane.f32.xlu0 %v2684
    %v2686 = vpop.xlane.xlu0 %2685
    %v2687 = vadd.f32 %v2665, %v2677
    %v2688 = vadd.f32 %v2668, %v2680
    %v2689 = vadd.f32 %v2671, %v2683
    %v2690 = vadd.f32 %v2674, %v2686
    %v2691 = vrcp.pop %v2687
    %v2692 = vrcp.pop %v2688
    %v2693 = vrcp.pop %v2689
    %v2694 = vrcp.pop %v2690
    %v2695 = vmul.f32 %v2644, %v2691
    %v2696 = vmul.f32 %v2646, %v2692
    %v2697 = vmul.f32 %v2648, %v2693
    %v2698 = vmul.f32 %v2650, %v2694
    %v2699 = vpack.c.bf16 %v2695, %v2695
    %v2700 = vpack.c.bf16 %v2696, %v2696
    %v2701 = vpack.c.bf16 %v2697, %v2697
    %v2702 = vpack.c.bf16 %v2698, %v2698
    %v2703 = vmul.f32 %v2656, %v2691
    %v2704 = vmul.f32 %v2658, %v2692
    %v2705 = vmul.f32 %v2660, %v2693
    %v2706 = vmul.f32 %v2662, %v2694
    %v2707 = vpack.c.bf16 %v2703, %v2703
    %v2708 = vpack.c.bf16 %v2704, %v2704
    %v2709 = vpack.c.bf16 %v2705, %v2705
    %v2710 = vpack.c.bf16 %v2706, %v2706
    %2711 = vrot.lane.b32.xlu0 %v507, 48
    %v2712 = vpop.permute.xlu0 %2711
    %v2714 = vsel %vm511, %v2707, 0
    %v2717 = vsel %vm982, %v2712, 0
    %2719 = vmatprep.subr.bf16.mxu0 0
    %2720 = vmatpush1.bf16.msra.mxu0 %v2717
    %2721 = vmatprep.subr.bf16.mxu0 0
    %2722 = vmatpush1.bf16.msra.mxu0 0
    %2723 = vmatprep.subr.bf16.mxu0 0
    %2724 = vmatpush1.bf16.msra.mxu0 0
    %2725 = vmatprep.subr.bf16.mxu0 0
    %2726 = vmatpush1.bf16.msra.mxu0 0
    %2727 = vmatprep.subr.bf16.mxu0 0
    %2728 = vmatpush1.bf16.msra.mxu0 0
    %2729 = vmatprep.subr.bf16.mxu0 0
    %2730 = vmatpush1.bf16.msra.mxu0 0
    %2731 = vmatprep.subr.bf16.mxu0 0
    %2732 = vmatpush1.bf16.msra.mxu0 0
    %2733 = vmatprep.subr.bf16.mxu0 0
    %2734 = vmatpush1.bf16.msra.mxu0 0
    %2735 = vmatprep.subr.bf16.mxu0 0
    %2736 = vmatpush1.bf16.msra.mxu0 0
    %2737 = vmatprep.subr.bf16.mxu0 0
    %2738 = vmatpush1.bf16.msra.mxu0 0
    %2739 = vmatprep.subr.bf16.mxu0 0
    %2740 = vmatpush1.bf16.msra.mxu0 0
    %2741 = vmatprep.subr.bf16.mxu0 0
    %2742 = vmatpush1.bf16.msra.mxu0 0
    %2743 = vmatprep.subr.bf16.mxu0 0
    %2744 = vmatpush1.bf16.msra.mxu0 0
    %2745 = vmatprep.subr.bf16.mxu0 0
    %2746 = vmatpush1.bf16.msra.mxu0 0
    %2747 = vmatprep.subr.bf16.mxu0 0
    %2748 = vmatpush1.bf16.msra.mxu0 0
    %2749 = vmatprep.subr.bf16.mxu0 0
    %2750 = vmatpush1.bf16.msra.mxu0 0
    %2751 = vmatprep.mubr.bf16.mxu0 0
    %2752 = vmatmul.mubr.bf16.gmra.mrb[0].mxu0 %v2714
    %v2753 = vpop.f32.mrb[0].mxu0
    %v2754 = vadd.f32 0.0, %v2753
    %v2755 = vpop.f32.mrb[0].mxu0
    %v2756 = vpop.f32.mrb[0].mxu0
    %v2757 = vpop.f32.mrb[0].mxu0
    %2758 = vdwg.mxu0
    %2759 = vrot.lane.b32.xlu0 %v508, 48
    %v2760 = vpop.permute.xlu0 %2759
    %v2762 = vsel %vm511, %v2708, 0
    %v2765 = vsel %vm982, %v2760, 0
    %2767 = vmatprep.subr.bf16.mxu0 0
    %2768 = vmatpush1.bf16.msra.mxu0 %v2765
    %2769 = vmatprep.subr.bf16.mxu0 0
    %2770 = vmatpush1.bf16.msra.mxu0 0
    %2771 = vmatprep.subr.bf16.mxu0 0
    %2772 = vmatpush1.bf16.msra.mxu0 0
    %2773 = vmatprep.subr.bf16.mxu0 0
    %2774 = vmatpush1.bf16.msra.mxu0 0
    %2775 = vmatprep.subr.bf16.mxu0 0
    %2776 = vmatpush1.bf16.msra.mxu0 0
    %2777 = vmatprep.subr.bf16.mxu0 0
    %2778 = vmatpush1.bf16.msra.mxu0 0
    %2779 = vmatprep.subr.bf16.mxu0 0
    %2780 = vmatpush1.bf16.msra.mxu0 0
    %2781 = vmatprep.subr.bf16.mxu0 0
    %2782 = vmatpush1.bf16.msra.mxu0 0
    %2783 = vmatprep.subr.bf16.mxu0 0
    %2784 = vmatpush1.bf16.msra.mxu0 0
    %2785 = vmatprep.subr.bf16.mxu0 0
    %2786 = vmatpush1.bf16.msra.mxu0 0
    %2787 = vmatprep.subr.bf16.mxu0 0
    %2788 = vmatpush1.bf16.msra.mxu0 0
    %2789 = vmatprep.subr.bf16.mxu0 0
    %2790 = vmatpush1.bf16.msra.mxu0 0
    %2791 = vmatprep.subr.bf16.mxu0 0
    %2792 = vmatpush1.bf16.msra.mxu0 0
    %2793 = vmatprep.subr.bf16.mxu0 0
    %2794 = vmatpush1.bf16.msra.mxu0 0
    %2795 = vmatprep.subr.bf16.mxu0 0
    %2796 = vmatpush1.bf16.msra.mxu0 0
    %2797 = vmatprep.subr.bf16.mxu0 0
    %2798 = vmatpush1.bf16.msra.mxu0 0
    %2799 = vmatprep.mubr.bf16.mxu0 0
    %2800 = vmatmul.mubr.bf16.gmra.mrb[0].mxu0 %v2762
    %v2801 = vpop.f32.mrb[0].mxu0
    %v2802 = vadd.f32 0.0, %v2801
    %v2803 = vpop.f32.mrb[0].mxu0
    %v2804 = vpop.f32.mrb[0].mxu0
    %v2805 = vpop.f32.mrb[0].mxu0
    %2806 = vdwg.mxu0
    %2807 = vrot.lane.b32.xlu0 %v509, 48
    %v2808 = vpop.permute.xlu0 %2807
    %v2810 = vsel %vm511, %v2709, 0
    %v2813 = vsel %vm982, %v2808, 0
    %2815 = vmatprep.subr.bf16.mxu0 0
    %2816 = vmatpush1.bf16.msra.mxu0 %v2813
    %2817 = vmatprep.subr.bf16.mxu0 0
    %2818 = vmatpush1.bf16.msra.mxu0 0
    %2819 = vmatprep.subr.bf16.mxu0 0
    %2820 = vmatpush1.bf16.msra.mxu0 0
    %2821 = vmatprep.subr.bf16.mxu0 0
    %2822 = vmatpush1.bf16.msra.mxu0 0
    %2823 = vmatprep.subr.bf16.mxu0 0
    %2824 = vmatpush1.bf16.msra.mxu0 0
    %2825 = vmatprep.subr.bf16.mxu0 0
    %2826 = vmatpush1.bf16.msra.mxu0 0
    %2827 = vmatprep.subr.bf16.mxu0 0
    %2828 = vmatpush1.bf16.msra.mxu0 0
    %2829 = vmatprep.subr.bf16.mxu0 0
    %2830 = vmatpush1.bf16.msra.mxu0 0
    %2831 = vmatprep.subr.bf16.mxu0 0
    %2832 = vmatpush1.bf16.msra.mxu0 0
    %2833 = vmatprep.subr.bf16.mxu0 0
    %2834 = vmatpush1.bf16.msra.mxu0 0
    %2835 = vmatprep.subr.bf16.mxu0 0
    %2836 = vmatpush1.bf16.msra.mxu0 0
    %2837 = vmatprep.subr.bf16.mxu0 0
    %2838 = vmatpush1.bf16.msra.mxu0 0
    %2839 = vmatprep.subr.bf16.mxu0 0
    %2840 = vmatpush1.bf16.msra.mxu0 0
    %2841 = vmatprep.subr.bf16.mxu0 0
    %2842 = vmatpush1.bf16.msra.mxu0 0
    %2843 = vmatprep.subr.bf16.mxu0 0
    %2844 = vmatpush1.bf16.msra.mxu0 0
    %2845 = vmatprep.subr.bf16.mxu0 0
    %2846 = vmatpush1.bf16.msra.mxu0 0
    %2847 = vmatprep.mubr.bf16.mxu0 0
    %2848 = vmatmul.mubr.bf16.gmra.mrb[0].mxu0 %v2810
    %v2849 = vpop.f32.mrb[0].mxu0
    %v2850 = vadd.f32 0.0, %v2849
    %v2851 = vpop.f32.mrb[0].mxu0
    %v2852 = vpop.f32.mrb[0].mxu0
    %v2853 = vpop.f32.mrb[0].mxu0
    %2854 = vdwg.mxu0
    %2855 = vrot.lane.b32.xlu0 %v510, 48
    %v2856 = vpop.permute.xlu0 %2855
    %v2858 = vsel %vm511, %v2710, 0
    %v2861 = vsel %vm982, %v2856, 0
    %2863 = vmatprep.subr.bf16.mxu0 0
    %2864 = vmatpush1.bf16.msra.mxu0 %v2861
    %2865 = vmatprep.subr.bf16.mxu0 0
    %2866 = vmatpush1.bf16.msra.mxu0 0
    %2867 = vmatprep.subr.bf16.mxu0 0
    %2868 = vmatpush1.bf16.msra.mxu0 0
    %2869 = vmatprep.subr.bf16.mxu0 0
    %2870 = vmatpush1.bf16.msra.mxu0 0
    %2871 = vmatprep.subr.bf16.mxu0 0
    %2872 = vmatpush1.bf16.msra.mxu0 0
    %2873 = vmatprep.subr.bf16.mxu0 0
    %2874 = vmatpush1.bf16.msra.mxu0 0
    %2875 = vmatprep.subr.bf16.mxu0 0
    %2876 = vmatpush1.bf16.msra.mxu0 0
    %2877 = vmatprep.subr.bf16.mxu0 0
    %2878 = vmatpush1.bf16.msra.mxu0 0
    %2879 = vmatprep.subr.bf16.mxu0 0
    %2880 = vmatpush1.bf16.msra.mxu0 0
    %2881 = vmatprep.subr.bf16.mxu0 0
    %2882 = vmatpush1.bf16.msra.mxu0 0
    %2883 = vmatprep.subr.bf16.mxu0 0
    %2884 = vmatpush1.bf16.msra.mxu0 0
    %2885 = vmatprep.subr.bf16.mxu0 0
    %2886 = vmatpush1.bf16.msra.mxu0 0
    %2887 = vmatprep.subr.bf16.mxu0 0
    %2888 = vmatpush1.bf16.msra.mxu0 0
    %2889 = vmatprep.subr.bf16.mxu0 0
    %2890 = vmatpush1.bf16.msra.mxu0 0
    %2891 = vmatprep.subr.bf16.mxu0 0
    %2892 = vmatpush1.bf16.msra.mxu0 0
    %2893 = vmatprep.subr.bf16.mxu0 0
    %2894 = vmatpush1.bf16.msra.mxu0 0
    %2895 = vmatprep.mubr.bf16.mxu0 0
    %2896 = vmatmul.mubr.bf16.gmra.mrb[0].mxu0 %v2858
    %v2897 = vpop.f32.mrb[0].mxu0
    %v2898 = vadd.f32 0.0, %v2897
    %v2899 = vpop.f32.mrb[0].mxu0
    %v2900 = vpop.f32.mrb[0].mxu0
    %v2901 = vpop.f32.mrb[0].mxu0
    %2902 = vdwg.mxu0
    %2903 = vrot.lane.b32.xlu0 %v497, 80
    %v2904 = vpop.permute.xlu0 %2903
    %v2907 = vsel %vm876, %v2699, 0
    %2909 = vmatprep.subr.bf16.mxu0 0
    %2910 = vmatpush1.bf16.msra.mxu0 %v2904
    %2911 = vmatprep.subr.bf16.mxu0 0
    %2912 = vmatpush1.bf16.msra.mxu0 0
    %2913 = vmatprep.subr.bf16.mxu0 0
    %2914 = vmatpush1.bf16.msra.mxu0 0
    %2915 = vmatprep.subr.bf16.mxu0 0
    %2916 = vmatpush1.bf16.msra.mxu0 0
    %2917 = vmatprep.subr.bf16.mxu0 0
    %2918 = vmatpush1.bf16.msra.mxu0 0
    %2919 = vmatprep.subr.bf16.mxu0 0
    %2920 = vmatpush1.bf16.msra.mxu0 0
    %2921 = vmatprep.subr.bf16.mxu0 0
    %2922 = vmatpush1.bf16.msra.mxu0 0
    %2923 = vmatprep.subr.bf16.mxu0 0
    %2924 = vmatpush1.bf16.msra.mxu0 0
    %2925 = vmatprep.subr.bf16.mxu0 0
    %2926 = vmatpush1.bf16.msra.mxu0 0
    %2927 = vmatprep.subr.bf16.mxu0 0
    %2928 = vmatpush1.bf16.msra.mxu0 0
    %2929 = vmatprep.subr.bf16.mxu0 0
    %2930 = vmatpush1.bf16.msra.mxu0 0
    %2931 = vmatprep.subr.bf16.mxu0 0
    %2932 = vmatpush1.bf16.msra.mxu0 0
    %2933 = vmatprep.subr.bf16.mxu0 0
    %2934 = vmatpush1.bf16.msra.mxu0 0
    %2935 = vmatprep.subr.bf16.mxu0 0
    %2936 = vmatpush1.bf16.msra.mxu0 0
    %2937 = vmatprep.subr.bf16.mxu0 0
    %2938 = vmatpush1.bf16.msra.mxu0 0
    %2939 = vmatprep.subr.bf16.mxu0 0
    %2940 = vmatpush1.bf16.msra.mxu0 0
    %2941 = vmatprep.mubr.bf16.mxu0 0
    %2942 = vmatmul.mubr.bf16.gmra.mrb[0].mxu0 %v2907
    %v2943 = vpop.f32.mrb[0].mxu0
    %v2944 = vadd.f32 %v2754, %v2943
    %v2945 = vpop.f32.mrb[0].mxu0
    %v2946 = vpop.f32.mrb[0].mxu0
    %v2947 = vpop.f32.mrb[0].mxu0
    %2948 = vdwg.mxu0
    %2949 = vrot.lane.b32.xlu0 %v498, 80
    %v2950 = vpop.permute.xlu0 %2949
    %v2953 = vsel %vm876, %v2700, 0
    %2955 = vmatprep.subr.bf16.mxu0 0
    %2956 = vmatpush1.bf16.msra.mxu0 %v2950
    %2957 = vmatprep.subr.bf16.mxu0 0
    %2958 = vmatpush1.bf16.msra.mxu0 0
    %2959 = vmatprep.subr.bf16.mxu0 0
    %2960 = vmatpush1.bf16.msra.mxu0 0
    %2961 = vmatprep.subr.bf16.mxu0 0
    %2962 = vmatpush1.bf16.msra.mxu0 0
    %2963 = vmatprep.subr.bf16.mxu0 0
    %2964 = vmatpush1.bf16.msra.mxu0 0
    %2965 = vmatprep.subr.bf16.mxu0 0
    %2966 = vmatpush1.bf16.msra.mxu0 0
    %2967 = vmatprep.subr.bf16.mxu0 0
    %2968 = vmatpush1.bf16.msra.mxu0 0
    %2969 = vmatprep.subr.bf16.mxu0 0
    %2970 = vmatpush1.bf16.msra.mxu0 0
    %2971 = vmatprep.subr.bf16.mxu0 0
    %2972 = vmatpush1.bf16.msra.mxu0 0
    %2973 = vmatprep.subr.bf16.mxu0 0
    %2974 = vmatpush1.bf16.msra.mxu0 0
    %2975 = vmatprep.subr.bf16.mxu0 0
    %2976 = vmatpush1.bf16.msra.mxu0 0
    %2977 = vmatprep.subr.bf16.mxu0 0
    %2978 = vmatpush1.bf16.msra.mxu0 0
    %2979 = vmatprep.subr.bf16.mxu0 0
    %2980 = vmatpush1.bf16.msra.mxu0 0
    %2981 = vmatprep.subr.bf16.mxu0 0
    %2982 = vmatpush1.bf16.msra.mxu0 0
    %2983 = vmatprep.subr.bf16.mxu0 0
    %2984 = vmatpush1.bf16.msra.mxu0 0
    %2985 = vmatprep.subr.bf16.mxu0 0
    %2986 = vmatpush1.bf16.msra.mxu0 0
    %2987 = vmatprep.mubr.bf16.mxu0 0
    %2988 = vmatmul.mubr.bf16.gmra.mrb[0].mxu0 %v2953
    %v2989 = vpop.f32.mrb[0].mxu0
    %v2990 = vadd.f32 %v2802, %v2989
    %v2991 = vpop.f32.mrb[0].mxu0
    %v2992 = vpop.f32.mrb[0].mxu0
    %v2993 = vpop.f32.mrb[0].mxu0
    %2994 = vdwg.mxu0
    %2995 = vrot.lane.b32.xlu0 %v499, 80
    %v2996 = vpop.permute.xlu0 %2995
    %v2999 = vsel %vm876, %v2701, 0
    %3001 = vmatprep.subr.bf16.mxu0 0
    %3002 = vmatpush1.bf16.msra.mxu0 %v2996
    %3003 = vmatprep.subr.bf16.mxu0 0
    %3004 = vmatpush1.bf16.msra.mxu0 0
    %3005 = vmatprep.subr.bf16.mxu0 0
    %3006 = vmatpush1.bf16.msra.mxu0 0
    %3007 = vmatprep.subr.bf16.mxu0 0
    %3008 = vmatpush1.bf16.msra.mxu0 0
    %3009 = vmatprep.subr.bf16.mxu0 0
    %3010 = vmatpush1.bf16.msra.mxu0 0
    %3011 = vmatprep.subr.bf16.mxu0 0
    %3012 = vmatpush1.bf16.msra.mxu0 0
    %3013 = vmatprep.subr.bf16.mxu0 0
    %3014 = vmatpush1.bf16.msra.mxu0 0
    %3015 = vmatprep.subr.bf16.mxu0 0
    %3016 = vmatpush1.bf16.msra.mxu0 0
    %3017 = vmatprep.subr.bf16.mxu0 0
    %3018 = vmatpush1.bf16.msra.mxu0 0
    %3019 = vmatprep.subr.bf16.mxu0 0
    %3020 = vmatpush1.bf16.msra.mxu0 0
    %3021 = vmatprep.subr.bf16.mxu0 0
    %3022 = vmatpush1.bf16.msra.mxu0 0
    %3023 = vmatprep.subr.bf16.mxu0 0
    %3024 = vmatpush1.bf16.msra.mxu0 0
    %3025 = vmatprep.subr.bf16.mxu0 0
    %3026 = vmatpush1.bf16.msra.mxu0 0
    %3027 = vmatprep.subr.bf16.mxu0 0
    %3028 = vmatpush1.bf16.msra.mxu0 0
    %3029 = vmatprep.subr.bf16.mxu0 0
    %3030 = vmatpush1.bf16.msra.mxu0 0
    %3031 = vmatprep.subr.bf16.mxu0 0
    %3032 = vmatpush1.bf16.msra.mxu0 0
    %3033 = vmatprep.mubr.bf16.mxu0 0
    %3034 = vmatmul.mubr.bf16.gmra.mrb[0].mxu0 %v2999
    %v3035 = vpop.f32.mrb[0].mxu0
    %v3036 = vadd.f32 %v2850, %v3035
    %v3037 = vpop.f32.mrb[0].mxu0
    %v3038 = vpop.f32.mrb[0].mxu0
    %v3039 = vpop.f32.mrb[0].mxu0
    %3040 = vdwg.mxu0
    %3041 = vrot.lane.b32.xlu0 %v500, 80
    %v3042 = vpop.permute.xlu0 %3041
    %v3045 = vsel %vm876, %v2702, 0
    %3047 = vmatprep.subr.bf16.mxu0 0
    %3048 = vmatpush1.bf16.msra.mxu0 %v3042
    %3049 = vmatprep.subr.bf16.mxu0 0
    %3050 = vmatpush1.bf16.msra.mxu0 0
    %3051 = vmatprep.subr.bf16.mxu0 0
    %3052 = vmatpush1.bf16.msra.mxu0 0
    %3053 = vmatprep.subr.bf16.mxu0 0
    %3054 = vmatpush1.bf16.msra.mxu0 0
    %3055 = vmatprep.subr.bf16.mxu0 0
    %3056 = vmatpush1.bf16.msra.mxu0 0
    %3057 = vmatprep.subr.bf16.mxu0 0
    %3058 = vmatpush1.bf16.msra.mxu0 0
    %3059 = vmatprep.subr.bf16.mxu0 0
    %3060 = vmatpush1.bf16.msra.mxu0 0
    %3061 = vmatprep.subr.bf16.mxu0 0
    %3062 = vmatpush1.bf16.msra.mxu0 0
    %3063 = vmatprep.subr.bf16.mxu0 0
    %3064 = vmatpush1.bf16.msra.mxu0 0
    %3065 = vmatprep.subr.bf16.mxu0 0
    %3066 = vmatpush1.bf16.msra.mxu0 0
    %3067 = vmatprep.subr.bf16.mxu0 0
    %3068 = vmatpush1.bf16.msra.mxu0 0
    %3069 = vmatprep.subr.bf16.mxu0 0
    %3070 = vmatpush1.bf16.msra.mxu0 0
    %3071 = vmatprep.subr.bf16.mxu0 0
    %3072 = vmatpush1.bf16.msra.mxu0 0
    %3073 = vmatprep.subr.bf16.mxu0 0
    %3074 = vmatpush1.bf16.msra.mxu0 0
    %3075 = vmatprep.subr.bf16.mxu0 0
    %3076 = vmatpush1.bf16.msra.mxu0 0
    %3077 = vmatprep.subr.bf16.mxu0 0
    %3078 = vmatpush1.bf16.msra.mxu0 0
    %3079 = vmatprep.mubr.bf16.mxu0 0
    %3080 = vmatmul.mubr.bf16.gmra.mrb[0].mxu0 %v3045
    %v3081 = vpop.f32.mrb[0].mxu0
    %v3082 = vadd.f32 %v2898, %v3081
    %v3083 = vpop.f32.mrb[0].mxu0
    %v3084 = vpop.f32.mrb[0].mxu0
    %v3085 = vpop.f32.mrb[0].mxu0
    %3086 = vdwg.mxu0
    %v3087 = vpack.c.bf16 %v2990, %v2944
    %v3088 = vpack.c.bf16 %v3082, %v3036
    %3091 = vrot.lane.b32.xlu0 %v3087, 16
    %v3092 = vpop.permute.xlu0 %3091
    %3093 = vrot.lane.b32.xlu0 %v3088, 16
    %v3094 = vpop.permute.xlu0 %3093
    %vm3097 = vcmask 195712
    %3098 = vst.msk [vmem:[#allocation2] sm:$0xff] %vm3097, %v3092
    %3099 = vst.msk [vmem:[#allocation2 + $0x8] sm:$0xff] %vm3097, %v3094
    %3100 = vrot.lane.b32.xlu0 %v507, 104
    %v3101 = vpop.permute.xlu0 %3100
    %3102 = vrot.lane.b32.xlu0 %v497, 104
    %v3103 = vpop.permute.xlu0 %3102
    %v3105 = vsel %vm511, %v3101, 0
    %v3108 = vsel %vm511, %v3103, 0
    %3110 = vmatprep.subr.bf16.mxu0 0
    %3111 = vmatpush1.bf16.xpose.msra.mxu0 %v3108
    %3112 = vmatprep.subr.bf16.mxu0 0
    %3113 = vmatpush1.bf16.xpose.msra.mxu0 0
    %3114 = vmatprep.subr.bf16.mxu0 0
    %3115 = vmatpush1.bf16.xpose.msra.mxu0 0
    %3116 = vmatprep.subr.bf16.mxu0 0
    %3117 = vmatpush1.bf16.xpose.msra.mxu0 0
    %3118 = vmatprep.subr.bf16.mxu0 0
    %3119 = vmatpush1.bf16.xpose.msra.mxu0 0
    %3120 = vmatprep.subr.bf16.mxu0 0
    %3121 = vmatpush1.bf16.xpose.msra.mxu0 0
    %3122 = vmatprep.subr.bf16.mxu0 0
    %3123 = vmatpush1.bf16.xpose.msra.mxu0 0
    %3124 = vmatprep.subr.bf16.mxu0 0
    %3125 = vmatpush1.bf16.xpose.msra.mxu0 0
    %3126 = vmatprep.subr.bf16.mxu0 0
    %3127 = vmatpush1.bf16.xpose.msra.mxu0 0
    %3128 = vmatprep.subr.bf16.mxu0 0
    %3129 = vmatpush1.bf16.xpose.msra.mxu0 0
    %3130 = vmatprep.subr.bf16.mxu0 0
    %3131 = vmatpush1.bf16.xpose.msra.mxu0 0
    %3132 = vmatprep.subr.bf16.mxu0 0
    %3133 = vmatpush1.bf16.xpose.msra.mxu0 0
    %3134 = vmatprep.subr.bf16.mxu0 0
    %3135 = vmatpush1.bf16.xpose.msra.mxu0 0
    %3136 = vmatprep.subr.bf16.mxu0 0
    %3137 = vmatpush1.bf16.xpose.msra.mxu0 0
    %3138 = vmatprep.subr.bf16.mxu0 0
    %3139 = vmatpush1.bf16.xpose.msra.mxu0 0
    %3140 = vmatprep.subr.bf16.mxu0 0
    %3141 = vmatpush1.bf16.xpose.msra.mxu0 0
    %3142 = vmatprep.mubr.bf16.mxu0 0
    %3143 = vmatmul.mubr.bf16.gmra.mrb[0].mxu0 %v3105
    %v3144 = vpop.f32.mrb[0].mxu0
    %v3145 = vadd.f32 0.0, %v3144
    %v3146 = vpop.f32.mrb[0].mxu0
    %v3147 = vpop.f32.mrb[0].mxu0
    %v3148 = vpop.f32.mrb[0].mxu0
    %3149 = vdwg.mxu0
    %3150 = vrot.lane.b32.xlu0 %v508, 104
    %v3151 = vpop.permute.xlu0 %3150
    %3152 = vrot.lane.b32.xlu0 %v498, 104
    %v3153 = vpop.permute.xlu0 %3152
    %v3155 = vsel %vm511, %v3151, 0
    %v3158 = vsel %vm511, %v3153, 0
    %3160 = vmatprep.subr.bf16.mxu0 0
    %3161 = vmatpush1.bf16.xpose.msra.mxu0 %v3158
    %3162 = vmatprep.subr.bf16.mxu0 0
    %3163 = vmatpush1.bf16.xpose.msra.mxu0 0
    %3164 = vmatprep.subr.bf16.mxu0 0
    %3165 = vmatpush1.bf16.xpose.msra.mxu0 0
    %3166 = vmatprep.subr.bf16.mxu0 0
    %3167 = vmatpush1.bf16.xpose.msra.mxu0 0
    %3168 = vmatprep.subr.bf16.mxu0 0
    %3169 = vmatpush1.bf16.xpose.msra.mxu0 0
    %3170 = vmatprep.subr.bf16.mxu0 0
    %3171 = vmatpush1.bf16.xpose.msra.mxu0 0
    %3172 = vmatprep.subr.bf16.mxu0 0
    %3173 = vmatpush1.bf16.xpose.msra.mxu0 0
    %3174 = vmatprep.subr.bf16.mxu0 0
    %3175 = vmatpush1.bf16.xpose.msra.mxu0 0
    %3176 = vmatprep.subr.bf16.mxu0 0
    %3177 = vmatpush1.bf16.xpose.msra.mxu0 0
    %3178 = vmatprep.subr.bf16.mxu0 0
    %3179 = vmatpush1.bf16.xpose.msra.mxu0 0
    %3180 = vmatprep.subr.bf16.mxu0 0
    %3181 = vmatpush1.bf16.xpose.msra.mxu0 0
    %3182 = vmatprep.subr.bf16.mxu0 0
    %3183 = vmatpush1.bf16.xpose.msra.mxu0 0
    %3184 = vmatprep.subr.bf16.mxu0 0
    %3185 = vmatpush1.bf16.xpose.msra.mxu0 0
    %3186 = vmatprep.subr.bf16.mxu0 0
    %3187 = vmatpush1.bf16.xpose.msra.mxu0 0
    %3188 = vmatprep.subr.bf16.mxu0 0
    %3189 = vmatpush1.bf16.xpose.msra.mxu0 0
    %3190 = vmatprep.subr.bf16.mxu0 0
    %3191 = vmatpush1.bf16.xpose.msra.mxu0 0
    %3192 = vmatprep.mubr.bf16.mxu0 0
    %3193 = vmatmul.mubr.bf16.gmra.mrb[0].mxu0 %v3155
    %v3194 = vpop.f32.mrb[0].mxu0
    %v3195 = vadd.f32 0.0, %v3194
    %v3196 = vpop.f32.mrb[0].mxu0
    %v3197 = vpop.f32.mrb[0].mxu0
    %v3198 = vpop.f32.mrb[0].mxu0
    %3199 = vdwg.mxu0
    %3200 = vrot.lane.b32.xlu0 %v509, 104
    %v3201 = vpop.permute.xlu0 %3200
    %3202 = vrot.lane.b32.xlu0 %v499, 104
    %v3203 = vpop.permute.xlu0 %3202
    %v3205 = vsel %vm511, %v3201, 0
    %v3208 = vsel %vm511, %v3203, 0
    %3210 = vmatprep.subr.bf16.mxu0 0
    %3211 = vmatpush1.bf16.xpose.msra.mxu0 %v3208
    %3212 = vmatprep.subr.bf16.mxu0 0
    %3213 = vmatpush1.bf16.xpose.msra.mxu0 0
    %3214 = vmatprep.subr.bf16.mxu0 0
    %3215 = vmatpush1.bf16.xpose.msra.mxu0 0
    %3216 = vmatprep.subr.bf16.mxu0 0
    %3217 = vmatpush1.bf16.xpose.msra.mxu0 0
    %3218 = vmatprep.subr.bf16.mxu0 0
    %3219 = vmatpush1.bf16.xpose.msra.mxu0 0
    %3220 = vmatprep.subr.bf16.mxu0 0
    %3221 = vmatpush1.bf16.xpose.msra.mxu0 0
    %3222 = vmatprep.subr.bf16.mxu0 0
    %3223 = vmatpush1.bf16.xpose.msra.mxu0 0
    %3224 = vmatprep.subr.bf16.mxu0 0
    %3225 = vmatpush1.bf16.xpose.msra.mxu0 0
    %3226 = vmatprep.subr.bf16.mxu0 0
    %3227 = vmatpush1.bf16.xpose.msra.mxu0 0
    %3228 = vmatprep.subr.bf16.mxu0 0
    %3229 = vmatpush1.bf16.xpose.msra.mxu0 0
    %3230 = vmatprep.subr.bf16.mxu0 0
    %3231 = vmatpush1.bf16.xpose.msra.mxu0 0
    %3232 = vmatprep.subr.bf16.mxu0 0
    %3233 = vmatpush1.bf16.xpose.msra.mxu0 0
    %3234 = vmatprep.subr.bf16.mxu0 0
    %3235 = vmatpush1.bf16.xpose.msra.mxu0 0
    %3236 = vmatprep.subr.bf16.mxu0 0
    %3237 = vmatpush1.bf16.xpose.msra.mxu0 0
    %3238 = vmatprep.subr.bf16.mxu0 0
    %3239 = vmatpush1.bf16.xpose.msra.mxu0 0
    %3240 = vmatprep.subr.bf16.mxu0 0
    %3241 = vmatpush1.bf16.xpose.msra.mxu0 0
    %3242 = vmatprep.mubr.bf16.mxu0 0
    %3243 = vmatmul.mubr.bf16.gmra.mrb[0].mxu0 %v3205
    %v3244 = vpop.f32.mrb[0].mxu0
    %v3245 = vadd.f32 0.0, %v3244
    %v3246 = vpop.f32.mrb[0].mxu0
    %v3247 = vpop.f32.mrb[0].mxu0
    %v3248 = vpop.f32.mrb[0].mxu0
    %3249 = vdwg.mxu0
    %3250 = vrot.lane.b32.xlu0 %v510, 104
    %v3251 = vpop.permute.xlu0 %3250
    %3252 = vrot.lane.b32.xlu0 %v500, 104
    %v3253 = vpop.permute.xlu0 %3252
    %v3255 = vsel %vm511, %v3251, 0
    %v3258 = vsel %vm511, %v3253, 0
    %3260 = vmatprep.subr.bf16.mxu0 0
    %3261 = vmatpush1.bf16.xpose.msra.mxu0 %v3258
    %3262 = vmatprep.subr.bf16.mxu0 0
    %3263 = vmatpush1.bf16.xpose.msra.mxu0 0
    %3264 = vmatprep.subr.bf16.mxu0 0
    %3265 = vmatpush1.bf16.xpose.msra.mxu0 0
    %3266 = vmatprep.subr.bf16.mxu0 0
    %3267 = vmatpush1.bf16.xpose.msra.mxu0 0
    %3268 = vmatprep.subr.bf16.mxu0 0
    %3269 = vmatpush1.bf16.xpose.msra.mxu0 0
    %3270 = vmatprep.subr.bf16.mxu0 0
    %3271 = vmatpush1.bf16.xpose.msra.mxu0 0
    %3272 = vmatprep.subr.bf16.mxu0 0
    %3273 = vmatpush1.bf16.xpose.msra.mxu0 0
    %3274 = vmatprep.subr.bf16.mxu0 0
    %3275 = vmatpush1.bf16.xpose.msra.mxu0 0
    %3276 = vmatprep.subr.bf16.mxu0 0
    %3277 = vmatpush1.bf16.xpose.msra.mxu0 0
    %3278 = vmatprep.subr.bf16.mxu0 0
    %3279 = vmatpush1.bf16.xpose.msra.mxu0 0
    %3280 = vmatprep.subr.bf16.mxu0 0
    %3281 = vmatpush1.bf16.xpose.msra.mxu0 0
    %3282 = vmatprep.subr.bf16.mxu0 0
    %3283 = vmatpush1.bf16.xpose.msra.mxu0 0
    %3284 = vmatprep.subr.bf16.mxu0 0
    %3285 = vmatpush1.bf16.xpose.msra.mxu0 0
    %3286 = vmatprep.subr.bf16.mxu0 0
    %3287 = vmatpush1.bf16.xpose.msra.mxu0 0
    %3288 = vmatprep.subr.bf16.mxu0 0
    %3289 = vmatpush1.bf16.xpose.msra.mxu0 0
    %3290 = vmatprep.subr.bf16.mxu0 0
    %3291 = vmatpush1.bf16.xpose.msra.mxu0 0
    %3292 = vmatprep.mubr.bf16.mxu0 0
    %3293 = vmatmul.mubr.bf16.gmra.mrb[0].mxu0 %v3255
    %v3294 = vpop.f32.mrb[0].mxu0
    %v3295 = vadd.f32 0.0, %v3294
    %v3296 = vpop.f32.mrb[0].mxu0
    %v3297 = vpop.f32.mrb[0].mxu0
    %v3298 = vpop.f32.mrb[0].mxu0
    %3299 = vdwg.mxu0
    %3300 = vrot.lane.b32.xlu0 %v507, 72
    %v3301 = vpop.permute.xlu0 %3300
    %v3303 = vsel %vm511, %v3301, 0
    %3305 = vmatprep.subr.bf16.mxu0 0
    %3306 = vmatpush1.bf16.xpose.msra.mxu0 %v3303
    %3307 = vmatprep.subr.bf16.mxu0 0
    %3308 = vmatpush1.bf16.xpose.msra.mxu0 0
    %3309 = vmatprep.subr.bf16.mxu0 0
    %3310 = vmatpush1.bf16.xpose.msra.mxu0 0
    %3311 = vmatprep.subr.bf16.mxu0 0
    %3312 = vmatpush1.bf16.xpose.msra.mxu0 0
    %3313 = vmatprep.subr.bf16.mxu0 0
    %3314 = vmatpush1.bf16.xpose.msra.mxu0 0
    %3315 = vmatprep.subr.bf16.mxu0 0
    %3316 = vmatpush1.bf16.xpose.msra.mxu0 0
    %3317 = vmatprep.subr.bf16.mxu0 0
    %3318 = vmatpush1.bf16.xpose.msra.mxu0 0
    %3319 = vmatprep.subr.bf16.mxu0 0
    %3320 = vmatpush1.bf16.xpose.msra.mxu0 0
    %3321 = vmatprep.subr.bf16.mxu0 0
    %3322 = vmatpush1.bf16.xpose.msra.mxu0 0
    %3323 = vmatprep.subr.bf16.mxu0 0
    %3324 = vmatpush1.bf16.xpose.msra.mxu0 0
    %3325 = vmatprep.subr.bf16.mxu0 0
    %3326 = vmatpush1.bf16.xpose.msra.mxu0 0
    %3327 = vmatprep.subr.bf16.mxu0 0
    %3328 = vmatpush1.bf16.xpose.msra.mxu0 0
    %3329 = vmatprep.subr.bf16.mxu0 0
    %3330 = vmatpush1.bf16.xpose.msra.mxu0 0
    %3331 = vmatprep.subr.bf16.mxu0 0
    %3332 = vmatpush1.bf16.xpose.msra.mxu0 0
    %3333 = vmatprep.subr.bf16.mxu0 0
    %3334 = vmatpush1.bf16.xpose.msra.mxu0 0
    %3335 = vmatprep.subr.bf16.mxu0 0
    %3336 = vmatpush1.bf16.xpose.msra.mxu0 0
    %3337 = vmatprep.mubr.bf16.mxu0 0
    %3338 = vmatmul.mubr.bf16.gmra.mrb[0].mxu0 %v3105
    %v3339 = vpop.f32.mrb[0].mxu0
    %v3340 = vadd.f32 0.0, %v3339
    %v3341 = vpop.f32.mrb[0].mxu0
    %v3342 = vpop.f32.mrb[0].mxu0
    %v3343 = vpop.f32.mrb[0].mxu0
    %3344 = vdwg.mxu0
    %3345 = vrot.lane.b32.xlu0 %v508, 72
    %v3346 = vpop.permute.xlu0 %3345
    %v3348 = vsel %vm511, %v3346, 0
    %3350 = vmatprep.subr.bf16.mxu0 0
    %3351 = vmatpush1.bf16.xpose.msra.mxu0 %v3348
    %3352 = vmatprep.subr.bf16.mxu0 0
    %3353 = vmatpush1.bf16.xpose.msra.mxu0 0
    %3354 = vmatprep.subr.bf16.mxu0 0
    %3355 = vmatpush1.bf16.xpose.msra.mxu0 0
    %3356 = vmatprep.subr.bf16.mxu0 0
    %3357 = vmatpush1.bf16.xpose.msra.mxu0 0
    %3358 = vmatprep.subr.bf16.mxu0 0
    %3359 = vmatpush1.bf16.xpose.msra.mxu0 0
    %3360 = vmatprep.subr.bf16.mxu0 0
    %3361 = vmatpush1.bf16.xpose.msra.mxu0 0
    %3362 = vmatprep.subr.bf16.mxu0 0
    %3363 = vmatpush1.bf16.xpose.msra.mxu0 0
    %3364 = vmatprep.subr.bf16.mxu0 0
    %3365 = vmatpush1.bf16.xpose.msra.mxu0 0
    %3366 = vmatprep.subr.bf16.mxu0 0
    %3367 = vmatpush1.bf16.xpose.msra.mxu0 0
    %3368 = vmatprep.subr.bf16.mxu0 0
    %3369 = vmatpush1.bf16.xpose.msra.mxu0 0
    %3370 = vmatprep.subr.bf16.mxu0 0
    %3371 = vmatpush1.bf16.xpose.msra.mxu0 0
    %3372 = vmatprep.subr.bf16.mxu0 0
    %3373 = vmatpush1.bf16.xpose.msra.mxu0 0
    %3374 = vmatprep.subr.bf16.mxu0 0
    %3375 = vmatpush1.bf16.xpose.msra.mxu0 0
    %3376 = vmatprep.subr.bf16.mxu0 0
    %3377 = vmatpush1.bf16.xpose.msra.mxu0 0
    %3378 = vmatprep.subr.bf16.mxu0 0
    %3379 = vmatpush1.bf16.xpose.msra.mxu0 0
    %3380 = vmatprep.subr.bf16.mxu0 0
    %3381 = vmatpush1.bf16.xpose.msra.mxu0 0
    %3382 = vmatprep.mubr.bf16.mxu0 0
    %3383 = vmatmul.mubr.bf16.gmra.mrb[0].mxu0 %v3155
    %v3384 = vpop.f32.mrb[0].mxu0
    %v3385 = vadd.f32 0.0, %v3384
    %v3386 = vpop.f32.mrb[0].mxu0
    %v3387 = vpop.f32.mrb[0].mxu0
    %v3388 = vpop.f32.mrb[0].mxu0
    %3389 = vdwg.mxu0
    %3390 = vrot.lane.b32.xlu0 %v509, 72
    %v3391 = vpop.permute.xlu0 %3390
    %v3393 = vsel %vm511, %v3391, 0
    %3395 = vmatprep.subr.bf16.mxu0 0
    %3396 = vmatpush1.bf16.xpose.msra.mxu0 %v3393
    %3397 = vmatprep.subr.bf16.mxu0 0
    %3398 = vmatpush1.bf16.xpose.msra.mxu0 0
    %3399 = vmatprep.subr.bf16.mxu0 0
    %3400 = vmatpush1.bf16.xpose.msra.mxu0 0
    %3401 = vmatprep.subr.bf16.mxu0 0
    %3402 = vmatpush1.bf16.xpose.msra.mxu0 0
    %3403 = vmatprep.subr.bf16.mxu0 0
    %3404 = vmatpush1.bf16.xpose.msra.mxu0 0
    %3405 = vmatprep.subr.bf16.mxu0 0
    %3406 = vmatpush1.bf16.xpose.msra.mxu0 0
    %3407 = vmatprep.subr.bf16.mxu0 0
    %3408 = vmatpush1.bf16.xpose.msra.mxu0 0
    %3409 = vmatprep.subr.bf16.mxu0 0
    %3410 = vmatpush1.bf16.xpose.msra.mxu0 0
    %3411 = vmatprep.subr.bf16.mxu0 0
    %3412 = vmatpush1.bf16.xpose.msra.mxu0 0
    %3413 = vmatprep.subr.bf16.mxu0 0
    %3414 = vmatpush1.bf16.xpose.msra.mxu0 0
    %3415 = vmatprep.subr.bf16.mxu0 0
    %3416 = vmatpush1.bf16.xpose.msra.mxu0 0
    %3417 = vmatprep.subr.bf16.mxu0 0
    %3418 = vmatpush1.bf16.xpose.msra.mxu0 0
    %3419 = vmatprep.subr.bf16.mxu0 0
    %3420 = vmatpush1.bf16.xpose.msra.mxu0 0
    %3421 = vmatprep.subr.bf16.mxu0 0
    %3422 = vmatpush1.bf16.xpose.msra.mxu0 0
    %3423 = vmatprep.subr.bf16.mxu0 0
    %3424 = vmatpush1.bf16.xpose.msra.mxu0 0
    %3425 = vmatprep.subr.bf16.mxu0 0
    %3426 = vmatpush1.bf16.xpose.msra.mxu0 0
    %3427 = vmatprep.mubr.bf16.mxu0 0
    %3428 = vmatmul.mubr.bf16.gmra.mrb[0].mxu0 %v3205
    %v3429 = vpop.f32.mrb[0].mxu0
    %v3430 = vadd.f32 0.0, %v3429
    %v3431 = vpop.f32.mrb[0].mxu0
    %v3432 = vpop.f32.mrb[0].mxu0
    %v3433 = vpop.f32.mrb[0].mxu0
    %3434 = vdwg.mxu0
    %3435 = vrot.lane.b32.xlu0 %v510, 72
    %v3436 = vpop.permute.xlu0 %3435
    %v3438 = vsel %vm511, %v3436, 0
    %3440 = vmatprep.subr.bf16.mxu0 0
    %3441 = vmatpush1.bf16.xpose.msra.mxu0 %v3438
    %3442 = vmatprep.subr.bf16.mxu0 0
    %3443 = vmatpush1.bf16.xpose.msra.mxu0 0
    %3444 = vmatprep.subr.bf16.mxu0 0
    %3445 = vmatpush1.bf16.xpose.msra.mxu0 0
    %3446 = vmatprep.subr.bf16.mxu0 0
    %3447 = vmatpush1.bf16.xpose.msra.mxu0 0
    %3448 = vmatprep.subr.bf16.mxu0 0
    %3449 = vmatpush1.bf16.xpose.msra.mxu0 0
    %3450 = vmatprep.subr.bf16.mxu0 0
    %3451 = vmatpush1.bf16.xpose.msra.mxu0 0
    %3452 = vmatprep.subr.bf16.mxu0 0
    %3453 = vmatpush1.bf16.xpose.msra.mxu0 0
    %3454 = vmatprep.subr.bf16.mxu0 0
    %3455 = vmatpush1.bf16.xpose.msra.mxu0 0
    %3456 = vmatprep.subr.bf16.mxu0 0
    %3457 = vmatpush1.bf16.xpose.msra.mxu0 0
    %3458 = vmatprep.subr.bf16.mxu0 0
    %3459 = vmatpush1.bf16.xpose.msra.mxu0 0
    %3460 = vmatprep.subr.bf16.mxu0 0
    %3461 = vmatpush1.bf16.xpose.msra.mxu0 0
    %3462 = vmatprep.subr.bf16.mxu0 0
    %3463 = vmatpush1.bf16.xpose.msra.mxu0 0
    %3464 = vmatprep.subr.bf16.mxu0 0
    %3465 = vmatpush1.bf16.xpose.msra.mxu0 0
    %3466 = vmatprep.subr.bf16.mxu0 0
    %3467 = vmatpush1.bf16.xpose.msra.mxu0 0
    %3468 = vmatprep.subr.bf16.mxu0 0
    %3469 = vmatpush1.bf16.xpose.msra.mxu0 0
    %3470 = vmatprep.subr.bf16.mxu0 0
    %3471 = vmatpush1.bf16.xpose.msra.mxu0 0
    %3472 = vmatprep.mubr.bf16.mxu0 0
    %3473 = vmatmul.mubr.bf16.gmra.mrb[0].mxu0 %v3255
    %v3474 = vpop.f32.mrb[0].mxu0
    %v3475 = vadd.f32 0.0, %v3474
    %v3476 = vpop.f32.mrb[0].mxu0
    %v3477 = vpop.f32.mrb[0].mxu0
    %v3478 = vpop.f32.mrb[0].mxu0
    %3479 = vdwg.mxu0
    %v3480 = vsel %vm876, %v3145, -inf
    %3481 = vmax.xlane.f32.xlu0 %v3480
    %v3482 = vpop.xlane.xlu0 %3481
    %v3483 = vsel %vm876, %v3195, -inf
    %3484 = vmax.xlane.f32.xlu0 %v3483
    %v3485 = vpop.xlane.xlu0 %3484
    %v3486 = vsel %vm876, %v3245, -inf
    %3487 = vmax.xlane.f32.xlu0 %v3486
    %v3488 = vpop.xlane.xlu0 %3487
    %v3489 = vsel %vm876, %v3295, -inf
    %3490 = vmax.xlane.f32.xlu0 %v3489
    %v3491 = vpop.xlane.xlu0 %3490
    %v3492 = vsel %vm511, %v3340, -inf
    %3493 = vmax.xlane.f32.xlu0 %v3492
    %v3494 = vpop.xlane.xlu0 %3493
    %v3495 = vsel %vm511, %v3385, -inf
    %3496 = vmax.xlane.f32.xlu0 %v3495
    %v3497 = vpop.xlane.xlu0 %3496
    %v3498 = vsel %vm511, %v3430, -inf
    %3499 = vmax.xlane.f32.xlu0 %v3498
    %v3500 = vpop.xlane.xlu0 %3499
    %v3501 = vsel %vm511, %v3475, -inf
    %3502 = vmax.xlane.f32.xlu0 %v3501
    %v3503 = vpop.xlane.xlu0 %3502
    %v3504 = vmax.f32 %v3482, %v3494
    %v3505 = vmax.f32 %v3485, %v3497
    %v3506 = vmax.f32 %v3488, %v3500
    %v3507 = vmax.f32 %v3491, %v3503
    %v3508 = vsub.f32 %v3145, %v3504
    %v3509 = vsub.f32 %v3195, %v3505
    %v3510 = vsub.f32 %v3245, %v3506
    %v3511 = vsub.f32 %v3295, %v3507
    %v3512 = vmul.f32 %v3508, 1.442695
    %v3513 = vpow.pop %v3512
    %v3514 = vmul.f32 %v3509, 1.442695
    %v3515 = vpow.pop %v3514
    %v3516 = vmul.f32 %v3510, 1.442695
    %v3517 = vpow.pop %v3516
    %v3518 = vmul.f32 %v3511, 1.442695
    %v3519 = vpow.pop %v3518
    %v3520 = vsub.f32 %v3340, %v3504
    %v3521 = vsub.f32 %v3385, %v3505
    %v3522 = vsub.f32 %v3430, %v3506
    %v3523 = vsub.f32 %v3475, %v3507
    %v3524 = vmul.f32 %v3520, 1.442695
    %v3525 = vpow.pop %v3524
    %v3526 = vmul.f32 %v3521, 1.442695
    %v3527 = vpow.pop %v3526
    %v3528 = vmul.f32 %v3522, 1.442695
    %v3529 = vpow.pop %v3528
    %v3530 = vmul.f32 %v3523, 1.442695
    %v3531 = vpow.pop %v3530
    %v3532 = vsel %vm876, %v3513, 0.0
    %3533 = vadd.xlane.f32.xlu0 %v3532
    %v3534 = vpop.xlane.xlu0 %3533
    %v3535 = vsel %vm876, %v3515, 0.0
    %3536 = vadd.xlane.f32.xlu0 %v3535
    %v3537 = vpop.xlane.xlu0 %3536
    %v3538 = vsel %vm876, %v3517, 0.0
    %3539 = vadd.xlane.f32.xlu0 %v3538
    %v3540 = vpop.xlane.xlu0 %3539
    %v3541 = vsel %vm876, %v3519, 0.0
    %3542 = vadd.xlane.f32.xlu0 %v3541
    %v3543 = vpop.xlane.xlu0 %3542
    %v3544 = vsel %vm511, %v3525, 0.0
    %3545 = vadd.xlane.f32.xlu0 %v3544
    %v3546 = vpop.xlane.xlu0 %3545
    %v3547 = vsel %vm511, %v3527, 0.0
    %3548 = vadd.xlane.f32.xlu0 %v3547
    %v3549 = vpop.xlane.xlu0 %3548
    %v3550 = vsel %vm511, %v3529, 0.0
    %3551 = vadd.xlane.f32.xlu0 %v3550
    %v3552 = vpop.xlane.xlu0 %3551
    %v3553 = vsel %vm511, %v3531, 0.0
    %3554 = vadd.xlane.f32.xlu0 %v3553
    %v3555 = vpop.xlane.xlu0 %3554
    %v3556 = vadd.f32 %v3534, %v3546
    %v3557 = vadd.f32 %v3537, %v3549
    %v3558 = vadd.f32 %v3540, %v3552
    %v3559 = vadd.f32 %v3543, %v3555
    %v3560 = vrcp.pop %v3556
    %v3561 = vrcp.pop %v3557
    %v3562 = vrcp.pop %v3558
    %v3563 = vrcp.pop %v3559
    %v3564 = vmul.f32 %v3513, %v3560
    %v3565 = vmul.f32 %v3515, %v3561
    %v3566 = vmul.f32 %v3517, %v3562
    %v3567 = vmul.f32 %v3519, %v3563
    %v3568 = vpack.c.bf16 %v3564, %v3564
    %v3569 = vpack.c.bf16 %v3565, %v3565
    %v3570 = vpack.c.bf16 %v3566, %v3566
    %v3571 = vpack.c.bf16 %v3567, %v3567
    %v3572 = vmul.f32 %v3525, %v3560
    %v3573 = vmul.f32 %v3527, %v3561
    %v3574 = vmul.f32 %v3529, %v3562
    %v3575 = vmul.f32 %v3531, %v3563
    %v3576 = vpack.c.bf16 %v3572, %v3572
    %v3577 = vpack.c.bf16 %v3573, %v3573
    %v3578 = vpack.c.bf16 %v3574, %v3574
    %v3579 = vpack.c.bf16 %v3575, %v3575
    %3580 = vrot.lane.b32.xlu0 %v507, 40
    %v3581 = vpop.permute.xlu0 %3580
    %v3583 = vsel %vm511, %v3576, 0
    %v3586 = vsel %vm982, %v3581, 0
    %3588 = vmatprep.subr.bf16.mxu0 0
    %3589 = vmatpush1.bf16.msra.mxu0 %v3586
    %3590 = vmatprep.subr.bf16.mxu0 0
    %3591 = vmatpush1.bf16.msra.mxu0 0
    %3592 = vmatprep.subr.bf16.mxu0 0
    %3593 = vmatpush1.bf16.msra.mxu0 0
    %3594 = vmatprep.subr.bf16.mxu0 0
    %3595 = vmatpush1.bf16.msra.mxu0 0
    %3596 = vmatprep.subr.bf16.mxu0 0
    %3597 = vmatpush1.bf16.msra.mxu0 0
    %3598 = vmatprep.subr.bf16.mxu0 0
    %3599 = vmatpush1.bf16.msra.mxu0 0
    %3600 = vmatprep.subr.bf16.mxu0 0
    %3601 = vmatpush1.bf16.msra.mxu0 0
    %3602 = vmatprep.subr.bf16.mxu0 0
    %3603 = vmatpush1.bf16.msra.mxu0 0
    %3604 = vmatprep.subr.bf16.mxu0 0
    %3605 = vmatpush1.bf16.msra.mxu0 0
    %3606 = vmatprep.subr.bf16.mxu0 0
    %3607 = vmatpush1.bf16.msra.mxu0 0
    %3608 = vmatprep.subr.bf16.mxu0 0
    %3609 = vmatpush1.bf16.msra.mxu0 0
    %3610 = vmatprep.subr.bf16.mxu0 0
    %3611 = vmatpush1.bf16.msra.mxu0 0
    %3612 = vmatprep.subr.bf16.mxu0 0
    %3613 = vmatpush1.bf16.msra.mxu0 0
    %3614 = vmatprep.subr.bf16.mxu0 0
    %3615 = vmatpush1.bf16.msra.mxu0 0
    %3616 = vmatprep.subr.bf16.mxu0 0
    %3617 = vmatpush1.bf16.msra.mxu0 0
    %3618 = vmatprep.subr.bf16.mxu0 0
    %3619 = vmatpush1.bf16.msra.mxu0 0
    %3620 = vmatprep.mubr.bf16.mxu0 0
    %3621 = vmatmul.mubr.bf16.gmra.mrb[0].mxu0 %v3583
    %v3622 = vpop.f32.mrb[0].mxu0
    %v3623 = vadd.f32 0.0, %v3622
    %v3624 = vpop.f32.mrb[0].mxu0
    %v3625 = vpop.f32.mrb[0].mxu0
    %v3626 = vpop.f32.mrb[0].mxu0
    %3627 = vdwg.mxu0
    %3628 = vrot.lane.b32.xlu0 %v508, 40
    %v3629 = vpop.permute.xlu0 %3628
    %v3631 = vsel %vm511, %v3577, 0
    %v3634 = vsel %vm982, %v3629, 0
    %3636 = vmatprep.subr.bf16.mxu0 0
    %3637 = vmatpush1.bf16.msra.mxu0 %v3634
    %3638 = vmatprep.subr.bf16.mxu0 0
    %3639 = vmatpush1.bf16.msra.mxu0 0
    %3640 = vmatprep.subr.bf16.mxu0 0
    %3641 = vmatpush1.bf16.msra.mxu0 0
    %3642 = vmatprep.subr.bf16.mxu0 0
    %3643 = vmatpush1.bf16.msra.mxu0 0
    %3644 = vmatprep.subr.bf16.mxu0 0
    %3645 = vmatpush1.bf16.msra.mxu0 0
    %3646 = vmatprep.subr.bf16.mxu0 0
    %3647 = vmatpush1.bf16.msra.mxu0 0
    %3648 = vmatprep.subr.bf16.mxu0 0
    %3649 = vmatpush1.bf16.msra.mxu0 0
    %3650 = vmatprep.subr.bf16.mxu0 0
    %3651 = vmatpush1.bf16.msra.mxu0 0
    %3652 = vmatprep.subr.bf16.mxu0 0
    %3653 = vmatpush1.bf16.msra.mxu0 0
    %3654 = vmatprep.subr.bf16.mxu0 0
    %3655 = vmatpush1.bf16.msra.mxu0 0
    %3656 = vmatprep.subr.bf16.mxu0 0
    %3657 = vmatpush1.bf16.msra.mxu0 0
    %3658 = vmatprep.subr.bf16.mxu0 0
    %3659 = vmatpush1.bf16.msra.mxu0 0
    %3660 = vmatprep.subr.bf16.mxu0 0
    %3661 = vmatpush1.bf16.msra.mxu0 0
    %3662 = vmatprep.subr.bf16.mxu0 0
    %3663 = vmatpush1.bf16.msra.mxu0 0
    %3664 = vmatprep.subr.bf16.mxu0 0
    %3665 = vmatpush1.bf16.msra.mxu0 0
    %3666 = vmatprep.subr.bf16.mxu0 0
    %3667 = vmatpush1.bf16.msra.mxu0 0
    %3668 = vmatprep.mubr.bf16.mxu0 0
    %3669 = vmatmul.mubr.bf16.gmra.mrb[0].mxu0 %v3631
    %v3670 = vpop.f32.mrb[0].mxu0
    %v3671 = vadd.f32 0.0, %v3670
    %v3672 = vpop.f32.mrb[0].mxu0
    %v3673 = vpop.f32.mrb[0].mxu0
    %v3674 = vpop.f32.mrb[0].mxu0
    %3675 = vdwg.mxu0
    %3676 = vrot.lane.b32.xlu0 %v509, 40
    %v3677 = vpop.permute.xlu0 %3676
    %v3679 = vsel %vm511, %v3578, 0
    %v3682 = vsel %vm982, %v3677, 0
    %3684 = vmatprep.subr.bf16.mxu0 0
    %3685 = vmatpush1.bf16.msra.mxu0 %v3682
    %3686 = vmatprep.subr.bf16.mxu0 0
    %3687 = vmatpush1.bf16.msra.mxu0 0
    %3688 = vmatprep.subr.bf16.mxu0 0
    %3689 = vmatpush1.bf16.msra.mxu0 0
    %3690 = vmatprep.subr.bf16.mxu0 0
    %3691 = vmatpush1.bf16.msra.mxu0 0
    %3692 = vmatprep.subr.bf16.mxu0 0
    %3693 = vmatpush1.bf16.msra.mxu0 0
    %3694 = vmatprep.subr.bf16.mxu0 0
    %3695 = vmatpush1.bf16.msra.mxu0 0
    %3696 = vmatprep.subr.bf16.mxu0 0
    %3697 = vmatpush1.bf16.msra.mxu0 0
    %3698 = vmatprep.subr.bf16.mxu0 0
    %3699 = vmatpush1.bf16.msra.mxu0 0
    %3700 = vmatprep.subr.bf16.mxu0 0
    %3701 = vmatpush1.bf16.msra.mxu0 0
    %3702 = vmatprep.subr.bf16.mxu0 0
    %3703 = vmatpush1.bf16.msra.mxu0 0
    %3704 = vmatprep.subr.bf16.mxu0 0
    %3705 = vmatpush1.bf16.msra.mxu0 0
    %3706 = vmatprep.subr.bf16.mxu0 0
    %3707 = vmatpush1.bf16.msra.mxu0 0
    %3708 = vmatprep.subr.bf16.mxu0 0
    %3709 = vmatpush1.bf16.msra.mxu0 0
    %3710 = vmatprep.subr.bf16.mxu0 0
    %3711 = vmatpush1.bf16.msra.mxu0 0
    %3712 = vmatprep.subr.bf16.mxu0 0
    %3713 = vmatpush1.bf16.msra.mxu0 0
    %3714 = vmatprep.subr.bf16.mxu0 0
    %3715 = vmatpush1.bf16.msra.mxu0 0
    %3716 = vmatprep.mubr.bf16.mxu0 0
    %3717 = vmatmul.mubr.bf16.gmra.mrb[0].mxu0 %v3679
    %v3718 = vpop.f32.mrb[0].mxu0
    %v3719 = vadd.f32 0.0, %v3718
    %v3720 = vpop.f32.mrb[0].mxu0
    %v3721 = vpop.f32.mrb[0].mxu0
    %v3722 = vpop.f32.mrb[0].mxu0
    %3723 = vdwg.mxu0
    %3724 = vrot.lane.b32.xlu0 %v510, 40
    %v3725 = vpop.permute.xlu0 %3724
    %v3727 = vsel %vm511, %v3579, 0
    %v3730 = vsel %vm982, %v3725, 0
    %3732 = vmatprep.subr.bf16.mxu0 0
    %3733 = vmatpush1.bf16.msra.mxu0 %v3730
    %3734 = vmatprep.subr.bf16.mxu0 0
    %3735 = vmatpush1.bf16.msra.mxu0 0
    %3736 = vmatprep.subr.bf16.mxu0 0
    %3737 = vmatpush1.bf16.msra.mxu0 0
    %3738 = vmatprep.subr.bf16.mxu0 0
    %3739 = vmatpush1.bf16.msra.mxu0 0
    %3740 = vmatprep.subr.bf16.mxu0 0
    %3741 = vmatpush1.bf16.msra.mxu0 0
    %3742 = vmatprep.subr.bf16.mxu0 0
    %3743 = vmatpush1.bf16.msra.mxu0 0
    %3744 = vmatprep.subr.bf16.mxu0 0
    %3745 = vmatpush1.bf16.msra.mxu0 0
    %3746 = vmatprep.subr.bf16.mxu0 0
    %3747 = vmatpush1.bf16.msra.mxu0 0
    %3748 = vmatprep.subr.bf16.mxu0 0
    %3749 = vmatpush1.bf16.msra.mxu0 0
    %3750 = vmatprep.subr.bf16.mxu0 0
    %3751 = vmatpush1.bf16.msra.mxu0 0
    %3752 = vmatprep.subr.bf16.mxu0 0
    %3753 = vmatpush1.bf16.msra.mxu0 0
    %3754 = vmatprep.subr.bf16.mxu0 0
    %3755 = vmatpush1.bf16.msra.mxu0 0
    %3756 = vmatprep.subr.bf16.mxu0 0
    %3757 = vmatpush1.bf16.msra.mxu0 0
    %3758 = vmatprep.subr.bf16.mxu0 0
    %3759 = vmatpush1.bf16.msra.mxu0 0
    %3760 = vmatprep.subr.bf16.mxu0 0
    %3761 = vmatpush1.bf16.msra.mxu0 0
    %3762 = vmatprep.subr.bf16.mxu0 0
    %3763 = vmatpush1.bf16.msra.mxu0 0
    %3764 = vmatprep.mubr.bf16.mxu0 0
    %3765 = vmatmul.mubr.bf16.gmra.mrb[0].mxu0 %v3727
    %v3766 = vpop.f32.mrb[0].mxu0
    %v3767 = vadd.f32 0.0, %v3766
    %v3768 = vpop.f32.mrb[0].mxu0
    %v3769 = vpop.f32.mrb[0].mxu0
    %v3770 = vpop.f32.mrb[0].mxu0
    %3771 = vdwg.mxu0
    %3772 = vrot.lane.b32.xlu0 %v497, 72
    %v3773 = vpop.permute.xlu0 %3772
    %v3776 = vsel %vm876, %v3568, 0
    %3778 = vmatprep.subr.bf16.mxu0 0
    %3779 = vmatpush1.bf16.msra.mxu0 %v3773
    %3780 = vmatprep.subr.bf16.mxu0 0
    %3781 = vmatpush1.bf16.msra.mxu0 0
    %3782 = vmatprep.subr.bf16.mxu0 0
    %3783 = vmatpush1.bf16.msra.mxu0 0
    %3784 = vmatprep.subr.bf16.mxu0 0
    %3785 = vmatpush1.bf16.msra.mxu0 0
    %3786 = vmatprep.subr.bf16.mxu0 0
    %3787 = vmatpush1.bf16.msra.mxu0 0
    %3788 = vmatprep.subr.bf16.mxu0 0
    %3789 = vmatpush1.bf16.msra.mxu0 0
    %3790 = vmatprep.subr.bf16.mxu0 0
    %3791 = vmatpush1.bf16.msra.mxu0 0
    %3792 = vmatprep.subr.bf16.mxu0 0
    %3793 = vmatpush1.bf16.msra.mxu0 0
    %3794 = vmatprep.subr.bf16.mxu0 0
    %3795 = vmatpush1.bf16.msra.mxu0 0
    %3796 = vmatprep.subr.bf16.mxu0 0
    %3797 = vmatpush1.bf16.msra.mxu0 0
    %3798 = vmatprep.subr.bf16.mxu0 0
    %3799 = vmatpush1.bf16.msra.mxu0 0
    %3800 = vmatprep.subr.bf16.mxu0 0
    %3801 = vmatpush1.bf16.msra.mxu0 0
    %3802 = vmatprep.subr.bf16.mxu0 0
    %3803 = vmatpush1.bf16.msra.mxu0 0
    %3804 = vmatprep.subr.bf16.mxu0 0
    %3805 = vmatpush1.bf16.msra.mxu0 0
    %3806 = vmatprep.subr.bf16.mxu0 0
    %3807 = vmatpush1.bf16.msra.mxu0 0
    %3808 = vmatprep.subr.bf16.mxu0 0
    %3809 = vmatpush1.bf16.msra.mxu0 0
    %3810 = vmatprep.mubr.bf16.mxu0 0
    %3811 = vmatmul.mubr.bf16.gmra.mrb[0].mxu0 %v3776
    %v3812 = vpop.f32.mrb[0].mxu0
    %v3813 = vadd.f32 %v3623, %v3812
    %v3814 = vpop.f32.mrb[0].mxu0
    %v3815 = vpop.f32.mrb[0].mxu0
    %v3816 = vpop.f32.mrb[0].mxu0
    %3817 = vdwg.mxu0
    %3818 = vrot.lane.b32.xlu0 %v498, 72
    %v3819 = vpop.permute.xlu0 %3818
    %v3822 = vsel %vm876, %v3569, 0
    %3824 = vmatprep.subr.bf16.mxu0 0
    %3825 = vmatpush1.bf16.msra.mxu0 %v3819
    %3826 = vmatprep.subr.bf16.mxu0 0
    %3827 = vmatpush1.bf16.msra.mxu0 0
    %3828 = vmatprep.subr.bf16.mxu0 0
    %3829 = vmatpush1.bf16.msra.mxu0 0
    %3830 = vmatprep.subr.bf16.mxu0 0
    %3831 = vmatpush1.bf16.msra.mxu0 0
    %3832 = vmatprep.subr.bf16.mxu0 0
    %3833 = vmatpush1.bf16.msra.mxu0 0
    %3834 = vmatprep.subr.bf16.mxu0 0
    %3835 = vmatpush1.bf16.msra.mxu0 0
    %3836 = vmatprep.subr.bf16.mxu0 0
    %3837 = vmatpush1.bf16.msra.mxu0 0
    %3838 = vmatprep.subr.bf16.mxu0 0
    %3839 = vmatpush1.bf16.msra.mxu0 0
    %3840 = vmatprep.subr.bf16.mxu0 0
    %3841 = vmatpush1.bf16.msra.mxu0 0
    %3842 = vmatprep.subr.bf16.mxu0 0
    %3843 = vmatpush1.bf16.msra.mxu0 0
    %3844 = vmatprep.subr.bf16.mxu0 0
    %3845 = vmatpush1.bf16.msra.mxu0 0
    %3846 = vmatprep.subr.bf16.mxu0 0
    %3847 = vmatpush1.bf16.msra.mxu0 0
    %3848 = vmatprep.subr.bf16.mxu0 0
    %3849 = vmatpush1.bf16.msra.mxu0 0
    %3850 = vmatprep.subr.bf16.mxu0 0
    %3851 = vmatpush1.bf16.msra.mxu0 0
    %3852 = vmatprep.subr.bf16.mxu0 0
    %3853 = vmatpush1.bf16.msra.mxu0 0
    %3854 = vmatprep.subr.bf16.mxu0 0
    %3855 = vmatpush1.bf16.msra.mxu0 0
    %3856 = vmatprep.mubr.bf16.mxu0 0
    %3857 = vmatmul.mubr.bf16.gmra.mrb[0].mxu0 %v3822
    %v3858 = vpop.f32.mrb[0].mxu0
    %v3859 = vadd.f32 %v3671, %v3858
    %v3860 = vpop.f32.mrb[0].mxu0
    %v3861 = vpop.f32.mrb[0].mxu0
    %v3862 = vpop.f32.mrb[0].mxu0
    %3863 = vdwg.mxu0
    %3864 = vrot.lane.b32.xlu0 %v499, 72
    %v3865 = vpop.permute.xlu0 %3864
    %v3868 = vsel %vm876, %v3570, 0
    %3870 = vmatprep.subr.bf16.mxu0 0
    %3871 = vmatpush1.bf16.msra.mxu0 %v3865
    %3872 = vmatprep.subr.bf16.mxu0 0
    %3873 = vmatpush1.bf16.msra.mxu0 0
    %3874 = vmatprep.subr.bf16.mxu0 0
    %3875 = vmatpush1.bf16.msra.mxu0 0
    %3876 = vmatprep.subr.bf16.mxu0 0
    %3877 = vmatpush1.bf16.msra.mxu0 0
    %3878 = vmatprep.subr.bf16.mxu0 0
    %3879 = vmatpush1.bf16.msra.mxu0 0
    %3880 = vmatprep.subr.bf16.mxu0 0
    %3881 = vmatpush1.bf16.msra.mxu0 0
    %3882 = vmatprep.subr.bf16.mxu0 0
    %3883 = vmatpush1.bf16.msra.mxu0 0
    %3884 = vmatprep.subr.bf16.mxu0 0
    %3885 = vmatpush1.bf16.msra.mxu0 0
    %3886 = vmatprep.subr.bf16.mxu0 0
    %3887 = vmatpush1.bf16.msra.mxu0 0
    %3888 = vmatprep.subr.bf16.mxu0 0
    %3889 = vmatpush1.bf16.msra.mxu0 0
    %3890 = vmatprep.subr.bf16.mxu0 0
    %3891 = vmatpush1.bf16.msra.mxu0 0
    %3892 = vmatprep.subr.bf16.mxu0 0
    %3893 = vmatpush1.bf16.msra.mxu0 0
    %3894 = vmatprep.subr.bf16.mxu0 0
    %3895 = vmatpush1.bf16.msra.mxu0 0
    %3896 = vmatprep.subr.bf16.mxu0 0
    %3897 = vmatpush1.bf16.msra.mxu0 0
    %3898 = vmatprep.subr.bf16.mxu0 0
    %3899 = vmatpush1.bf16.msra.mxu0 0
    %3900 = vmatprep.subr.bf16.mxu0 0
    %3901 = vmatpush1.bf16.msra.mxu0 0
    %3902 = vmatprep.mubr.bf16.mxu0 0
    %3903 = vmatmul.mubr.bf16.gmra.mrb[0].mxu0 %v3868
    %v3904 = vpop.f32.mrb[0].mxu0
    %v3905 = vadd.f32 %v3719, %v3904
    %v3906 = vpop.f32.mrb[0].mxu0
    %v3907 = vpop.f32.mrb[0].mxu0
    %v3908 = vpop.f32.mrb[0].mxu0
    %3909 = vdwg.mxu0
    %3910 = vrot.lane.b32.xlu0 %v500, 72
    %v3911 = vpop.permute.xlu0 %3910
    %v3914 = vsel %vm876, %v3571, 0
    %3916 = vmatprep.subr.bf16.mxu0 0
    %3917 = vmatpush1.bf16.msra.mxu0 %v3911
    %3918 = vmatprep.subr.bf16.mxu0 0
    %3919 = vmatpush1.bf16.msra.mxu0 0
    %3920 = vmatprep.subr.bf16.mxu0 0
    %3921 = vmatpush1.bf16.msra.mxu0 0
    %3922 = vmatprep.subr.bf16.mxu0 0
    %3923 = vmatpush1.bf16.msra.mxu0 0
    %3924 = vmatprep.subr.bf16.mxu0 0
    %3925 = vmatpush1.bf16.msra.mxu0 0
    %3926 = vmatprep.subr.bf16.mxu0 0
    %3927 = vmatpush1.bf16.msra.mxu0 0
    %3928 = vmatprep.subr.bf16.mxu0 0
    %3929 = vmatpush1.bf16.msra.mxu0 0
    %3930 = vmatprep.subr.bf16.mxu0 0
    %3931 = vmatpush1.bf16.msra.mxu0 0
    %3932 = vmatprep.subr.bf16.mxu0 0
    %3933 = vmatpush1.bf16.msra.mxu0 0
    %3934 = vmatprep.subr.bf16.mxu0 0
    %3935 = vmatpush1.bf16.msra.mxu0 0
    %3936 = vmatprep.subr.bf16.mxu0 0
    %3937 = vmatpush1.bf16.msra.mxu0 0
    %3938 = vmatprep.subr.bf16.mxu0 0
    %3939 = vmatpush1.bf16.msra.mxu0 0
    %3940 = vmatprep.subr.bf16.mxu0 0
    %3941 = vmatpush1.bf16.msra.mxu0 0
    %3942 = vmatprep.subr.bf16.mxu0 0
    %3943 = vmatpush1.bf16.msra.mxu0 0
    %3944 = vmatprep.subr.bf16.mxu0 0
    %3945 = vmatpush1.bf16.msra.mxu0 0
    %3946 = vmatprep.subr.bf16.mxu0 0
    %3947 = vmatpush1.bf16.msra.mxu0 0
    %3948 = vmatprep.mubr.bf16.mxu0 0
    %3949 = vmatmul.mubr.bf16.gmra.mrb[0].mxu0 %v3914
    %v3950 = vpop.f32.mrb[0].mxu0
    %v3951 = vadd.f32 %v3767, %v3950
    %v3952 = vpop.f32.mrb[0].mxu0
    %v3953 = vpop.f32.mrb[0].mxu0
    %v3954 = vpop.f32.mrb[0].mxu0
    %3955 = vdwg.mxu0
    %v3956 = vpack.c.bf16 %v3859, %v3813
    %v3957 = vpack.c.bf16 %v3951, %v3905
    %3960 = vrot.lane.b32.xlu0 %v3956, 24
    %v3961 = vpop.permute.xlu0 %3960
    %3962 = vrot.lane.b32.xlu0 %v3957, 24
    %v3963 = vpop.permute.xlu0 %3962
    %vm3966 = vcmask 261312
    %3967 = vst.msk [vmem:[#allocation2] sm:$0xff] %vm3966, %v3961
    %3968 = vst.msk [vmem:[#allocation2 + $0x8] sm:$0xff] %vm3966, %v3963
    %v3969 = vld [vmem:[#allocation2] sm:$0xff]
    %v3970 = vld [vmem:[#allocation2 + $0x8] sm:$0xff]
    %v3971 = vld [vmem:[#allocation11] sm:$0xf]
    %v3972 = vld [vmem:[#allocation11 + $0x4] sm:$0xf]
    %v3973 = vld [vmem:[#allocation11 + $0x8] sm:$0xf]
    %v3974 = vld [vmem:[#allocation11 + $0xc] sm:$0xf]
    %v3979 = vunpack.c.l.b16 %v3971
    %v3980 = vunpack.c.l.b16 %v3972
    %v3981 = vunpack.c.l.b16 %v3973
    %v3982 = vunpack.c.l.b16 %v3974
    %v3983 = vpack.c.b16 %v3980, %v3979
    %v3984 = vpack.c.b16 %v3982, %v3981
    %v3988 = vsel %vm101, %v3969, 0
    %v3991 = vsel %vm101, %v3970, 0
    %3993 = vmatprep.subr.bf16.mxu0 0
    %3994 = vmatpush1.bf16.msra.mxu0 %v3983
    %3995 = vmatprep.subr.bf16.mxu0 0
    %3996 = vmatpush1.bf16.msra.mxu0 %v3984
    %3997 = vmatprep.subr.bf16.mxu0 0
    %3998 = vmatpush1.bf16.msra.mxu0 0
    %3999 = vmatprep.subr.bf16.mxu0 0
    %4000 = vmatpush1.bf16.msra.mxu0 0
    %4001 = vmatprep.subr.bf16.mxu0 0
    %4002 = vmatpush1.bf16.msra.mxu0 0
    %4003 = vmatprep.subr.bf16.mxu0 0
    %4004 = vmatpush1.bf16.msra.mxu0 0
    %4005 = vmatprep.subr.bf16.mxu0 0
    %4006 = vmatpush1.bf16.msra.mxu0 0
    %4007 = vmatprep.subr.bf16.mxu0 0
    %4008 = vmatpush1.bf16.msra.mxu0 0
    %4009 = vmatprep.subr.bf16.mxu0 0
    %4010 = vmatpush1.bf16.msra.mxu0 0
    %4011 = vmatprep.subr.bf16.mxu0 0
    %4012 = vmatpush1.bf16.msra.mxu0 0
    %4013 = vmatprep.subr.bf16.mxu0 0
    %4014 = vmatpush1.bf16.msra.mxu0 0
    %4015 = vmatprep.subr.bf16.mxu0 0
    %4016 = vmatpush1.bf16.msra.mxu0 0
    %4017 = vmatprep.subr.bf16.mxu0 0
    %4018 = vmatpush1.bf16.msra.mxu0 0
    %4019 = vmatprep.subr.bf16.mxu0 0
    %4020 = vmatpush1.bf16.msra.mxu0 0
    %4021 = vmatprep.subr.bf16.mxu0 0
    %4022 = vmatpush1.bf16.msra.mxu0 0
    %4023 = vmatprep.subr.bf16.mxu0 0
    %4024 = vmatpush1.bf16.msra.mxu0 0
    %4025 = vmatprep.mubr.bf16.mxu0 0
    %4026 = vmatmul.mubr.bf16.gmra.mrb[0].mxu0 %v3988
    %v4027 = vpop.f32.mrb[0].mxu0
    %v4028 = vadd.f32 0.0, %v4027
    %v4029 = vpop.f32.mrb[0].mxu0
    %v4030 = vpop.f32.mrb[0].mxu0
    %v4031 = vadd.f32 0.0, %v4030
    %v4032 = vpop.f32.mrb[0].mxu0
    %4033 = vmatprep.mubr.bf16.mxu0 0
    %4034 = vmatmul.mubr.bf16.gmra.mrb[0].mxu0 %v3991
    %v4035 = vpop.f32.mrb[0].mxu0
    %v4036 = vadd.f32 0.0, %v4035
    %v4037 = vpop.f32.mrb[0].mxu0
    %v4038 = vpop.f32.mrb[0].mxu0
    %v4039 = vadd.f32 0.0, %v4038
    %v4040 = vpop.f32.mrb[0].mxu0
    %4041 = vdwg.mxu0
    %4042 = vst.msk [vmem:[#allocation12] sm:$0xff] %vm101, %v4028
    %4043 = vst.msk [vmem:[#allocation12 + $0x8] sm:$0xff] %vm101, %v4031
    %4044 = vst.msk [vmem:[#allocation12 + $0x10] sm:$0xff] %vm101, %v4036
    %4045 = vst.msk [vmem:[#allocation12 + $0x18] sm:$0xff] %vm101, %v4039
    // Predicated region
    $region42: #{tpu_custom_call.1} parent=1 // pred_check
      _
    $region43: #{tpu_custom_call.1} parent=1 // pred_check_branch
      %4047 = sbr.rel (0) target = $region45
    $region44: #{tpu_custom_call.1} parent=1 // pred_region
      %s4049 = ssub.s32 512, 512
      %4050 = vsyncadd [#allocation5], %s4049
      %s4051 = sshll.u32 [#allocation12], 4
      %s4052 = int_to_ptr.vmem [resolvable:$true] %s4051
      %4057 = dma.vmem_to_hbm [thread:$0]  %s4052, 512, %s5, [#allocation5], 128, 128, 8
    $region45: #{tpu_custom_call.1} parent=1 // pred_fallthru
      _
    // Predicated region
    $region46: #{tpu_custom_call.1} parent=1 // pred_check
      _
    $region47: #{tpu_custom_call.1} parent=1 // pred_check_branch
      %4059 = sbr.rel (0) target = $region49
    $region48: #{tpu_custom_call.1} parent=1 // pred_region
      %4060 = dma.done [#allocation5], 512
    $region49: #{tpu_custom_call.1} parent=1 // pred_fallthru
      _
    %4061 = vsyncpa [#allocation4], 1
    %4062 = vsyncpa [#allocation7], 1
    %4063 = vsyncpa [#allocation10], 1
    %4064 = vsyncpa [#allocation5], 1

// kernel: tpu_custom_call.1
$region0: #{tpu_custom_call.1}
  #allocation0 [shape = 'u32[]', space=smem, size = 0x4, offset = 0x4, fixed_abs, tag = 'smem constant byte address 0x4 - core index']
  #allocation1 [shape = 'u32[144,128]{1,0:T(1,128)}', space=vmem, size = 0x12000, scoped, tag = 'internal scratch']
  #allocation2 [shape = 'bf16[32,32]{1,0:T(16,128)(2,1)}', space=vmem, size = 0x2000, scoped, tag = 'scratch operand']
  %s0 = inlined_call_operand.hbm [shape: f32[4,16,32], index: 0, kind: input, shape index: {}]
  %s1 = inlined_call_operand.hbm [shape: f32[4,8,32], index: 1, kind: input, shape index: {}]
  %s2 = inlined_call_operand.hbm [shape: f32[4,32], index: 2, kind: input, shape index: {}]
  %s3 = inlined_call_operand.hbm [shape: bf16[32,96], index: 3, kind: input, shape index: {}]
  %s4 = inlined_call_operand.hbm [shape: bf16[32,32], index: 4, kind: input, shape index: {}]
  %s5 = inlined_call_operand.hbm [shape: f32[4,8,32], index: 5, kind: output, shape index: {}]
  %s6 = sld [smem:[#allocation0]]
  $region50: #{tpu_custom_call.1} parent=0
    _
  %s8 = ssub.s32 1, %s6
  %s9 = scalar_select 0, %s8, %s6
  $region1: #{tpu_custom_call.1} parent=0
    #allocation3 [shape = 'u8[32768]{0}', space=vmem, size = 0x8000, scoped, tag = 'input window, operand 0, single buffered']
    #allocation4 [shape = 's32[1]{0}', space=sflag, size = 0x4, scoped, tag = 'scoped memory for tpu_custom_call.1']
    #allocation5 [shape = 's32[1]{0}', space=sflag, size = 0x4, scoped, tag = 'scoped memory for tpu_custom_call.1']
    #allocation6 [shape = 'u8[16384]{0}', space=vmem, size = 0x4000, scoped, tag = 'input window, operand 1, single buffered']
    #allocation7 [shape = 's32[1]{0}', space=sflag, size = 0x4, scoped, tag = 'scoped memory for tpu_custom_call.1']
    #allocation8 [shape = 'u8[2048]{0}', space=vmem, size = 0x800, scoped, tag = 'input window, operand 2, single buffered']
    #allocation9 [shape = 'u8[8192]{0}', space=vmem, size = 0x2000, scoped, tag = 'input window, operand 3, single buffered']
    #allocation10 [shape = 's32[1]{0}', space=sflag, size = 0x4, scoped, tag = 'scoped memory for tpu_custom_call.1']
    #allocation11 [shape = 'u8[8192]{0}', space=vmem, size = 0x2000, scoped, tag = 'input window, operand 4, single buffered']
    #allocation12 [shape = 'u8[16384]{0}', space=vmem, size = 0x4000, scoped, tag = 'output window, operand 0, single buffered']
    %10 = vsyncpa [#allocation4], 0
    %11 = vsyncpa [#allocation7], 0
    %12 = vsyncpa [#allocation10], 0
    %13 = vsyncpa [#allocation5], 0
    // Predicated region
    $region2: #{tpu_custom_call.1} parent=1 // pred_check
      _
    $region3: #{tpu_custom_call.1} parent=1 // pred_check_branch
      %15 = sbr.rel (0) target = $region5
    $region4: #{tpu_custom_call.1} parent=1 // pred_region
      %s17 = ssub.s32 1024, 1024
      %18 = vsyncadd [#allocation4], %s17
      %s19 = sshll.u32 [#allocation3], 4
      %s20 = int_to_ptr.vmem [resolvable:$true] %s19
      %25 = dma.hbm_to_vmem [thread:$0]  %s0, 1024, %s20, [#allocation4], 128, 128, 8
    $region5: #{tpu_custom_call.1} parent=1 // pred_fallthru
      _
    // Predicated region
    $region6: #{tpu_custom_call.1} parent=1 // pred_check
      _
    $region7: #{tpu_custom_call.1} parent=1 // pred_check_branch
      %27 = sbr.rel (0) target = $region9
    $region8: #{tpu_custom_call.1} parent=1 // pred_region
      %s29 = ssub.s32 512, 512
      %30 = vsyncadd [#allocation7], %s29
      %s31 = sshll.u32 [#allocation6], 4
      %s32 = int_to_ptr.vmem [resolvable:$true] %s31
      %37 = dma.hbm_to_vmem [thread:$0]  %s1, 512, %s32, [#allocation7], 128, 128, 8
    $region9: #{tpu_custom_call.1} parent=1 // pred_fallthru
      _
    // Predicated region
    $region10: #{tpu_custom_call.1} parent=1 // pred_check
      _
    $region11: #{tpu_custom_call.1} parent=1 // pred_check_branch
      %39 = sbr.rel (0) target = $region13
    $region12: #{tpu_custom_call.1} parent=1 // pred_region
      %s41 = ssub.s32 64, 64
      %42 = vsyncadd [#allocation7], %s41
      %s44 = sshll.u32 [#allocation8], 4
      %s45 = int_to_ptr.vmem [resolvable:$true] %s44
      %47 = dma.hbm_to_vmem [thread:$0]  %s2, 64, %s45, [#allocation7]
    $region13: #{tpu_custom_call.1} parent=1 // pred_fallthru
      _
    // Predicated region
    $region14: #{tpu_custom_call.1} parent=1 // pred_check
      _
    $region15: #{tpu_custom_call.1} parent=1 // pred_check_branch
      %49 = sbr.rel (0) target = $region17
    $region16: #{tpu_custom_call.1} parent=1 // pred_region
      %s51 = ssub.s32 256, 256
      %52 = vsyncadd [#allocation10], %s51
      %s53 = sshll.u32 [#allocation9], 4
      %s54 = int_to_ptr.vmem [resolvable:$true] %s53
      %59 = dma.hbm_to_vmem [thread:$0]  %s3, 256, %s54, [#allocation10], 64, 64, 4
    $region17: #{tpu_custom_call.1} parent=1 // pred_fallthru
      _
    // Predicated region
    $region18: #{tpu_custom_call.1} parent=1 // pred_check
      _
    $region19: #{tpu_custom_call.1} parent=1 // pred_check_branch
      %61 = sbr.rel (0) target = $region21
    $region20: #{tpu_custom_call.1} parent=1 // pred_region
      %s63 = ssub.s32 256, 256
      %64 = vsyncadd [#allocation10], %s63
      %s65 = sshll.u32 [#allocation11], 4
      %s66 = int_to_ptr.vmem [resolvable:$true] %s65
      %71 = dma.hbm_to_vmem [thread:$0]  %s4, 256, %s66, [#allocation10], 64, 64, 4
    $region21: #{tpu_custom_call.1} parent=1 // pred_fallthru
      _
    // Predicated region
    $region22: #{tpu_custom_call.1} parent=1 // pred_check
      _
    $region23: #{tpu_custom_call.1} parent=1 // pred_check_branch
      %73 = sbr.rel (0) target = $region25
    $region24: #{tpu_custom_call.1} parent=1 // pred_region
      %74 = dma.done [#allocation4], 1024
    $region25: #{tpu_custom_call.1} parent=1 // pred_fallthru
      _
    // Predicated region
    $region26: #{tpu_custom_call.1} parent=1 // pred_check
      _
    $region27: #{tpu_custom_call.1} parent=1 // pred_check_branch
      %76 = sbr.rel (0) target = $region29
    $region28: #{tpu_custom_call.1} parent=1 // pred_region
      %77 = dma.done [#allocation7], 512
    $region29: #{tpu_custom_call.1} parent=1 // pred_fallthru
      _
    // Predicated region
    $region30: #{tpu_custom_call.1} parent=1 // pred_check
      _
    $region31: #{tpu_custom_call.1} parent=1 // pred_check_branch
      %79 = sbr.rel (0) target = $region33
    $region32: #{tpu_custom_call.1} parent=1 // pred_region
      %80 = dma.done [#allocation7], 64
    $region33: #{tpu_custom_call.1} parent=1 // pred_fallthru
      _
    // Predicated region
    $region34: #{tpu_custom_call.1} parent=1 // pred_check
      _
    $region35: #{tpu_custom_call.1} parent=1 // pred_check_branch
      %82 = sbr.rel (0) target = $region37
    $region36: #{tpu_custom_call.1} parent=1 // pred_region
      %83 = dma.done [#allocation10], 256
    $region37: #{tpu_custom_call.1} parent=1 // pred_fallthru
      _
    // Predicated region
    $region38: #{tpu_custom_call.1} parent=1 // pred_check
      _
    $region39: #{tpu_custom_call.1} parent=1 // pred_check_branch
      %85 = sbr.rel (0) target = $region41
    $region40: #{tpu_custom_call.1} parent=1 // pred_region
      %86 = dma.done [#allocation10], 256
    $region41: #{tpu_custom_call.1} parent=1 // pred_fallthru
      _
    %v88 = vld [vmem:[#allocation3] sm:$0xff]
    %v89 = vld [vmem:[#allocation3 + $0x8] sm:$0xff]
    %v90 = vld [vmem:[#allocation3 + $0x10] sm:$0xff]
    %v91 = vld [vmem:[#allocation3 + $0x18] sm:$0xff]
    %v92 = vld [vmem:[#allocation3 + $0x20] sm:$0xff]
    %v93 = vld [vmem:[#allocation3 + $0x28] sm:$0xff]
    %v94 = vld [vmem:[#allocation3 + $0x30] sm:$0xff]
    %v95 = vld [vmem:[#allocation3 + $0x38] sm:$0xff]
    %v96 = vld [vmem:[#allocation6] sm:$0xff]
    %v97 = vld [vmem:[#allocation6 + $0x8] sm:$0xff]
    %v98 = vld [vmem:[#allocation6 + $0x10] sm:$0xff]
    %v99 = vld [vmem:[#allocation6 + $0x18] sm:$0xff]
    %v100 = vld [vmem:[#allocation8] sm:$0xf]
    %vm101 = vcmask 261120
    %v102 = vsel %vm101, %v88, 0.0
    %103 = vadd.xlane.f32.xlu0 %v102
    %v104 = vpop.xlane.xlu0 %103
    %v105 = vsel %vm101, %v89, 0.0
    %106 = vadd.xlane.f32.xlu0 %v105
    %v107 = vpop.xlane.xlu0 %106
    %v108 = vsel %vm101, %v90, 0.0
    %109 = vadd.xlane.f32.xlu0 %v108
    %v110 = vpop.xlane.xlu0 %109
    %v111 = vsel %vm101, %v91, 0.0
    %112 = vadd.xlane.f32.xlu0 %v111
    %v113 = vpop.xlane.xlu0 %112
    %v114 = vsel %vm101, %v92, 0.0
    %115 = vadd.xlane.f32.xlu0 %v114
    %v116 = vpop.xlane.xlu0 %115
    %v117 = vsel %vm101, %v93, 0.0
    %118 = vadd.xlane.f32.xlu0 %v117
    %v119 = vpop.xlane.xlu0 %118
    %v120 = vsel %vm101, %v94, 0.0
    %121 = vadd.xlane.f32.xlu0 %v120
    %v122 = vpop.xlane.xlu0 %121
    %v123 = vsel %vm101, %v95, 0.0
    %124 = vadd.xlane.f32.xlu0 %v123
    %v125 = vpop.xlane.xlu0 %124
    %v126 = vrcp.pop 32.0
    %v127 = vmul.f32 %v104, %v126
    %v128 = vmul.f32 %v107, %v126
    %v129 = vmul.f32 %v110, %v126
    %v130 = vmul.f32 %v113, %v126
    %v131 = vmul.f32 %v116, %v126
    %v132 = vmul.f32 %v119, %v126
    %v133 = vmul.f32 %v122, %v126
    %v134 = vmul.f32 %v125, %v126
    %v135 = vmul.f32 %v88, %v88
    %v136 = vmul.f32 %v89, %v89
    %v137 = vmul.f32 %v90, %v90
    %v138 = vmul.f32 %v91, %v91
    %v139 = vmul.f32 %v92, %v92
    %v140 = vmul.f32 %v93, %v93
    %v141 = vmul.f32 %v94, %v94
    %v142 = vmul.f32 %v95, %v95
    %v143 = vsel %vm101, %v135, 0.0
    %144 = vadd.xlane.f32.xlu0 %v143
    %v145 = vpop.xlane.xlu0 %144
    %v146 = vsel %vm101, %v136, 0.0
    %147 = vadd.xlane.f32.xlu0 %v146
    %v148 = vpop.xlane.xlu0 %147
    %v149 = vsel %vm101, %v137, 0.0
    %150 = vadd.xlane.f32.xlu0 %v149
    %v151 = vpop.xlane.xlu0 %150
    %v152 = vsel %vm101, %v138, 0.0
    %153 = vadd.xlane.f32.xlu0 %v152
    %v154 = vpop.xlane.xlu0 %153
    %v155 = vsel %vm101, %v139, 0.0
    %156 = vadd.xlane.f32.xlu0 %v155
    %v157 = vpop.xlane.xlu0 %156
    %v158 = vsel %vm101, %v140, 0.0
    %159 = vadd.xlane.f32.xlu0 %v158
    %v160 = vpop.xlane.xlu0 %159
    %v161 = vsel %vm101, %v141, 0.0
    %162 = vadd.xlane.f32.xlu0 %v161
    %v163 = vpop.xlane.xlu0 %162
    %v164 = vsel %vm101, %v142, 0.0
    %165 = vadd.xlane.f32.xlu0 %v164
    %v166 = vpop.xlane.xlu0 %165
    %v167 = vmul.f32 %v145, %v126
    %v168 = vmul.f32 %v148, %v126
    %v169 = vmul.f32 %v151, %v126
    %v170 = vmul.f32 %v154, %v126
    %v171 = vmul.f32 %v157, %v126
    %v172 = vmul.f32 %v160, %v126
    %v173 = vmul.f32 %v163, %v126
    %v174 = vmul.f32 %v166, %v126
    %v175 = vmul.f32 %v127, %v127
    %v176 = vmul.f32 %v128, %v128
    %v177 = vmul.f32 %v129, %v129
    %v178 = vmul.f32 %v130, %v130
    %v179 = vmul.f32 %v131, %v131
    %v180 = vmul.f32 %v132, %v132
    %v181 = vmul.f32 %v133, %v133
    %v182 = vmul.f32 %v134, %v134
    %v183 = vsub.f32 %v167, %v175
    %v184 = vsub.f32 %v168, %v176
    %v185 = vsub.f32 %v169, %v177
    %v186 = vsub.f32 %v170, %v178
    %v187 = vsub.f32 %v171, %v179
    %v188 = vsub.f32 %v172, %v180
    %v189 = vsub.f32 %v173, %v181
    %v190 = vsub.f32 %v174, %v182
    %v191 = vsub.f32 %v88, %v127
    %v192 = vsub.f32 %v89, %v128
    %v193 = vsub.f32 %v90, %v129
    %v194 = vsub.f32 %v91, %v130
    %v195 = vsub.f32 %v92, %v131
    %v196 = vsub.f32 %v93, %v132
    %v197 = vsub.f32 %v94, %v133
    %v198 = vsub.f32 %v95, %v134
    %v199 = vadd.f32 %v183, 1e-05
    %v200 = vadd.f32 %v184, 1e-05
    %v201 = vadd.f32 %v185, 1e-05
    %v202 = vadd.f32 %v186, 1e-05
    %v203 = vadd.f32 %v187, 1e-05
    %v204 = vadd.f32 %v188, 1e-05
    %v205 = vadd.f32 %v189, 1e-05
    %v206 = vadd.f32 %v190, 1e-05
    %v207 = vrsqrt.pop %v199
    %v208 = vrsqrt.pop %v200
    %v209 = vrsqrt.pop %v201
    %v210 = vrsqrt.pop %v202
    %v211 = vrsqrt.pop %v203
    %v212 = vrsqrt.pop %v204
    %v213 = vrsqrt.pop %v205
    %v214 = vrsqrt.pop %v206
    %v215 = vmul.f32 %v191, %v207
    %v216 = vmul.f32 %v192, %v208
    %v217 = vmul.f32 %v193, %v209
    %v218 = vmul.f32 %v194, %v210
    %v219 = vmul.f32 %v195, %v211
    %v220 = vmul.f32 %v196, %v212
    %v221 = vmul.f32 %v197, %v213
    %v222 = vmul.f32 %v198, %v214
    %v223 = vlaneseq
    %v224 = vshrl.u32 %v223, 7
    %v225 = vsub.s32 0, %v224
    %v226 = vrot.slane %v100, %v225
    %v227 = vmul.f32 %v215, %v226
    %v228 = vmul.f32 %v216, %v226
    %v229 = vmul.f32 %v217, %v226
    %v230 = vmul.f32 %v218, %v226
    %v231 = vmul.f32 %v219, %v226
    %v232 = vmul.f32 %v220, %v226
    %v233 = vmul.f32 %v221, %v226
    %v234 = vmul.f32 %v222, %v226
    %v235 = vlaneseq
    %v236 = vshrl.u32 %v235, 7
    %v237 = vsub.s32 1, %v236
    %v238 = vrot.slane %v100, %v237
    %v239 = vadd.f32 %v227, %v238
    %v240 = vadd.f32 %v228, %v238
    %v241 = vadd.f32 %v229, %v238
    %v242 = vadd.f32 %v230, %v238
    %v243 = vadd.f32 %v231, %v238
    %v244 = vadd.f32 %v232, %v238
    %v245 = vadd.f32 %v233, %v238
    %v246 = vadd.f32 %v234, %v238
    %v247 = vsel %vm101, %v96, 0.0
    %248 = vadd.xlane.f32.xlu0 %v247
    %v249 = vpop.xlane.xlu0 %248
    %v250 = vsel %vm101, %v97, 0.0
    %251 = vadd.xlane.f32.xlu0 %v250
    %v252 = vpop.xlane.xlu0 %251
    %v253 = vsel %vm101, %v98, 0.0
    %254 = vadd.xlane.f32.xlu0 %v253
    %v255 = vpop.xlane.xlu0 %254
    %v256 = vsel %vm101, %v99, 0.0
    %257 = vadd.xlane.f32.xlu0 %v256
    %v258 = vpop.xlane.xlu0 %257
    %v259 = vmul.f32 %v249, %v126
    %v260 = vmul.f32 %v252, %v126
    %v261 = vmul.f32 %v255, %v126
    %v262 = vmul.f32 %v258, %v126
    %v263 = vmul.f32 %v96, %v96
    %v264 = vmul.f32 %v97, %v97
    %v265 = vmul.f32 %v98, %v98
    %v266 = vmul.f32 %v99, %v99
    %v267 = vsel %vm101, %v263, 0.0
    %268 = vadd.xlane.f32.xlu0 %v267
    %v269 = vpop.xlane.xlu0 %268
    %v270 = vsel %vm101, %v264, 0.0
    %271 = vadd.xlane.f32.xlu0 %v270
    %v272 = vpop.xlane.xlu0 %271
    %v273 = vsel %vm101, %v265, 0.0
    %274 = vadd.xlane.f32.xlu0 %v273
    %v275 = vpop.xlane.xlu0 %274
    %v276 = vsel %vm101, %v266, 0.0
    %277 = vadd.xlane.f32.xlu0 %v276
    %v278 = vpop.xlane.xlu0 %277
    %v279 = vmul.f32 %v269, %v126
    %v280 = vmul.f32 %v272, %v126
    %v281 = vmul.f32 %v275, %v126
    %v282 = vmul.f32 %v278, %v126
    %v283 = vmul.f32 %v259, %v259
    %v284 = vmul.f32 %v260, %v260
    %v285 = vmul.f32 %v261, %v261
    %v286 = vmul.f32 %v262, %v262
    %v287 = vsub.f32 %v279, %v283
    %v288 = vsub.f32 %v280, %v284
    %v289 = vsub.f32 %v281, %v285
    %v290 = vsub.f32 %v282, %v286
    %v291 = vsub.f32 %v96, %v259
    %v292 = vsub.f32 %v97, %v260
    %v293 = vsub.f32 %v98, %v261
    %v294 = vsub.f32 %v99, %v262
    %v295 = vadd.f32 %v287, 1e-05
    %v296 = vadd.f32 %v288, 1e-05
    %v297 = vadd.f32 %v289, 1e-05
    %v298 = vadd.f32 %v290, 1e-05
    %v299 = vrsqrt.pop %v295
    %v300 = vrsqrt.pop %v296
    %v301 = vrsqrt.pop %v297
    %v302 = vrsqrt.pop %v298
    %v303 = vmul.f32 %v291, %v299
    %v304 = vmul.f32 %v292, %v300
    %v305 = vmul.f32 %v293, %v301
    %v306 = vmul.f32 %v294, %v302
    %v307 = vlaneseq
    %v308 = vshrl.u32 %v307, 7
    %v309 = vsub.s32 2, %v308
    %v310 = vrot.slane %v100, %v309
    %v311 = vmul.f32 %v303, %v310
    %v312 = vmul.f32 %v304, %v310
    %v313 = vmul.f32 %v305, %v310
    %v314 = vmul.f32 %v306, %v310
    %v315 = vlaneseq
    %v316 = vshrl.u32 %v315, 7
    %v317 = vsub.s32 3, %v316
    %v318 = vrot.slane %v100, %v317
    %v319 = vadd.f32 %v311, %v318
    %v320 = vadd.f32 %v312, %v318
    %v321 = vadd.f32 %v313, %v318
    %v322 = vadd.f32 %v314, %v318
    %v323 = vpack.c.bf16 %v240, %v239
    %v324 = vpack.c.bf16 %v242, %v241
    %v325 = vpack.c.bf16 %v244, %v243
    %v326 = vpack.c.bf16 %v246, %v245
    %v327 = vpack.c.bf16 %v319, %v319
    %v328 = vpack.c.bf16 %v320, %v320
    %v329 = vpack.c.bf16 %v321, %v321
    %v330 = vpack.c.bf16 %v322, %v322
    %v331 = vld [vmem:[#allocation9] sm:$0xf]
    %v332 = vld [vmem:[#allocation9 + $0x4] sm:$0xf]
    %v333 = vld [vmem:[#allocation9 + $0x8] sm:$0xf]
    %v334 = vld [vmem:[#allocation9 + $0xc] sm:$0xf]
    %v339 = vunpack.c.l.b16 %v327
    %v340 = vunpack.c.l.b16 %v328
    %v341 = vunpack.c.l.b16 %v329
    %v342 = vunpack.c.l.b16 %v330
    %v343 = vpack.c.b16 %v340, %v339
    %v344 = vpack.c.b16 %v342, %v341
    %v349 = vunpack.c.l.b16 %v331
    %v350 = vunpack.c.l.b16 %v332
    %v351 = vunpack.c.l.b16 %v333
    %v352 = vunpack.c.l.b16 %v334
    %v353 = vpack.c.b16 %v350, %v349
    %v354 = vpack.c.b16 %v352, %v351
    %v358 = vsel %vm101, %v343, 0
    %v361 = vsel %vm101, %v344, 0
    %363 = vmatprep.subr.bf16.mxu0 0
    %364 = vmatpush1.bf16.msra.mxu0 %v353
    %365 = vmatprep.subr.bf16.mxu0 0
    %366 = vmatpush1.bf16.msra.mxu0 %v354
    %367 = vmatprep.subr.bf16.mxu0 0
    %368 = vmatpush1.bf16.msra.mxu0 0
    %369 = vmatprep.subr.bf16.mxu0 0
    %370 = vmatpush1.bf16.msra.mxu0 0
    %371 = vmatprep.subr.bf16.mxu0 0
    %372 = vmatpush1.bf16.msra.mxu0 0
    %373 = vmatprep.subr.bf16.mxu0 0
    %374 = vmatpush1.bf16.msra.mxu0 0
    %375 = vmatprep.subr.bf16.mxu0 0
    %376 = vmatpush1.bf16.msra.mxu0 0
    %377 = vmatprep.subr.bf16.mxu0 0
    %378 = vmatpush1.bf16.msra.mxu0 0
    %379 = vmatprep.subr.bf16.mxu0 0
    %380 = vmatpush1.bf16.msra.mxu0 0
    %381 = vmatprep.subr.bf16.mxu0 0
    %382 = vmatpush1.bf16.msra.mxu0 0
    %383 = vmatprep.subr.bf16.mxu0 0
    %384 = vmatpush1.bf16.msra.mxu0 0
    %385 = vmatprep.subr.bf16.mxu0 0
    %386 = vmatpush1.bf16.msra.mxu0 0
    %387 = vmatprep.subr.bf16.mxu0 0
    %388 = vmatpush1.bf16.msra.mxu0 0
    %389 = vmatprep.subr.bf16.mxu0 0
    %390 = vmatpush1.bf16.msra.mxu0 0
    %391 = vmatprep.subr.bf16.mxu0 0
    %392 = vmatpush1.bf16.msra.mxu0 0
    %393 = vmatprep.subr.bf16.mxu0 0
    %394 = vmatpush1.bf16.msra.mxu0 0
    %395 = vmatprep.mubr.bf16.mxu0 0
    %396 = vmatmul.mubr.bf16.gmra.mrb[0].mxu0 %v358
    %v397 = vpop.f32.mrb[0].mxu0
    %v398 = vadd.f32 0.0, %v397
    %v399 = vpop.f32.mrb[0].mxu0
    %v400 = vpop.f32.mrb[0].mxu0
    %v401 = vadd.f32 0.0, %v400
    %v402 = vpop.f32.mrb[0].mxu0
    %403 = vmatprep.mubr.bf16.mxu0 0
    %404 = vmatmul.mubr.bf16.gmra.mrb[0].mxu0 %v361
    %v405 = vpop.f32.mrb[0].mxu0
    %v406 = vadd.f32 0.0, %v405
    %v407 = vpop.f32.mrb[0].mxu0
    %v408 = vpop.f32.mrb[0].mxu0
    %v409 = vadd.f32 0.0, %v408
    %v410 = vpop.f32.mrb[0].mxu0
    %411 = vdwg.mxu0
    %v412 = vpack.c.bf16 %v401, %v398
    %v413 = vpack.c.bf16 %v409, %v406
    %414 = vrot.lane.b32.xlu0 %v353, 96
    %v415 = vpop.permute.xlu0 %414
    %416 = vrot.lane.b32.xlu0 %v354, 96
    %v417 = vpop.permute.xlu0 %416
    %v421 = vsel %vm101, %v323, 0
    %v424 = vsel %vm101, %v324, 0
    %v427 = vsel %vm101, %v325, 0
    %v430 = vsel %vm101, %v326, 0
    %432 = vmatprep.subr.bf16.mxu0 0
    %433 = vmatpush1.bf16.msra.mxu0 %v415
    %434 = vmatprep.subr.bf16.mxu0 0
    %435 = vmatpush1.bf16.msra.mxu0 %v417
    %436 = vmatprep.subr.bf16.mxu0 0
    %437 = vmatpush1.bf16.msra.mxu0 0
    %438 = vmatprep.subr.bf16.mxu0 0
    %439 = vmatpush1.bf16.msra.mxu0 0
    %440 = vmatprep.subr.bf16.mxu0 0
    %441 = vmatpush1.bf16.msra.mxu0 0
    %442 = vmatprep.subr.bf16.mxu0 0
    %443 = vmatpush1.bf16.msra.mxu0 0
    %444 = vmatprep.subr.bf16.mxu0 0
    %445 = vmatpush1.bf16.msra.mxu0 0
    %446 = vmatprep.subr.bf16.mxu0 0
    %447 = vmatpush1.bf16.msra.mxu0 0
    %448 = vmatprep.subr.bf16.mxu0 0
    %449 = vmatpush1.bf16.msra.mxu0 0
    %450 = vmatprep.subr.bf16.mxu0 0
    %451 = vmatpush1.bf16.msra.mxu0 0
    %452 = vmatprep.subr.bf16.mxu0 0
    %453 = vmatpush1.bf16.msra.mxu0 0
    %454 = vmatprep.subr.bf16.mxu0 0
    %455 = vmatpush1.bf16.msra.mxu0 0
    %456 = vmatprep.subr.bf16.mxu0 0
    %457 = vmatpush1.bf16.msra.mxu0 0
    %458 = vmatprep.subr.bf16.mxu0 0
    %459 = vmatpush1.bf16.msra.mxu0 0
    %460 = vmatprep.subr.bf16.mxu0 0
    %461 = vmatpush1.bf16.msra.mxu0 0
    %462 = vmatprep.subr.bf16.mxu0 0
    %463 = vmatpush1.bf16.msra.mxu0 0
    %464 = vmatprep.mubr.bf16.mxu0 0
    %465 = vmatmul.mubr.bf16.gmra.mrb[0].mxu0 %v421
    %v466 = vpop.f32.mrb[0].mxu0
    %v467 = vadd.f32 0.0, %v466
    %v468 = vpop.f32.mrb[0].mxu0
    %v469 = vpop.f32.mrb[0].mxu0
    %v470 = vadd.f32 0.0, %v469
    %v471 = vpop.f32.mrb[0].mxu0
    %472 = vmatprep.mubr.bf16.mxu0 0
    %473 = vmatmul.mubr.bf16.gmra.mrb[0].mxu0 %v424
    %v474 = vpop.f32.mrb[0].mxu0
    %v475 = vadd.f32 0.0, %v474
    %v476 = vpop.f32.mrb[0].mxu0
    %v477 = vpop.f32.mrb[0].mxu0
    %v478 = vadd.f32 0.0, %v477
    %v479 = vpop.f32.mrb[0].mxu0
    %480 = vmatprep.mubr.bf16.mxu0 0
    %481 = vmatmul.mubr.bf16.gmra.mrb[0].mxu0 %v427
    %v482 = vpop.f32.mrb[0].mxu0
    %v483 = vadd.f32 0.0, %v482
    %v484 = vpop.f32.mrb[0].mxu0
    %v485 = vpop.f32.mrb[0].mxu0
    %v486 = vadd.f32 0.0, %v485
    %v487 = vpop.f32.mrb[0].mxu0
    %488 = vmatprep.mubr.bf16.mxu0 0
    %489 = vmatmul.mubr.bf16.gmra.mrb[0].mxu0 %v430
    %v490 = vpop.f32.mrb[0].mxu0
    %v491 = vadd.f32 0.0, %v490
    %v492 = vpop.f32.mrb[0].mxu0
    %v493 = vpop.f32.mrb[0].mxu0
    %v494 = vadd.f32 0.0, %v493
    %v495 = vpop.f32.mrb[0].mxu0
    %496 = vdwg.mxu0
    %v497 = vpack.c.bf16 %v470, %v467
    %v498 = vpack.c.bf16 %v478, %v475
    %v499 = vpack.c.bf16 %v486, %v483
    %v500 = vpack.c.bf16 %v494, %v491
    %v503 = vunpack.c.l.b16 %v412
    %v504 = vunpack.c.h.b16 %v412
    %v505 = vunpack.c.l.b16 %v413
    %v506 = vunpack.c.h.b16 %v413
    %v507 = vpack.c.b16 %v503, %v503
    %v508 = vpack.c.b16 %v504, %v504
    %v509 = vpack.c.b16 %v505, %v505
    %v510 = vpack.c.b16 %v506, %v506
    %vm511 = vcmask 64512
    %v513 = vsel %vm511, %v507, 0
    %v516 = vsel %vm511, %v497, 0
    %518 = vmatprep.subr.bf16.mxu0 0
    %519 = vmatpush1.bf16.xpose.msra.mxu0 %v516
    %520 = vmatprep.subr.bf16.mxu0 0
    %521 = vmatpush1.bf16.xpose.msra.mxu0 0
    %522 = vmatprep.subr.bf16.mxu0 0
    %523 = vmatpush1.bf16.xpose.msra.mxu0 0
    %524 = vmatprep.subr.bf16.mxu0 0
    %525 = vmatpush1.bf16.xpose.msra.mxu0 0
    %526 = vmatprep.subr.bf16.mxu0 0
    %527 = vmatpush1.bf16.xpose.msra.mxu0 0
    %528 = vmatprep.subr.bf16.mxu0 0
    %529 = vmatpush1.bf16.xpose.msra.mxu0 0
    %530 = vmatprep.subr.bf16.mxu0 0
    %531 = vmatpush1.bf16.xpose.msra.mxu0 0
    %532 = vmatprep.subr.bf16.mxu0 0
    %533 = vmatpush1.bf16.xpose.msra.mxu0 0
    %534 = vmatprep.subr.bf16.mxu0 0
    %535 = vmatpush1.bf16.xpose.msra.mxu0 0
    %536 = vmatprep.subr.bf16.mxu0 0
    %537 = vmatpush1.bf16.xpose.msra.mxu0 0
    %538 = vmatprep.subr.bf16.mxu0 0
    %539 = vmatpush1.bf16.xpose.msra.mxu0 0
    %540 = vmatprep.subr.bf16.mxu0 0
    %541 = vmatpush1.bf16.xpose.msra.mxu0 0
    %542 = vmatprep.subr.bf16.mxu0 0
    %543 = vmatpush1.bf16.xpose.msra.mxu0 0
    %544 = vmatprep.subr.bf16.mxu0 0
    %545 = vmatpush1.bf16.xpose.msra.mxu0 0
    %546 = vmatprep.subr.bf16.mxu0 0
    %547 = vmatpush1.bf16.xpose.msra.mxu0 0
    %548 = vmatprep.subr.bf16.mxu0 0
    %549 = vmatpush1.bf16.xpose.msra.mxu0 0
    %550 = vmatprep.mubr.bf16.mxu0 0
    %551 = vmatmul.mubr.bf16.gmra.mrb[0].mxu0 %v513
    %v552 = vpop.f32.mrb[0].mxu0
    %v553 = vadd.f32 0.0, %v552
    %v554 = vpop.f32.mrb[0].mxu0
    %v555 = vpop.f32.mrb[0].mxu0
    %v556 = vpop.f32.mrb[0].mxu0
    %557 = vdwg.mxu0
    %v559 = vsel %vm511, %v508, 0
    %v562 = vsel %vm511, %v498, 0
    %564 = vmatprep.subr.bf16.mxu0 0
    %565 = vmatpush1.bf16.xpose.msra.mxu0 %v562
    %566 = vmatprep.subr.bf16.mxu0 0
    %567 = vmatpush1.bf16.xpose.msra.mxu0 0
    %568 = vmatprep.subr.bf16.mxu0 0
    %569 = vmatpush1.bf16.xpose.msra.mxu0 0
    %570 = vmatprep.subr.bf16.mxu0 0
    %571 = vmatpush1.bf16.xpose.msra.mxu0 0
    %572 = vmatprep.subr.bf16.mxu0 0
    %573 = vmatpush1.bf16.xpose.msra.mxu0 0
    %574 = vmatprep.subr.bf16.mxu0 0
    %575 = vmatpush1.bf16.xpose.msra.mxu0 0
    %576 = vmatprep.subr.bf16.mxu0 0
    %577 = vmatpush1.bf16.xpose.msra.mxu0 0
    %578 = vmatprep.subr.bf16.mxu0 0
    %579 = vmatpush1.bf16.xpose.msra.mxu0 0
    %580 = vmatprep.subr.bf16.mxu0 0
    %581 = vmatpush1.bf16.xpose.msra.mxu0 0
    %582 = vmatprep.subr.bf16.mxu0 0
    %583 = vmatpush1.bf16.xpose.msra.mxu0 0
    %584 = vmatprep.subr.bf16.mxu0 0
    %585 = vmatpush1.bf16.xpose.msra.mxu0 0
    %586 = vmatprep.subr.bf16.mxu0 0
    %587 = vmatpush1.bf16.xpose.msra.mxu0 0
    %588 = vmatprep.subr.bf16.mxu0 0
    %589 = vmatpush1.bf16.xpose.msra.mxu0 0
    %590 = vmatprep.subr.bf16.mxu0 0
    %591 = vmatpush1.bf16.xpose.msra.mxu0 0
    %592 = vmatprep.subr.bf16.mxu0 0
    %593 = vmatpush1.bf16.xpose.msra.mxu0 0
    %594 = vmatprep.subr.bf16.mxu0 0
    %595 = vmatpush1.bf16.xpose.msra.mxu0 0
    %596 = vmatprep.mubr.bf16.mxu0 0
    %597 = vmatmul.mubr.bf16.gmra.mrb[0].mxu0 %v559
    %v598 = vpop.f32.mrb[0].mxu0
    %v599 = vadd.f32 0.0, %v598
    %v600 = vpop.f32.mrb[0].mxu0
    %v601 = vpop.f32.mrb[0].mxu0
    %v602 = vpop.f32.mrb[0].mxu0
    %603 = vdwg.mxu0
    %v605 = vsel %vm511, %v509, 0
    %v608 = vsel %vm511, %v499, 0
    %610 = vmatprep.subr.bf16.mxu0 0
    %611 = vmatpush1.bf16.xpose.msra.mxu0 %v608
    %612 = vmatprep.subr.bf16.mxu0 0
    %613 = vmatpush1.bf16.xpose.msra.mxu0 0
    %614 = vmatprep.subr.bf16.mxu0 0
    %615 = vmatpush1.bf16.xpose.msra.mxu0 0
    %616 = vmatprep.subr.bf16.mxu0 0
    %617 = vmatpush1.bf16.xpose.msra.mxu0 0
    %618 = vmatprep.subr.bf16.mxu0 0
    %619 = vmatpush1.bf16.xpose.msra.mxu0 0
    %620 = vmatprep.subr.bf16.mxu0 0
    %621 = vmatpush1.bf16.xpose.msra.mxu0 0
    %622 = vmatprep.subr.bf16.mxu0 0
    %623 = vmatpush1.bf16.xpose.msra.mxu0 0
    %624 = vmatprep.subr.bf16.mxu0 0
    %625 = vmatpush1.bf16.xpose.msra.mxu0 0
    %626 = vmatprep.subr.bf16.mxu0 0
    %627 = vmatpush1.bf16.xpose.msra.mxu0 0
    %628 = vmatprep.subr.bf16.mxu0 0
    %629 = vmatpush1.bf16.xpose.msra.mxu0 0
    %630 = vmatprep.subr.bf16.mxu0 0
    %631 = vmatpush1.bf16.xpose.msra.mxu0 0
    %632 = vmatprep.subr.bf16.mxu0 0
    %633 = vmatpush1.bf16.xpose.msra.mxu0 0
    %634 = vmatprep.subr.bf16.mxu0 0
    %635 = vmatpush1.bf16.xpose.msra.mxu0 0
    %636 = vmatprep.subr.bf16.mxu0 0
    %637 = vmatpush1.bf16.xpose.msra.mxu0 0
    %638 = vmatprep.subr.bf16.mxu0 0
    %639 = vmatpush1.bf16.xpose.msra.mxu0 0
    %640 = vmatprep.subr.bf16.mxu0 0
    %641 = vmatpush1.bf16.xpose.msra.mxu0 0
    %642 = vmatprep.mubr.bf16.mxu0 0
    %643 = vmatmul.mubr.bf16.gmra.mrb[0].mxu0 %v605
    %v644 = vpop.f32.mrb[0].mxu0
    %v645 = vadd.f32 0.0, %v644
    %v646 = vpop.f32.mrb[0].mxu0
    %v647 = vpop.f32.mrb[0].mxu0
    %v648 = vpop.f32.mrb[0].mxu0
    %649 = vdwg.mxu0
    %v651 = vsel %vm511, %v510, 0
    %v654 = vsel %vm511, %v500, 0
    %656 = vmatprep.subr.bf16.mxu0 0
    %657 = vmatpush1.bf16.xpose.msra.mxu0 %v654
    %658 = vmatprep.subr.bf16.mxu0 0
    %659 = vmatpush1.bf16.xpose.msra.mxu0 0
    %660 = vmatprep.subr.bf16.mxu0 0
    %661 = vmatpush1.bf16.xpose.msra.mxu0 0
    %662 = vmatprep.subr.bf16.mxu0 0
    %663 = vmatpush1.bf16.xpose.msra.mxu0 0
    %664 = vmatprep.subr.bf16.mxu0 0
    %665 = vmatpush1.bf16.xpose.msra.mxu0 0
    %666 = vmatprep.subr.bf16.mxu0 0
    %667 = vmatpush1.bf16.xpose.msra.mxu0 0
    %668 = vmatprep.subr.bf16.mxu0 0
    %669 = vmatpush1.bf16.xpose.msra.mxu0 0
    %670 = vmatprep.subr.bf16.mxu0 0
    %671 = vmatpush1.bf16.xpose.msra.mxu0 0
    %672 = vmatprep.subr.bf16.mxu0 0
    %673 = vmatpush1.bf16.xpose.msra.mxu0 0
    %674 = vmatprep.subr.bf16.mxu0 0
    %675 = vmatpush1.bf16.xpose.msra.mxu0 0
    %676 = vmatprep.subr.bf16.mxu0 0
    %677 = vmatpush1.bf16.xpose.msra.mxu0 0
    %678 = vmatprep.subr.bf16.mxu0 0
    %679 = vmatpush1.bf16.xpose.msra.mxu0 0
    %680 = vmatprep.subr.bf16.mxu0 0
    %681 = vmatpush1.bf16.xpose.msra.mxu0 0
    %682 = vmatprep.subr.bf16.mxu0 0
    %683 = vmatpush1.bf16.xpose.msra.mxu0 0
    %684 = vmatprep.subr.bf16.mxu0 0
    %685 = vmatpush1.bf16.xpose.msra.mxu0 0
    %686 = vmatprep.subr.bf16.mxu0 0
    %687 = vmatpush1.bf16.xpose.msra.mxu0 0
    %688 = vmatprep.mubr.bf16.mxu0 0
    %689 = vmatmul.mubr.bf16.gmra.mrb[0].mxu0 %v651
    %v690 = vpop.f32.mrb[0].mxu0
    %v691 = vadd.f32 0.0, %v690
    %v692 = vpop.f32.mrb[0].mxu0
    %v693 = vpop.f32.mrb[0].mxu0
    %v694 = vpop.f32.mrb[0].mxu0
    %695 = vdwg.mxu0
    %696 = vrot.lane.b32.xlu0 %v507, 96
    %v697 = vpop.permute.xlu0 %696
    %v699 = vsel %vm511, %v697, 0
    %701 = vmatprep.subr.bf16.mxu0 0
    %702 = vmatpush1.bf16.xpose.msra.mxu0 %v699
    %703 = vmatprep.subr.bf16.mxu0 0
    %704 = vmatpush1.bf16.xpose.msra.mxu0 0
    %705 = vmatprep.subr.bf16.mxu0 0
    %706 = vmatpush1.bf16.xpose.msra.mxu0 0
    %707 = vmatprep.subr.bf16.mxu0 0
    %708 = vmatpush1.bf16.xpose.msra.mxu0 0
    %709 = vmatprep.subr.bf16.mxu0 0
    %710 = vmatpush1.bf16.xpose.msra.mxu0 0
    %711 = vmatprep.subr.bf16.mxu0 0
    %712 = vmatpush1.bf16.xpose.msra.mxu0 0
    %713 = vmatprep.subr.bf16.mxu0 0
    %714 = vmatpush1.bf16.xpose.msra.mxu0 0
    %715 = vmatprep.subr.bf16.mxu0 0
    %716 = vmatpush1.bf16.xpose.msra.mxu0 0
    %717 = vmatprep.subr.bf16.mxu0 0
    %718 = vmatpush1.bf16.xpose.msra.mxu0 0
    %719 = vmatprep.subr.bf16.mxu0 0
    %720 = vmatpush1.bf16.xpose.msra.mxu0 0
    %721 = vmatprep.subr.bf16.mxu0 0
    %722 = vmatpush1.bf16.xpose.msra.mxu0 0
    %723 = vmatprep.subr.bf16.mxu0 0
    %724 = vmatpush1.bf16.xpose.msra.mxu0 0
    %725 = vmatprep.subr.bf16.mxu0 0
    %726 = vmatpush1.bf16.xpose.msra.mxu0 0
    %727 = vmatprep.subr.bf16.mxu0 0
    %728 = vmatpush1.bf16.xpose.msra.mxu0 0
    %729 = vmatprep.subr.bf16.mxu0 0
    %730 = vmatpush1.bf16.xpose.msra.mxu0 0
    %731 = vmatprep.subr.bf16.mxu0 0
    %732 = vmatpush1.bf16.xpose.msra.mxu0 0
    %733 = vmatprep.mubr.bf16.mxu0 0
    %734 = vmatmul.mubr.bf16.gmra.mrb[0].mxu0 %v513
    %v735 = vpop.f32.mrb[0].mxu0
    %v736 = vadd.f32 0.0, %v735
    %v737 = vpop.f32.mrb[0].mxu0
    %v738 = vpop.f32.mrb[0].mxu0
    %v739 = vpop.f32.mrb[0].mxu0
    %740 = vdwg.mxu0
    %741 = vrot.lane.b32.xlu0 %v508, 96
    %v742 = vpop.permute.xlu0 %741
    %v744 = vsel %vm511, %v742, 0
    %746 = vmatprep.subr.bf16.mxu0 0
    %747 = vmatpush1.bf16.xpose.msra.mxu0 %v744
    %748 = vmatprep.subr.bf16.mxu0 0
    %749 = vmatpush1.bf16.xpose.msra.mxu0 0
    %750 = vmatprep.subr.bf16.mxu0 0
    %751 = vmatpush1.bf16.xpose.msra.mxu0 0
    %752 = vmatprep.subr.bf16.mxu0 0
    %753 = vmatpush1.bf16.xpose.msra.mxu0 0
    %754 = vmatprep.subr.bf16.mxu0 0
    %755 = vmatpush1.bf16.xpose.msra.mxu0 0
    %756 = vmatprep.subr.bf16.mxu0 0
    %757 = vmatpush1.bf16.xpose.msra.mxu0 0
    %758 = vmatprep.subr.bf16.mxu0 0
    %759 = vmatpush1.bf16.xpose.msra.mxu0 0
    %760 = vmatprep.subr.bf16.mxu0 0
    %761 = vmatpush1.bf16.xpose.msra.mxu0 0
    %762 = vmatprep.subr.bf16.mxu0 0
    %763 = vmatpush1.bf16.xpose.msra.mxu0 0
    %764 = vmatprep.subr.bf16.mxu0 0
    %765 = vmatpush1.bf16.xpose.msra.mxu0 0
    %766 = vmatprep.subr.bf16.mxu0 0
    %767 = vmatpush1.bf16.xpose.msra.mxu0 0
    %768 = vmatprep.subr.bf16.mxu0 0
    %769 = vmatpush1.bf16.xpose.msra.mxu0 0
    %770 = vmatprep.subr.bf16.mxu0 0
    %771 = vmatpush1.bf16.xpose.msra.mxu0 0
    %772 = vmatprep.subr.bf16.mxu0 0
    %773 = vmatpush1.bf16.xpose.msra.mxu0 0
    %774 = vmatprep.subr.bf16.mxu0 0
    %775 = vmatpush1.bf16.xpose.msra.mxu0 0
    %776 = vmatprep.subr.bf16.mxu0 0
    %777 = vmatpush1.bf16.xpose.msra.mxu0 0
    %778 = vmatprep.mubr.bf16.mxu0 0
    %779 = vmatmul.mubr.bf16.gmra.mrb[0].mxu0 %v559
    %v780 = vpop.f32.mrb[0].mxu0
    %v781 = vadd.f32 0.0, %v780
    %v782 = vpop.f32.mrb[0].mxu0
    %v783 = vpop.f32.mrb[0].mxu0
    %v784 = vpop.f32.mrb[0].mxu0
    %785 = vdwg.mxu0
    %786 = vrot.lane.b32.xlu0 %v509, 96
    %v787 = vpop.permute.xlu0 %786
    %v789 = vsel %vm511, %v787, 0
    %791 = vmatprep.subr.bf16.mxu0 0
    %792 = vmatpush1.bf16.xpose.msra.mxu0 %v789
    %793 = vmatprep.subr.bf16.mxu0 0
    %794 = vmatpush1.bf16.xpose.msra.mxu0 0
    %795 = vmatprep.subr.bf16.mxu0 0
    %796 = vmatpush1.bf16.xpose.msra.mxu0 0
    %797 = vmatprep.subr.bf16.mxu0 0
    %798 = vmatpush1.bf16.xpose.msra.mxu0 0
    %799 = vmatprep.subr.bf16.mxu0 0
    %800 = vmatpush1.bf16.xpose.msra.mxu0 0
    %801 = vmatprep.subr.bf16.mxu0 0
    %802 = vmatpush1.bf16.xpose.msra.mxu0 0
    %803 = vmatprep.subr.bf16.mxu0 0
    %804 = vmatpush1.bf16.xpose.msra.mxu0 0
    %805 = vmatprep.subr.bf16.mxu0 0
    %806 = vmatpush1.bf16.xpose.msra.mxu0 0
    %807 = vmatprep.subr.bf16.mxu0 0
    %808 = vmatpush1.bf16.xpose.msra.mxu0 0
    %809 = vmatprep.subr.bf16.mxu0 0
    %810 = vmatpush1.bf16.xpose.msra.mxu0 0
    %811 = vmatprep.subr.bf16.mxu0 0
    %812 = vmatpush1.bf16.xpose.msra.mxu0 0
    %813 = vmatprep.subr.bf16.mxu0 0
    %814 = vmatpush1.bf16.xpose.msra.mxu0 0
    %815 = vmatprep.subr.bf16.mxu0 0
    %816 = vmatpush1.bf16.xpose.msra.mxu0 0
    %817 = vmatprep.subr.bf16.mxu0 0
    %818 = vmatpush1.bf16.xpose.msra.mxu0 0
    %819 = vmatprep.subr.bf16.mxu0 0
    %820 = vmatpush1.bf16.xpose.msra.mxu0 0
    %821 = vmatprep.subr.bf16.mxu0 0
    %822 = vmatpush1.bf16.xpose.msra.mxu0 0
    %823 = vmatprep.mubr.bf16.mxu0 0
    %824 = vmatmul.mubr.bf16.gmra.mrb[0].mxu0 %v605
    %v825 = vpop.f32.mrb[0].mxu0
    %v826 = vadd.f32 0.0, %v825
    %v827 = vpop.f32.mrb[0].mxu0
    %v828 = vpop.f32.mrb[0].mxu0
    %v829 = vpop.f32.mrb[0].mxu0
    %830 = vdwg.mxu0
    %831 = vrot.lane.b32.xlu0 %v510, 96
    %v832 = vpop.permute.xlu0 %831
    %v834 = vsel %vm511, %v832, 0
    %836 = vmatprep.subr.bf16.mxu0 0
    %837 = vmatpush1.bf16.xpose.msra.mxu0 %v834
    %838 = vmatprep.subr.bf16.mxu0 0
    %839 = vmatpush1.bf16.xpose.msra.mxu0 0
    %840 = vmatprep.subr.bf16.mxu0 0
    %841 = vmatpush1.bf16.xpose.msra.mxu0 0
    %842 = vmatprep.subr.bf16.mxu0 0
    %843 = vmatpush1.bf16.xpose.msra.mxu0 0
    %844 = vmatprep.subr.bf16.mxu0 0
    %845 = vmatpush1.bf16.xpose.msra.mxu0 0
    %846 = vmatprep.subr.bf16.mxu0 0
    %847 = vmatpush1.bf16.xpose.msra.mxu0 0
    %848 = vmatprep.subr.bf16.mxu0 0
    %849 = vmatpush1.bf16.xpose.msra.mxu0 0
    %850 = vmatprep.subr.bf16.mxu0 0
    %851 = vmatpush1.bf16.xpose.msra.mxu0 0
    %852 = vmatprep.subr.bf16.mxu0 0
    %853 = vmatpush1.bf16.xpose.msra.mxu0 0
    %854 = vmatprep.subr.bf16.mxu0 0
    %855 = vmatpush1.bf16.xpose.msra.mxu0 0
    %856 = vmatprep.subr.bf16.mxu0 0
    %857 = vmatpush1.bf16.xpose.msra.mxu0 0
    %858 = vmatprep.subr.bf16.mxu0 0
    %859 = vmatpush1.bf16.xpose.msra.mxu0 0
    %860 = vmatprep.subr.bf16.mxu0 0
    %861 = vmatpush1.bf16.xpose.msra.mxu0 0
    %862 = vmatprep.subr.bf16.mxu0 0
    %863 = vmatpush1.bf16.xpose.msra.mxu0 0
    %864 = vmatprep.subr.bf16.mxu0 0
    %865 = vmatpush1.bf16.xpose.msra.mxu0 0
    %866 = vmatprep.subr.bf16.mxu0 0
    %867 = vmatpush1.bf16.xpose.msra.mxu0 0
    %868 = vmatprep.mubr.bf16.mxu0 0
    %869 = vmatmul.mubr.bf16.gmra.mrb[0].mxu0 %v651
    %v870 = vpop.f32.mrb[0].mxu0
    %v871 = vadd.f32 0.0, %v870
    %v872 = vpop.f32.mrb[0].mxu0
    %v873 = vpop.f32.mrb[0].mxu0
    %v874 = vpop.f32.mrb[0].mxu0
    %875 = vdwg.mxu0
    %vm876 = vcmask 130048
    %v877 = vsel %vm876, %v553, -inf
    %878 = vmax.xlane.f32.xlu0 %v877
    %v879 = vpop.xlane.xlu0 %878
    %v880 = vsel %vm876, %v599, -inf
    %881 = vmax.xlane.f32.xlu0 %v880
    %v882 = vpop.xlane.xlu0 %881
    %v883 = vsel %vm876, %v645, -inf
    %884 = vmax.xlane.f32.xlu0 %v883
    %v885 = vpop.xlane.xlu0 %884
    %v886 = vsel %vm876, %v691, -inf
    %887 = vmax.xlane.f32.xlu0 %v886
    %v888 = vpop.xlane.xlu0 %887
    %v889 = vsel %vm511, %v736, -inf
    %890 = vmax.xlane.f32.xlu0 %v889
    %v891 = vpop.xlane.xlu0 %890
    %v892 = vsel %vm511, %v781, -inf
    %893 = vmax.xlane.f32.xlu0 %v892
    %v894 = vpop.xlane.xlu0 %893
    %v895 = vsel %vm511, %v826, -inf
    %896 = vmax.xlane.f32.xlu0 %v895
    %v897 = vpop.xlane.xlu0 %896
    %v898 = vsel %vm511, %v871, -inf
    %899 = vmax.xlane.f32.xlu0 %v898
    %v900 = vpop.xlane.xlu0 %899
    %v901 = vmax.f32 %v879, %v891
    %v902 = vmax.f32 %v882, %v894
    %v903 = vmax.f32 %v885, %v897
    %v904 = vmax.f32 %v888, %v900
    %v905 = vsub.f32 %v553, %v901
    %v906 = vsub.f32 %v599, %v902
    %v907 = vsub.f32 %v645, %v903
    %v908 = vsub.f32 %v691, %v904
    %v909 = vmul.f32 %v905, 1.442695
    %v910 = vpow.pop %v909
    %v911 = vmul.f32 %v906, 1.442695
    %v912 = vpow.pop %v911
    %v913 = vmul.f32 %v907, 1.442695
    %v914 = vpow.pop %v913
    %v915 = vmul.f32 %v908, 1.442695
    %v916 = vpow.pop %v915
    %v917 = vsub.f32 %v736, %v901
    %v918 = vsub.f32 %v781, %v902
    %v919 = vsub.f32 %v826, %v903
    %v920 = vsub.f32 %v871, %v904
    %v921 = vmul.f32 %v917, 1.442695
    %v922 = vpow.pop %v921
    %v923 = vmul.f32 %v918, 1.442695
    %v924 = vpow.pop %v923
    %v925 = vmul.f32 %v919, 1.442695
    %v926 = vpow.pop %v925
    %v927 = vmul.f32 %v920, 1.442695
    %v928 = vpow.pop %v927
    %v929 = vsel %vm876, %v910, 0.0
    %930 = vadd.xlane.f32.xlu0 %v929
    %v931 = vpop.xlane.xlu0 %930
    %v932 = vsel %vm876, %v912, 0.0
    %933 = vadd.xlane.f32.xlu0 %v932
    %v934 = vpop.xlane.xlu0 %933
    %v935 = vsel %vm876, %v914, 0.0
    %936 = vadd.xlane.f32.xlu0 %v935
    %v937 = vpop.xlane.xlu0 %936
    %v938 = vsel %vm876, %v916, 0.0
    %939 = vadd.xlane.f32.xlu0 %v938
    %v940 = vpop.xlane.xlu0 %939
    %v941 = vsel %vm511, %v922, 0.0
    %942 = vadd.xlane.f32.xlu0 %v941
    %v943 = vpop.xlane.xlu0 %942
    %v944 = vsel %vm511, %v924, 0.0
    %945 = vadd.xlane.f32.xlu0 %v944
    %v946 = vpop.xlane.xlu0 %945
    %v947 = vsel %vm511, %v926, 0.0
    %948 = vadd.xlane.f32.xlu0 %v947
    %v949 = vpop.xlane.xlu0 %948
    %v950 = vsel %vm511, %v928, 0.0
    %951 = vadd.xlane.f32.xlu0 %v950
    %v952 = vpop.xlane.xlu0 %951
    %v953 = vadd.f32 %v931, %v943
    %v954 = vadd.f32 %v934, %v946
    %v955 = vadd.f32 %v937, %v949
    %v956 = vadd.f32 %v940, %v952
    %v957 = vrcp.pop %v953
    %v958 = vrcp.pop %v954
    %v959 = vrcp.pop %v955
    %v960 = vrcp.pop %v956
    %v961 = vmul.f32 %v910, %v957
    %v962 = vmul.f32 %v912, %v958
    %v963 = vmul.f32 %v914, %v959
    %v964 = vmul.f32 %v916, %v960
    %v965 = vpack.c.bf16 %v961, %v961
    %v966 = vpack.c.bf16 %v962, %v962
    %v967 = vpack.c.bf16 %v963, %v963
    %v968 = vpack.c.bf16 %v964, %v964
    %v969 = vmul.f32 %v922, %v957
    %v970 = vmul.f32 %v924, %v958
    %v971 = vmul.f32 %v926, %v959
    %v972 = vmul.f32 %v928, %v960
    %v973 = vpack.c.bf16 %v969, %v969
    %v974 = vpack.c.bf16 %v970, %v970
    %v975 = vpack.c.bf16 %v971, %v971
    %v976 = vpack.c.bf16 %v972, %v972
    %977 = vrot.lane.b32.xlu0 %v507, 64
    %v978 = vpop.permute.xlu0 %977
    %v980 = vsel %vm511, %v973, 0
    %vm982 = vcmask 1043456
    %v984 = vsel %vm982, %v978, 0
    %986 = vmatprep.subr.bf16.mxu0 0
    %987 = vmatpush1.bf16.msra.mxu0 %v984
    %988 = vmatprep.subr.bf16.mxu0 0
    %989 = vmatpush1.bf16.msra.mxu0 0
    %990 = vmatprep.subr.bf16.mxu0 0
    %991 = vmatpush1.bf16.msra.mxu0 0
    %992 = vmatprep.subr.bf16.mxu0 0
    %993 = vmatpush1.bf16.msra.mxu0 0
    %994 = vmatprep.subr.bf16.mxu0 0
    %995 = vmatpush1.bf16.msra.mxu0 0
    %996 = vmatprep.subr.bf16.mxu0 0
    %997 = vmatpush1.bf16.msra.mxu0 0
    %998 = vmatprep.subr.bf16.mxu0 0
    %999 = vmatpush1.bf16.msra.mxu0 0
    %1000 = vmatprep.subr.bf16.mxu0 0
    %1001 = vmatpush1.bf16.msra.mxu0 0
    %1002 = vmatprep.subr.bf16.mxu0 0
    %1003 = vmatpush1.bf16.msra.mxu0 0
    %1004 = vmatprep.subr.bf16.mxu0 0
    %1005 = vmatpush1.bf16.msra.mxu0 0
    %1006 = vmatprep.subr.bf16.mxu0 0
    %1007 = vmatpush1.bf16.msra.mxu0 0
    %1008 = vmatprep.subr.bf16.mxu0 0
    %1009 = vmatpush1.bf16.msra.mxu0 0
    %1010 = vmatprep.subr.bf16.mxu0 0
    %1011 = vmatpush1.bf16.msra.mxu0 0
    %1012 = vmatprep.subr.bf16.mxu0 0
    %1013 = vmatpush1.bf16.msra.mxu0 0
    %1014 = vmatprep.subr.bf16.mxu0 0
    %1015 = vmatpush1.bf16.msra.mxu0 0
    %1016 = vmatprep.subr.bf16.mxu0 0
    %1017 = vmatpush1.bf16.msra.mxu0 0
    %1018 = vmatprep.mubr.bf16.mxu0 0
    %1019 = vmatmul.mubr.bf16.gmra.mrb[0].mxu0 %v980
    %v1020 = vpop.f32.mrb[0].mxu0
    %v1021 = vadd.f32 0.0, %v1020
    %v1022 = vpop.f32.mrb[0].mxu0
    %v1023 = vpop.f32.mrb[0].mxu0
    %v1024 = vpop.f32.mrb[0].mxu0
    %1025 = vdwg.mxu0
    %1026 = vrot.lane.b32.xlu0 %v508, 64
    %v1027 = vpop.permute.xlu0 %1026
    %v1029 = vsel %vm511, %v974, 0
    %v1032 = vsel %vm982, %v1027, 0
    %1034 = vmatprep.subr.bf16.mxu0 0
    %1035 = vmatpush1.bf16.msra.mxu0 %v1032
    %1036 = vmatprep.subr.bf16.mxu0 0
    %1037 = vmatpush1.bf16.msra.mxu0 0
    %1038 = vmatprep.subr.bf16.mxu0 0
    %1039 = vmatpush1.bf16.msra.mxu0 0
    %1040 = vmatprep.subr.bf16.mxu0 0
    %1041 = vmatpush1.bf16.msra.mxu0 0
    %1042 = vmatprep.subr.bf16.mxu0 0
    %1043 = vmatpush1.bf16.msra.mxu0 0
    %1044 = vmatprep.subr.bf16.mxu0 0
    %1045 = vmatpush1.bf16.msra.mxu0 0
    %1046 = vmatprep.subr.bf16.mxu0 0
    %1047 = vmatpush1.bf16.msra.mxu0 0
    %1048 = vmatprep.subr.bf16.mxu0 0
    %1049 = vmatpush1.bf16.msra.mxu0 0
    %1050 = vmatprep.subr.bf16.mxu0 0
    %1051 = vmatpush1.bf16.msra.mxu0 0
    %1052 = vmatprep.subr.bf16.mxu0 0
    %1053 = vmatpush1.bf16.msra.mxu0 0
    %1054 = vmatprep.subr.bf16.mxu0 0
    %1055 = vmatpush1.bf16.msra.mxu0 0
    %1056 = vmatprep.subr.bf16.mxu0 0
    %1057 = vmatpush1.bf16.msra.mxu0 0
    %1058 = vmatprep.subr.bf16.mxu0 0
    %1059 = vmatpush1.bf16.msra.mxu0 0
    %1060 = vmatprep.subr.bf16.mxu0 0
    %1061 = vmatpush1.bf16.msra.mxu0 0
    %1062 = vmatprep.subr.bf16.mxu0 0
    %1063 = vmatpush1.bf16.msra.mxu0 0
    %1064 = vmatprep.subr.bf16.mxu0 0
    %1065 = vmatpush1.bf16.msra.mxu0 0
    %1066 = vmatprep.mubr.bf16.mxu0 0
    %1067 = vmatmul.mubr.bf16.gmra.mrb[0].mxu0 %v1029
    %v1068 = vpop.f32.mrb[0].mxu0
    %v1069 = vadd.f32 0.0, %v1068
    %v1070 = vpop.f32.mrb[0].mxu0
    %v1071 = vpop.f32.mrb[0].mxu0
    %v1072 = vpop.f32.mrb[0].mxu0
    %1073 = vdwg.mxu0
    %1074 = vrot.lane.b32.xlu0 %v509, 64
    %v1075 = vpop.permute.xlu0 %1074
    %v1077 = vsel %vm511, %v975, 0
    %v1080 = vsel %vm982, %v1075, 0
    %1082 = vmatprep.subr.bf16.mxu0 0
    %1083 = vmatpush1.bf16.msra.mxu0 %v1080
    %1084 = vmatprep.subr.bf16.mxu0 0
    %1085 = vmatpush1.bf16.msra.mxu0 0
    %1086 = vmatprep.subr.bf16.mxu0 0
    %1087 = vmatpush1.bf16.msra.mxu0 0
    %1088 = vmatprep.subr.bf16.mxu0 0
    %1089 = vmatpush1.bf16.msra.mxu0 0
    %1090 = vmatprep.subr.bf16.mxu0 0
    %1091 = vmatpush1.bf16.msra.mxu0 0
    %1092 = vmatprep.subr.bf16.mxu0 0
    %1093 = vmatpush1.bf16.msra.mxu0 0
    %1094 = vmatprep.subr.bf16.mxu0 0
    %1095 = vmatpush1.bf16.msra.mxu0 0
    %1096 = vmatprep.subr.bf16.mxu0 0
    %1097 = vmatpush1.bf16.msra.mxu0 0
    %1098 = vmatprep.subr.bf16.mxu0 0
    %1099 = vmatpush1.bf16.msra.mxu0 0
    %1100 = vmatprep.subr.bf16.mxu0 0
    %1101 = vmatpush1.bf16.msra.mxu0 0
    %1102 = vmatprep.subr.bf16.mxu0 0
    %1103 = vmatpush1.bf16.msra.mxu0 0
    %1104 = vmatprep.subr.bf16.mxu0 0
    %1105 = vmatpush1.bf16.msra.mxu0 0
    %1106 = vmatprep.subr.bf16.mxu0 0
    %1107 = vmatpush1.bf16.msra.mxu0 0
    %1108 = vmatprep.subr.bf16.mxu0 0
    %1109 = vmatpush1.bf16.msra.mxu0 0
    %1110 = vmatprep.subr.bf16.mxu0 0
    %1111 = vmatpush1.bf16.msra.mxu0 0
    %1112 = vmatprep.subr.bf16.mxu0 0
    %1113 = vmatpush1.bf16.msra.mxu0 0
    %1114 = vmatprep.mubr.bf16.mxu0 0
    %1115 = vmatmul.mubr.bf16.gmra.mrb[0].mxu0 %v1077
    %v1116 = vpop.f32.mrb[0].mxu0
    %v1117 = vadd.f32 0.0, %v1116
    %v1118 = vpop.f32.mrb[0].mxu0
    %v1119 = vpop.f32.mrb[0].mxu0
    %v1120 = vpop.f32.mrb[0].mxu0
    %1121 = vdwg.mxu0
    %1122 = vrot.lane.b32.xlu0 %v510, 64
    %v1123 = vpop.permute.xlu0 %1122
    %v1125 = vsel %vm511, %v976, 0
    %v1128 = vsel %vm982, %v1123, 0
    %1130 = vmatprep.subr.bf16.mxu0 0
    %1131 = vmatpush1.bf16.msra.mxu0 %v1128
    %1132 = vmatprep.subr.bf16.mxu0 0
    %1133 = vmatpush1.bf16.msra.mxu0 0
    %1134 = vmatprep.subr.bf16.mxu0 0
    %1135 = vmatpush1.bf16.msra.mxu0 0
    %1136 = vmatprep.subr.bf16.mxu0 0
    %1137 = vmatpush1.bf16.msra.mxu0 0
    %1138 = vmatprep.subr.bf16.mxu0 0
    %1139 = vmatpush1.bf16.msra.mxu0 0
    %1140 = vmatprep.subr.bf16.mxu0 0
    %1141 = vmatpush1.bf16.msra.mxu0 0
    %1142 = vmatprep.subr.bf16.mxu0 0
    %1143 = vmatpush1.bf16.msra.mxu0 0
    %1144 = vmatprep.subr.bf16.mxu0 0
    %1145 = vmatpush1.bf16.msra.mxu0 0
    %1146 = vmatprep.subr.bf16.mxu0 0
    %1147 = vmatpush1.bf16.msra.mxu0 0
    %1148 = vmatprep.subr.bf16.mxu0 0
    %1149 = vmatpush1.bf16.msra.mxu0 0
    %1150 = vmatprep.subr.bf16.mxu0 0
    %1151 = vmatpush1.bf16.msra.mxu0 0
    %1152 = vmatprep.subr.bf16.mxu0 0
    %1153 = vmatpush1.bf16.msra.mxu0 0
    %1154 = vmatprep.subr.bf16.mxu0 0
    %1155 = vmatpush1.bf16.msra.mxu0 0
    %1156 = vmatprep.subr.bf16.mxu0 0
    %1157 = vmatpush1.bf16.msra.mxu0 0
    %1158 = vmatprep.subr.bf16.mxu0 0
    %1159 = vmatpush1.bf16.msra.mxu0 0
    %1160 = vmatprep.subr.bf16.mxu0 0
    %1161 = vmatpush1.bf16.msra.mxu0 0
    %1162 = vmatprep.mubr.bf16.mxu0 0
    %1163 = vmatmul.mubr.bf16.gmra.mrb[0].mxu0 %v1125
    %v1164 = vpop.f32.mrb[0].mxu0
    %v1165 = vadd.f32 0.0, %v1164
    %v1166 = vpop.f32.mrb[0].mxu0
    %v1167 = vpop.f32.mrb[0].mxu0
    %v1168 = vpop.f32.mrb[0].mxu0
    %1169 = vdwg.mxu0
    %1171 = vrot.lane.b32.xlu0 %v497, 96
    %v1172 = vpop.permute.xlu0 %1171
    %v1175 = vsel %vm876, %v965, 0
    %1177 = vmatprep.subr.bf16.mxu0 0
    %1178 = vmatpush1.bf16.msra.mxu0 %v1172
    %1179 = vmatprep.subr.bf16.mxu0 0
    %1180 = vmatpush1.bf16.msra.mxu0 0
    %1181 = vmatprep.subr.bf16.mxu0 0
    %1182 = vmatpush1.bf16.msra.mxu0 0
    %1183 = vmatprep.subr.bf16.mxu0 0
    %1184 = vmatpush1.bf16.msra.mxu0 0
    %1185 = vmatprep.subr.bf16.mxu0 0
    %1186 = vmatpush1.bf16.msra.mxu0 0
    %1187 = vmatprep.subr.bf16.mxu0 0
    %1188 = vmatpush1.bf16.msra.mxu0 0
    %1189 = vmatprep.subr.bf16.mxu0 0
    %1190 = vmatpush1.bf16.msra.mxu0 0
    %1191 = vmatprep.subr.bf16.mxu0 0
    %1192 = vmatpush1.bf16.msra.mxu0 0
    %1193 = vmatprep.subr.bf16.mxu0 0
    %1194 = vmatpush1.bf16.msra.mxu0 0
    %1195 = vmatprep.subr.bf16.mxu0 0
    %1196 = vmatpush1.bf16.msra.mxu0 0
    %1197 = vmatprep.subr.bf16.mxu0 0
    %1198 = vmatpush1.bf16.msra.mxu0 0
    %1199 = vmatprep.subr.bf16.mxu0 0
    %1200 = vmatpush1.bf16.msra.mxu0 0
    %1201 = vmatprep.subr.bf16.mxu0 0
    %1202 = vmatpush1.bf16.msra.mxu0 0
    %1203 = vmatprep.subr.bf16.mxu0 0
    %1204 = vmatpush1.bf16.msra.mxu0 0
    %1205 = vmatprep.subr.bf16.mxu0 0
    %1206 = vmatpush1.bf16.msra.mxu0 0
    %1207 = vmatprep.subr.bf16.mxu0 0
    %1208 = vmatpush1.bf16.msra.mxu0 0
    %1209 = vmatprep.mubr.bf16.mxu0 0
    %1210 = vmatmul.mubr.bf16.gmra.mrb[0].mxu0 %v1175
    %v1211 = vpop.f32.mrb[0].mxu0
    %v1212 = vadd.f32 %v1021, %v1211
    %v1213 = vpop.f32.mrb[0].mxu0
    %v1214 = vpop.f32.mrb[0].mxu0
    %v1215 = vpop.f32.mrb[0].mxu0
    %1216 = vdwg.mxu0
    %1218 = vrot.lane.b32.xlu0 %v498, 96
    %v1219 = vpop.permute.xlu0 %1218
    %v1222 = vsel %vm876, %v966, 0
    %1224 = vmatprep.subr.bf16.mxu0 0
    %1225 = vmatpush1.bf16.msra.mxu0 %v1219
    %1226 = vmatprep.subr.bf16.mxu0 0
    %1227 = vmatpush1.bf16.msra.mxu0 0
    %1228 = vmatprep.subr.bf16.mxu0 0
    %1229 = vmatpush1.bf16.msra.mxu0 0
    %1230 = vmatprep.subr.bf16.mxu0 0
    %1231 = vmatpush1.bf16.msra.mxu0 0
    %1232 = vmatprep.subr.bf16.mxu0 0
    %1233 = vmatpush1.bf16.msra.mxu0 0
    %1234 = vmatprep.subr.bf16.mxu0 0
    %1235 = vmatpush1.bf16.msra.mxu0 0
    %1236 = vmatprep.subr.bf16.mxu0 0
    %1237 = vmatpush1.bf16.msra.mxu0 0
    %1238 = vmatprep.subr.bf16.mxu0 0
    %1239 = vmatpush1.bf16.msra.mxu0 0
    %1240 = vmatprep.subr.bf16.mxu0 0
    %1241 = vmatpush1.bf16.msra.mxu0 0
    %1242 = vmatprep.subr.bf16.mxu0 0
    %1243 = vmatpush1.bf16.msra.mxu0 0
    %1244 = vmatprep.subr.bf16.mxu0 0
    %1245 = vmatpush1.bf16.msra.mxu0 0
    %1246 = vmatprep.subr.bf16.mxu0 0
    %1247 = vmatpush1.bf16.msra.mxu0 0
    %1248 = vmatprep.subr.bf16.mxu0 0
    %1249 = vmatpush1.bf16.msra.mxu0 0
    %1250 = vmatprep.subr.bf16.mxu0 0
    %1251 = vmatpush1.bf16.msra.mxu0 0
    %1252 = vmatprep.subr.bf16.mxu0 0
    %1253 = vmatpush1.bf16.msra.mxu0 0
    %1254 = vmatprep.subr.bf16.mxu0 0
    %1255 = vmatpush1.bf16.msra.mxu0 0
    %1256 = vmatprep.mubr.bf16.mxu0 0
    %1257 = vmatmul.mubr.bf16.gmra.mrb[0].mxu0 %v1222
    %v1258 = vpop.f32.mrb[0].mxu0
    %v1259 = vadd.f32 %v1069, %v1258
    %v1260 = vpop.f32.mrb[0].mxu0
    %v1261 = vpop.f32.mrb[0].mxu0
    %v1262 = vpop.f32.mrb[0].mxu0
    %1263 = vdwg.mxu0
    %1265 = vrot.lane.b32.xlu0 %v499, 96
    %v1266 = vpop.permute.xlu0 %1265
    %v1269 = vsel %vm876, %v967, 0
    %1271 = vmatprep.subr.bf16.mxu0 0
    %1272 = vmatpush1.bf16.msra.mxu0 %v1266
    %1273 = vmatprep.subr.bf16.mxu0 0
    %1274 = vmatpush1.bf16.msra.mxu0 0
    %1275 = vmatprep.subr.bf16.mxu0 0
    %1276 = vmatpush1.bf16.msra.mxu0 0
    %1277 = vmatprep.subr.bf16.mxu0 0
    %1278 = vmatpush1.bf16.msra.mxu0 0
    %1279 = vmatprep.subr.bf16.mxu0 0
    %1280 = vmatpush1.bf16.msra.mxu0 0
    %1281 = vmatprep.subr.bf16.mxu0 0
    %1282 = vmatpush1.bf16.msra.mxu0 0
    %1283 = vmatprep.subr.bf16.mxu0 0
    %1284 = vmatpush1.bf16.msra.mxu0 0
    %1285 = vmatprep.subr.bf16.mxu0 0
    %1286 = vmatpush1.bf16.msra.mxu0 0
    %1287 = vmatprep.subr.bf16.mxu0 0
    %1288 = vmatpush1.bf16.msra.mxu0 0
    %1289 = vmatprep.subr.bf16.mxu0 0
    %1290 = vmatpush1.bf16.msra.mxu0 0
    %1291 = vmatprep.subr.bf16.mxu0 0
    %1292 = vmatpush1.bf16.msra.mxu0 0
    %1293 = vmatprep.subr.bf16.mxu0 0
    %1294 = vmatpush1.bf16.msra.mxu0 0
    %1295 = vmatprep.subr.bf16.mxu0 0
    %1296 = vmatpush1.bf16.msra.mxu0 0
    %1297 = vmatprep.subr.bf16.mxu0 0
    %1298 = vmatpush1.bf16.msra.mxu0 0
    %1299 = vmatprep.subr.bf16.mxu0 0
    %1300 = vmatpush1.bf16.msra.mxu0 0
    %1301 = vmatprep.subr.bf16.mxu0 0
    %1302 = vmatpush1.bf16.msra.mxu0 0
    %1303 = vmatprep.mubr.bf16.mxu0 0
    %1304 = vmatmul.mubr.bf16.gmra.mrb[0].mxu0 %v1269
    %v1305 = vpop.f32.mrb[0].mxu0
    %v1306 = vadd.f32 %v1117, %v1305
    %v1307 = vpop.f32.mrb[0].mxu0
    %v1308 = vpop.f32.mrb[0].mxu0
    %v1309 = vpop.f32.mrb[0].mxu0
    %1310 = vdwg.mxu0
    %1312 = vrot.lane.b32.xlu0 %v500, 96
    %v1313 = vpop.permute.xlu0 %1312
    %v1316 = vsel %vm876, %v968, 0
    %1318 = vmatprep.subr.bf16.mxu0 0
    %1319 = vmatpush1.bf16.msra.mxu0 %v1313
    %1320 = vmatprep.subr.bf16.mxu0 0
    %1321 = vmatpush1.bf16.msra.mxu0 0
    %1322 = vmatprep.subr.bf16.mxu0 0
    %1323 = vmatpush1.bf16.msra.mxu0 0
    %1324 = vmatprep.subr.bf16.mxu0 0
    %1325 = vmatpush1.bf16.msra.mxu0 0
    %1326 = vmatprep.subr.bf16.mxu0 0
    %1327 = vmatpush1.bf16.msra.mxu0 0
    %1328 = vmatprep.subr.bf16.mxu0 0
    %1329 = vmatpush1.bf16.msra.mxu0 0
    %1330 = vmatprep.subr.bf16.mxu0 0
    %1331 = vmatpush1.bf16.msra.mxu0 0
    %1332 = vmatprep.subr.bf16.mxu0 0
    %1333 = vmatpush1.bf16.msra.mxu0 0
    %1334 = vmatprep.subr.bf16.mxu0 0
    %1335 = vmatpush1.bf16.msra.mxu0 0
    %1336 = vmatprep.subr.bf16.mxu0 0
    %1337 = vmatpush1.bf16.msra.mxu0 0
    %1338 = vmatprep.subr.bf16.mxu0 0
    %1339 = vmatpush1.bf16.msra.mxu0 0
    %1340 = vmatprep.subr.bf16.mxu0 0
    %1341 = vmatpush1.bf16.msra.mxu0 0
    %1342 = vmatprep.subr.bf16.mxu0 0
    %1343 = vmatpush1.bf16.msra.mxu0 0
    %1344 = vmatprep.subr.bf16.mxu0 0
    %1345 = vmatpush1.bf16.msra.mxu0 0
    %1346 = vmatprep.subr.bf16.mxu0 0
    %1347 = vmatpush1.bf16.msra.mxu0 0
    %1348 = vmatprep.subr.bf16.mxu0 0
    %1349 = vmatpush1.bf16.msra.mxu0 0
    %1350 = vmatprep.mubr.bf16.mxu0 0
    %1351 = vmatmul.mubr.bf16.gmra.mrb[0].mxu0 %v1316
    %v1352 = vpop.f32.mrb[0].mxu0
    %v1353 = vadd.f32 %v1165, %v1352
    %v1354 = vpop.f32.mrb[0].mxu0
    %v1355 = vpop.f32.mrb[0].mxu0
    %v1356 = vpop.f32.mrb[0].mxu0
    %1357 = vdwg.mxu0
    %v1358 = vpack.c.bf16 %v1259, %v1212
    %v1359 = vpack.c.bf16 %v1353, %v1306
    %1360 = vst.msk [vmem:[#allocation2] sm:$0xff] %vm511, %v1358
    %1361 = vst.msk [vmem:[#allocation2 + $0x8] sm:$0xff] %vm511, %v1359
    %1362 = vrot.lane.b32.xlu0 %v507, 120
    %v1363 = vpop.permute.xlu0 %1362
    %1364 = vrot.lane.b32.xlu0 %v497, 120
    %v1365 = vpop.permute.xlu0 %1364
    %v1367 = vsel %vm511, %v1363, 0
    %v1370 = vsel %vm511, %v1365, 0
    %1372 = vmatprep.subr.bf16.mxu0 0
    %1373 = vmatpush1.bf16.xpose.msra.mxu0 %v1370
    %1374 = vmatprep.subr.bf16.mxu0 0
    %1375 = vmatpush1.bf16.xpose.msra.mxu0 0
    %1376 = vmatprep.subr.bf16.mxu0 0
    %1377 = vmatpush1.bf16.xpose.msra.mxu0 0
    %1378 = vmatprep.subr.bf16.mxu0 0
    %1379 = vmatpush1.bf16.xpose.msra.mxu0 0
    %1380 = vmatprep.subr.bf16.mxu0 0
    %1381 = vmatpush1.bf16.xpose.msra.mxu0 0
    %1382 = vmatprep.subr.bf16.mxu0 0
    %1383 = vmatpush1.bf16.xpose.msra.mxu0 0
    %1384 = vmatprep.subr.bf16.mxu0 0
    %1385 = vmatpush1.bf16.xpose.msra.mxu0 0
    %1386 = vmatprep.subr.bf16.mxu0 0
    %1387 = vmatpush1.bf16.xpose.msra.mxu0 0
    %1388 = vmatprep.subr.bf16.mxu0 0
    %1389 = vmatpush1.bf16.xpose.msra.mxu0 0
    %1390 = vmatprep.subr.bf16.mxu0 0
    %1391 = vmatpush1.bf16.xpose.msra.mxu0 0
    %1392 = vmatprep.subr.bf16.mxu0 0
    %1393 = vmatpush1.bf16.xpose.msra.mxu0 0
    %1394 = vmatprep.subr.bf16.mxu0 0
    %1395 = vmatpush1.bf16.xpose.msra.mxu0 0
    %1396 = vmatprep.subr.bf16.mxu0 0
    %1397 = vmatpush1.bf16.xpose.msra.mxu0 0
    %1398 = vmatprep.subr.bf16.mxu0 0
    %1399 = vmatpush1.bf16.xpose.msra.mxu0 0
    %1400 = vmatprep.subr.bf16.mxu0 0
    %1401 = vmatpush1.bf16.xpose.msra.mxu0 0
    %1402 = vmatprep.subr.bf16.mxu0 0
    %1403 = vmatpush1.bf16.xpose.msra.mxu0 0
    %1404 = vmatprep.mubr.bf16.mxu0 0
    %1405 = vmatmul.mubr.bf16.gmra.mrb[0].mxu0 %v1367
    %v1406 = vpop.f32.mrb[0].mxu0
    %v1407 = vadd.f32 0.0, %v1406
    %v1408 = vpop.f32.mrb[0].mxu0
    %v1409 = vpop.f32.mrb[0].mxu0
    %v1410 = vpop.f32.mrb[0].mxu0
    %1411 = vdwg.mxu0
    %1412 = vrot.lane.b32.xlu0 %v508, 120
    %v1413 = vpop.permute.xlu0 %1412
    %1414 = vrot.lane.b32.xlu0 %v498, 120
    %v1415 = vpop.permute.xlu0 %1414
    %v1417 = vsel %vm511, %v1413, 0
    %v1420 = vsel %vm511, %v1415, 0
    %1422 = vmatprep.subr.bf16.mxu0 0
    %1423 = vmatpush1.bf16.xpose.msra.mxu0 %v1420
    %1424 = vmatprep.subr.bf16.mxu0 0
    %1425 = vmatpush1.bf16.xpose.msra.mxu0 0
    %1426 = vmatprep.subr.bf16.mxu0 0
    %1427 = vmatpush1.bf16.xpose.msra.mxu0 0
    %1428 = vmatprep.subr.bf16.mxu0 0
    %1429 = vmatpush1.bf16.xpose.msra.mxu0 0
    %1430 = vmatprep.subr.bf16.mxu0 0
    %1431 = vmatpush1.bf16.xpose.msra.mxu0 0
    %1432 = vmatprep.subr.bf16.mxu0 0
    %1433 = vmatpush1.bf16.xpose.msra.mxu0 0
    %1434 = vmatprep.subr.bf16.mxu0 0
    %1435 = vmatpush1.bf16.xpose.msra.mxu0 0
    %1436 = vmatprep.subr.bf16.mxu0 0
    %1437 = vmatpush1.bf16.xpose.msra.mxu0 0
    %1438 = vmatprep.subr.bf16.mxu0 0
    %1439 = vmatpush1.bf16.xpose.msra.mxu0 0
    %1440 = vmatprep.subr.bf16.mxu0 0
    %1441 = vmatpush1.bf16.xpose.msra.mxu0 0
    %1442 = vmatprep.subr.bf16.mxu0 0
    %1443 = vmatpush1.bf16.xpose.msra.mxu0 0
    %1444 = vmatprep.subr.bf16.mxu0 0
    %1445 = vmatpush1.bf16.xpose.msra.mxu0 0
    %1446 = vmatprep.subr.bf16.mxu0 0
    %1447 = vmatpush1.bf16.xpose.msra.mxu0 0
    %1448 = vmatprep.subr.bf16.mxu0 0
    %1449 = vmatpush1.bf16.xpose.msra.mxu0 0
    %1450 = vmatprep.subr.bf16.mxu0 0
    %1451 = vmatpush1.bf16.xpose.msra.mxu0 0
    %1452 = vmatprep.subr.bf16.mxu0 0
    %1453 = vmatpush1.bf16.xpose.msra.mxu0 0
    %1454 = vmatprep.mubr.bf16.mxu0 0
    %1455 = vmatmul.mubr.bf16.gmra.mrb[0].mxu0 %v1417
    %v1456 = vpop.f32.mrb[0].mxu0
    %v1457 = vadd.f32 0.0, %v1456
    %v1458 = vpop.f32.mrb[0].mxu0
    %v1459 = vpop.f32.mrb[0].mxu0
    %v1460 = vpop.f32.mrb[0].mxu0
    %1461 = vdwg.mxu0
    %1462 = vrot.lane.b32.xlu0 %v509, 120
    %v1463 = vpop.permute.xlu0 %1462
    %1464 = vrot.lane.b32.xlu0 %v499, 120
    %v1465 = vpop.permute.xlu0 %1464
    %v1467 = vsel %vm511, %v1463, 0
    %v1470 = vsel %vm511, %v1465, 0
    %1472 = vmatprep.subr.bf16.mxu0 0
    %1473 = vmatpush1.bf16.xpose.msra.mxu0 %v1470
    %1474 = vmatprep.subr.bf16.mxu0 0
    %1475 = vmatpush1.bf16.xpose.msra.mxu0 0
    %1476 = vmatprep.subr.bf16.mxu0 0
    %1477 = vmatpush1.bf16.xpose.msra.mxu0 0
    %1478 = vmatprep.subr.bf16.mxu0 0
    %1479 = vmatpush1.bf16.xpose.msra.mxu0 0
    %1480 = vmatprep.subr.bf16.mxu0 0
    %1481 = vmatpush1.bf16.xpose.msra.mxu0 0
    %1482 = vmatprep.subr.bf16.mxu0 0
    %1483 = vmatpush1.bf16.xpose.msra.mxu0 0
    %1484 = vmatprep.subr.bf16.mxu0 0
    %1485 = vmatpush1.bf16.xpose.msra.mxu0 0
    %1486 = vmatprep.subr.bf16.mxu0 0
    %1487 = vmatpush1.bf16.xpose.msra.mxu0 0
    %1488 = vmatprep.subr.bf16.mxu0 0
    %1489 = vmatpush1.bf16.xpose.msra.mxu0 0
    %1490 = vmatprep.subr.bf16.mxu0 0
    %1491 = vmatpush1.bf16.xpose.msra.mxu0 0
    %1492 = vmatprep.subr.bf16.mxu0 0
    %1493 = vmatpush1.bf16.xpose.msra.mxu0 0
    %1494 = vmatprep.subr.bf16.mxu0 0
    %1495 = vmatpush1.bf16.xpose.msra.mxu0 0
    %1496 = vmatprep.subr.bf16.mxu0 0
    %1497 = vmatpush1.bf16.xpose.msra.mxu0 0
    %1498 = vmatprep.subr.bf16.mxu0 0
    %1499 = vmatpush1.bf16.xpose.msra.mxu0 0
    %1500 = vmatprep.subr.bf16.mxu0 0
    %1501 = vmatpush1.bf16.xpose.msra.mxu0 0
    %1502 = vmatprep.subr.bf16.mxu0 0
    %1503 = vmatpush1.bf16.xpose.msra.mxu0 0
    %1504 = vmatprep.mubr.bf16.mxu0 0
    %1505 = vmatmul.mubr.bf16.gmra.mrb[0].mxu0 %v1467
    %v1506 = vpop.f32.mrb[0].mxu0
    %v1507 = vadd.f32 0.0, %v1506
    %v1508 = vpop.f32.mrb[0].mxu0
    %v1509 = vpop.f32.mrb[0].mxu0
    %v1510 = vpop.f32.mrb[0].mxu0
    %1511 = vdwg.mxu0
    %1512 = vrot.lane.b32.xlu0 %v510, 120
    %v1513 = vpop.permute.xlu0 %1512
    %1514 = vrot.lane.b32.xlu0 %v500, 120
    %v1515 = vpop.permute.xlu0 %1514
    %v1517 = vsel %vm511, %v1513, 0
    %v1520 = vsel %vm511, %v1515, 0
    %1522 = vmatprep.subr.bf16.mxu0 0
    %1523 = vmatpush1.bf16.xpose.msra.mxu0 %v1520
    %1524 = vmatprep.subr.bf16.mxu0 0
    %1525 = vmatpush1.bf16.xpose.msra.mxu0 0
    %1526 = vmatprep.subr.bf16.mxu0 0
    %1527 = vmatpush1.bf16.xpose.msra.mxu0 0
    %1528 = vmatprep.subr.bf16.mxu0 0
    %1529 = vmatpush1.bf16.xpose.msra.mxu0 0
    %1530 = vmatprep.subr.bf16.mxu0 0
    %1531 = vmatpush1.bf16.xpose.msra.mxu0 0
    %1532 = vmatprep.subr.bf16.mxu0 0
    %1533 = vmatpush1.bf16.xpose.msra.mxu0 0
    %1534 = vmatprep.subr.bf16.mxu0 0
    %1535 = vmatpush1.bf16.xpose.msra.mxu0 0
    %1536 = vmatprep.subr.bf16.mxu0 0
    %1537 = vmatpush1.bf16.xpose.msra.mxu0 0
    %1538 = vmatprep.subr.bf16.mxu0 0
    %1539 = vmatpush1.bf16.xpose.msra.mxu0 0
    %1540 = vmatprep.subr.bf16.mxu0 0
    %1541 = vmatpush1.bf16.xpose.msra.mxu0 0
    %1542 = vmatprep.subr.bf16.mxu0 0
    %1543 = vmatpush1.bf16.xpose.msra.mxu0 0
    %1544 = vmatprep.subr.bf16.mxu0 0
    %1545 = vmatpush1.bf16.xpose.msra.mxu0 0
    %1546 = vmatprep.subr.bf16.mxu0 0
    %1547 = vmatpush1.bf16.xpose.msra.mxu0 0
    %1548 = vmatprep.subr.bf16.mxu0 0
    %1549 = vmatpush1.bf16.xpose.msra.mxu0 0
    %1550 = vmatprep.subr.bf16.mxu0 0
    %1551 = vmatpush1.bf16.xpose.msra.mxu0 0
    %1552 = vmatprep.subr.bf16.mxu0 0
    %1553 = vmatpush1.bf16.xpose.msra.mxu0 0
    %1554 = vmatprep.mubr.bf16.mxu0 0
    %1555 = vmatmul.mubr.bf16.gmra.mrb[0].mxu0 %v1517
    %v1556 = vpop.f32.mrb[0].mxu0
    %v1557 = vadd.f32 0.0, %v1556
    %v1558 = vpop.f32.mrb[0].mxu0
    %v1559 = vpop.f32.mrb[0].mxu0
    %v1560 = vpop.f32.mrb[0].mxu0
    %1561 = vdwg.mxu0
    %1562 = vrot.lane.b32.xlu0 %v507, 88
    %v1563 = vpop.permute.xlu0 %1562
    %v1565 = vsel %vm511, %v1563, 0
    %1567 = vmatprep.subr.bf16.mxu0 0
    %1568 = vmatpush1.bf16.xpose.msra.mxu0 %v1565
    %1569 = vmatprep.subr.bf16.mxu0 0
    %1570 = vmatpush1.bf16.xpose.msra.mxu0 0
    %1571 = vmatprep.subr.bf16.mxu0 0
    %1572 = vmatpush1.bf16.xpose.msra.mxu0 0
    %1573 = vmatprep.subr.bf16.mxu0 0
    %1574 = vmatpush1.bf16.xpose.msra.mxu0 0
    %1575 = vmatprep.subr.bf16.mxu0 0
    %1576 = vmatpush1.bf16.xpose.msra.mxu0 0
    %1577 = vmatprep.subr.bf16.mxu0 0
    %1578 = vmatpush1.bf16.xpose.msra.mxu0 0
    %1579 = vmatprep.subr.bf16.mxu0 0
    %1580 = vmatpush1.bf16.xpose.msra.mxu0 0
    %1581 = vmatprep.subr.bf16.mxu0 0
    %1582 = vmatpush1.bf16.xpose.msra.mxu0 0
    %1583 = vmatprep.subr.bf16.mxu0 0
    %1584 = vmatpush1.bf16.xpose.msra.mxu0 0
    %1585 = vmatprep.subr.bf16.mxu0 0
    %1586 = vmatpush1.bf16.xpose.msra.mxu0 0
    %1587 = vmatprep.subr.bf16.mxu0 0
    %1588 = vmatpush1.bf16.xpose.msra.mxu0 0
    %1589 = vmatprep.subr.bf16.mxu0 0
    %1590 = vmatpush1.bf16.xpose.msra.mxu0 0
    %1591 = vmatprep.subr.bf16.mxu0 0
    %1592 = vmatpush1.bf16.xpose.msra.mxu0 0
    %1593 = vmatprep.subr.bf16.mxu0 0
    %1594 = vmatpush1.bf16.xpose.msra.mxu0 0
    %1595 = vmatprep.subr.bf16.mxu0 0
    %1596 = vmatpush1.bf16.xpose.msra.mxu0 0
    %1597 = vmatprep.subr.bf16.mxu0 0
    %1598 = vmatpush1.bf16.xpose.msra.mxu0 0
    %1599 = vmatprep.mubr.bf16.mxu0 0
    %1600 = vmatmul.mubr.bf16.gmra.mrb[0].mxu0 %v1367
    %v1601 = vpop.f32.mrb[0].mxu0
    %v1602 = vadd.f32 0.0, %v1601
    %v1603 = vpop.f32.mrb[0].mxu0
    %v1604 = vpop.f32.mrb[0].mxu0
    %v1605 = vpop.f32.mrb[0].mxu0
    %1606 = vdwg.mxu0
    %1607 = vrot.lane.b32.xlu0 %v508, 88
    %v1608 = vpop.permute.xlu0 %1607
    %v1610 = vsel %vm511, %v1608, 0
    %1612 = vmatprep.subr.bf16.mxu0 0
    %1613 = vmatpush1.bf16.xpose.msra.mxu0 %v1610
    %1614 = vmatprep.subr.bf16.mxu0 0
    %1615 = vmatpush1.bf16.xpose.msra.mxu0 0
    %1616 = vmatprep.subr.bf16.mxu0 0
    %1617 = vmatpush1.bf16.xpose.msra.mxu0 0
    %1618 = vmatprep.subr.bf16.mxu0 0
    %1619 = vmatpush1.bf16.xpose.msra.mxu0 0
    %1620 = vmatprep.subr.bf16.mxu0 0
    %1621 = vmatpush1.bf16.xpose.msra.mxu0 0
    %1622 = vmatprep.subr.bf16.mxu0 0
    %1623 = vmatpush1.bf16.xpose.msra.mxu0 0
    %1624 = vmatprep.subr.bf16.mxu0 0
    %1625 = vmatpush1.bf16.xpose.msra.mxu0 0
    %1626 = vmatprep.subr.bf16.mxu0 0
    %1627 = vmatpush1.bf16.xpose.msra.mxu0 0
    %1628 = vmatprep.subr.bf16.mxu0 0
    %1629 = vmatpush1.bf16.xpose.msra.mxu0 0
    %1630 = vmatprep.subr.bf16.mxu0 0
    %1631 = vmatpush1.bf16.xpose.msra.mxu0 0
    %1632 = vmatprep.subr.bf16.mxu0 0
    %1633 = vmatpush1.bf16.xpose.msra.mxu0 0
    %1634 = vmatprep.subr.bf16.mxu0 0
    %1635 = vmatpush1.bf16.xpose.msra.mxu0 0
    %1636 = vmatprep.subr.bf16.mxu0 0
    %1637 = vmatpush1.bf16.xpose.msra.mxu0 0
    %1638 = vmatprep.subr.bf16.mxu0 0
    %1639 = vmatpush1.bf16.xpose.msra.mxu0 0
    %1640 = vmatprep.subr.bf16.mxu0 0
    %1641 = vmatpush1.bf16.xpose.msra.mxu0 0
    %1642 = vmatprep.subr.bf16.mxu0 0
    %1643 = vmatpush1.bf16.xpose.msra.mxu0 0
    %1644 = vmatprep.mubr.bf16.mxu0 0
    %1645 = vmatmul.mubr.bf16.gmra.mrb[0].mxu0 %v1417
    %v1646 = vpop.f32.mrb[0].mxu0
    %v1647 = vadd.f32 0.0, %v1646
    %v1648 = vpop.f32.mrb[0].mxu0
    %v1649 = vpop.f32.mrb[0].mxu0
    %v1650 = vpop.f32.mrb[0].mxu0
    %1651 = vdwg.mxu0
    %1652 = vrot.lane.b32.xlu0 %v509, 88
    %v1653 = vpop.permute.xlu0 %1652
    %v1655 = vsel %vm511, %v1653, 0
    %1657 = vmatprep.subr.bf16.mxu0 0
    %1658 = vmatpush1.bf16.xpose.msra.mxu0 %v1655
    %1659 = vmatprep.subr.bf16.mxu0 0
    %1660 = vmatpush1.bf16.xpose.msra.mxu0 0
    %1661 = vmatprep.subr.bf16.mxu0 0
    %1662 = vmatpush1.bf16.xpose.msra.mxu0 0
    %1663 = vmatprep.subr.bf16.mxu0 0
    %1664 = vmatpush1.bf16.xpose.msra.mxu0 0
    %1665 = vmatprep.subr.bf16.mxu0 0
    %1666 = vmatpush1.bf16.xpose.msra.mxu0 0
    %1667 = vmatprep.subr.bf16.mxu0 0
    %1668 = vmatpush1.bf16.xpose.msra.mxu0 0
    %1669 = vmatprep.subr.bf16.mxu0 0
    %1670 = vmatpush1.bf16.xpose.msra.mxu0 0
    %1671 = vmatprep.subr.bf16.mxu0 0
    %1672 = vmatpush1.bf16.xpose.msra.mxu0 0
    %1673 = vmatprep.subr.bf16.mxu0 0
    %1674 = vmatpush1.bf16.xpose.msra.mxu0 0
    %1675 = vmatprep.subr.bf16.mxu0 0
    %1676 = vmatpush1.bf16.xpose.msra.mxu0 0
    %1677 = vmatprep.subr.bf16.mxu0 0
    %1678 = vmatpush1.bf16.xpose.msra.mxu0 0
    %1679 = vmatprep.subr.bf16.mxu0 0
    %1680 = vmatpush1.bf16.xpose.msra.mxu0 0
    %1681 = vmatprep.subr.bf16.mxu0 0
    %1682 = vmatpush1.bf16.xpose.msra.mxu0 0
    %1683 = vmatprep.subr.bf16.mxu0 0
    %1684 = vmatpush1.bf16.xpose.msra.mxu0 0
    %1685 = vmatprep.subr.bf16.mxu0 0
    %1686 = vmatpush1.bf16.xpose.msra.mxu0 0
    %1687 = vmatprep.subr.bf16.mxu0 0
    %1688 = vmatpush1.bf16.xpose.msra.mxu0 0
    %1689 = vmatprep.mubr.bf16.mxu0 0
    %1690 = vmatmul.mubr.bf16.gmra.mrb[0].mxu0 %v1467
    %v1691 = vpop.f32.mrb[0].mxu0
    %v1692 = vadd.f32 0.0, %v1691
    %v1693 = vpop.f32.mrb[0].mxu0
    %v1694 = vpop.f32.mrb[0].mxu0
    %v1695 = vpop.f32.mrb[0].mxu0
    %1696 = vdwg.mxu0
    %1697 = vrot.lane.b32.xlu0 %v510, 88
    %v1698 = vpop.permute.xlu0 %1697
    %v1700 = vsel %vm511, %v1698, 0
    %1702 = vmatprep.subr.bf16.mxu0 0
    %1703 = vmatpush1.bf16.xpose.msra.mxu0 %v1700
    %1704 = vmatprep.subr.bf16.mxu0 0
    %1705 = vmatpush1.bf16.xpose.msra.mxu0 0
    %1706 = vmatprep.subr.bf16.mxu0 0
    %1707 = vmatpush1.bf16.xpose.msra.mxu0 0
    %1708 = vmatprep.subr.bf16.mxu0 0
    %1709 = vmatpush1.bf16.xpose.msra.mxu0 0
    %1710 = vmatprep.subr.bf16.mxu0 0
    %1711 = vmatpush1.bf16.xpose.msra.mxu0 0
    %1712 = vmatprep.subr.bf16.mxu0 0
    %1713 = vmatpush1.bf16.xpose.msra.mxu0 0
    %1714 = vmatprep.subr.bf16.mxu0 0
    %1715 = vmatpush1.bf16.xpose.msra.mxu0 0
    %1716 = vmatprep.subr.bf16.mxu0 0
    %1717 = vmatpush1.bf16.xpose.msra.mxu0 0
    %1718 = vmatprep.subr.bf16.mxu0 0
    %1719 = vmatpush1.bf16.xpose.msra.mxu0 0
    %1720 = vmatprep.subr.bf16.mxu0 0
    %1721 = vmatpush1.bf16.xpose.msra.mxu0 0
    %1722 = vmatprep.subr.bf16.mxu0 0
    %1723 = vmatpush1.bf16.xpose.msra.mxu0 0
    %1724 = vmatprep.subr.bf16.mxu0 0
    %1725 = vmatpush1.bf16.xpose.msra.mxu0 0
    %1726 = vmatprep.subr.bf16.mxu0 0
    %1727 = vmatpush1.bf16.xpose.msra.mxu0 0
    %1728 = vmatprep.subr.bf16.mxu0 0
    %1729 = vmatpush1.bf16.xpose.msra.mxu0 0
    %1730 = vmatprep.subr.bf16.mxu0 0
    %1731 = vmatpush1.bf16.xpose.msra.mxu0 0
    %1732 = vmatprep.subr.bf16.mxu0 0
    %1733 = vmatpush1.bf16.xpose.msra.mxu0 0
    %1734 = vmatprep.mubr.bf16.mxu0 0
    %1735 = vmatmul.mubr.bf16.gmra.mrb[0].mxu0 %v1517
    %v1736 = vpop.f32.mrb[0].mxu0
    %v1737 = vadd.f32 0.0, %v1736
    %v1738 = vpop.f32.mrb[0].mxu0
    %v1739 = vpop.f32.mrb[0].mxu0
    %v1740 = vpop.f32.mrb[0].mxu0
    %1741 = vdwg.mxu0
    %v1742 = vsel %vm876, %v1407, -inf
    %1743 = vmax.xlane.f32.xlu0 %v1742
    %v1744 = vpop.xlane.xlu0 %1743
    %v1745 = vsel %vm876, %v1457, -inf
    %1746 = vmax.xlane.f32.xlu0 %v1745
    %v1747 = vpop.xlane.xlu0 %1746
    %v1748 = vsel %vm876, %v1507, -inf
    %1749 = vmax.xlane.f32.xlu0 %v1748
    %v1750 = vpop.xlane.xlu0 %1749
    %v1751 = vsel %vm876, %v1557, -inf
    %1752 = vmax.xlane.f32.xlu0 %v1751
    %v1753 = vpop.xlane.xlu0 %1752
    %v1754 = vsel %vm511, %v1602, -inf
    %1755 = vmax.xlane.f32.xlu0 %v1754
    %v1756 = vpop.xlane.xlu0 %1755
    %v1757 = vsel %vm511, %v1647, -inf
    %1758 = vmax.xlane.f32.xlu0 %v1757
    %v1759 = vpop.xlane.xlu0 %1758
    %v1760 = vsel %vm511, %v1692, -inf
    %1761 = vmax.xlane.f32.xlu0 %v1760
    %v1762 = vpop.xlane.xlu0 %1761
    %v1763 = vsel %vm511, %v1737, -inf
    %1764 = vmax.xlane.f32.xlu0 %v1763
    %v1765 = vpop.xlane.xlu0 %1764
    %v1766 = vmax.f32 %v1744, %v1756
    %v1767 = vmax.f32 %v1747, %v1759
    %v1768 = vmax.f32 %v1750, %v1762
    %v1769 = vmax.f32 %v1753, %v1765
    %v1770 = vsub.f32 %v1407, %v1766
    %v1771 = vsub.f32 %v1457, %v1767
    %v1772 = vsub.f32 %v1507, %v1768
    %v1773 = vsub.f32 %v1557, %v1769
    %v1774 = vmul.f32 %v1770, 1.442695
    %v1775 = vpow.pop %v1774
    %v1776 = vmul.f32 %v1771, 1.442695
    %v1777 = vpow.pop %v1776
    %v1778 = vmul.f32 %v1772, 1.442695
    %v1779 = vpow.pop %v1778
    %v1780 = vmul.f32 %v1773, 1.442695
    %v1781 = vpow.pop %v1780
    %v1782 = vsub.f32 %v1602, %v1766
    %v1783 = vsub.f32 %v1647, %v1767
    %v1784 = vsub.f32 %v1692, %v1768
    %v1785 = vsub.f32 %v1737, %v1769
    %v1786 = vmul.f32 %v1782, 1.442695
    %v1787 = vpow.pop %v1786
    %v1788 = vmul.f32 %v1783, 1.442695
    %v1789 = vpow.pop %v1788
    %v1790 = vmul.f32 %v1784, 1.442695
    %v1791 = vpow.pop %v1790
    %v1792 = vmul.f32 %v1785, 1.442695
    %v1793 = vpow.pop %v1792
    %v1794 = vsel %vm876, %v1775, 0.0
    %1795 = vadd.xlane.f32.xlu0 %v1794
    %v1796 = vpop.xlane.xlu0 %1795
    %v1797 = vsel %vm876, %v1777, 0.0
    %1798 = vadd.xlane.f32.xlu0 %v1797
    %v1799 = vpop.xlane.xlu0 %1798
    %v1800 = vsel %vm876, %v1779, 0.0
    %1801 = vadd.xlane.f32.xlu0 %v1800
    %v1802 = vpop.xlane.xlu0 %1801
    %v1803 = vsel %vm876, %v1781, 0.0
    %1804 = vadd.xlane.f32.xlu0 %v1803
    %v1805 = vpop.xlane.xlu0 %1804
    %v1806 = vsel %vm511, %v1787, 0.0
    %1807 = vadd.xlane.f32.xlu0 %v1806
    %v1808 = vpop.xlane.xlu0 %1807
    %v1809 = vsel %vm511, %v1789, 0.0
    %1810 = vadd.xlane.f32.xlu0 %v1809
    %v1811 = vpop.xlane.xlu0 %1810
    %v1812 = vsel %vm511, %v1791, 0.0
    %1813 = vadd.xlane.f32.xlu0 %v1812
    %v1814 = vpop.xlane.xlu0 %1813
    %v1815 = vsel %vm511, %v1793, 0.0
    %1816 = vadd.xlane.f32.xlu0 %v1815
    %v1817 = vpop.xlane.xlu0 %1816
    %v1818 = vadd.f32 %v1796, %v1808
    %v1819 = vadd.f32 %v1799, %v1811
    %v1820 = vadd.f32 %v1802, %v1814
    %v1821 = vadd.f32 %v1805, %v1817
    %v1822 = vrcp.pop %v1818
    %v1823 = vrcp.pop %v1819
    %v1824 = vrcp.pop %v1820
    %v1825 = vrcp.pop %v1821
    %v1826 = vmul.f32 %v1775, %v1822
    %v1827 = vmul.f32 %v1777, %v1823
    %v1828 = vmul.f32 %v1779, %v1824
    %v1829 = vmul.f32 %v1781, %v1825
    %v1830 = vpack.c.bf16 %v1826, %v1826
    %v1831 = vpack.c.bf16 %v1827, %v1827
    %v1832 = vpack.c.bf16 %v1828, %v1828
    %v1833 = vpack.c.bf16 %v1829, %v1829
    %v1834 = vmul.f32 %v1787, %v1822
    %v1835 = vmul.f32 %v1789, %v1823
    %v1836 = vmul.f32 %v1791, %v1824
    %v1837 = vmul.f32 %v1793, %v1825
    %v1838 = vpack.c.bf16 %v1834, %v1834
    %v1839 = vpack.c.bf16 %v1835, %v1835
    %v1840 = vpack.c.bf16 %v1836, %v1836
    %v1841 = vpack.c.bf16 %v1837, %v1837
    %1842 = vrot.lane.b32.xlu0 %v507, 56
    %v1843 = vpop.permute.xlu0 %1842
    %v1845 = vsel %vm511, %v1838, 0
    %v1848 = vsel %vm982, %v1843, 0
    %1850 = vmatprep.subr.bf16.mxu0 0
    %1851 = vmatpush1.bf16.msra.mxu0 %v1848
    %1852 = vmatprep.subr.bf16.mxu0 0
    %1853 = vmatpush1.bf16.msra.mxu0 0
    %1854 = vmatprep.subr.bf16.mxu0 0
    %1855 = vmatpush1.bf16.msra.mxu0 0
    %1856 = vmatprep.subr.bf16.mxu0 0
    %1857 = vmatpush1.bf16.msra.mxu0 0
    %1858 = vmatprep.subr.bf16.mxu0 0
    %1859 = vmatpush1.bf16.msra.mxu0 0
    %1860 = vmatprep.subr.bf16.mxu0 0
    %1861 = vmatpush1.bf16.msra.mxu0 0
    %1862 = vmatprep.subr.bf16.mxu0 0
    %1863 = vmatpush1.bf16.msra.mxu0 0
    %1864 = vmatprep.subr.bf16.mxu0 0
    %1865 = vmatpush1.bf16.msra.mxu0 0
    %1866 = vmatprep.subr.bf16.mxu0 0
    %1867 = vmatpush1.bf16.msra.mxu0 0
    %1868 = vmatprep.subr.bf16.mxu0 0
    %1869 = vmatpush1.bf16.msra.mxu0 0
    %1870 = vmatprep.subr.bf16.mxu0 0
    %1871 = vmatpush1.bf16.msra.mxu0 0
    %1872 = vmatprep.subr.bf16.mxu0 0
    %1873 = vmatpush1.bf16.msra.mxu0 0
    %1874 = vmatprep.subr.bf16.mxu0 0
    %1875 = vmatpush1.bf16.msra.mxu0 0
    %1876 = vmatprep.subr.bf16.mxu0 0
    %1877 = vmatpush1.bf16.msra.mxu0 0
    %1878 = vmatprep.subr.bf16.mxu0 0
    %1879 = vmatpush1.bf16.msra.mxu0 0
    %1880 = vmatprep.subr.bf16.mxu0 0
    %1881 = vmatpush1.bf16.msra.mxu0 0
    %1882 = vmatprep.mubr.bf16.mxu0 0
    %1883 = vmatmul.mubr.bf16.gmra.mrb[0].mxu0 %v1845
    %v1884 = vpop.f32.mrb[0].mxu0
    %v1885 = vadd.f32 0.0, %v1884
    %v1886 = vpop.f32.mrb[0].mxu0
    %v1887 = vpop.f32.mrb[0].mxu0
    %v1888 = vpop.f32.mrb[0].mxu0
    %1889 = vdwg.mxu0
    %1890 = vrot.lane.b32.xlu0 %v508, 56
    %v1891 = vpop.permute.xlu0 %1890
    %v1893 = vsel %vm511, %v1839, 0
    %v1896 = vsel %vm982, %v1891, 0
    %1898 = vmatprep.subr.bf16.mxu0 0
    %1899 = vmatpush1.bf16.msra.mxu0 %v1896
    %1900 = vmatprep.subr.bf16.mxu0 0
    %1901 = vmatpush1.bf16.msra.mxu0 0
    %1902 = vmatprep.subr.bf16.mxu0 0
    %1903 = vmatpush1.bf16.msra.mxu0 0
    %1904 = vmatprep.subr.bf16.mxu0 0
    %1905 = vmatpush1.bf16.msra.mxu0 0
    %1906 = vmatprep.subr.bf16.mxu0 0
    %1907 = vmatpush1.bf16.msra.mxu0 0
    %1908 = vmatprep.subr.bf16.mxu0 0
    %1909 = vmatpush1.bf16.msra.mxu0 0
    %1910 = vmatprep.subr.bf16.mxu0 0
    %1911 = vmatpush1.bf16.msra.mxu0 0
    %1912 = vmatprep.subr.bf16.mxu0 0
    %1913 = vmatpush1.bf16.msra.mxu0 0
    %1914 = vmatprep.subr.bf16.mxu0 0
    %1915 = vmatpush1.bf16.msra.mxu0 0
    %1916 = vmatprep.subr.bf16.mxu0 0
    %1917 = vmatpush1.bf16.msra.mxu0 0
    %1918 = vmatprep.subr.bf16.mxu0 0
    %1919 = vmatpush1.bf16.msra.mxu0 0
    %1920 = vmatprep.subr.bf16.mxu0 0
    %1921 = vmatpush1.bf16.msra.mxu0 0
    %1922 = vmatprep.subr.bf16.mxu0 0
    %1923 = vmatpush1.bf16.msra.mxu0 0
    %1924 = vmatprep.subr.bf16.mxu0 0
    %1925 = vmatpush1.bf16.msra.mxu0 0
    %1926 = vmatprep.subr.bf16.mxu0 0
    %1927 = vmatpush1.bf16.msra.mxu0 0
    %1928 = vmatprep.subr.bf16.mxu0 0
    %1929 = vmatpush1.bf16.msra.mxu0 0
    %1930 = vmatprep.mubr.bf16.mxu0 0
    %1931 = vmatmul.mubr.bf16.gmra.mrb[0].mxu0 %v1893
    %v1932 = vpop.f32.mrb[0].mxu0
    %v1933 = vadd.f32 0.0, %v1932
    %v1934 = vpop.f32.mrb[0].mxu0
    %v1935 = vpop.f32.mrb[0].mxu0
    %v1936 = vpop.f32.mrb[0].mxu0
    %1937 = vdwg.mxu0
    %1938 = vrot.lane.b32.xlu0 %v509, 56
    %v1939 = vpop.permute.xlu0 %1938
    %v1941 = vsel %vm511, %v1840, 0
    %v1944 = vsel %vm982, %v1939, 0
    %1946 = vmatprep.subr.bf16.mxu0 0
    %1947 = vmatpush1.bf16.msra.mxu0 %v1944
    %1948 = vmatprep.subr.bf16.mxu0 0
    %1949 = vmatpush1.bf16.msra.mxu0 0
    %1950 = vmatprep.subr.bf16.mxu0 0
    %1951 = vmatpush1.bf16.msra.mxu0 0
    %1952 = vmatprep.subr.bf16.mxu0 0
    %1953 = vmatpush1.bf16.msra.mxu0 0
    %1954 = vmatprep.subr.bf16.mxu0 0
    %1955 = vmatpush1.bf16.msra.mxu0 0
    %1956 = vmatprep.subr.bf16.mxu0 0
    %1957 = vmatpush1.bf16.msra.mxu0 0
    %1958 = vmatprep.subr.bf16.mxu0 0
    %1959 = vmatpush1.bf16.msra.mxu0 0
    %1960 = vmatprep.subr.bf16.mxu0 0
    %1961 = vmatpush1.bf16.msra.mxu0 0
    %1962 = vmatprep.subr.bf16.mxu0 0
    %1963 = vmatpush1.bf16.msra.mxu0 0
    %1964 = vmatprep.subr.bf16.mxu0 0
    %1965 = vmatpush1.bf16.msra.mxu0 0
    %1966 = vmatprep.subr.bf16.mxu0 0
    %1967 = vmatpush1.bf16.msra.mxu0 0
    %1968 = vmatprep.subr.bf16.mxu0 0
    %1969 = vmatpush1.bf16.msra.mxu0 0
    %1970 = vmatprep.subr.bf16.mxu0 0
    %1971 = vmatpush1.bf16.msra.mxu0 0
    %1972 = vmatprep.subr.bf16.mxu0 0
    %1973 = vmatpush1.bf16.msra.mxu0 0
    %1974 = vmatprep.subr.bf16.mxu0 0
    %1975 = vmatpush1.bf16.msra.mxu0 0
    %1976 = vmatprep.subr.bf16.mxu0 0
    %1977 = vmatpush1.bf16.msra.mxu0 0
    %1978 = vmatprep.mubr.bf16.mxu0 0
    %1979 = vmatmul.mubr.bf16.gmra.mrb[0].mxu0 %v1941
    %v1980 = vpop.f32.mrb[0].mxu0
    %v1981 = vadd.f32 0.0, %v1980
    %v1982 = vpop.f32.mrb[0].mxu0
    %v1983 = vpop.f32.mrb[0].mxu0
    %v1984 = vpop.f32.mrb[0].mxu0
    %1985 = vdwg.mxu0
    %1986 = vrot.lane.b32.xlu0 %v510, 56
    %v1987 = vpop.permute.xlu0 %1986
    %v1989 = vsel %vm511, %v1841, 0
    %v1992 = vsel %vm982, %v1987, 0
    %1994 = vmatprep.subr.bf16.mxu0 0
    %1995 = vmatpush1.bf16.msra.mxu0 %v1992
    %1996 = vmatprep.subr.bf16.mxu0 0
    %1997 = vmatpush1.bf16.msra.mxu0 0
    %1998 = vmatprep.subr.bf16.mxu0 0
    %1999 = vmatpush1.bf16.msra.mxu0 0
    %2000 = vmatprep.subr.bf16.mxu0 0
    %2001 = vmatpush1.bf16.msra.mxu0 0
    %2002 = vmatprep.subr.bf16.mxu0 0
    %2003 = vmatpush1.bf16.msra.mxu0 0
    %2004 = vmatprep.subr.bf16.mxu0 0
    %2005 = vmatpush1.bf16.msra.mxu0 0
    %2006 = vmatprep.subr.bf16.mxu0 0
    %2007 = vmatpush1.bf16.msra.mxu0 0
    %2008 = vmatprep.subr.bf16.mxu0 0
    %2009 = vmatpush1.bf16.msra.mxu0 0
    %2010 = vmatprep.subr.bf16.mxu0 0
    %2011 = vmatpush1.bf16.msra.mxu0 0
    %2012 = vmatprep.subr.bf16.mxu0 0
    %2013 = vmatpush1.bf16.msra.mxu0 0
    %2014 = vmatprep.subr.bf16.mxu0 0
    %2015 = vmatpush1.bf16.msra.mxu0 0
    %2016 = vmatprep.subr.bf16.mxu0 0
    %2017 = vmatpush1.bf16.msra.mxu0 0
    %2018 = vmatprep.subr.bf16.mxu0 0
    %2019 = vmatpush1.bf16.msra.mxu0 0
    %2020 = vmatprep.subr.bf16.mxu0 0
    %2021 = vmatpush1.bf16.msra.mxu0 0
    %2022 = vmatprep.subr.bf16.mxu0 0
    %2023 = vmatpush1.bf16.msra.mxu0 0
    %2024 = vmatprep.subr.bf16.mxu0 0
    %2025 = vmatpush1.bf16.msra.mxu0 0
    %2026 = vmatprep.mubr.bf16.mxu0 0
    %2027 = vmatmul.mubr.bf16.gmra.mrb[0].mxu0 %v1989
    %v2028 = vpop.f32.mrb[0].mxu0
    %v2029 = vadd.f32 0.0, %v2028
    %v2030 = vpop.f32.mrb[0].mxu0
    %v2031 = vpop.f32.mrb[0].mxu0
    %v2032 = vpop.f32.mrb[0].mxu0
    %2033 = vdwg.mxu0
    %2034 = vrot.lane.b32.xlu0 %v497, 88
    %v2035 = vpop.permute.xlu0 %2034
    %v2038 = vsel %vm876, %v1830, 0
    %2040 = vmatprep.subr.bf16.mxu0 0
    %2041 = vmatpush1.bf16.msra.mxu0 %v2035
    %2042 = vmatprep.subr.bf16.mxu0 0
    %2043 = vmatpush1.bf16.msra.mxu0 0
    %2044 = vmatprep.subr.bf16.mxu0 0
    %2045 = vmatpush1.bf16.msra.mxu0 0
    %2046 = vmatprep.subr.bf16.mxu0 0
    %2047 = vmatpush1.bf16.msra.mxu0 0
    %2048 = vmatprep.subr.bf16.mxu0 0
    %2049 = vmatpush1.bf16.msra.mxu0 0
    %2050 = vmatprep.subr.bf16.mxu0 0
    %2051 = vmatpush1.bf16.msra.mxu0 0
    %2052 = vmatprep.subr.bf16.mxu0 0
    %2053 = vmatpush1.bf16.msra.mxu0 0
    %2054 = vmatprep.subr.bf16.mxu0 0
    %2055 = vmatpush1.bf16.msra.mxu0 0
    %2056 = vmatprep.subr.bf16.mxu0 0
    %2057 = vmatpush1.bf16.msra.mxu0 0
    %2058 = vmatprep.subr.bf16.mxu0 0
    %2059 = vmatpush1.bf16.msra.mxu0 0
    %2060 = vmatprep.subr.bf16.mxu0 0
    %2061 = vmatpush1.bf16.msra.mxu0 0
    %2062 = vmatprep.subr.bf16.mxu0 0
    %2063 = vmatpush1.bf16.msra.mxu0 0
    %2064 = vmatprep.subr.bf16.mxu0 0
    %2065 = vmatpush1.bf16.msra.mxu0 0
    %2066 = vmatprep.subr.bf16.mxu0 0
    %2067 = vmatpush1.bf16.msra.mxu0 0
    %2068 = vmatprep.subr.bf16.mxu0 0
    %2069 = vmatpush1.bf16.msra.mxu0 0
    %2070 = vmatprep.subr.bf16.mxu0 0
    %2071 = vmatpush1.bf16.msra.mxu0 0
    %2072 = vmatprep.mubr.bf16.mxu0 0
    %2073 = vmatmul.mubr.bf16.gmra.mrb[0].mxu0 %v2038
    %v2074 = vpop.f32.mrb[0].mxu0
    %v2075 = vadd.f32 %v1885, %v2074
    %v2076 = vpop.f32.mrb[0].mxu0
    %v2077 = vpop.f32.mrb[0].mxu0
    %v2078 = vpop.f32.mrb[0].mxu0
    %2079 = vdwg.mxu0
    %2080 = vrot.lane.b32.xlu0 %v498, 88
    %v2081 = vpop.permute.xlu0 %2080
    %v2084 = vsel %vm876, %v1831, 0
    %2086 = vmatprep.subr.bf16.mxu0 0
    %2087 = vmatpush1.bf16.msra.mxu0 %v2081
    %2088 = vmatprep.subr.bf16.mxu0 0
    %2089 = vmatpush1.bf16.msra.mxu0 0
    %2090 = vmatprep.subr.bf16.mxu0 0
    %2091 = vmatpush1.bf16.msra.mxu0 0
    %2092 = vmatprep.subr.bf16.mxu0 0
    %2093 = vmatpush1.bf16.msra.mxu0 0
    %2094 = vmatprep.subr.bf16.mxu0 0
    %2095 = vmatpush1.bf16.msra.mxu0 0
    %2096 = vmatprep.subr.bf16.mxu0 0
    %2097 = vmatpush1.bf16.msra.mxu0 0
    %2098 = vmatprep.subr.bf16.mxu0 0
    %2099 = vmatpush1.bf16.msra.mxu0 0
    %2100 = vmatprep.subr.bf16.mxu0 0
    %2101 = vmatpush1.bf16.msra.mxu0 0
    %2102 = vmatprep.subr.bf16.mxu0 0
    %2103 = vmatpush1.bf16.msra.mxu0 0
    %2104 = vmatprep.subr.bf16.mxu0 0
    %2105 = vmatpush1.bf16.msra.mxu0 0
    %2106 = vmatprep.subr.bf16.mxu0 0
    %2107 = vmatpush1.bf16.msra.mxu0 0
    %2108 = vmatprep.subr.bf16.mxu0 0
    %2109 = vmatpush1.bf16.msra.mxu0 0
    %2110 = vmatprep.subr.bf16.mxu0 0
    %2111 = vmatpush1.bf16.msra.mxu0 0
    %2112 = vmatprep.subr.bf16.mxu0 0
    %2113 = vmatpush1.bf16.msra.mxu0 0
    %2114 = vmatprep.subr.bf16.mxu0 0
    %2115 = vmatpush1.bf16.msra.mxu0 0
    %2116 = vmatprep.subr.bf16.mxu0 0
    %2117 = vmatpush1.bf16.msra.mxu0 0
    %2118 = vmatprep.mubr.bf16.mxu0 0
    %2119 = vmatmul.mubr.bf16.gmra.mrb[0].mxu0 %v2084
    %v2120 = vpop.f32.mrb[0].mxu0
    %v2121 = vadd.f32 %v1933, %v2120
    %v2122 = vpop.f32.mrb[0].mxu0
    %v2123 = vpop.f32.mrb[0].mxu0
    %v2124 = vpop.f32.mrb[0].mxu0
    %2125 = vdwg.mxu0
    %2126 = vrot.lane.b32.xlu0 %v499, 88
    %v2127 = vpop.permute.xlu0 %2126
    %v2130 = vsel %vm876, %v1832, 0
    %2132 = vmatprep.subr.bf16.mxu0 0
    %2133 = vmatpush1.bf16.msra.mxu0 %v2127
    %2134 = vmatprep.subr.bf16.mxu0 0
    %2135 = vmatpush1.bf16.msra.mxu0 0
    %2136 = vmatprep.subr.bf16.mxu0 0
    %2137 = vmatpush1.bf16.msra.mxu0 0
    %2138 = vmatprep.subr.bf16.mxu0 0
    %2139 = vmatpush1.bf16.msra.mxu0 0
    %2140 = vmatprep.subr.bf16.mxu0 0
    %2141 = vmatpush1.bf16.msra.mxu0 0
    %2142 = vmatprep.subr.bf16.mxu0 0
    %2143 = vmatpush1.bf16.msra.mxu0 0
    %2144 = vmatprep.subr.bf16.mxu0 0
    %2145 = vmatpush1.bf16.msra.mxu0 0
    %2146 = vmatprep.subr.bf16.mxu0 0
    %2147 = vmatpush1.bf16.msra.mxu0 0
    %2148 = vmatprep.subr.bf16.mxu0 0
    %2149 = vmatpush1.bf16.msra.mxu0 0
    %2150 = vmatprep.subr.bf16.mxu0 0
    %2151 = vmatpush1.bf16.msra.mxu0 0
    %2152 = vmatprep.subr.bf16.mxu0 0
    %2153 = vmatpush1.bf16.msra.mxu0 0
    %2154 = vmatprep.subr.bf16.mxu0 0
    %2155 = vmatpush1.bf16.msra.mxu0 0
    %2156 = vmatprep.subr.bf16.mxu0 0
    %2157 = vmatpush1.bf16.msra.mxu0 0
    %2158 = vmatprep.subr.bf16.mxu0 0
    %2159 = vmatpush1.bf16.msra.mxu0 0
    %2160 = vmatprep.subr.bf16.mxu0 0
    %2161 = vmatpush1.bf16.msra.mxu0 0
    %2162 = vmatprep.subr.bf16.mxu0 0
    %2163 = vmatpush1.bf16.msra.mxu0 0
    %2164 = vmatprep.mubr.bf16.mxu0 0
    %2165 = vmatmul.mubr.bf16.gmra.mrb[0].mxu0 %v2130
    %v2166 = vpop.f32.mrb[0].mxu0
    %v2167 = vadd.f32 %v1981, %v2166
    %v2168 = vpop.f32.mrb[0].mxu0
    %v2169 = vpop.f32.mrb[0].mxu0
    %v2170 = vpop.f32.mrb[0].mxu0
    %2171 = vdwg.mxu0
    %2172 = vrot.lane.b32.xlu0 %v500, 88
    %v2173 = vpop.permute.xlu0 %2172
    %v2176 = vsel %vm876, %v1833, 0
    %2178 = vmatprep.subr.bf16.mxu0 0
    %2179 = vmatpush1.bf16.msra.mxu0 %v2173
    %2180 = vmatprep.subr.bf16.mxu0 0
    %2181 = vmatpush1.bf16.msra.mxu0 0
    %2182 = vmatprep.subr.bf16.mxu0 0
    %2183 = vmatpush1.bf16.msra.mxu0 0
    %2184 = vmatprep.subr.bf16.mxu0 0
    %2185 = vmatpush1.bf16.msra.mxu0 0
    %2186 = vmatprep.subr.bf16.mxu0 0
    %2187 = vmatpush1.bf16.msra.mxu0 0
    %2188 = vmatprep.subr.bf16.mxu0 0
    %2189 = vmatpush1.bf16.msra.mxu0 0
    %2190 = vmatprep.subr.bf16.mxu0 0
    %2191 = vmatpush1.bf16.msra.mxu0 0
    %2192 = vmatprep.subr.bf16.mxu0 0
    %2193 = vmatpush1.bf16.msra.mxu0 0
    %2194 = vmatprep.subr.bf16.mxu0 0
    %2195 = vmatpush1.bf16.msra.mxu0 0
    %2196 = vmatprep.subr.bf16.mxu0 0
    %2197 = vmatpush1.bf16.msra.mxu0 0
    %2198 = vmatprep.subr.bf16.mxu0 0
    %2199 = vmatpush1.bf16.msra.mxu0 0
    %2200 = vmatprep.subr.bf16.mxu0 0
    %2201 = vmatpush1.bf16.msra.mxu0 0
    %2202 = vmatprep.subr.bf16.mxu0 0
    %2203 = vmatpush1.bf16.msra.mxu0 0
    %2204 = vmatprep.subr.bf16.mxu0 0
    %2205 = vmatpush1.bf16.msra.mxu0 0
    %2206 = vmatprep.subr.bf16.mxu0 0
    %2207 = vmatpush1.bf16.msra.mxu0 0
    %2208 = vmatprep.subr.bf16.mxu0 0
    %2209 = vmatpush1.bf16.msra.mxu0 0
    %2210 = vmatprep.mubr.bf16.mxu0 0
    %2211 = vmatmul.mubr.bf16.gmra.mrb[0].mxu0 %v2176
    %v2212 = vpop.f32.mrb[0].mxu0
    %v2213 = vadd.f32 %v2029, %v2212
    %v2214 = vpop.f32.mrb[0].mxu0
    %v2215 = vpop.f32.mrb[0].mxu0
    %v2216 = vpop.f32.mrb[0].mxu0
    %2217 = vdwg.mxu0
    %v2218 = vpack.c.bf16 %v2121, %v2075
    %v2219 = vpack.c.bf16 %v2213, %v2167
    %2222 = vrot.lane.b32.xlu0 %v2218, 8
    %v2223 = vpop.permute.xlu0 %2222
    %2224 = vrot.lane.b32.xlu0 %v2219, 8
    %v2225 = vpop.permute.xlu0 %2224
    %vm2228 = vcmask 130112
    %2229 = vst.msk [vmem:[#allocation2] sm:$0xff] %vm2228, %v2223
    %2230 = vst.msk [vmem:[#allocation2 + $0x8] sm:$0xff] %vm2228, %v2225
    %2231 = vrot.lane.b32.xlu0 %v507, 112
    %v2232 = vpop.permute.xlu0 %2231
    %2233 = vrot.lane.b32.xlu0 %v497, 112
    %v2234 = vpop.permute.xlu0 %2233
    %v2236 = vsel %vm511, %v2232, 0
    %v2239 = vsel %vm511, %v2234, 0
    %2241 = vmatprep.subr.bf16.mxu0 0
    %2242 = vmatpush1.bf16.xpose.msra.mxu0 %v2239
    %2243 = vmatprep.subr.bf16.mxu0 0
    %2244 = vmatpush1.bf16.xpose.msra.mxu0 0
    %2245 = vmatprep.subr.bf16.mxu0 0
    %2246 = vmatpush1.bf16.xpose.msra.mxu0 0
    %2247 = vmatprep.subr.bf16.mxu0 0
    %2248 = vmatpush1.bf16.xpose.msra.mxu0 0
    %2249 = vmatprep.subr.bf16.mxu0 0
    %2250 = vmatpush1.bf16.xpose.msra.mxu0 0
    %2251 = vmatprep.subr.bf16.mxu0 0
    %2252 = vmatpush1.bf16.xpose.msra.mxu0 0
    %2253 = vmatprep.subr.bf16.mxu0 0
    %2254 = vmatpush1.bf16.xpose.msra.mxu0 0
    %2255 = vmatprep.subr.bf16.mxu0 0
    %2256 = vmatpush1.bf16.xpose.msra.mxu0 0
    %2257 = vmatprep.subr.bf16.mxu0 0
    %2258 = vmatpush1.bf16.xpose.msra.mxu0 0
    %2259 = vmatprep.subr.bf16.mxu0 0
    %2260 = vmatpush1.bf16.xpose.msra.mxu0 0
    %2261 = vmatprep.subr.bf16.mxu0 0
    %2262 = vmatpush1.bf16.xpose.msra.mxu0 0
    %2263 = vmatprep.subr.bf16.mxu0 0
    %2264 = vmatpush1.bf16.xpose.msra.mxu0 0
    %2265 = vmatprep.subr.bf16.mxu0 0
    %2266 = vmatpush1.bf16.xpose.msra.mxu0 0
    %2267 = vmatprep.subr.bf16.mxu0 0
    %2268 = vmatpush1.bf16.xpose.msra.mxu0 0
    %2269 = vmatprep.subr.bf16.mxu0 0
    %2270 = vmatpush1.bf16.xpose.msra.mxu0 0
    %2271 = vmatprep.subr.bf16.mxu0 0
    %2272 = vmatpush1.bf16.xpose.msra.mxu0 0
    %2273 = vmatprep.mubr.bf16.mxu0 0
    %2274 = vmatmul.mubr.bf16.gmra.mrb[0].mxu0 %v2236
    %v2275 = vpop.f32.mrb[0].mxu0
    %v2276 = vadd.f32 0.0, %v2275
    %v2277 = vpop.f32.mrb[0].mxu0
    %v2278 = vpop.f32.mrb[0].mxu0
    %v2279 = vpop.f32.mrb[0].mxu0
    %2280 = vdwg.mxu0
    %2281 = vrot.lane.b32.xlu0 %v508, 112
    %v2282 = vpop.permute.xlu0 %2281
    %2283 = vrot.lane.b32.xlu0 %v498, 112
    %v2284 = vpop.permute.xlu0 %2283
    %v2286 = vsel %vm511, %v2282, 0
    %v2289 = vsel %vm511, %v2284, 0
    %2291 = vmatprep.subr.bf16.mxu0 0
    %2292 = vmatpush1.bf16.xpose.msra.mxu0 %v2289
    %2293 = vmatprep.subr.bf16.mxu0 0
    %2294 = vmatpush1.bf16.xpose.msra.mxu0 0
    %2295 = vmatprep.subr.bf16.mxu0 0
    %2296 = vmatpush1.bf16.xpose.msra.mxu0 0
    %2297 = vmatprep.subr.bf16.mxu0 0
    %2298 = vmatpush1.bf16.xpose.msra.mxu0 0
    %2299 = vmatprep.subr.bf16.mxu0 0
    %2300 = vmatpush1.bf16.xpose.msra.mxu0 0
    %2301 = vmatprep.subr.bf16.mxu0 0
    %2302 = vmatpush1.bf16.xpose.msra.mxu0 0
    %2303 = vmatprep.subr.bf16.mxu0 0
    %2304 = vmatpush1.bf16.xpose.msra.mxu0 0
    %2305 = vmatprep.subr.bf16.mxu0 0
    %2306 = vmatpush1.bf16.xpose.msra.mxu0 0
    %2307 = vmatprep.subr.bf16.mxu0 0
    %2308 = vmatpush1.bf16.xpose.msra.mxu0 0
    %2309 = vmatprep.subr.bf16.mxu0 0
    %2310 = vmatpush1.bf16.xpose.msra.mxu0 0
    %2311 = vmatprep.subr.bf16.mxu0 0
    %2312 = vmatpush1.bf16.xpose.msra.mxu0 0
    %2313 = vmatprep.subr.bf16.mxu0 0
    %2314 = vmatpush1.bf16.xpose.msra.mxu0 0
    %2315 = vmatprep.subr.bf16.mxu0 0
    %2316 = vmatpush1.bf16.xpose.msra.mxu0 0
    %2317 = vmatprep.subr.bf16.mxu0 0
    %2318 = vmatpush1.bf16.xpose.msra.mxu0 0
    %2319 = vmatprep.subr.bf16.mxu0 0
    %2320 = vmatpush1.bf16.xpose.msra.mxu0 0
    %2321 = vmatprep.subr.bf16.mxu0 0
    %2322 = vmatpush1.bf16.xpose.msra.mxu0 0
    %2323 = vmatprep.mubr.bf16.mxu0 0
    %2324 = vmatmul.mubr.bf16.gmra.mrb[0].mxu0 %v2286
    %v2325 = vpop.f32.mrb[0].mxu0
    %v2326 = vadd.f32 0.0, %v2325
    %v2327 = vpop.f32.mrb[0].mxu0
    %v2328 = vpop.f32.mrb[0].mxu0
    %v2329 = vpop.f32.mrb[0].mxu0
    %2330 = vdwg.mxu0
    %2331 = vrot.lane.b32.xlu0 %v509, 112
    %v2332 = vpop.permute.xlu0 %2331
    %2333 = vrot.lane.b32.xlu0 %v499, 112
    %v2334 = vpop.permute.xlu0 %2333
    %v2336 = vsel %vm511, %v2332, 0
    %v2339 = vsel %vm511, %v2334, 0
    %2341 = vmatprep.subr.bf16.mxu0 0
    %2342 = vmatpush1.bf16.xpose.msra.mxu0 %v2339
    %2343 = vmatprep.subr.bf16.mxu0 0
    %2344 = vmatpush1.bf16.xpose.msra.mxu0 0
    %2345 = vmatprep.subr.bf16.mxu0 0
    %2346 = vmatpush1.bf16.xpose.msra.mxu0 0
    %2347 = vmatprep.subr.bf16.mxu0 0
    %2348 = vmatpush1.bf16.xpose.msra.mxu0 0
    %2349 = vmatprep.subr.bf16.mxu0 0
    %2350 = vmatpush1.bf16.xpose.msra.mxu0 0
    %2351 = vmatprep.subr.bf16.mxu0 0
    %2352 = vmatpush1.bf16.xpose.msra.mxu0 0
    %2353 = vmatprep.subr.bf16.mxu0 0
    %2354 = vmatpush1.bf16.xpose.msra.mxu0 0
    %2355 = vmatprep.subr.bf16.mxu0 0
    %2356 = vmatpush1.bf16.xpose.msra.mxu0 0
    %2357 = vmatprep.subr.bf16.mxu0 0
    %2358 = vmatpush1.bf16.xpose.msra.mxu0 0
    %2359 = vmatprep.subr.bf16.mxu0 0
    %2360 = vmatpush1.bf16.xpose.msra.mxu0 0
    %2361 = vmatprep.subr.bf16.mxu0 0
    %2362 = vmatpush1.bf16.xpose.msra.mxu0 0
    %2363 = vmatprep.subr.bf16.mxu0 0
    %2364 = vmatpush1.bf16.xpose.msra.mxu0 0
    %2365 = vmatprep.subr.bf16.mxu0 0
    %2366 = vmatpush1.bf16.xpose.msra.mxu0 0
    %2367 = vmatprep.subr.bf16.mxu0 0
    %2368 = vmatpush1.bf16.xpose.msra.mxu0 0
    %2369 = vmatprep.subr.bf16.mxu0 0
    %2370 = vmatpush1.bf16.xpose.msra.mxu0 0
    %2371 = vmatprep.subr.bf16.mxu0 0
    %2372 = vmatpush1.bf16.xpose.msra.mxu0 0
    %2373 = vmatprep.mubr.bf16.mxu0 0
    %2374 = vmatmul.mubr.bf16.gmra.mrb[0].mxu0 %v2336
    %v2375 = vpop.f32.mrb[0].mxu0
    %v2376 = vadd.f32 0.0, %v2375
    %v2377 = vpop.f32.mrb[0].mxu0
    %v2378 = vpop.f32.mrb[0].mxu0
    %v2379 = vpop.f32.mrb[0].mxu0
    %2380 = vdwg.mxu0
    %2381 = vrot.lane.b32.xlu0 %v510, 112
    %v2382 = vpop.permute.xlu0 %2381
    %2383 = vrot.lane.b32.xlu0 %v500, 112
    %v2384 = vpop.permute.xlu0 %2383
    %v2386 = vsel %vm511, %v2382, 0
    %v2389 = vsel %vm511, %v2384, 0
    %2391 = vmatprep.subr.bf16.mxu0 0
    %2392 = vmatpush1.bf16.xpose.msra.mxu0 %v2389
    %2393 = vmatprep.subr.bf16.mxu0 0
    %2394 = vmatpush1.bf16.xpose.msra.mxu0 0
    %2395 = vmatprep.subr.bf16.mxu0 0
    %2396 = vmatpush1.bf16.xpose.msra.mxu0 0
    %2397 = vmatprep.subr.bf16.mxu0 0
    %2398 = vmatpush1.bf16.xpose.msra.mxu0 0
    %2399 = vmatprep.subr.bf16.mxu0 0
    %2400 = vmatpush1.bf16.xpose.msra.mxu0 0
    %2401 = vmatprep.subr.bf16.mxu0 0
    %2402 = vmatpush1.bf16.xpose.msra.mxu0 0
    %2403 = vmatprep.subr.bf16.mxu0 0
    %2404 = vmatpush1.bf16.xpose.msra.mxu0 0
    %2405 = vmatprep.subr.bf16.mxu0 0
    %2406 = vmatpush1.bf16.xpose.msra.mxu0 0
    %2407 = vmatprep.subr.bf16.mxu0 0
    %2408 = vmatpush1.bf16.xpose.msra.mxu0 0
    %2409 = vmatprep.subr.bf16.mxu0 0
    %2410 = vmatpush1.bf16.xpose.msra.mxu0 0
    %2411 = vmatprep.subr.bf16.mxu0 0
    %2412 = vmatpush1.bf16.xpose.msra.mxu0 0
    %2413 = vmatprep.subr.bf16.mxu0 0
    %2414 = vmatpush1.bf16.xpose.msra.mxu0 0
    %2415 = vmatprep.subr.bf16.mxu0 0
    %2416 = vmatpush1.bf16.xpose.msra.mxu0 0
    %2417 = vmatprep.subr.bf16.mxu0 0
    %2418 = vmatpush1.bf16.xpose.msra.mxu0 0
    %2419 = vmatprep.subr.bf16.mxu0 0
    %2420 = vmatpush1.bf16.xpose.msra.mxu0 0
    %2421 = vmatprep.subr.bf16.mxu0 0
    %2422 = vmatpush1.bf16.xpose.msra.mxu0 0
    %2423 = vmatprep.mubr.bf16.mxu0 0
    %2424 = vmatmul.mubr.bf16.gmra.mrb[0].mxu0 %v2386
    %v2425 = vpop.f32.mrb[0].mxu0
    %v2426 = vadd.f32 0.0, %v2425
    %v2427 = vpop.f32.mrb[0].mxu0
    %v2428 = vpop.f32.mrb[0].mxu0
    %v2429 = vpop.f32.mrb[0].mxu0
    %2430 = vdwg.mxu0
    %2431 = vrot.lane.b32.xlu0 %v507, 80
    %v2432 = vpop.permute.xlu0 %2431
    %v2434 = vsel %vm511, %v2432, 0
    %2436 = vmatprep.subr.bf16.mxu0 0
    %2437 = vmatpush1.bf16.xpose.msra.mxu0 %v2434
    %2438 = vmatprep.subr.bf16.mxu0 0
    %2439 = vmatpush1.bf16.xpose.msra.mxu0 0
    %2440 = vmatprep.subr.bf16.mxu0 0
    %2441 = vmatpush1.bf16.xpose.msra.mxu0 0
    %2442 = vmatprep.subr.bf16.mxu0 0
    %2443 = vmatpush1.bf16.xpose.msra.mxu0 0
    %2444 = vmatprep.subr.bf16.mxu0 0
    %2445 = vmatpush1.bf16.xpose.msra.mxu0 0
    %2446 = vmatprep.subr.bf16.mxu0 0
    %2447 = vmatpush1.bf16.xpose.msra.mxu0 0
    %2448 = vmatprep.subr.bf16.mxu0 0
    %2449 = vmatpush1.bf16.xpose.msra.mxu0 0
    %2450 = vmatprep.subr.bf16.mxu0 0
    %2451 = vmatpush1.bf16.xpose.msra.mxu0 0
    %2452 = vmatprep.subr.bf16.mxu0 0
    %2453 = vmatpush1.bf16.xpose.msra.mxu0 0
    %2454 = vmatprep.subr.bf16.mxu0 0
    %2455 = vmatpush1.bf16.xpose.msra.mxu0 0
    %2456 = vmatprep.subr.bf16.mxu0 0
    %2457 = vmatpush1.bf16.xpose.msra.mxu0 0
    %2458 = vmatprep.subr.bf16.mxu0 0
    %2459 = vmatpush1.bf16.xpose.msra.mxu0 0
    %2460 = vmatprep.subr.bf16.mxu0 0
    %2461 = vmatpush1.bf16.xpose.msra.mxu0 0
    %2462 = vmatprep.subr.bf16.mxu0 0
    %2463 = vmatpush1.bf16.xpose.msra.mxu0 0
    %2464 = vmatprep.subr.bf16.mxu0 0
    %2465 = vmatpush1.bf16.xpose.msra.mxu0 0
    %2466 = vmatprep.subr.bf16.mxu0 0
    %2467 = vmatpush1.bf16.xpose.msra.mxu0 0
    %2468 = vmatprep.mubr.bf16.mxu0 0
    %2469 = vmatmul.mubr.bf16.gmra.mrb[0].mxu0 %v2236
    %v2470 = vpop.f32.mrb[0].mxu0
    %v2471 = vadd.f32 0.0, %v2470
    %v2472 = vpop.f32.mrb[0].mxu0
    %v2473 = vpop.f32.mrb[0].mxu0
    %v2474 = vpop.f32.mrb[0].mxu0
    %2475 = vdwg.mxu0
    %2476 = vrot.lane.b32.xlu0 %v508, 80
    %v2477 = vpop.permute.xlu0 %2476
    %v2479 = vsel %vm511, %v2477, 0
    %2481 = vmatprep.subr.bf16.mxu0 0
    %2482 = vmatpush1.bf16.xpose.msra.mxu0 %v2479
    %2483 = vmatprep.subr.bf16.mxu0 0
    %2484 = vmatpush1.bf16.xpose.msra.mxu0 0
    %2485 = vmatprep.subr.bf16.mxu0 0
    %2486 = vmatpush1.bf16.xpose.msra.mxu0 0
    %2487 = vmatprep.subr.bf16.mxu0 0
    %2488 = vmatpush1.bf16.xpose.msra.mxu0 0
    %2489 = vmatprep.subr.bf16.mxu0 0
    %2490 = vmatpush1.bf16.xpose.msra.mxu0 0
    %2491 = vmatprep.subr.bf16.mxu0 0
    %2492 = vmatpush1.bf16.xpose.msra.mxu0 0
    %2493 = vmatprep.subr.bf16.mxu0 0
    %2494 = vmatpush1.bf16.xpose.msra.mxu0 0
    %2495 = vmatprep.subr.bf16.mxu0 0
    %2496 = vmatpush1.bf16.xpose.msra.mxu0 0
    %2497 = vmatprep.subr.bf16.mxu0 0
    %2498 = vmatpush1.bf16.xpose.msra.mxu0 0
    %2499 = vmatprep.subr.bf16.mxu0 0
    %2500 = vmatpush1.bf16.xpose.msra.mxu0 0
    %2501 = vmatprep.subr.bf16.mxu0 0
    %2502 = vmatpush1.bf16.xpose.msra.mxu0 0
    %2503 = vmatprep.subr.bf16.mxu0 0
    %2504 = vmatpush1.bf16.xpose.msra.mxu0 0
    %2505 = vmatprep.subr.bf16.mxu0 0
    %2506 = vmatpush1.bf16.xpose.msra.mxu0 0
    %2507 = vmatprep.subr.bf16.mxu0 0
    %2508 = vmatpush1.bf16.xpose.msra.mxu0 0
    %2509 = vmatprep.subr.bf16.mxu0 0
    %2510 = vmatpush1.bf16.xpose.msra.mxu0 0
    %2511 = vmatprep.subr.bf16.mxu0 0
    %2512 = vmatpush1.bf16.xpose.msra.mxu0 0
    %2513 = vmatprep.mubr.bf16.mxu0 0
    %2514 = vmatmul.mubr.bf16.gmra.mrb[0].mxu0 %v2286
    %v2515 = vpop.f32.mrb[0].mxu0
    %v2516 = vadd.f32 0.0, %v2515
    %v2517 = vpop.f32.mrb[0].mxu0
    %v2518 = vpop.f32.mrb[0].mxu0
    %v2519 = vpop.f32.mrb[0].mxu0
    %2520 = vdwg.mxu0
    %2521 = vrot.lane.b32.xlu0 %v509, 80
    %v2522 = vpop.permute.xlu0 %2521
    %v2524 = vsel %vm511, %v2522, 0
    %2526 = vmatprep.subr.bf16.mxu0 0
    %2527 = vmatpush1.bf16.xpose.msra.mxu0 %v2524
    %2528 = vmatprep.subr.bf16.mxu0 0
    %2529 = vmatpush1.bf16.xpose.msra.mxu0 0
    %2530 = vmatprep.subr.bf16.mxu0 0
    %2531 = vmatpush1.bf16.xpose.msra.mxu0 0
    %2532 = vmatprep.subr.bf16.mxu0 0
    %2533 = vmatpush1.bf16.xpose.msra.mxu0 0
    %2534 = vmatprep.subr.bf16.mxu0 0
    %2535 = vmatpush1.bf16.xpose.msra.mxu0 0
    %2536 = vmatprep.subr.bf16.mxu0 0
    %2537 = vmatpush1.bf16.xpose.msra.mxu0 0
    %2538 = vmatprep.subr.bf16.mxu0 0
    %2539 = vmatpush1.bf16.xpose.msra.mxu0 0
    %2540 = vmatprep.subr.bf16.mxu0 0
    %2541 = vmatpush1.bf16.xpose.msra.mxu0 0
    %2542 = vmatprep.subr.bf16.mxu0 0
    %2543 = vmatpush1.bf16.xpose.msra.mxu0 0
    %2544 = vmatprep.subr.bf16.mxu0 0
    %2545 = vmatpush1.bf16.xpose.msra.mxu0 0
    %2546 = vmatprep.subr.bf16.mxu0 0
    %2547 = vmatpush1.bf16.xpose.msra.mxu0 0
    %2548 = vmatprep.subr.bf16.mxu0 0
    %2549 = vmatpush1.bf16.xpose.msra.mxu0 0
    %2550 = vmatprep.subr.bf16.mxu0 0
    %2551 = vmatpush1.bf16.xpose.msra.mxu0 0
    %2552 = vmatprep.subr.bf16.mxu0 0
    %2553 = vmatpush1.bf16.xpose.msra.mxu0 0
    %2554 = vmatprep.subr.bf16.mxu0 0
    %2555 = vmatpush1.bf16.xpose.msra.mxu0 0
    %2556 = vmatprep.subr.bf16.mxu0 0
    %2557 = vmatpush1.bf16.xpose.msra.mxu0 0
    %2558 = vmatprep.mubr.bf16.mxu0 0
    %2559 = vmatmul.mubr.bf16.gmra.mrb[0].mxu0 %v2336
    %v2560 = vpop.f32.mrb[0].mxu0
    %v2561 = vadd.f32 0.0, %v2560
    %v2562 = vpop.f32.mrb[0].mxu0
    %v2563 = vpop.f32.mrb[0].mxu0
    %v2564 = vpop.f32.mrb[0].mxu0
    %2565 = vdwg.mxu0
    %2566 = vrot.lane.b32.xlu0 %v510, 80
    %v2567 = vpop.permute.xlu0 %2566
    %v2569 = vsel %vm511, %v2567, 0
    %2571 = vmatprep.subr.bf16.mxu0 0
    %2572 = vmatpush1.bf16.xpose.msra.mxu0 %v2569
    %2573 = vmatprep.subr.bf16.mxu0 0
    %2574 = vmatpush1.bf16.xpose.msra.mxu0 0
    %2575 = vmatprep.subr.bf16.mxu0 0
    %2576 = vmatpush1.bf16.xpose.msra.mxu0 0
    %2577 = vmatprep.subr.bf16.mxu0 0
    %2578 = vmatpush1.bf16.xpose.msra.mxu0 0
    %2579 = vmatprep.subr.bf16.mxu0 0
    %2580 = vmatpush1.bf16.xpose.msra.mxu0 0
    %2581 = vmatprep.subr.bf16.mxu0 0
    %2582 = vmatpush1.bf16.xpose.msra.mxu0 0
    %2583 = vmatprep.subr.bf16.mxu0 0
    %2584 = vmatpush1.bf16.xpose.msra.mxu0 0
    %2585 = vmatprep.subr.bf16.mxu0 0
    %2586 = vmatpush1.bf16.xpose.msra.mxu0 0
    %2587 = vmatprep.subr.bf16.mxu0 0
    %2588 = vmatpush1.bf16.xpose.msra.mxu0 0
    %2589 = vmatprep.subr.bf16.mxu0 0
    %2590 = vmatpush1.bf16.xpose.msra.mxu0 0
    %2591 = vmatprep.subr.bf16.mxu0 0
    %2592 = vmatpush1.bf16.xpose.msra.mxu0 0
    %2593 = vmatprep.subr.bf16.mxu0 0
    %2594 = vmatpush1.bf16.xpose.msra.mxu0 0
    %2595 = vmatprep.subr.bf16.mxu0 0
    %2596 = vmatpush1.bf16.xpose.msra.mxu0 0
    %2597 = vmatprep.subr.bf16.mxu0 0
    %2598 = vmatpush1.bf16.xpose.msra.mxu0 0
    %2599 = vmatprep.subr.bf16.mxu0 0
    %2600 = vmatpush1.bf16.xpose.msra.mxu0 0
    %2601 = vmatprep.subr.bf16.mxu0 0
    %2602 = vmatpush1.bf16.xpose.msra.mxu0 0
    %2603 = vmatprep.mubr.bf16.mxu0 0
    %2604 = vmatmul.mubr.bf16.gmra.mrb[0].mxu0 %v2386
    %v2605 = vpop.f32.mrb[0].mxu0
    %v2606 = vadd.f32 0.0, %v2605
    %v2607 = vpop.f32.mrb[0].mxu0
    %v2608 = vpop.f32.mrb[0].mxu0
    %v2609 = vpop.f32.mrb[0].mxu0
    %2610 = vdwg.mxu0
    %v2611 = vsel %vm876, %v2276, -inf
    %2612 = vmax.xlane.f32.xlu0 %v2611
    %v2613 = vpop.xlane.xlu0 %2612
    %v2614 = vsel %vm876, %v2326, -inf
    %2615 = vmax.xlane.f32.xlu0 %v2614
    %v2616 = vpop.xlane.xlu0 %2615
    %v2617 = vsel %vm876, %v2376, -inf
    %2618 = vmax.xlane.f32.xlu0 %v2617
    %v2619 = vpop.xlane.xlu0 %2618
    %v2620 = vsel %vm876, %v2426, -inf
    %2621 = vmax.xlane.f32.xlu0 %v2620
    %v2622 = vpop.xlane.xlu0 %2621
    %v2623 = vsel %vm511, %v2471, -inf
    %2624 = vmax.xlane.f32.xlu0 %v2623
    %v2625 = vpop.xlane.xlu0 %2624
    %v2626 = vsel %vm511, %v2516, -inf
    %2627 = vmax.xlane.f32.xlu0 %v2626
    %v2628 = vpop.xlane.xlu0 %2627
    %v2629 = vsel %vm511, %v2561, -inf
    %2630 = vmax.xlane.f32.xlu0 %v2629
    %v2631 = vpop.xlane.xlu0 %2630
    %v2632 = vsel %vm511, %v2606, -inf
    %2633 = vmax.xlane.f32.xlu0 %v2632
    %v2634 = vpop.xlane.xlu0 %2633
    %v2635 = vmax.f32 %v2613, %v2625
    %v2636 = vmax.f32 %v2616, %v2628
    %v2637 = vmax.f32 %v2619, %v2631
    %v2638 = vmax.f32 %v2622, %v2634
    %v2639 = vsub.f32 %v2276, %v2635
    %v2640 = vsub.f32 %v2326, %v2636
    %v2641 = vsub.f32 %v2376, %v2637
    %v2642 = vsub.f32 %v2426, %v2638
    %v2643 = vmul.f32 %v2639, 1.442695
    %v2644 = vpow.pop %v2643
    %v2645 = vmul.f32 %v2640, 1.442695
    %v2646 = vpow.pop %v2645
    %v2647 = vmul.f32 %v2641, 1.442695
    %v2648 = vpow.pop %v2647
    %v2649 = vmul.f32 %v2642, 1.442695
    %v2650 = vpow.pop %v2649
    %v2651 = vsub.f32 %v2471, %v2635
    %v2652 = vsub.f32 %v2516, %v2636
    %v2653 = vsub.f32 %v2561, %v2637
    %v2654 = vsub.f32 %v2606, %v2638
    %v2655 = vmul.f32 %v2651, 1.442695
    %v2656 = vpow.pop %v2655
    %v2657 = vmul.f32 %v2652, 1.442695
    %v2658 = vpow.pop %v2657
    %v2659 = vmul.f32 %v2653, 1.442695
    %v2660 = vpow.pop %v2659
    %v2661 = vmul.f32 %v2654, 1.442695
    %v2662 = vpow.pop %v2661
    %v2663 = vsel %vm876, %v2644, 0.0
    %2664 = vadd.xlane.f32.xlu0 %v2663
    %v2665 = vpop.xlane.xlu0 %2664
    %v2666 = vsel %vm876, %v2646, 0.0
    %2667 = vadd.xlane.f32.xlu0 %v2666
    %v2668 = vpop.xlane.xlu0 %2667
    %v2669 = vsel %vm876, %v2648, 0.0
    %2670 = vadd.xlane.f32.xlu0 %v2669
    %v2671 = vpop.xlane.xlu0 %2670
    %v2672 = vsel %vm876, %v2650, 0.0
    %2673 = vadd.xlane.f32.xlu0 %v2672
    %v2674 = vpop.xlane.xlu0 %2673
    %v2675 = vsel %vm511, %v2656, 0.0
    %2676 = vadd.xlane.f32.xlu0 %v2675
    %v2677 = vpop.xlane.xlu0 %2676
    %v2678 = vsel %vm511, %v2658, 0.0
    %2679 = vadd.xlane.f32.xlu0 %v2678
    %v2680 = vpop.xlane.xlu0 %2679
    %v2681 = vsel %vm511, %v2660, 0.0
    %2682 = vadd.xlane.f32.xlu0 %v2681
    %v2683 = vpop.xlane.xlu0 %2682
    %v2684 = vsel %vm511, %v2662, 0.0
    %2685 = vadd.xlane.f32.xlu0 %v2684
    %v2686 = vpop.xlane.xlu0 %2685
    %v2687 = vadd.f32 %v2665, %v2677
    %v2688 = vadd.f32 %v2668, %v2680
    %v2689 = vadd.f32 %v2671, %v2683
    %v2690 = vadd.f32 %v2674, %v2686
    %v2691 = vrcp.pop %v2687
    %v2692 = vrcp.pop %v2688
    %v2693 = vrcp.pop %v2689
    %v2694 = vrcp.pop %v2690
    %v2695 = vmul.f32 %v2644, %v2691
    %v2696 = vmul.f32 %v2646, %v2692
    %v2697 = vmul.f32 %v2648, %v2693
    %v2698 = vmul.f32 %v2650, %v2694
    %v2699 = vpack.c.bf16 %v2695, %v2695
    %v2700 = vpack.c.bf16 %v2696, %v2696
    %v2701 = vpack.c.bf16 %v2697, %v2697
    %v2702 = vpack.c.bf16 %v2698, %v2698
    %v2703 = vmul.f32 %v2656, %v2691
    %v2704 = vmul.f32 %v2658, %v2692
    %v2705 = vmul.f32 %v2660, %v2693
    %v2706 = vmul.f32 %v2662, %v2694
    %v2707 = vpack.c.bf16 %v2703, %v2703
    %v2708 = vpack.c.bf16 %v2704, %v2704
    %v2709 = vpack.c.bf16 %v2705, %v2705
    %v2710 = vpack.c.bf16 %v2706, %v2706
    %2711 = vrot.lane.b32.xlu0 %v507, 48
    %v2712 = vpop.permute.xlu0 %2711
    %v2714 = vsel %vm511, %v2707, 0
    %v2717 = vsel %vm982, %v2712, 0
    %2719 = vmatprep.subr.bf16.mxu0 0
    %2720 = vmatpush1.bf16.msra.mxu0 %v2717
    %2721 = vmatprep.subr.bf16.mxu0 0
    %2722 = vmatpush1.bf16.msra.mxu0 0
    %2723 = vmatprep.subr.bf16.mxu0 0
    %2724 = vmatpush1.bf16.msra.mxu0 0
    %2725 = vmatprep.subr.bf16.mxu0 0
    %2726 = vmatpush1.bf16.msra.mxu0 0
    %2727 = vmatprep.subr.bf16.mxu0 0
    %2728 = vmatpush1.bf16.msra.mxu0 0
    %2729 = vmatprep.subr.bf16.mxu0 0
    %2730 = vmatpush1.bf16.msra.mxu0 0
    %2731 = vmatprep.subr.bf16.mxu0 0
    %2732 = vmatpush1.bf16.msra.mxu0 0
    %2733 = vmatprep.subr.bf16.mxu0 0
    %2734 = vmatpush1.bf16.msra.mxu0 0
    %2735 = vmatprep.subr.bf16.mxu0 0
    %2736 = vmatpush1.bf16.msra.mxu0 0
    %2737 = vmatprep.subr.bf16.mxu0 0
    %2738 = vmatpush1.bf16.msra.mxu0 0
    %2739 = vmatprep.subr.bf16.mxu0 0
    %2740 = vmatpush1.bf16.msra.mxu0 0
    %2741 = vmatprep.subr.bf16.mxu0 0
    %2742 = vmatpush1.bf16.msra.mxu0 0
    %2743 = vmatprep.subr.bf16.mxu0 0
    %2744 = vmatpush1.bf16.msra.mxu0 0
    %2745 = vmatprep.subr.bf16.mxu0 0
    %2746 = vmatpush1.bf16.msra.mxu0 0
    %2747 = vmatprep.subr.bf16.mxu0 0
    %2748 = vmatpush1.bf16.msra.mxu0 0
    %2749 = vmatprep.subr.bf16.mxu0 0
    %2750 = vmatpush1.bf16.msra.mxu0 0
    %2751 = vmatprep.mubr.bf16.mxu0 0
    %2752 = vmatmul.mubr.bf16.gmra.mrb[0].mxu0 %v2714
    %v2753 = vpop.f32.mrb[0].mxu0
    %v2754 = vadd.f32 0.0, %v2753
    %v2755 = vpop.f32.mrb[0].mxu0
    %v2756 = vpop.f32.mrb[0].mxu0
    %v2757 = vpop.f32.mrb[0].mxu0
    %2758 = vdwg.mxu0
    %2759 = vrot.lane.b32.xlu0 %v508, 48
    %v2760 = vpop.permute.xlu0 %2759
    %v2762 = vsel %vm511, %v2708, 0
    %v2765 = vsel %vm982, %v2760, 0
    %2767 = vmatprep.subr.bf16.mxu0 0
    %2768 = vmatpush1.bf16.msra.mxu0 %v2765
    %2769 = vmatprep.subr.bf16.mxu0 0
    %2770 = vmatpush1.bf16.msra.mxu0 0
    %2771 = vmatprep.subr.bf16.mxu0 0
    %2772 = vmatpush1.bf16.msra.mxu0 0
    %2773 = vmatprep.subr.bf16.mxu0 0
    %2774 = vmatpush1.bf16.msra.mxu0 0
    %2775 = vmatprep.subr.bf16.mxu0 0
    %2776 = vmatpush1.bf16.msra.mxu0 0
    %2777 = vmatprep.subr.bf16.mxu0 0
    %2778 = vmatpush1.bf16.msra.mxu0 0
    %2779 = vmatprep.subr.bf16.mxu0 0
    %2780 = vmatpush1.bf16.msra.mxu0 0
    %2781 = vmatprep.subr.bf16.mxu0 0
    %2782 = vmatpush1.bf16.msra.mxu0 0
    %2783 = vmatprep.subr.bf16.mxu0 0
    %2784 = vmatpush1.bf16.msra.mxu0 0
    %2785 = vmatprep.subr.bf16.mxu0 0
    %2786 = vmatpush1.bf16.msra.mxu0 0
    %2787 = vmatprep.subr.bf16.mxu0 0
    %2788 = vmatpush1.bf16.msra.mxu0 0
    %2789 = vmatprep.subr.bf16.mxu0 0
    %2790 = vmatpush1.bf16.msra.mxu0 0
    %2791 = vmatprep.subr.bf16.mxu0 0
    %2792 = vmatpush1.bf16.msra.mxu0 0
    %2793 = vmatprep.subr.bf16.mxu0 0
    %2794 = vmatpush1.bf16.msra.mxu0 0
    %2795 = vmatprep.subr.bf16.mxu0 0
    %2796 = vmatpush1.bf16.msra.mxu0 0
    %2797 = vmatprep.subr.bf16.mxu0 0
    %2798 = vmatpush1.bf16.msra.mxu0 0
    %2799 = vmatprep.mubr.bf16.mxu0 0
    %2800 = vmatmul.mubr.bf16.gmra.mrb[0].mxu0 %v2762
    %v2801 = vpop.f32.mrb[0].mxu0
    %v2802 = vadd.f32 0.0, %v2801
    %v2803 = vpop.f32.mrb[0].mxu0
    %v2804 = vpop.f32.mrb[0].mxu0
    %v2805 = vpop.f32.mrb[0].mxu0
    %2806 = vdwg.mxu0
    %2807 = vrot.lane.b32.xlu0 %v509, 48
    %v2808 = vpop.permute.xlu0 %2807
    %v2810 = vsel %vm511, %v2709, 0
    %v2813 = vsel %vm982, %v2808, 0
    %2815 = vmatprep.subr.bf16.mxu0 0
    %2816 = vmatpush1.bf16.msra.mxu0 %v2813
    %2817 = vmatprep.subr.bf16.mxu0 0
    %2818 = vmatpush1.bf16.msra.mxu0 0
    %2819 = vmatprep.subr.bf16.mxu0 0
    %2820 = vmatpush1.bf16.msra.mxu0 0
    %2821 = vmatprep.subr.bf16.mxu0 0
    %2822 = vmatpush1.bf16.msra.mxu0 0
    %2823 = vmatprep.subr.bf16.mxu0 0
    %2824 = vmatpush1.bf16.msra.mxu0 0
    %2825 = vmatprep.subr.bf16.mxu0 0
    %2826 = vmatpush1.bf16.msra.mxu0 0
    %2827 = vmatprep.subr.bf16.mxu0 0
    %2828 = vmatpush1.bf16.msra.mxu0 0
    %2829 = vmatprep.subr.bf16.mxu0 0
    %2830 = vmatpush1.bf16.msra.mxu0 0
    %2831 = vmatprep.subr.bf16.mxu0 0
    %2832 = vmatpush1.bf16.msra.mxu0 0
    %2833 = vmatprep.subr.bf16.mxu0 0
    %2834 = vmatpush1.bf16.msra.mxu0 0
    %2835 = vmatprep.subr.bf16.mxu0 0
    %2836 = vmatpush1.bf16.msra.mxu0 0
    %2837 = vmatprep.subr.bf16.mxu0 0
    %2838 = vmatpush1.bf16.msra.mxu0 0
    %2839 = vmatprep.subr.bf16.mxu0 0
    %2840 = vmatpush1.bf16.msra.mxu0 0
    %2841 = vmatprep.subr.bf16.mxu0 0
    %2842 = vmatpush1.bf16.msra.mxu0 0
    %2843 = vmatprep.subr.bf16.mxu0 0
    %2844 = vmatpush1.bf16.msra.mxu0 0
    %2845 = vmatprep.subr.bf16.mxu0 0
    %2846 = vmatpush1.bf16.msra.mxu0 0
    %2847 = vmatprep.mubr.bf16.mxu0 0
    %2848 = vmatmul.mubr.bf16.gmra.mrb[0].mxu0 %v2810
    %v2849 = vpop.f32.mrb[0].mxu0
    %v2850 = vadd.f32 0.0, %v2849
    %v2851 = vpop.f32.mrb[0].mxu0
    %v2852 = vpop.f32.mrb[0].mxu0
    %v2853 = vpop.f32.mrb[0].mxu0
    %2854 = vdwg.mxu0
    %2855 = vrot.lane.b32.xlu0 %v510, 48
    %v2856 = vpop.permute.xlu0 %2855
    %v2858 = vsel %vm511, %v2710, 0
    %v2861 = vsel %vm982, %v2856, 0
    %2863 = vmatprep.subr.bf16.mxu0 0
    %2864 = vmatpush1.bf16.msra.mxu0 %v2861
    %2865 = vmatprep.subr.bf16.mxu0 0
    %2866 = vmatpush1.bf16.msra.mxu0 0
    %2867 = vmatprep.subr.bf16.mxu0 0
    %2868 = vmatpush1.bf16.msra.mxu0 0
    %2869 = vmatprep.subr.bf16.mxu0 0
    %2870 = vmatpush1.bf16.msra.mxu0 0
    %2871 = vmatprep.subr.bf16.mxu0 0
    %2872 = vmatpush1.bf16.msra.mxu0 0
    %2873 = vmatprep.subr.bf16.mxu0 0
    %2874 = vmatpush1.bf16.msra.mxu0 0
    %2875 = vmatprep.subr.bf16.mxu0 0
    %2876 = vmatpush1.bf16.msra.mxu0 0
    %2877 = vmatprep.subr.bf16.mxu0 0
    %2878 = vmatpush1.bf16.msra.mxu0 0
    %2879 = vmatprep.subr.bf16.mxu0 0
    %2880 = vmatpush1.bf16.msra.mxu0 0
    %2881 = vmatprep.subr.bf16.mxu0 0
    %2882 = vmatpush1.bf16.msra.mxu0 0
    %2883 = vmatprep.subr.bf16.mxu0 0
    %2884 = vmatpush1.bf16.msra.mxu0 0
    %2885 = vmatprep.subr.bf16.mxu0 0
    %2886 = vmatpush1.bf16.msra.mxu0 0
    %2887 = vmatprep.subr.bf16.mxu0 0
    %2888 = vmatpush1.bf16.msra.mxu0 0
    %2889 = vmatprep.subr.bf16.mxu0 0
    %2890 = vmatpush1.bf16.msra.mxu0 0
    %2891 = vmatprep.subr.bf16.mxu0 0
    %2892 = vmatpush1.bf16.msra.mxu0 0
    %2893 = vmatprep.subr.bf16.mxu0 0
    %2894 = vmatpush1.bf16.msra.mxu0 0
    %2895 = vmatprep.mubr.bf16.mxu0 0
    %2896 = vmatmul.mubr.bf16.gmra.mrb[0].mxu0 %v2858
    %v2897 = vpop.f32.mrb[0].mxu0
    %v2898 = vadd.f32 0.0, %v2897
    %v2899 = vpop.f32.mrb[0].mxu0
    %v2900 = vpop.f32.mrb[0].mxu0
    %v2901 = vpop.f32.mrb[0].mxu0
    %2902 = vdwg.mxu0
    %2903 = vrot.lane.b32.xlu0 %v497, 80
    %v2904 = vpop.permute.xlu0 %2903
    %v2907 = vsel %vm876, %v2699, 0
    %2909 = vmatprep.subr.bf16.mxu0 0
    %2910 = vmatpush1.bf16.msra.mxu0 %v2904
    %2911 = vmatprep.subr.bf16.mxu0 0
    %2912 = vmatpush1.bf16.msra.mxu0 0
    %2913 = vmatprep.subr.bf16.mxu0 0
    %2914 = vmatpush1.bf16.msra.mxu0 0
    %2915 = vmatprep.subr.bf16.mxu0 0
    %2916 = vmatpush1.bf16.msra.mxu0 0
    %2917 = vmatprep.subr.bf16.mxu0 0
    %2918 = vmatpush1.bf16.msra.mxu0 0
    %2919 = vmatprep.subr.bf16.mxu0 0
    %2920 = vmatpush1.bf16.msra.mxu0 0
    %2921 = vmatprep.subr.bf16.mxu0 0
    %2922 = vmatpush1.bf16.msra.mxu0 0
    %2923 = vmatprep.subr.bf16.mxu0 0
    %2924 = vmatpush1.bf16.msra.mxu0 0
    %2925 = vmatprep.subr.bf16.mxu0 0
    %2926 = vmatpush1.bf16.msra.mxu0 0
    %2927 = vmatprep.subr.bf16.mxu0 0
    %2928 = vmatpush1.bf16.msra.mxu0 0
    %2929 = vmatprep.subr.bf16.mxu0 0
    %2930 = vmatpush1.bf16.msra.mxu0 0
    %2931 = vmatprep.subr.bf16.mxu0 0
    %2932 = vmatpush1.bf16.msra.mxu0 0
    %2933 = vmatprep.subr.bf16.mxu0 0
    %2934 = vmatpush1.bf16.msra.mxu0 0
    %2935 = vmatprep.subr.bf16.mxu0 0
    %2936 = vmatpush1.bf16.msra.mxu0 0
    %2937 = vmatprep.subr.bf16.mxu0 0
    %2938 = vmatpush1.bf16.msra.mxu0 0
    %2939 = vmatprep.subr.bf16.mxu0 0
    %2940 = vmatpush1.bf16.msra.mxu0 0
    %2941 = vmatprep.mubr.bf16.mxu0 0
    %2942 = vmatmul.mubr.bf16.gmra.mrb[0].mxu0 %v2907
    %v2943 = vpop.f32.mrb[0].mxu0
    %v2944 = vadd.f32 %v2754, %v2943
    %v2945 = vpop.f32.mrb[0].mxu0
    %v2946 = vpop.f32.mrb[0].mxu0
    %v2947 = vpop.f32.mrb[0].mxu0
    %2948 = vdwg.mxu0
    %2949 = vrot.lane.b32.xlu0 %v498, 80
    %v2950 = vpop.permute.xlu0 %2949
    %v2953 = vsel %vm876, %v2700, 0
    %2955 = vmatprep.subr.bf16.mxu0 0
    %2956 = vmatpush1.bf16.msra.mxu0 %v2950
    %2957 = vmatprep.subr.bf16.mxu0 0
    %2958 = vmatpush1.bf16.msra.mxu0 0
    %2959 = vmatprep.subr.bf16.mxu0 0
    %2960 = vmatpush1.bf16.msra.mxu0 0
    %2961 = vmatprep.subr.bf16.mxu0 0
    %2962 = vmatpush1.bf16.msra.mxu0 0
    %2963 = vmatprep.subr.bf16.mxu0 0
    %2964 = vmatpush1.bf16.msra.mxu0 0
    %2965 = vmatprep.subr.bf16.mxu0 0
    %2966 = vmatpush1.bf16.msra.mxu0 0
    %2967 = vmatprep.subr.bf16.mxu0 0
    %2968 = vmatpush1.bf16.msra.mxu0 0
    %2969 = vmatprep.subr.bf16.mxu0 0
    %2970 = vmatpush1.bf16.msra.mxu0 0
    %2971 = vmatprep.subr.bf16.mxu0 0
    %2972 = vmatpush1.bf16.msra.mxu0 0
    %2973 = vmatprep.subr.bf16.mxu0 0
    %2974 = vmatpush1.bf16.msra.mxu0 0
    %2975 = vmatprep.subr.bf16.mxu0 0
    %2976 = vmatpush1.bf16.msra.mxu0 0
    %2977 = vmatprep.subr.bf16.mxu0 0
    %2978 = vmatpush1.bf16.msra.mxu0 0
    %2979 = vmatprep.subr.bf16.mxu0 0
    %2980 = vmatpush1.bf16.msra.mxu0 0
    %2981 = vmatprep.subr.bf16.mxu0 0
    %2982 = vmatpush1.bf16.msra.mxu0 0
    %2983 = vmatprep.subr.bf16.mxu0 0
    %2984 = vmatpush1.bf16.msra.mxu0 0
    %2985 = vmatprep.subr.bf16.mxu0 0
    %2986 = vmatpush1.bf16.msra.mxu0 0
    %2987 = vmatprep.mubr.bf16.mxu0 0
    %2988 = vmatmul.mubr.bf16.gmra.mrb[0].mxu0 %v2953
    %v2989 = vpop.f32.mrb[0].mxu0
    %v2990 = vadd.f32 %v2802, %v2989
    %v2991 = vpop.f32.mrb[0].mxu0
    %v2992 = vpop.f32.mrb[0].mxu0
    %v2993 = vpop.f32.mrb[0].mxu0
    %2994 = vdwg.mxu0
    %2995 = vrot.lane.b32.xlu0 %v499, 80
    %v2996 = vpop.permute.xlu0 %2995
    %v2999 = vsel %vm876, %v2701, 0
    %3001 = vmatprep.subr.bf16.mxu0 0
    %3002 = vmatpush1.bf16.msra.mxu0 %v2996
    %3003 = vmatprep.subr.bf16.mxu0 0
    %3004 = vmatpush1.bf16.msra.mxu0 0
    %3005 = vmatprep.subr.bf16.mxu0 0
    %3006 = vmatpush1.bf16.msra.mxu0 0
    %3007 = vmatprep.subr.bf16.mxu0 0
    %3008 = vmatpush1.bf16.msra.mxu0 0
    %3009 = vmatprep.subr.bf16.mxu0 0
    %3010 = vmatpush1.bf16.msra.mxu0 0
    %3011 = vmatprep.subr.bf16.mxu0 0
    %3012 = vmatpush1.bf16.msra.mxu0 0
    %3013 = vmatprep.subr.bf16.mxu0 0
    %3014 = vmatpush1.bf16.msra.mxu0 0
    %3015 = vmatprep.subr.bf16.mxu0 0
    %3016 = vmatpush1.bf16.msra.mxu0 0
    %3017 = vmatprep.subr.bf16.mxu0 0
    %3018 = vmatpush1.bf16.msra.mxu0 0
    %3019 = vmatprep.subr.bf16.mxu0 0
    %3020 = vmatpush1.bf16.msra.mxu0 0
    %3021 = vmatprep.subr.bf16.mxu0 0
    %3022 = vmatpush1.bf16.msra.mxu0 0
    %3023 = vmatprep.subr.bf16.mxu0 0
    %3024 = vmatpush1.bf16.msra.mxu0 0
    %3025 = vmatprep.subr.bf16.mxu0 0
    %3026 = vmatpush1.bf16.msra.mxu0 0
    %3027 = vmatprep.subr.bf16.mxu0 0
    %3028 = vmatpush1.bf16.msra.mxu0 0
    %3029 = vmatprep.subr.bf16.mxu0 0
    %3030 = vmatpush1.bf16.msra.mxu0 0
    %3031 = vmatprep.subr.bf16.mxu0 0
    %3032 = vmatpush1.bf16.msra.mxu0 0
    %3033 = vmatprep.mubr.bf16.mxu0 0
    %3034 = vmatmul.mubr.bf16.gmra.mrb[0].mxu0 %v2999
    %v3035 = vpop.f32.mrb[0].mxu0
    %v3036 = vadd.f32 %v2850, %v3035
    %v3037 = vpop.f32.mrb[0].mxu0
    %v3038 = vpop.f32.mrb[0].mxu0
    %v3039 = vpop.f32.mrb[0].mxu0
    %3040 = vdwg.mxu0
    %3041 = vrot.lane.b32.xlu0 %v500, 80
    %v3042 = vpop.permute.xlu0 %3041
    %v3045 = vsel %vm876, %v2702, 0
    %3047 = vmatprep.subr.bf16.mxu0 0
    %3048 = vmatpush1.bf16.msra.mxu0 %v3042
    %3049 = vmatprep.subr.bf16.mxu0 0
    %3050 = vmatpush1.bf16.msra.mxu0 0
    %3051 = vmatprep.subr.bf16.mxu0 0
    %3052 = vmatpush1.bf16.msra.mxu0 0
    %3053 = vmatprep.subr.bf16.mxu0 0
    %3054 = vmatpush1.bf16.msra.mxu0 0
    %3055 = vmatprep.subr.bf16.mxu0 0
    %3056 = vmatpush1.bf16.msra.mxu0 0
    %3057 = vmatprep.subr.bf16.mxu0 0
    %3058 = vmatpush1.bf16.msra.mxu0 0
    %3059 = vmatprep.subr.bf16.mxu0 0
    %3060 = vmatpush1.bf16.msra.mxu0 0
    %3061 = vmatprep.subr.bf16.mxu0 0
    %3062 = vmatpush1.bf16.msra.mxu0 0
    %3063 = vmatprep.subr.bf16.mxu0 0
    %3064 = vmatpush1.bf16.msra.mxu0 0
    %3065 = vmatprep.subr.bf16.mxu0 0
    %3066 = vmatpush1.bf16.msra.mxu0 0
    %3067 = vmatprep.subr.bf16.mxu0 0
    %3068 = vmatpush1.bf16.msra.mxu0 0
    %3069 = vmatprep.subr.bf16.mxu0 0
    %3070 = vmatpush1.bf16.msra.mxu0 0
    %3071 = vmatprep.subr.bf16.mxu0 0
    %3072 = vmatpush1.bf16.msra.mxu0 0
    %3073 = vmatprep.subr.bf16.mxu0 0
    %3074 = vmatpush1.bf16.msra.mxu0 0
    %3075 = vmatprep.subr.bf16.mxu0 0
    %3076 = vmatpush1.bf16.msra.mxu0 0
    %3077 = vmatprep.subr.bf16.mxu0 0
    %3078 = vmatpush1.bf16.msra.mxu0 0
    %3079 = vmatprep.mubr.bf16.mxu0 0
    %3080 = vmatmul.mubr.bf16.gmra.mrb[0].mxu0 %v3045
    %v3081 = vpop.f32.mrb[0].mxu0
    %v3082 = vadd.f32 %v2898, %v3081
    %v3083 = vpop.f32.mrb[0].mxu0
    %v3084 = vpop.f32.mrb[0].mxu0
    %v3085 = vpop.f32.mrb[0].mxu0
    %3086 = vdwg.mxu0
    %v3087 = vpack.c.bf16 %v2990, %v2944
    %v3088 = vpack.c.bf16 %v3082, %v3036
    %3091 = vrot.lane.b32.xlu0 %v3087, 16
    %v3092 = vpop.permute.xlu0 %3091
    %3093 = vrot.lane.b32.xlu0 %v3088, 16
    %v3094 = vpop.permute.xlu0 %3093
    %vm3097 = vcmask 195712
    %3098 = vst.msk [vmem:[#allocation2] sm:$0xff] %vm3097, %v3092
    %3099 = vst.msk [vmem:[#allocation2 + $0x8] sm:$0xff] %vm3097, %v3094
    %3100 = vrot.lane.b32.xlu0 %v507, 104
    %v3101 = vpop.permute.xlu0 %3100
    %3102 = vrot.lane.b32.xlu0 %v497, 104
    %v3103 = vpop.permute.xlu0 %3102
    %v3105 = vsel %vm511, %v3101, 0
    %v3108 = vsel %vm511, %v3103, 0
    %3110 = vmatprep.subr.bf16.mxu0 0
    %3111 = vmatpush1.bf16.xpose.msra.mxu0 %v3108
    %3112 = vmatprep.subr.bf16.mxu0 0
    %3113 = vmatpush1.bf16.xpose.msra.mxu0 0
    %3114 = vmatprep.subr.bf16.mxu0 0
    %3115 = vmatpush1.bf16.xpose.msra.mxu0 0
    %3116 = vmatprep.subr.bf16.mxu0 0
    %3117 = vmatpush1.bf16.xpose.msra.mxu0 0
    %3118 = vmatprep.subr.bf16.mxu0 0
    %3119 = vmatpush1.bf16.xpose.msra.mxu0 0
    %3120 = vmatprep.subr.bf16.mxu0 0
    %3121 = vmatpush1.bf16.xpose.msra.mxu0 0
    %3122 = vmatprep.subr.bf16.mxu0 0
    %3123 = vmatpush1.bf16.xpose.msra.mxu0 0
    %3124 = vmatprep.subr.bf16.mxu0 0
    %3125 = vmatpush1.bf16.xpose.msra.mxu0 0
    %3126 = vmatprep.subr.bf16.mxu0 0
    %3127 = vmatpush1.bf16.xpose.msra.mxu0 0
    %3128 = vmatprep.subr.bf16.mxu0 0
    %3129 = vmatpush1.bf16.xpose.msra.mxu0 0
    %3130 = vmatprep.subr.bf16.mxu0 0
    %3131 = vmatpush1.bf16.xpose.msra.mxu0 0
    %3132 = vmatprep.subr.bf16.mxu0 0
    %3133 = vmatpush1.bf16.xpose.msra.mxu0 0
    %3134 = vmatprep.subr.bf16.mxu0 0
    %3135 = vmatpush1.bf16.xpose.msra.mxu0 0
    %3136 = vmatprep.subr.bf16.mxu0 0
    %3137 = vmatpush1.bf16.xpose.msra.mxu0 0
    %3138 = vmatprep.subr.bf16.mxu0 0
    %3139 = vmatpush1.bf16.xpose.msra.mxu0 0
    %3140 = vmatprep.subr.bf16.mxu0 0
    %3141 = vmatpush1.bf16.xpose.msra.mxu0 0
    %3142 = vmatprep.mubr.bf16.mxu0 0
    %3143 = vmatmul.mubr.bf16.gmra.mrb[0].mxu0 %v3105
    %v3144 = vpop.f32.mrb[0].mxu0
    %v3145 = vadd.f32 0.0, %v3144
    %v3146 = vpop.f32.mrb[0].mxu0
    %v3147 = vpop.f32.mrb[0].mxu0
    %v3148 = vpop.f32.mrb[0].mxu0
    %3149 = vdwg.mxu0
    %3150 = vrot.lane.b32.xlu0 %v508, 104
    %v3151 = vpop.permute.xlu0 %3150
    %3152 = vrot.lane.b32.xlu0 %v498, 104
    %v3153 = vpop.permute.xlu0 %3152
    %v3155 = vsel %vm511, %v3151, 0
    %v3158 = vsel %vm511, %v3153, 0
    %3160 = vmatprep.subr.bf16.mxu0 0
    %3161 = vmatpush1.bf16.xpose.msra.mxu0 %v3158
    %3162 = vmatprep.subr.bf16.mxu0 0
    %3163 = vmatpush1.bf16.xpose.msra.mxu0 0
    %3164 = vmatprep.subr.bf16.mxu0 0
    %3165 = vmatpush1.bf16.xpose.msra.mxu0 0
    %3166 = vmatprep.subr.bf16.mxu0 0
    %3167 = vmatpush1.bf16.xpose.msra.mxu0 0
    %3168 = vmatprep.subr.bf16.mxu0 0
    %3169 = vmatpush1.bf16.xpose.msra.mxu0 0
    %3170 = vmatprep.subr.bf16.mxu0 0
    %3171 = vmatpush1.bf16.xpose.msra.mxu0 0
    %3172 = vmatprep.subr.bf16.mxu0 0
    %3173 = vmatpush1.bf16.xpose.msra.mxu0 0
    %3174 = vmatprep.subr.bf16.mxu0 0
    %3175 = vmatpush1.bf16.xpose.msra.mxu0 0
    %3176 = vmatprep.subr.bf16.mxu0 0
    %3177 = vmatpush1.bf16.xpose.msra.mxu0 0
    %3178 = vmatprep.subr.bf16.mxu0 0
    %3179 = vmatpush1.bf16.xpose.msra.mxu0 0
    %3180 = vmatprep.subr.bf16.mxu0 0
    %3181 = vmatpush1.bf16.xpose.msra.mxu0 0
    %3182 = vmatprep.subr.bf16.mxu0 0
    %3183 = vmatpush1.bf16.xpose.msra.mxu0 0
    %3184 = vmatprep.subr.bf16.mxu0 0
    %3185 = vmatpush1.bf16.xpose.msra.mxu0 0
    %3186 = vmatprep.subr.bf16.mxu0 0
    %3187 = vmatpush1.bf16.xpose.msra.mxu0 0
    %3188 = vmatprep.subr.bf16.mxu0 0
    %3189 = vmatpush1.bf16.xpose.msra.mxu0 0
    %3190 = vmatprep.subr.bf16.mxu0 0
    %3191 = vmatpush1.bf16.xpose.msra.mxu0 0
    %3192 = vmatprep.mubr.bf16.mxu0 0
    %3193 = vmatmul.mubr.bf16.gmra.mrb[0].mxu0 %v3155
    %v3194 = vpop.f32.mrb[0].mxu0
    %v3195 = vadd.f32 0.0, %v3194
    %v3196 = vpop.f32.mrb[0].mxu0
    %v3197 = vpop.f32.mrb[0].mxu0
    %v3198 = vpop.f32.mrb[0].mxu0
    %3199 = vdwg.mxu0
    %3200 = vrot.lane.b32.xlu0 %v509, 104
    %v3201 = vpop.permute.xlu0 %3200
    %3202 = vrot.lane.b32.xlu0 %v499, 104
    %v3203 = vpop.permute.xlu0 %3202
    %v3205 = vsel %vm511, %v3201, 0
    %v3208 = vsel %vm511, %v3203, 0
    %3210 = vmatprep.subr.bf16.mxu0 0
    %3211 = vmatpush1.bf16.xpose.msra.mxu0 %v3208
    %3212 = vmatprep.subr.bf16.mxu0 0
    %3213 = vmatpush1.bf16.xpose.msra.mxu0 0
    %3214 = vmatprep.subr.bf16.mxu0 0
    %3215 = vmatpush1.bf16.xpose.msra.mxu0 0
    %3216 = vmatprep.subr.bf16.mxu0 0
    %3217 = vmatpush1.bf16.xpose.msra.mxu0 0
    %3218 = vmatprep.subr.bf16.mxu0 0
    %3219 = vmatpush1.bf16.xpose.msra.mxu0 0
    %3220 = vmatprep.subr.bf16.mxu0 0
    %3221 = vmatpush1.bf16.xpose.msra.mxu0 0
    %3222 = vmatprep.subr.bf16.mxu0 0
    %3223 = vmatpush1.bf16.xpose.msra.mxu0 0
    %3224 = vmatprep.subr.bf16.mxu0 0
    %3225 = vmatpush1.bf16.xpose.msra.mxu0 0
    %3226 = vmatprep.subr.bf16.mxu0 0
    %3227 = vmatpush1.bf16.xpose.msra.mxu0 0
    %3228 = vmatprep.subr.bf16.mxu0 0
    %3229 = vmatpush1.bf16.xpose.msra.mxu0 0
    %3230 = vmatprep.subr.bf16.mxu0 0
    %3231 = vmatpush1.bf16.xpose.msra.mxu0 0
    %3232 = vmatprep.subr.bf16.mxu0 0
    %3233 = vmatpush1.bf16.xpose.msra.mxu0 0
    %3234 = vmatprep.subr.bf16.mxu0 0
    %3235 = vmatpush1.bf16.xpose.msra.mxu0 0
    %3236 = vmatprep.subr.bf16.mxu0 0
    %3237 = vmatpush1.bf16.xpose.msra.mxu0 0
    %3238 = vmatprep.subr.bf16.mxu0 0
    %3239 = vmatpush1.bf16.xpose.msra.mxu0 0
    %3240 = vmatprep.subr.bf16.mxu0 0
    %3241 = vmatpush1.bf16.xpose.msra.mxu0 0
    %3242 = vmatprep.mubr.bf16.mxu0 0
    %3243 = vmatmul.mubr.bf16.gmra.mrb[0].mxu0 %v3205
    %v3244 = vpop.f32.mrb[0].mxu0
    %v3245 = vadd.f32 0.0, %v3244
    %v3246 = vpop.f32.mrb[0].mxu0
    %v3247 = vpop.f32.mrb[0].mxu0
    %v3248 = vpop.f32.mrb[0].mxu0
    %3249 = vdwg.mxu0
    %3250 = vrot.lane.b32.xlu0 %v510, 104
    %v3251 = vpop.permute.xlu0 %3250
    %3252 = vrot.lane.b32.xlu0 %v500, 104
    %v3253 = vpop.permute.xlu0 %3252
    %v3255 = vsel %vm511, %v3251, 0
    %v3258 = vsel %vm511, %v3253, 0
    %3260 = vmatprep.subr.bf16.mxu0 0
    %3261 = vmatpush1.bf16.xpose.msra.mxu0 %v3258
    %3262 = vmatprep.subr.bf16.mxu0 0
    %3263 = vmatpush1.bf16.xpose.msra.mxu0 0
    %3264 = vmatprep.subr.bf16.mxu0 0
    %3265 = vmatpush1.bf16.xpose.msra.mxu0 0
    %3266 = vmatprep.subr.bf16.mxu0 0
    %3267 = vmatpush1.bf16.xpose.msra.mxu0 0
    %3268 = vmatprep.subr.bf16.mxu0 0
    %3269 = vmatpush1.bf16.xpose.msra.mxu0 0
    %3270 = vmatprep.subr.bf16.mxu0 0
    %3271 = vmatpush1.bf16.xpose.msra.mxu0 0
    %3272 = vmatprep.subr.bf16.mxu0 0
    %3273 = vmatpush1.bf16.xpose.msra.mxu0 0
    %3274 = vmatprep.subr.bf16.mxu0 0
    %3275 = vmatpush1.bf16.xpose.msra.mxu0 0
    %3276 = vmatprep.subr.bf16.mxu0 0
    %3277 = vmatpush1.bf16.xpose.msra.mxu0 0
    %3278 = vmatprep.subr.bf16.mxu0 0
    %3279 = vmatpush1.bf16.xpose.msra.mxu0 0
    %3280 = vmatprep.subr.bf16.mxu0 0
    %3281 = vmatpush1.bf16.xpose.msra.mxu0 0
    %3282 = vmatprep.subr.bf16.mxu0 0
    %3283 = vmatpush1.bf16.xpose.msra.mxu0 0
    %3284 = vmatprep.subr.bf16.mxu0 0
    %3285 = vmatpush1.bf16.xpose.msra.mxu0 0
    %3286 = vmatprep.subr.bf16.mxu0 0
    %3287 = vmatpush1.bf16.xpose.msra.mxu0 0
    %3288 = vmatprep.subr.bf16.mxu0 0
    %3289 = vmatpush1.bf16.xpose.msra.mxu0 0
    %3290 = vmatprep.subr.bf16.mxu0 0
    %3291 = vmatpush1.bf16.xpose.msra.mxu0 0
    %3292 = vmatprep.mubr.bf16.mxu0 0
    %3293 = vmatmul.mubr.bf16.gmra.mrb[0].mxu0 %v3255
    %v3294 = vpop.f32.mrb[0].mxu0
    %v3295 = vadd.f32 0.0, %v3294
    %v3296 = vpop.f32.mrb[0].mxu0
    %v3297 = vpop.f32.mrb[0].mxu0
    %v3298 = vpop.f32.mrb[0].mxu0
    %3299 = vdwg.mxu0
    %3300 = vrot.lane.b32.xlu0 %v507, 72
    %v3301 = vpop.permute.xlu0 %3300
    %v3303 = vsel %vm511, %v3301, 0
    %3305 = vmatprep.subr.bf16.mxu0 0
    %3306 = vmatpush1.bf16.xpose.msra.mxu0 %v3303
    %3307 = vmatprep.subr.bf16.mxu0 0
    %3308 = vmatpush1.bf16.xpose.msra.mxu0 0
    %3309 = vmatprep.subr.bf16.mxu0 0
    %3310 = vmatpush1.bf16.xpose.msra.mxu0 0
    %3311 = vmatprep.subr.bf16.mxu0 0
    %3312 = vmatpush1.bf16.xpose.msra.mxu0 0
    %3313 = vmatprep.subr.bf16.mxu0 0
    %3314 = vmatpush1.bf16.xpose.msra.mxu0 0
    %3315 = vmatprep.subr.bf16.mxu0 0
    %3316 = vmatpush1.bf16.xpose.msra.mxu0 0
    %3317 = vmatprep.subr.bf16.mxu0 0
    %3318 = vmatpush1.bf16.xpose.msra.mxu0 0
    %3319 = vmatprep.subr.bf16.mxu0 0
    %3320 = vmatpush1.bf16.xpose.msra.mxu0 0
    %3321 = vmatprep.subr.bf16.mxu0 0
    %3322 = vmatpush1.bf16.xpose.msra.mxu0 0
    %3323 = vmatprep.subr.bf16.mxu0 0
    %3324 = vmatpush1.bf16.xpose.msra.mxu0 0
    %3325 = vmatprep.subr.bf16.mxu0 0
    %3326 = vmatpush1.bf16.xpose.msra.mxu0 0
    %3327 = vmatprep.subr.bf16.mxu0 0
    %3328 = vmatpush1.bf16.xpose.msra.mxu0 0
    %3329 = vmatprep.subr.bf16.mxu0 0
    %3330 = vmatpush1.bf16.xpose.msra.mxu0 0
    %3331 = vmatprep.subr.bf16.mxu0 0
    %3332 = vmatpush1.bf16.xpose.msra.mxu0 0
    %3333 = vmatprep.subr.bf16.mxu0 0
    %3334 = vmatpush1.bf16.xpose.msra.mxu0 0
    %3335 = vmatprep.subr.bf16.mxu0 0
    %3336 = vmatpush1.bf16.xpose.msra.mxu0 0
    %3337 = vmatprep.mubr.bf16.mxu0 0
    %3338 = vmatmul.mubr.bf16.gmra.mrb[0].mxu0 %v3105
    %v3339 = vpop.f32.mrb[0].mxu0
    %v3340 = vadd.f32 0.0, %v3339
    %v3341 = vpop.f32.mrb[0].mxu0
    %v3342 = vpop.f32.mrb[0].mxu0
    %v3343 = vpop.f32.mrb[0].mxu0
    %3344 = vdwg.mxu0
    %3345 = vrot.lane.b32.xlu0 %v508, 72
    %v3346 = vpop.permute.xlu0 %3345
    %v3348 = vsel %vm511, %v3346, 0
    %3350 = vmatprep.subr.bf16.mxu0 0
    %3351 = vmatpush1.bf16.xpose.msra.mxu0 %v3348
    %3352 = vmatprep.subr.bf16.mxu0 0
    %3353 = vmatpush1.bf16.xpose.msra.mxu0 0
    %3354 = vmatprep.subr.bf16.mxu0 0
    %3355 = vmatpush1.bf16.xpose.msra.mxu0 0
    %3356 = vmatprep.subr.bf16.mxu0 0
    %3357 = vmatpush1.bf16.xpose.msra.mxu0 0
    %3358 = vmatprep.subr.bf16.mxu0 0
    %3359 = vmatpush1.bf16.xpose.msra.mxu0 0
    %3360 = vmatprep.subr.bf16.mxu0 0
    %3361 = vmatpush1.bf16.xpose.msra.mxu0 0
    %3362 = vmatprep.subr.bf16.mxu0 0
    %3363 = vmatpush1.bf16.xpose.msra.mxu0 0
    %3364 = vmatprep.subr.bf16.mxu0 0
    %3365 = vmatpush1.bf16.xpose.msra.mxu0 0
    %3366 = vmatprep.subr.bf16.mxu0 0
    %3367 = vmatpush1.bf16.xpose.msra.mxu0 0
    %3368 = vmatprep.subr.bf16.mxu0 0
    %3369 = vmatpush1.bf16.xpose.msra.mxu0 0
    %3370 = vmatprep.subr.bf16.mxu0 0
    %3371 = vmatpush1.bf16.xpose.msra.mxu0 0
    %3372 = vmatprep.subr.bf16.mxu0 0
    %3373 = vmatpush1.bf16.xpose.msra.mxu0 0
    %3374 = vmatprep.subr.bf16.mxu0 0
    %3375 = vmatpush1.bf16.xpose.msra.mxu0 0
    %3376 = vmatprep.subr.bf16.mxu0 0
    %3377 = vmatpush1.bf16.xpose.msra.mxu0 0
    %3378 = vmatprep.subr.bf16.mxu0 0
    %3379 = vmatpush1.bf16.xpose.msra.mxu0 0
    %3380 = vmatprep.subr.bf16.mxu0 0
    %3381 = vmatpush1.bf16.xpose.msra.mxu0 0
    %3382 = vmatprep.mubr.bf16.mxu0 0
    %3383 = vmatmul.mubr.bf16.gmra.mrb[0].mxu0 %v3155
    %v3384 = vpop.f32.mrb[0].mxu0
    %v3385 = vadd.f32 0.0, %v3384
    %v3386 = vpop.f32.mrb[0].mxu0
    %v3387 = vpop.f32.mrb[0].mxu0
    %v3388 = vpop.f32.mrb[0].mxu0
    %3389 = vdwg.mxu0
    %3390 = vrot.lane.b32.xlu0 %v509, 72
    %v3391 = vpop.permute.xlu0 %3390
    %v3393 = vsel %vm511, %v3391, 0
    %3395 = vmatprep.subr.bf16.mxu0 0
    %3396 = vmatpush1.bf16.xpose.msra.mxu0 %v3393
    %3397 = vmatprep.subr.bf16.mxu0 0
    %3398 = vmatpush1.bf16.xpose.msra.mxu0 0
    %3399 = vmatprep.subr.bf16.mxu0 0
    %3400 = vmatpush1.bf16.xpose.msra.mxu0 0
    %3401 = vmatprep.subr.bf16.mxu0 0
    %3402 = vmatpush1.bf16.xpose.msra.mxu0 0
    %3403 = vmatprep.subr.bf16.mxu0 0
    %3404 = vmatpush1.bf16.xpose.msra.mxu0 0
    %3405 = vmatprep.subr.bf16.mxu0 0
    %3406 = vmatpush1.bf16.xpose.msra.mxu0 0
    %3407 = vmatprep.subr.bf16.mxu0 0
    %3408 = vmatpush1.bf16.xpose.msra.mxu0 0
    %3409 = vmatprep.subr.bf16.mxu0 0
    %3410 = vmatpush1.bf16.xpose.msra.mxu0 0
    %3411 = vmatprep.subr.bf16.mxu0 0
    %3412 = vmatpush1.bf16.xpose.msra.mxu0 0
    %3413 = vmatprep.subr.bf16.mxu0 0
    %3414 = vmatpush1.bf16.xpose.msra.mxu0 0
    %3415 = vmatprep.subr.bf16.mxu0 0
    %3416 = vmatpush1.bf16.xpose.msra.mxu0 0
    %3417 = vmatprep.subr.bf16.mxu0 0
    %3418 = vmatpush1.bf16.xpose.msra.mxu0 0
    %3419 = vmatprep.subr.bf16.mxu0 0
    %3420 = vmatpush1.bf16.xpose.msra.mxu0 0
    %3421 = vmatprep.subr.bf16.mxu0 0
    %3422 = vmatpush1.bf16.xpose.msra.mxu0 0
    %3423 = vmatprep.subr.bf16.mxu0 0
    %3424 = vmatpush1.bf16.xpose.msra.mxu0 0
    %3425 = vmatprep.subr.bf16.mxu0 0
    %3426 = vmatpush1.bf16.xpose.msra.mxu0 0
    %3427 = vmatprep.mubr.bf16.mxu0 0
    %3428 = vmatmul.mubr.bf16.gmra.mrb[0].mxu0 %v3205
    %v3429 = vpop.f32.mrb[0].mxu0
    %v3430 = vadd.f32 0.0, %v3429
    %v3431 = vpop.f32.mrb[0].mxu0
    %v3432 = vpop.f32.mrb[0].mxu0
    %v3433 = vpop.f32.mrb[0].mxu0
    %3434 = vdwg.mxu0
    %3435 = vrot.lane.b32.xlu0 %v510, 72
    %v3436 = vpop.permute.xlu0 %3435
    %v3438 = vsel %vm511, %v3436, 0
    %3440 = vmatprep.subr.bf16.mxu0 0
    %3441 = vmatpush1.bf16.xpose.msra.mxu0 %v3438
    %3442 = vmatprep.subr.bf16.mxu0 0
    %3443 = vmatpush1.bf16.xpose.msra.mxu0 0
    %3444 = vmatprep.subr.bf16.mxu0 0
    %3445 = vmatpush1.bf16.xpose.msra.mxu0 0
    %3446 = vmatprep.subr.bf16.mxu0 0
    %3447 = vmatpush1.bf16.xpose.msra.mxu0 0
    %3448 = vmatprep.subr.bf16.mxu0 0
    %3449 = vmatpush1.bf16.xpose.msra.mxu0 0
    %3450 = vmatprep.subr.bf16.mxu0 0
    %3451 = vmatpush1.bf16.xpose.msra.mxu0 0
    %3452 = vmatprep.subr.bf16.mxu0 0
    %3453 = vmatpush1.bf16.xpose.msra.mxu0 0
    %3454 = vmatprep.subr.bf16.mxu0 0
    %3455 = vmatpush1.bf16.xpose.msra.mxu0 0
    %3456 = vmatprep.subr.bf16.mxu0 0
    %3457 = vmatpush1.bf16.xpose.msra.mxu0 0
    %3458 = vmatprep.subr.bf16.mxu0 0
    %3459 = vmatpush1.bf16.xpose.msra.mxu0 0
    %3460 = vmatprep.subr.bf16.mxu0 0
    %3461 = vmatpush1.bf16.xpose.msra.mxu0 0
    %3462 = vmatprep.subr.bf16.mxu0 0
    %3463 = vmatpush1.bf16.xpose.msra.mxu0 0
    %3464 = vmatprep.subr.bf16.mxu0 0
    %3465 = vmatpush1.bf16.xpose.msra.mxu0 0
    %3466 = vmatprep.subr.bf16.mxu0 0
    %3467 = vmatpush1.bf16.xpose.msra.mxu0 0
    %3468 = vmatprep.subr.bf16.mxu0 0
    %3469 = vmatpush1.bf16.xpose.msra.mxu0 0
    %3470 = vmatprep.subr.bf16.mxu0 0
    %3471 = vmatpush1.bf16.xpose.msra.mxu0 0
    %3472 = vmatprep.mubr.bf16.mxu0 0
    %3473 = vmatmul.mubr.bf16.gmra.mrb[0].mxu0 %v3255
    %v3474 = vpop.f32.mrb[0].mxu0
    %v3475 = vadd.f32 0.0, %v3474
    %v3476 = vpop.f32.mrb[0].mxu0
    %v3477 = vpop.f32.mrb[0].mxu0
    %v3478 = vpop.f32.mrb[0].mxu0
    %3479 = vdwg.mxu0
    %v3480 = vsel %vm876, %v3145, -inf
    %3481 = vmax.xlane.f32.xlu0 %v3480
    %v3482 = vpop.xlane.xlu0 %3481
    %v3483 = vsel %vm876, %v3195, -inf
    %3484 = vmax.xlane.f32.xlu0 %v3483
    %v3485 = vpop.xlane.xlu0 %3484
    %v3486 = vsel %vm876, %v3245, -inf
    %3487 = vmax.xlane.f32.xlu0 %v3486
    %v3488 = vpop.xlane.xlu0 %3487
    %v3489 = vsel %vm876, %v3295, -inf
    %3490 = vmax.xlane.f32.xlu0 %v3489
    %v3491 = vpop.xlane.xlu0 %3490
    %v3492 = vsel %vm511, %v3340, -inf
    %3493 = vmax.xlane.f32.xlu0 %v3492
    %v3494 = vpop.xlane.xlu0 %3493
    %v3495 = vsel %vm511, %v3385, -inf
    %3496 = vmax.xlane.f32.xlu0 %v3495
    %v3497 = vpop.xlane.xlu0 %3496
    %v3498 = vsel %vm511, %v3430, -inf
    %3499 = vmax.xlane.f32.xlu0 %v3498
    %v3500 = vpop.xlane.xlu0 %3499
    %v3501 = vsel %vm511, %v3475, -inf
    %3502 = vmax.xlane.f32.xlu0 %v3501
    %v3503 = vpop.xlane.xlu0 %3502
    %v3504 = vmax.f32 %v3482, %v3494
    %v3505 = vmax.f32 %v3485, %v3497
    %v3506 = vmax.f32 %v3488, %v3500
    %v3507 = vmax.f32 %v3491, %v3503
    %v3508 = vsub.f32 %v3145, %v3504
    %v3509 = vsub.f32 %v3195, %v3505
    %v3510 = vsub.f32 %v3245, %v3506
    %v3511 = vsub.f32 %v3295, %v3507
    %v3512 = vmul.f32 %v3508, 1.442695
    %v3513 = vpow.pop %v3512
    %v3514 = vmul.f32 %v3509, 1.442695
    %v3515 = vpow.pop %v3514
    %v3516 = vmul.f32 %v3510, 1.442695
    %v3517 = vpow.pop %v3516
    %v3518 = vmul.f32 %v3511, 1.442695
    %v3519 = vpow.pop %v3518
    %v3520 = vsub.f32 %v3340, %v3504
    %v3521 = vsub.f32 %v3385, %v3505
    %v3522 = vsub.f32 %v3430, %v3506
    %v3523 = vsub.f32 %v3475, %v3507
    %v3524 = vmul.f32 %v3520, 1.442695
    %v3525 = vpow.pop %v3524
    %v3526 = vmul.f32 %v3521, 1.442695
    %v3527 = vpow.pop %v3526
    %v3528 = vmul.f32 %v3522, 1.442695
    %v3529 = vpow.pop %v3528
    %v3530 = vmul.f32 %v3523, 1.442695
    %v3531 = vpow.pop %v3530
    %v3532 = vsel %vm876, %v3513, 0.0
    %3533 = vadd.xlane.f32.xlu0 %v3532
    %v3534 = vpop.xlane.xlu0 %3533
    %v3535 = vsel %vm876, %v3515, 0.0
    %3536 = vadd.xlane.f32.xlu0 %v3535
    %v3537 = vpop.xlane.xlu0 %3536
    %v3538 = vsel %vm876, %v3517, 0.0
    %3539 = vadd.xlane.f32.xlu0 %v3538
    %v3540 = vpop.xlane.xlu0 %3539
    %v3541 = vsel %vm876, %v3519, 0.0
    %3542 = vadd.xlane.f32.xlu0 %v3541
    %v3543 = vpop.xlane.xlu0 %3542
    %v3544 = vsel %vm511, %v3525, 0.0
    %3545 = vadd.xlane.f32.xlu0 %v3544
    %v3546 = vpop.xlane.xlu0 %3545
    %v3547 = vsel %vm511, %v3527, 0.0
    %3548 = vadd.xlane.f32.xlu0 %v3547
    %v3549 = vpop.xlane.xlu0 %3548
    %v3550 = vsel %vm511, %v3529, 0.0
    %3551 = vadd.xlane.f32.xlu0 %v3550
    %v3552 = vpop.xlane.xlu0 %3551
    %v3553 = vsel %vm511, %v3531, 0.0
    %3554 = vadd.xlane.f32.xlu0 %v3553
    %v3555 = vpop.xlane.xlu0 %3554
    %v3556 = vadd.f32 %v3534, %v3546
    %v3557 = vadd.f32 %v3537, %v3549
    %v3558 = vadd.f32 %v3540, %v3552
    %v3559 = vadd.f32 %v3543, %v3555
    %v3560 = vrcp.pop %v3556
    %v3561 = vrcp.pop %v3557
    %v3562 = vrcp.pop %v3558
    %v3563 = vrcp.pop %v3559
    %v3564 = vmul.f32 %v3513, %v3560
    %v3565 = vmul.f32 %v3515, %v3561
    %v3566 = vmul.f32 %v3517, %v3562
    %v3567 = vmul.f32 %v3519, %v3563
    %v3568 = vpack.c.bf16 %v3564, %v3564
    %v3569 = vpack.c.bf16 %v3565, %v3565
    %v3570 = vpack.c.bf16 %v3566, %v3566
    %v3571 = vpack.c.bf16 %v3567, %v3567
    %v3572 = vmul.f32 %v3525, %v3560
    %v3573 = vmul.f32 %v3527, %v3561
    %v3574 = vmul.f32 %v3529, %v3562
    %v3575 = vmul.f32 %v3531, %v3563
    %v3576 = vpack.c.bf16 %v3572, %v3572
    %v3577 = vpack.c.bf16 %v3573, %v3573
    %v3578 = vpack.c.bf16 %v3574, %v3574
    %v3579 = vpack.c.bf16 %v3575, %v3575
    %3580 = vrot.lane.b32.xlu0 %v507, 40
    %v3581 = vpop.permute.xlu0 %3580
    %v3583 = vsel %vm511, %v3576, 0
    %v3586 = vsel %vm982, %v3581, 0
    %3588 = vmatprep.subr.bf16.mxu0 0
    %3589 = vmatpush1.bf16.msra.mxu0 %v3586
    %3590 = vmatprep.subr.bf16.mxu0 0
    %3591 = vmatpush1.bf16.msra.mxu0 0
    %3592 = vmatprep.subr.bf16.mxu0 0
    %3593 = vmatpush1.bf16.msra.mxu0 0
    %3594 = vmatprep.subr.bf16.mxu0 0
    %3595 = vmatpush1.bf16.msra.mxu0 0
    %3596 = vmatprep.subr.bf16.mxu0 0
    %3597 = vmatpush1.bf16.msra.mxu0 0
    %3598 = vmatprep.subr.bf16.mxu0 0
    %3599 = vmatpush1.bf16.msra.mxu0 0
    %3600 = vmatprep.subr.bf16.mxu0 0
    %3601 = vmatpush1.bf16.msra.mxu0 0
    %3602 = vmatprep.subr.bf16.mxu0 0
    %3603 = vmatpush1.bf16.msra.mxu0 0
    %3604 = vmatprep.subr.bf16.mxu0 0
    %3605 = vmatpush1.bf16.msra.mxu0 0
    %3606 = vmatprep.subr.bf16.mxu0 0
    %3607 = vmatpush1.bf16.msra.mxu0 0
    %3608 = vmatprep.subr.bf16.mxu0 0
    %3609 = vmatpush1.bf16.msra.mxu0 0
    %3610 = vmatprep.subr.bf16.mxu0 0
    %3611 = vmatpush1.bf16.msra.mxu0 0
    %3612 = vmatprep.subr.bf16.mxu0 0
    %3613 = vmatpush1.bf16.msra.mxu0 0
    %3614 = vmatprep.subr.bf16.mxu0 0
    %3615 = vmatpush1.bf16.msra.mxu0 0
    %3616 = vmatprep.subr.bf16.mxu0 0
    %3617 = vmatpush1.bf16.msra.mxu0 0
    %3618 = vmatprep.subr.bf16.mxu0 0
    %3619 = vmatpush1.bf16.msra.mxu0 0
    %3620 = vmatprep.mubr.bf16.mxu0 0
    %3621 = vmatmul.mubr.bf16.gmra.mrb[0].mxu0 %v3583
    %v3622 = vpop.f32.mrb[0].mxu0
    %v3623 = vadd.f32 0.0, %v3622
    %v3624 = vpop.f32.mrb[0].mxu0
    %v3625 = vpop.f32.mrb[0].mxu0
    %v3626 = vpop.f32.mrb[0].mxu0
    %3627 = vdwg.mxu0
    %3628 = vrot.lane.b32.xlu0 %v508, 40
    %v3629 = vpop.permute.xlu0 %3628
    %v3631 = vsel %vm511, %v3577, 0
    %v3634 = vsel %vm982, %v3629, 0
    %3636 = vmatprep.subr.bf16.mxu0 0
    %3637 = vmatpush1.bf16.msra.mxu0 %v3634
    %3638 = vmatprep.subr.bf16.mxu0 0
    %3639 = vmatpush1.bf16.msra.mxu0 0
    %3640 = vmatprep.subr.bf16.mxu0 0
    %3641 = vmatpush1.bf16.msra.mxu0 0
    %3642 = vmatprep.subr.bf16.mxu0 0
    %3643 = vmatpush1.bf16.msra.mxu0 0
    %3644 = vmatprep.subr.bf16.mxu0 0
    %3645 = vmatpush1.bf16.msra.mxu0 0
    %3646 = vmatprep.subr.bf16.mxu0 0
    %3647 = vmatpush1.bf16.msra.mxu0 0
    %3648 = vmatprep.subr.bf16.mxu0 0
    %3649 = vmatpush1.bf16.msra.mxu0 0
    %3650 = vmatprep.subr.bf16.mxu0 0
    %3651 = vmatpush1.bf16.msra.mxu0 0
    %3652 = vmatprep.subr.bf16.mxu0 0
    %3653 = vmatpush1.bf16.msra.mxu0 0
    %3654 = vmatprep.subr.bf16.mxu0 0
    %3655 = vmatpush1.bf16.msra.mxu0 0
    %3656 = vmatprep.subr.bf16.mxu0 0
    %3657 = vmatpush1.bf16.msra.mxu0 0
    %3658 = vmatprep.subr.bf16.mxu0 0
    %3659 = vmatpush1.bf16.msra.mxu0 0
    %3660 = vmatprep.subr.bf16.mxu0 0
    %3661 = vmatpush1.bf16.msra.mxu0 0
    %3662 = vmatprep.subr.bf16.mxu0 0
    %3663 = vmatpush1.bf16.msra.mxu0 0
    %3664 = vmatprep.subr.bf16.mxu0 0
    %3665 = vmatpush1.bf16.msra.mxu0 0
    %3666 = vmatprep.subr.bf16.mxu0 0
    %3667 = vmatpush1.bf16.msra.mxu0 0
    %3668 = vmatprep.mubr.bf16.mxu0 0
    %3669 = vmatmul.mubr.bf16.gmra.mrb[0].mxu0 %v3631
    %v3670 = vpop.f32.mrb[0].mxu0
    %v3671 = vadd.f32 0.0, %v3670
    %v3672 = vpop.f32.mrb[0].mxu0
    %v3673 = vpop.f32.mrb[0].mxu0
    %v3674 = vpop.f32.mrb[0].mxu0
    %3675 = vdwg.mxu0
    %3676 = vrot.lane.b32.xlu0 %v509, 40
    %v3677 = vpop.permute.xlu0 %3676
    %v3679 = vsel %vm511, %v3578, 0
    %v3682 = vsel %vm982, %v3677, 0
    %3684 = vmatprep.subr.bf16.mxu0 0
    %3685 = vmatpush1.bf16.msra.mxu0 %v3682
    %3686 = vmatprep.subr.bf16.mxu0 0
    %3687 = vmatpush1.bf16.msra.mxu0 0
    %3688 = vmatprep.subr.bf16.mxu0 0
    %3689 = vmatpush1.bf16.msra.mxu0 0
    %3690 = vmatprep.subr.bf16.mxu0 0
    %3691 = vmatpush1.bf16.msra.mxu0 0
    %3692 = vmatprep.subr.bf16.mxu0 0
    %3693 = vmatpush1.bf16.msra.mxu0 0
    %3694 = vmatprep.subr.bf16.mxu0 0
    %3695 = vmatpush1.bf16.msra.mxu0 0
    %3696 = vmatprep.subr.bf16.mxu0 0
    %3697 = vmatpush1.bf16.msra.mxu0 0
    %3698 = vmatprep.subr.bf16.mxu0 0
    %3699 = vmatpush1.bf16.msra.mxu0 0
    %3700 = vmatprep.subr.bf16.mxu0 0
    %3701 = vmatpush1.bf16.msra.mxu0 0
    %3702 = vmatprep.subr.bf16.mxu0 0
    %3703 = vmatpush1.bf16.msra.mxu0 0
    %3704 = vmatprep.subr.bf16.mxu0 0
    %3705 = vmatpush1.bf16.msra.mxu0 0
    %3706 = vmatprep.subr.bf16.mxu0 0
    %3707 = vmatpush1.bf16.msra.mxu0 0
    %3708 = vmatprep.subr.bf16.mxu0 0
    %3709 = vmatpush1.bf16.msra.mxu0 0
    %3710 = vmatprep.subr.bf16.mxu0 0
    %3711 = vmatpush1.bf16.msra.mxu0 0
    %3712 = vmatprep.subr.bf16.mxu0 0
    %3713 = vmatpush1.bf16.msra.mxu0 0
    %3714 = vmatprep.subr.bf16.mxu0 0
    %3715 = vmatpush1.bf16.msra.mxu0 0
    %3716 = vmatprep.mubr.bf16.mxu0 0
    %3717 = vmatmul.mubr.bf16.gmra.mrb[0].mxu0 %v3679
    %v3718 = vpop.f32.mrb[0].mxu0
    %v3719 = vadd.f32 0.0, %v3718
    %v3720 = vpop.f32.mrb[0].mxu0
    %v3721 = vpop.f32.mrb[0].mxu0
    %v3722 = vpop.f32.mrb[0].mxu0
    %3723 = vdwg.mxu0
    %3724 = vrot.lane.b32.xlu0 %v510, 40
    %v3725 = vpop.permute.xlu0 %3724
    %v3727 = vsel %vm511, %v3579, 0
    %v3730 = vsel %vm982, %v3725, 0
    %3732 = vmatprep.subr.bf16.mxu0 0
    %3733 = vmatpush1.bf16.msra.mxu0 %v3730
    %3734 = vmatprep.subr.bf16.mxu0 0
    %3735 = vmatpush1.bf16.msra.mxu0 0
    %3736 = vmatprep.subr.bf16.mxu0 0
    %3737 = vmatpush1.bf16.msra.mxu0 0
    %3738 = vmatprep.subr.bf16.mxu0 0
    %3739 = vmatpush1.bf16.msra.mxu0 0
    %3740 = vmatprep.subr.bf16.mxu0 0
    %3741 = vmatpush1.bf16.msra.mxu0 0
    %3742 = vmatprep.subr.bf16.mxu0 0
    %3743 = vmatpush1.bf16.msra.mxu0 0
    %3744 = vmatprep.subr.bf16.mxu0 0
    %3745 = vmatpush1.bf16.msra.mxu0 0
    %3746 = vmatprep.subr.bf16.mxu0 0
    %3747 = vmatpush1.bf16.msra.mxu0 0
    %3748 = vmatprep.subr.bf16.mxu0 0
    %3749 = vmatpush1.bf16.msra.mxu0 0
    %3750 = vmatprep.subr.bf16.mxu0 0
    %3751 = vmatpush1.bf16.msra.mxu0 0
    %3752 = vmatprep.subr.bf16.mxu0 0
    %3753 = vmatpush1.bf16.msra.mxu0 0
    %3754 = vmatprep.subr.bf16.mxu0 0
    %3755 = vmatpush1.bf16.msra.mxu0 0
    %3756 = vmatprep.subr.bf16.mxu0 0
    %3757 = vmatpush1.bf16.msra.mxu0 0
    %3758 = vmatprep.subr.bf16.mxu0 0
    %3759 = vmatpush1.bf16.msra.mxu0 0
    %3760 = vmatprep.subr.bf16.mxu0 0
    %3761 = vmatpush1.bf16.msra.mxu0 0
    %3762 = vmatprep.subr.bf16.mxu0 0
    %3763 = vmatpush1.bf16.msra.mxu0 0
    %3764 = vmatprep.mubr.bf16.mxu0 0
    %3765 = vmatmul.mubr.bf16.gmra.mrb[0].mxu0 %v3727
    %v3766 = vpop.f32.mrb[0].mxu0
    %v3767 = vadd.f32 0.0, %v3766
    %v3768 = vpop.f32.mrb[0].mxu0
    %v3769 = vpop.f32.mrb[0].mxu0
    %v3770 = vpop.f32.mrb[0].mxu0
    %3771 = vdwg.mxu0
    %3772 = vrot.lane.b32.xlu0 %v497, 72
    %v3773 = vpop.permute.xlu0 %3772
    %v3776 = vsel %vm876, %v3568, 0
    %3778 = vmatprep.subr.bf16.mxu0 0
    %3779 = vmatpush1.bf16.msra.mxu0 %v3773
    %3780 = vmatprep.subr.bf16.mxu0 0
    %3781 = vmatpush1.bf16.msra.mxu0 0
    %3782 = vmatprep.subr.bf16.mxu0 0
    %3783 = vmatpush1.bf16.msra.mxu0 0
    %3784 = vmatprep.subr.bf16.mxu0 0
    %3785 = vmatpush1.bf16.msra.mxu0 0
    %3786 = vmatprep.subr.bf16.mxu0 0
    %3787 = vmatpush1.bf16.msra.mxu0 0
    %3788 = vmatprep.subr.bf16.mxu0 0
    %3789 = vmatpush1.bf16.msra.mxu0 0
    %3790 = vmatprep.subr.bf16.mxu0 0
    %3791 = vmatpush1.bf16.msra.mxu0 0
    %3792 = vmatprep.subr.bf16.mxu0 0
    %3793 = vmatpush1.bf16.msra.mxu0 0
    %3794 = vmatprep.subr.bf16.mxu0 0
    %3795 = vmatpush1.bf16.msra.mxu0 0
    %3796 = vmatprep.subr.bf16.mxu0 0
    %3797 = vmatpush1.bf16.msra.mxu0 0
    %3798 = vmatprep.subr.bf16.mxu0 0
    %3799 = vmatpush1.bf16.msra.mxu0 0
    %3800 = vmatprep.subr.bf16.mxu0 0
    %3801 = vmatpush1.bf16.msra.mxu0 0
    %3802 = vmatprep.subr.bf16.mxu0 0
    %3803 = vmatpush1.bf16.msra.mxu0 0
    %3804 = vmatprep.subr.bf16.mxu0 0
    %3805 = vmatpush1.bf16.msra.mxu0 0
    %3806 = vmatprep.subr.bf16.mxu0 0
    %3807 = vmatpush1.bf16.msra.mxu0 0
    %3808 = vmatprep.subr.bf16.mxu0 0
    %3809 = vmatpush1.bf16.msra.mxu0 0
    %3810 = vmatprep.mubr.bf16.mxu0 0
    %3811 = vmatmul.mubr.bf16.gmra.mrb[0].mxu0 %v3776
    %v3812 = vpop.f32.mrb[0].mxu0
    %v3813 = vadd.f32 %v3623, %v3812
    %v3814 = vpop.f32.mrb[0].mxu0
    %v3815 = vpop.f32.mrb[0].mxu0
    %v3816 = vpop.f32.mrb[0].mxu0
    %3817 = vdwg.mxu0
    %3818 = vrot.lane.b32.xlu0 %v498, 72
    %v3819 = vpop.permute.xlu0 %3818
    %v3822 = vsel %vm876, %v3569, 0
    %3824 = vmatprep.subr.bf16.mxu0 0
    %3825 = vmatpush1.bf16.msra.mxu0 %v3819
    %3826 = vmatprep.subr.bf16.mxu0 0
    %3827 = vmatpush1.bf16.msra.mxu0 0
    %3828 = vmatprep.subr.bf16.mxu0 0
    %3829 = vmatpush1.bf16.msra.mxu0 0
    %3830 = vmatprep.subr.bf16.mxu0 0
    %3831 = vmatpush1.bf16.msra.mxu0 0
    %3832 = vmatprep.subr.bf16.mxu0 0
    %3833 = vmatpush1.bf16.msra.mxu0 0
    %3834 = vmatprep.subr.bf16.mxu0 0
    %3835 = vmatpush1.bf16.msra.mxu0 0
    %3836 = vmatprep.subr.bf16.mxu0 0
    %3837 = vmatpush1.bf16.msra.mxu0 0
    %3838 = vmatprep.subr.bf16.mxu0 0
    %3839 = vmatpush1.bf16.msra.mxu0 0
    %3840 = vmatprep.subr.bf16.mxu0 0
    %3841 = vmatpush1.bf16.msra.mxu0 0
    %3842 = vmatprep.subr.bf16.mxu0 0
    %3843 = vmatpush1.bf16.msra.mxu0 0
    %3844 = vmatprep.subr.bf16.mxu0 0
    %3845 = vmatpush1.bf16.msra.mxu0 0
    %3846 = vmatprep.subr.bf16.mxu0 0
    %3847 = vmatpush1.bf16.msra.mxu0 0
    %3848 = vmatprep.subr.bf16.mxu0 0
    %3849 = vmatpush1.bf16.msra.mxu0 0
    %3850 = vmatprep.subr.bf16.mxu0 0
    %3851 = vmatpush1.bf16.msra.mxu0 0
    %3852 = vmatprep.subr.bf16.mxu0 0
    %3853 = vmatpush1.bf16.msra.mxu0 0
    %3854 = vmatprep.subr.bf16.mxu0 0
    %3855 = vmatpush1.bf16.msra.mxu0 0
    %3856 = vmatprep.mubr.bf16.mxu0 0
    %3857 = vmatmul.mubr.bf16.gmra.mrb[0].mxu0 %v3822
    %v3858 = vpop.f32.mrb[0].mxu0
    %v3859 = vadd.f32 %v3671, %v3858
    %v3860 = vpop.f32.mrb[0].mxu0
    %v3861 = vpop.f32.mrb[0].mxu0
    %v3862 = vpop.f32.mrb[0].mxu0
    %3863 = vdwg.mxu0
    %3864 = vrot.lane.b32.xlu0 %v499, 72
    %v3865 = vpop.permute.xlu0 %3864
    %v3868 = vsel %vm876, %v3570, 0
    %3870 = vmatprep.subr.bf16.mxu0 0
    %3871 = vmatpush1.bf16.msra.mxu0 %v3865
    %3872 = vmatprep.subr.bf16.mxu0 0
    %3873 = vmatpush1.bf16.msra.mxu0 0
    %3874 = vmatprep.subr.bf16.mxu0 0
    %3875 = vmatpush1.bf16.msra.mxu0 0
    %3876 = vmatprep.subr.bf16.mxu0 0
    %3877 = vmatpush1.bf16.msra.mxu0 0
    %3878 = vmatprep.subr.bf16.mxu0 0
    %3879 = vmatpush1.bf16.msra.mxu0 0
    %3880 = vmatprep.subr.bf16.mxu0 0
    %3881 = vmatpush1.bf16.msra.mxu0 0
    %3882 = vmatprep.subr.bf16.mxu0 0
    %3883 = vmatpush1.bf16.msra.mxu0 0
    %3884 = vmatprep.subr.bf16.mxu0 0
    %3885 = vmatpush1.bf16.msra.mxu0 0
    %3886 = vmatprep.subr.bf16.mxu0 0
    %3887 = vmatpush1.bf16.msra.mxu0 0
    %3888 = vmatprep.subr.bf16.mxu0 0
    %3889 = vmatpush1.bf16.msra.mxu0 0
    %3890 = vmatprep.subr.bf16.mxu0 0
    %3891 = vmatpush1.bf16.msra.mxu0 0
    %3892 = vmatprep.subr.bf16.mxu0 0
    %3893 = vmatpush1.bf16.msra.mxu0 0
    %3894 = vmatprep.subr.bf16.mxu0 0
    %3895 = vmatpush1.bf16.msra.mxu0 0
    %3896 = vmatprep.subr.bf16.mxu0 0
    %3897 = vmatpush1.bf16.msra.mxu0 0
    %3898 = vmatprep.subr.bf16.mxu0 0
    %3899 = vmatpush1.bf16.msra.mxu0 0
    %3900 = vmatprep.subr.bf16.mxu0 0
    %3901 = vmatpush1.bf16.msra.mxu0 0
    %3902 = vmatprep.mubr.bf16.mxu0 0
    %3903 = vmatmul.mubr.bf16.gmra.mrb[0].mxu0 %v3868
    %v3904 = vpop.f32.mrb[0].mxu0
    %v3905 = vadd.f32 %v3719, %v3904
    %v3906 = vpop.f32.mrb[0].mxu0
    %v3907 = vpop.f32.mrb[0].mxu0
    %v3908 = vpop.f32.mrb[0].mxu0
    %3909 = vdwg.mxu0
    %3910 = vrot.lane.b32.xlu0 %v500, 72
    %v3911 = vpop.permute.xlu0 %3910
    %v3914 = vsel %vm876, %v3571, 0
    %3916 = vmatprep.subr.bf16.mxu0 0
    %3917 = vmatpush1.bf16.msra.mxu0 %v3911
    %3918 = vmatprep.subr.bf16.mxu0 0
    %3919 = vmatpush1.bf16.msra.mxu0 0
    %3920 = vmatprep.subr.bf16.mxu0 0
    %3921 = vmatpush1.bf16.msra.mxu0 0
    %3922 = vmatprep.subr.bf16.mxu0 0
    %3923 = vmatpush1.bf16.msra.mxu0 0
    %3924 = vmatprep.subr.bf16.mxu0 0
    %3925 = vmatpush1.bf16.msra.mxu0 0
    %3926 = vmatprep.subr.bf16.mxu0 0
    %3927 = vmatpush1.bf16.msra.mxu0 0
    %3928 = vmatprep.subr.bf16.mxu0 0
    %3929 = vmatpush1.bf16.msra.mxu0 0
    %3930 = vmatprep.subr.bf16.mxu0 0
    %3931 = vmatpush1.bf16.msra.mxu0 0
    %3932 = vmatprep.subr.bf16.mxu0 0
    %3933 = vmatpush1.bf16.msra.mxu0 0
    %3934 = vmatprep.subr.bf16.mxu0 0
    %3935 = vmatpush1.bf16.msra.mxu0 0
    %3936 = vmatprep.subr.bf16.mxu0 0
    %3937 = vmatpush1.bf16.msra.mxu0 0
    %3938 = vmatprep.subr.bf16.mxu0 0
    %3939 = vmatpush1.bf16.msra.mxu0 0
    %3940 = vmatprep.subr.bf16.mxu0 0
    %3941 = vmatpush1.bf16.msra.mxu0 0
    %3942 = vmatprep.subr.bf16.mxu0 0
    %3943 = vmatpush1.bf16.msra.mxu0 0
    %3944 = vmatprep.subr.bf16.mxu0 0
    %3945 = vmatpush1.bf16.msra.mxu0 0
    %3946 = vmatprep.subr.bf16.mxu0 0
    %3947 = vmatpush1.bf16.msra.mxu0 0
    %3948 = vmatprep.mubr.bf16.mxu0 0
    %3949 = vmatmul.mubr.bf16.gmra.mrb[0].mxu0 %v3914
    %v3950 = vpop.f32.mrb[0].mxu0
    %v3951 = vadd.f32 %v3767, %v3950
    %v3952 = vpop.f32.mrb[0].mxu0
    %v3953 = vpop.f32.mrb[0].mxu0
    %v3954 = vpop.f32.mrb[0].mxu0
    %3955 = vdwg.mxu0
    %v3956 = vpack.c.bf16 %v3859, %v3813
    %v3957 = vpack.c.bf16 %v3951, %v3905
    %3960 = vrot.lane.b32.xlu0 %v3956, 24
    %v3961 = vpop.permute.xlu0 %3960
    %3962 = vrot.lane.b32.xlu0 %v3957, 24
    %v3963 = vpop.permute.xlu0 %3962
    %vm3966 = vcmask 261312
    %3967 = vst.msk [vmem:[#allocation2] sm:$0xff] %vm3966, %v3961
    %3968 = vst.msk [vmem:[#allocation2 + $0x8] sm:$0xff] %vm3966, %v3963
    %v3969 = vld [vmem:[#allocation2] sm:$0xff]
    %v3970 = vld [vmem:[#allocation2 + $0x8] sm:$0xff]
    %v3971 = vld [vmem:[#allocation11] sm:$0xf]
    %v3972 = vld [vmem:[#allocation11 + $0x4] sm:$0xf]
    %v3973 = vld [vmem:[#allocation11 + $0x8] sm:$0xf]
    %v3974 = vld [vmem:[#allocation11 + $0xc] sm:$0xf]
    %v3979 = vunpack.c.l.b16 %v3971
    %v3980 = vunpack.c.l.b16 %v3972
    %v3981 = vunpack.c.l.b16 %v3973
    %v3982 = vunpack.c.l.b16 %v3974
    %v3983 = vpack.c.b16 %v3980, %v3979
    %v3984 = vpack.c.b16 %v3982, %v3981
    %v3988 = vsel %vm101, %v3969, 0
    %v3991 = vsel %vm101, %v3970, 0
    %3993 = vmatprep.subr.bf16.mxu0 0
    %3994 = vmatpush1.bf16.msra.mxu0 %v3983
    %3995 = vmatprep.subr.bf16.mxu0 0
    %3996 = vmatpush1.bf16.msra.mxu0 %v3984
    %3997 = vmatprep.subr.bf16.mxu0 0
    %3998 = vmatpush1.bf16.msra.mxu0 0
    %3999 = vmatprep.subr.bf16.mxu0 0
    %4000 = vmatpush1.bf16.msra.mxu0 0
    %4001 = vmatprep.subr.bf16.mxu0 0
    %4002 = vmatpush1.bf16.msra.mxu0 0
    %4003 = vmatprep.subr.bf16.mxu0 0
    %4004 = vmatpush1.bf16.msra.mxu0 0
    %4005 = vmatprep.subr.bf16.mxu0 0
    %4006 = vmatpush1.bf16.msra.mxu0 0
    %4007 = vmatprep.subr.bf16.mxu0 0
    %4008 = vmatpush1.bf16.msra.mxu0 0
    %4009 = vmatprep.subr.bf16.mxu0 0
    %4010 = vmatpush1.bf16.msra.mxu0 0
    %4011 = vmatprep.subr.bf16.mxu0 0
    %4012 = vmatpush1.bf16.msra.mxu0 0
    %4013 = vmatprep.subr.bf16.mxu0 0
    %4014 = vmatpush1.bf16.msra.mxu0 0
    %4015 = vmatprep.subr.bf16.mxu0 0
    %4016 = vmatpush1.bf16.msra.mxu0 0
    %4017 = vmatprep.subr.bf16.mxu0 0
    %4018 = vmatpush1.bf16.msra.mxu0 0
    %4019 = vmatprep.subr.bf16.mxu0 0
    %4020 = vmatpush1.bf16.msra.mxu0 0
    %4021 = vmatprep.subr.bf16.mxu0 0
    %4022 = vmatpush1.bf16.msra.mxu0 0
    %4023 = vmatprep.subr.bf16.mxu0 0
    %4024 = vmatpush1.bf16.msra.mxu0 0
    %4025 = vmatprep.mubr.bf16.mxu0 0
    %4026 = vmatmul.mubr.bf16.gmra.mrb[0].mxu0 %v3988
    %v4027 = vpop.f32.mrb[0].mxu0
    %v4028 = vadd.f32 0.0, %v4027
    %v4029 = vpop.f32.mrb[0].mxu0
    %v4030 = vpop.f32.mrb[0].mxu0
    %v4031 = vadd.f32 0.0, %v4030
    %v4032 = vpop.f32.mrb[0].mxu0
    %4033 = vmatprep.mubr.bf16.mxu0 0
    %4034 = vmatmul.mubr.bf16.gmra.mrb[0].mxu0 %v3991
    %v4035 = vpop.f32.mrb[0].mxu0
    %v4036 = vadd.f32 0.0, %v4035
    %v4037 = vpop.f32.mrb[0].mxu0
    %v4038 = vpop.f32.mrb[0].mxu0
    %v4039 = vadd.f32 0.0, %v4038
    %v4040 = vpop.f32.mrb[0].mxu0
    %4041 = vdwg.mxu0
    %4042 = vst.msk [vmem:[#allocation12] sm:$0xff] %vm101, %v4028
    %4043 = vst.msk [vmem:[#allocation12 + $0x8] sm:$0xff] %vm101, %v4031
    %4044 = vst.msk [vmem:[#allocation12 + $0x10] sm:$0xff] %vm101, %v4036
    %4045 = vst.msk [vmem:[#allocation12 + $0x18] sm:$0xff] %vm101, %v4039
    // Predicated region
    $region42: #{tpu_custom_call.1} parent=1 // pred_check
      _
    $region43: #{tpu_custom_call.1} parent=1 // pred_check_branch
      %4047 = sbr.rel (0) target = $region45
    $region44: #{tpu_custom_call.1} parent=1 // pred_region
      %s4049 = ssub.s32 512, 512
      %4050 = vsyncadd [#allocation5], %s4049
      %s4051 = sshll.u32 [#allocation12], 4
      %s4052 = int_to_ptr.vmem [resolvable:$true] %s4051
      %4057 = dma.vmem_to_hbm [thread:$0]  %s4052, 512, %s5, [#allocation5], 128, 128, 8
    $region45: #{tpu_custom_call.1} parent=1 // pred_fallthru
      _
    // Predicated region
    $region46: #{tpu_custom_call.1} parent=1 // pred_check
      _
    $region47: #{tpu_custom_call.1} parent=1 // pred_check_branch
      %4059 = sbr.rel (0) target = $region49
    $region48: #{tpu_custom_call.1} parent=1 // pred_region
      %4060 = dma.done [#allocation5], 512
    $region49: #{tpu_custom_call.1} parent=1 // pred_fallthru
      _
    %4061 = vsyncpa [#allocation4], 1
    %4062 = vsyncpa [#allocation7], 1
    %4063 = vsyncpa [#allocation10], 1
    %4064 = vsyncpa [#allocation5], 1

</llo_original>
